<compile_context>
chip_gen: v7x
topology: tpu7x:2x2x1
jax: 0.10.0
libtpu: 0.0.40
codegen_flags: <defaults>
</compile_context>

<pallas_src>
import functools

import jax
import jax.numpy as jnp
from jax.experimental import pallas as pl
from jax.experimental.pallas import tpu as pltpu

_NEG = -1e30  # stands in for -inf ("no edge") without generating NaNs/Infs


# --------------------------- Kernel A: projection -----------------------------
def _proj_kernel(x_ref, w_ref, b_ref, a_ref, hs_ref, hn_ref, sc_ref, *,
                 dim_out, mulhead, ds):
    """Fused projections + all-head attention scores for one row tile of nodes.

    The weight/bias are pre-packed so that the neighbor features come out in a
    per-head-contiguous layout with one constant "ones" column per head
    (relu(x@0 + 1) == 1), which Kernel B uses to get the softmax denominator
    from the same MXU matmul as the numerator.
    """
    h = jnp.dot(x_ref[...], w_ref[...], preferred_element_type=jnp.float32)
    h = jnp.maximum(h + b_ref[...], 0.0)                      # ReLU
    sc = jnp.dot(h, a_ref[...], preferred_element_type=jnp.float32)
    sc_ref[...] = jnp.where(sc > 0, sc, 0.2 * sc)             # LeakyReLU(0.2)
    hs_ref[...] = h[:, :dim_out].astype(hs_ref.dtype)
    dse = ds + 1
    for k in range(mulhead):                                  # head-major (H, N, ds+1)
        hn_ref[k] = h[:, dim_out + k * dse: dim_out + (k + 1) * dse].astype(hn_ref.dtype)


# ----------------------- Kernel B: flash-style aggregation --------------------
def _agg_kernel(cid_ref, ncs_ref,                              # scalar-prefetch (SMEM)
                hs_ref, sq_ref, hn_ref, nt_ref, adj_ref,
                scale_ref, offset_ref, mavg_ref,
                out_ref, m_sc, acc_sc, *, mulhead, ds):
    """Online-softmax attention aggregation over non-empty source-node tiles."""
    qi = pl.program_id(0)
    t = pl.program_id(1)
    nk = pl.num_programs(1)

    @pl.when(t == 0)
    def _init():
        m_sc[...] = jnp.full_like(m_sc, _NEG)
        acc_sc[...] = jnp.zeros_like(acc_sc)

    # Only column tiles that contain at least one edge for this row tile do work;
    # steps past ncs[qi] keep the previous block index (no DMA) and are skipped.
    @pl.when(t < ncs_ref[qi])
    def _update():
        adj = adj_ref[...].astype(jnp.float32)                 # (TQ, TK)
        edge = adj > 0.0
        sq = sq_ref[...]                                       # (TQ, H) self scores
        for k in range(mulhead):                               # static unroll
            e = sq[:, k:k + 1] + nt_ref[k:k + 1, :]            # e[i,j]=s_i+n_j (TQ,TK)
            e = jnp.where(edge, e, _NEG)                       # sparse-edge max semantics
            m_old = m_sc[k]                                    # (TQ, 1)
            m_new = jnp.maximum(m_old, jnp.max(e, axis=-1, keepdims=True))
            p = jnp.exp(e - m_new) * adj                       # <=1 on edges, 0 off edges
            alpha = jnp.exp(m_old - m_new)                     # (TQ, 1) rescale
            # hn_ref[k] is (TK, ds+1); its last column is 1.0 so the row-sum
            # (softmax denominator) falls out of the same MXU matmul.
            num = jnp.dot(p.astype(hn_ref.dtype), hn_ref[k],
                          preferred_element_type=jnp.float32)  # (TQ, ds+1)
            acc_sc[k] = alpha * acc_sc[k] + num
            m_sc[k] = m_new

    @pl.when(t == nk - 1)
    def _finalize():
        rets = []
        for k in range(mulhead):
            a = acc_sc[k]                                      # (TQ, ds+1)
            denom = jnp.maximum(a[:, ds:ds + 1], 1e-10)
            rets.append(a[:, :ds] / denom)                     # exact divide, 1x / row tile
        ret = jnp.concatenate(rets, axis=1)                    # (TQ, D) aggregated neigh
        fs = hs_ref[...]                                       # (TQ, D) self features
        mavg = mavg_ref[...]                                   # block-diag averaging (D, D)

        def layernorm(v, sc_row, off_row):                     # per-node/per-head LN
            mu = jnp.dot(v, mavg, preferred_element_type=jnp.float32)
            var = jnp.dot((v - mu) * (v - mu), mavg, preferred_element_type=jnp.float32)
            return (v - mu) * jax.lax.rsqrt(var + 1e-9) * sc_row + off_row

        fs_n = layernorm(fs, scale_ref[0:1, :], offset_ref[0:1, :])
        ret_n = layernorm(ret, scale_ref[1:2, :], offset_ref[1:2, :])
        out_ref[...] = ((fs_n + ret_n) * 0.5).astype(out_ref.dtype)


# ----------------------------------- wrapper ----------------------------------
@functools.partial(jax.jit, static_argnames=("mulhead", "tq", "tk", "use_bf16"))
def gat_forward(feat_in, adj, w0, b0, w1, b1, attention, scale, offset, *,
                mulhead, tq=128, tk=512, use_bf16=False):
    N, dim_in = feat_in.shape
    dim_out = w0.shape[1]
    assert dim_out % mulhead == 0
    assert tk % tq == 0
    ds = dim_out // mulhead
    dse = ds + 1
    d_ext = mulhead * dse
    f32 = jnp.float32
    stream_dt = jnp.bfloat16 if use_bf16 else f32
    stream_bytes = 2 if use_bf16 else 4

    w0, w1 = w0.astype(f32), w1.astype(f32)
    b0, b1 = b0.astype(f32), b1.astype(f32)
    attention = attention.astype(f32)

    # pad the node axis to a multiple of TK (zero adj rows/cols -> skipped tiles)
    npad = ((N + tk - 1) // tk) * tk
    if npad != N:
        feat_p = jnp.pad(feat_in, ((0, npad - N), (0, 0)))
        adj_p = jnp.pad(adj, ((0, npad - N), (0, npad - N)))
    else:
        feat_p, adj_p = feat_in, adj
    nq, nk = npad // tq, npad // tk
    na = npad // tk                                   # Kernel A row tile == TK

    # ---- adjacency tile occupancy -> scalar-prefetch tile schedule ----
    # TODO(synk): in a multi-layer model compute this (and the adj cast) once per
    #             graph and reuse it across layers.
    occ = (adj_p.reshape(nq, tq, nk, tk) > 0).any(axis=(1, 3))        # (nq, nk)
    ncs = occ.sum(axis=1).astype(jnp.int32)                           # (nq,)
    order = jnp.argsort(jnp.logical_not(occ).astype(jnp.int32), axis=1).astype(jnp.int32)
    t_idx = jnp.arange(nk, dtype=jnp.int32)[None, :]
    t_clamp = jnp.minimum(t_idx, jnp.maximum(ncs - 1, 0)[:, None])
    cid = jnp.take_along_axis(order, t_clamp, axis=1).reshape(-1).astype(jnp.int32)

    adj_s = adj_p.astype(stream_dt)

    # ---- host-side parameter packing (tiny, done once under jit) ----
    w1_ext = jnp.zeros((dim_in, d_ext), f32)
    b1_ext = jnp.zeros((d_ext,), f32)
    acat = jnp.zeros((dim_out + d_ext, 2 * mulhead), f32)
    for k in range(mulhead):
        w1_ext = w1_ext.at[:, k * dse:k * dse + ds].set(w1[:, k * ds:(k + 1) * ds])
        b1_ext = b1_ext.at[k * dse:k * dse + ds].set(b1[k * ds:(k + 1) * ds])
        b1_ext = b1_ext.at[k * dse + ds].set(1.0)          # ones column: relu(0+1)=1
        acat = acat.at[k * ds:(k + 1) * ds, k].set(attention[0, k])
        acat = acat.at[dim_out + k * dse:dim_out + k * dse + ds,
                       mulhead + k].set(attention[1, k])
    wcat = jnp.concatenate([w0, w1_ext], axis=1)                       # (Din, D + Dext)
    bcat = jnp.concatenate([b0, b1_ext]).reshape(1, dim_out + d_ext)

    head_id = jnp.arange(dim_out) // ds
    mavg = (head_id[:, None] == head_id[None, :]).astype(f32) / ds     # (D, D)
    scale_cat = scale.reshape(2, dim_out).astype(f32)
    offset_cat = offset.reshape(2, dim_out).astype(f32)

    # -------- Kernel A: projections + attention scores (row-tiled, parallel) --------
    h_self, hn3, sc_all = pl.pallas_call(
        functools.partial(_proj_kernel, dim_out=dim_out, mulhead=mulhead, ds=ds),
        grid=(na,),
        in_specs=[
            pl.BlockSpec((tk, dim_in), lambda i: (i, 0)),
            pl.BlockSpec((dim_in, dim_out + d_ext), lambda i: (0, 0)),
            pl.BlockSpec((1, dim_out + d_ext), lambda i: (0, 0)),
            pl.BlockSpec((dim_out + d_ext, 2 * mulhead), lambda i: (0, 0)),
        ],
        out_specs=(
            pl.BlockSpec((tk, dim_out), lambda i: (i, 0)),
            pl.BlockSpec((mulhead, tk, dse), lambda i: (0, i, 0)),
            pl.BlockSpec((tk, 2 * mulhead), lambda i: (i, 0)),
        ),
        out_shape=(
            jax.ShapeDtypeStruct((npad, dim_out), f32),
            jax.ShapeDtypeStruct((mulhead, npad, dse), stream_dt),
            jax.ShapeDtypeStruct((npad, 2 * mulhead), f32),
        ),
        compiler_params=pltpu.CompilerParams(dimension_semantics=("parallel",)),
        cost_estimate=pl.CostEstimate(
            flops=int(2 * npad * dim_in * (dim_out + d_ext)
                      + 2 * npad * (dim_out + d_ext) * 2 * mulhead),
            transcendentals=0,
            bytes_accessed=int(4 * npad * (dim_in + dim_out + 2 * mulhead)
                               + stream_bytes * npad * d_ext)),
    )(feat_p, wcat, bcat, acat)

    s_all = sc_all[:, :mulhead]                       # (Npad, H) self scores
    n_t = sc_all[:, mulhead:].T                       # (H, Npad) neigh scores, lane-dense

    # -------- Kernel B: flash-style aggregation + layernorm + merge --------
    feat_out = pl.pallas_call(
        functools.partial(_agg_kernel, mulhead=mulhead, ds=ds),
        grid_spec=pltpu.PrefetchScalarGridSpec(
            num_scalar_prefetch=2,
            grid=(nq, nk),
            in_specs=[
                pl.BlockSpec((tq, dim_out), lambda qi, t, cid, ncs: (qi, 0)),
                pl.BlockSpec((tq, mulhead), lambda qi, t, cid, ncs: (qi, 0)),
                pl.BlockSpec((mulhead, tk, dse),
                             lambda qi, t, cid, ncs: (0, cid[qi * nk + t], 0)),
                pl.BlockSpec((mulhead, tk),
                             lambda qi, t, cid, ncs: (0, cid[qi * nk + t])),
                pl.BlockSpec((tq, tk),
                             lambda qi, t, cid, ncs: (qi, cid[qi * nk + t])),
                pl.BlockSpec((2, dim_out), lambda qi, t, cid, ncs: (0, 0)),
                pl.BlockSpec((2, dim_out), lambda qi, t, cid, ncs: (0, 0)),
                pl.BlockSpec((dim_out, dim_out), lambda qi, t, cid, ncs: (0, 0)),
            ],
            out_specs=pl.BlockSpec((tq, dim_out), lambda qi, t, cid, ncs: (qi, 0)),
            scratch_shapes=[
                pltpu.VMEM((mulhead, tq, 1), f32),      # running max per head
                pltpu.VMEM((mulhead, tq, dse), f32),    # running [numerator | denom] per head
            ],
        ),
        out_shape=jax.ShapeDtypeStruct((npad, dim_out), f32),
        compiler_params=pltpu.CompilerParams(
            dimension_semantics=("parallel", "arbitrary")),
        cost_estimate=pl.CostEstimate(
            flops=int(2 * mulhead * npad * npad * dse + 8 * mulhead * npad * npad),
            transcendentals=int(mulhead * npad * npad),
            bytes_accessed=int(stream_bytes * npad * npad
                               + nq * npad * (stream_bytes * d_ext + 4 * mulhead)
                               + 8 * npad * dim_out)),
    )(cid, ncs, h_self, s_all, hn3, n_t, adj_s, scale_cat, offset_cat, mavg)

    # forward returns (feat_out, adj_norm, True, 0.0)
    return feat_out[:N], adj, True, 0.0


# ----------------------------- pure-JAX reference -----------------------------
def reference_forward(feat_in, adj, w0, b0, w1, b1, attention, scale, offset, mulhead):
    """Pure-JAX reference of the PyTorch semantics (dense adj, sparse-edge max)."""
    dim_out = w0.shape[1]
    ds = dim_out // mulhead
    h_self = jax.nn.relu(feat_in @ w0 + b0)
    h_neigh = jax.nn.relu(feat_in @ w1 + b1)
    outs = []
    for k in range(mulhead):
        fs = h_self[:, k * ds:(k + 1) * ds]
        fn = h_neigh[:, k * ds:(k + 1) * ds]
        s = jax.nn.leaky_relu(fs @ attention[0, k], 0.2)
        n = jax.nn.leaky_relu(fn @ attention[1, k], 0.2)
        e = s[:, None] + n[None, :]
        e_m = jnp.where(adj > 0, e, _NEG)
        m = e_m.max(-1, keepdims=True)
        p = jnp.exp(e_m - m) * adj
        denom = jnp.maximum(p.sum(-1, keepdims=True), 1e-10)
        ret = (p @ fn) / denom

        def ln(v, sc, off):
            mu = v.mean(1, keepdims=True)
            var = ((v - mu) ** 2).mean(1, keepdims=True)
            return (v - mu) * jax.lax.rsqrt(var + 1e-9) * sc + off

        outs.append((ln(fs, scale[0, k], offset[0, k]) +
                     ln(ret, scale[1, k], offset[1, k])) * 0.5)
    return jnp.concatenate(outs, axis=1)


if __name__ == "__main__":
    # N=200 (not a tile multiple) exercises padding, tile skipping and a 4x1 grid.
    N, dim_in, dim_out, mulhead = 200, 32, 32, 2
    ds = dim_out // mulhead

    key = jax.random.PRNGKey(0)
    k_feat, k_adj, k_w0, k_b0, k_w1, k_b1, k_att = jax.random.split(key, 7)

    feat_in = jax.random.normal(k_feat, (N, dim_in), dtype=jnp.float32)

    # dense "normalized" adjacency: sparse-ish random + self loops, row-normalized
    raw = jax.random.uniform(k_adj, (N, N), dtype=jnp.float32)
    mask = (raw > 0.9).astype(jnp.float32)
    adj = mask * raw + jnp.eye(N, dtype=jnp.float32)
    adj = adj / adj.sum(axis=1, keepdims=True)

    # deterministic synthetic parameters (shapes match GAT.__init__)
    lim_lin = (6.0 / (dim_in + dim_out)) ** 0.5
    w0 = jax.random.uniform(k_w0, (dim_in, dim_out), jnp.float32, -lim_lin, lim_lin)
    w1 = jax.random.uniform(k_w1, (dim_in, dim_out), jnp.float32, -lim_lin, lim_lin)
    b0 = jax.random.uniform(k_b0, (dim_out,), jnp.float32, -0.1, 0.1)
    b1 = jax.random.uniform(k_b1, (dim_out,), jnp.float32, -0.1, 0.1)
    lim_att = (6.0 / (mulhead + ds)) ** 0.5          # xavier_uniform_ on (2, mulhead, ds)
    attention = jax.random.uniform(k_att, (2, mulhead, ds), jnp.float32, -lim_att, lim_att)
    offset = jnp.zeros((2, mulhead, ds), jnp.float32)
    scale = jnp.ones((2, mulhead, ds), jnp.float32)

    ref = reference_forward(feat_in, adj, w0, b0, w1, b1, attention, scale, offset, mulhead)

    # --- exact path: f32-streamed adjacency/features ---
    feat_out, adj_out, is_normed, dropedge = gat_forward(
        feat_in, adj, w0, b0, w1, b1, attention, scale, offset, mulhead=mulhead)
    feat_out = jax.block_until_ready(feat_out)
    assert feat_out.shape == (N, dim_out)
    max_err = float(jnp.max(jnp.abs(feat_out - ref)))
    assert jnp.allclose(feat_out, ref, rtol=2e-3, atol=2e-3), \
        f"f32 path mismatch vs reference, max abs err={max_err}"

    # --- bf16-streamed path (halves dominant N^2 HBM traffic; looser tolerance) ---
    feat_bf, _, _, _ = gat_forward(
        feat_in, adj, w0, b0, w1, b1, attention, scale, offset,
        mulhead=mulhead, use_bf16=True)
    feat_bf = jax.block_until_ready(feat_bf)
    max_err_bf = float(jnp.max(jnp.abs(feat_bf - ref)))
    assert jnp.allclose(feat_bf, ref, rtol=5e-2, atol=5e-2), \
        f"bf16 path mismatch vs reference, max abs err={max_err_bf}"

    print("KERNEL_OK")
</pallas_src>

<mosaic_0001>
module attributes {stable_mosaic.version = 11 : i64} {
  func.func @_proj_kernel(%arg0: i32, %arg1: memref<512x32xf32, #tpu.memory_space<vmem>>, %arg2: memref<32x66xf32, #tpu.memory_space<vmem>>, %arg3: memref<1x66xf32, #tpu.memory_space<vmem>>, %arg4: memref<66x4xf32, #tpu.memory_space<vmem>>, %arg5: memref<512x32xf32, #tpu.memory_space<vmem>>, %arg6: memref<2x512x17xf32, #tpu.memory_space<vmem>>, %arg7: memref<512x4xf32, #tpu.memory_space<vmem>>) attributes {dimension_semantics = [#tpu.dimension_semantics<parallel>], iteration_bounds = array<i64: 1>, scalar_prefetch = 0 : i64, scratch_operands = 0 : i64, tpu.core_type = #tpu.core_type<tc>, window_params = [{transform_indices = @transform_0, window_bounds = array<i64: 512, 32>}, {pipeline_mode = #tpu.pipeline_mode<synchronous>, transform_indices = @transform_1, window_bounds = array<i64: 32, 66>}, {pipeline_mode = #tpu.pipeline_mode<synchronous>, transform_indices = @transform_2, window_bounds = array<i64: 1, 66>}, {pipeline_mode = #tpu.pipeline_mode<synchronous>, transform_indices = @transform_3, window_bounds = array<i64: 66, 4>}, {transform_indices = @transform_4, window_bounds = array<i64: 512, 32>}, {transform_indices = @transform_5, window_bounds = array<i64: 2, 512, 17>}, {transform_indices = @transform_6, window_bounds = array<i64: 512, 4>}]} {
    %c0 = arith.constant 0 : index
    %c0_0 = arith.constant 0 : index
    %0 = vector.load %arg1[%c0, %c0_0] : memref<512x32xf32, #tpu.memory_space<vmem>>, vector<512x32xf32>
    %c0_1 = arith.constant 0 : index
    %c0_2 = arith.constant 0 : index
    %1 = vector.load %arg2[%c0_1, %c0_2] : memref<32x66xf32, #tpu.memory_space<vmem>>, vector<32x66xf32>
    %cst = arith.constant dense<0.000000e+00> : vector<512x66xf32>
    %2 = tpu.matmul %0, %1, %cst {dimension_numbers = #tpu.dot_dimension_numbers<[1], [0], [0], [1], [0, 0, 1, 1], [], []>} : vector<512x32xf32>, vector<32x66xf32>, vector<512x66xf32> -> vector<512x66xf32>
    %c0_3 = arith.constant 0 : index
    %c0_4 = arith.constant 0 : index
    %3 = vector.load %arg3[%c0_3, %c0_4] : memref<1x66xf32, #tpu.memory_space<vmem>>, vector<1x66xf32>
    %4 = vector.broadcast %3 : vector<1x66xf32> to vector<512x66xf32>
    %5 = arith.addf %2, %4 : vector<512x66xf32>
    %cst_5 = arith.constant 0.000000e+00 : f32
    %6 = vector.broadcast %cst_5 : f32 to vector<512x66xf32>
    %7 = arith.maximumf %5, %6 : vector<512x66xf32>
    %c0_6 = arith.constant 0 : index
    %c0_7 = arith.constant 0 : index
    %8 = vector.load %arg4[%c0_6, %c0_7] : memref<66x4xf32, #tpu.memory_space<vmem>>, vector<66x4xf32>
    %cst_8 = arith.constant dense<0.000000e+00> : vector<512x4xf32>
    %9 = tpu.matmul %7, %8, %cst_8 {dimension_numbers = #tpu.dot_dimension_numbers<[1], [0], [0], [1], [0, 0, 1, 1], [], []>} : vector<512x66xf32>, vector<66x4xf32>, vector<512x4xf32> -> vector<512x4xf32>
    %cst_9 = arith.constant 0.000000e+00 : f32
    %10 = vector.broadcast %cst_9 : f32 to vector<512x4xf32>
    %11 = arith.cmpf ogt, %9, %10 : vector<512x4xf32>
    %cst_10 = arith.constant 2.000000e-01 : f32
    %12 = vector.broadcast %cst_10 : f32 to vector<512x4xf32>
    %13 = arith.mulf %12, %9 : vector<512x4xf32>
    %14 = arith.select %11, %9, %13 : vector<512x4xi1>, vector<512x4xf32>
    %c0_11 = arith.constant 0 : index
    %c0_12 = arith.constant 0 : index
    %15 = vector.load %arg7[%c0_11, %c0_12] : memref<512x4xf32, #tpu.memory_space<vmem>>, vector<512x4xf32>
    tpu.vector_store %arg7[%c0_11, %c0_12], %14 {strides = array<i32>} : memref<512x4xf32, #tpu.memory_space<vmem>>, vector<512x4xf32>,
    %16 = vector.extract_strided_slice %7 {offsets = [0, 0], sizes = [512, 32], strides = [1, 1]} : vector<512x66xf32> to vector<512x32xf32>
    %c0_13 = arith.constant 0 : index
    %c0_14 = arith.constant 0 : index
    %17 = vector.load %arg5[%c0_13, %c0_14] : memref<512x32xf32, #tpu.memory_space<vmem>>, vector<512x32xf32>
    tpu.vector_store %arg5[%c0_13, %c0_14], %16 {strides = array<i32>} : memref<512x32xf32, #tpu.memory_space<vmem>>, vector<512x32xf32>,
    %18 = vector.extract_strided_slice %7 {offsets = [0, 32], sizes = [512, 17], strides = [1, 1]} : vector<512x66xf32> to vector<512x17xf32>
    %c0_15 = arith.constant 0 : index
    %c0_16 = arith.constant 0 : index
    %c0_17 = arith.constant 0 : index
    %19 = vector.load %arg6[%c0_15, %c0_16, %c0_17] : memref<2x512x17xf32, #tpu.memory_space<vmem>>, vector<1x512x17xf32>
    %20 = vector.shape_cast %19 : vector<1x512x17xf32> to vector<512x17xf32>
    %21 = vector.shape_cast %18 : vector<512x17xf32> to vector<1x512x17xf32>
    tpu.vector_store %arg6[%c0_15, %c0_16, %c0_17], %21 {strides = array<i32>} : memref<2x512x17xf32, #tpu.memory_space<vmem>>, vector<1x512x17xf32>,
    %22 = vector.extract_strided_slice %7 {offsets = [0, 49], sizes = [512, 17], strides = [1, 1]} : vector<512x66xf32> to vector<512x17xf32>
    %c1 = arith.constant 1 : index
    %c0_18 = arith.constant 0 : index
    %c0_19 = arith.constant 0 : index
    %23 = vector.load %arg6[%c1, %c0_18, %c0_19] : memref<2x512x17xf32, #tpu.memory_space<vmem>>, vector<1x512x17xf32>
    %24 = vector.shape_cast %23 : vector<1x512x17xf32> to vector<512x17xf32>
    %25 = vector.shape_cast %22 : vector<512x17xf32> to vector<1x512x17xf32>
    tpu.vector_store %arg6[%c1, %c0_18, %c0_19], %25 {strides = array<i32>} : memref<2x512x17xf32, #tpu.memory_space<vmem>>, vector<1x512x17xf32>,
    return
  }
  func.func @transform_0(%arg0: i32) -> (i32, i32) {
    %c0_i32 = arith.constant 0 : i32
    %c0_i32_0 = arith.constant 0 : i32
    return %arg0, %c0_i32 : i32, i32
  }
  func.func @transform_1(%arg0: i32) -> (i32, i32) {
    %c0_i32 = arith.constant 0 : i32
    %c0_i32_0 = arith.constant 0 : i32
    %c0_i32_1 = arith.constant 0 : i32
    return %c0_i32, %c0_i32_0 : i32, i32
  }
  func.func @transform_2(%arg0: i32) -> (i32, i32) {
    %c0_i32 = arith.constant 0 : i32
    %c0_i32_0 = arith.constant 0 : i32
    %c0_i32_1 = arith.constant 0 : i32
    return %c0_i32, %c0_i32_0 : i32, i32
  }
  func.func @transform_3(%arg0: i32) -> (i32, i32) {
    %c0_i32 = arith.constant 0 : i32
    %c0_i32_0 = arith.constant 0 : i32
    %c0_i32_1 = arith.constant 0 : i32
    return %c0_i32, %c0_i32_0 : i32, i32
  }
  func.func @transform_4(%arg0: i32) -> (i32, i32) {
    %c0_i32 = arith.constant 0 : i32
    %c0_i32_0 = arith.constant 0 : i32
    return %arg0, %c0_i32 : i32, i32
  }
  func.func @transform_5(%arg0: i32) -> (i32, i32, i32) {
    %c0_i32 = arith.constant 0 : i32
    %c0_i32_0 = arith.constant 0 : i32
    %c0_i32_1 = arith.constant 0 : i32
    return %c0_i32, %arg0, %c0_i32_0 : i32, i32, i32
  }
  func.func @transform_6(%arg0: i32) -> (i32, i32) {
    %c0_i32 = arith.constant 0 : i32
    %c0_i32_0 = arith.constant 0 : i32
    return %arg0, %c0_i32 : i32, i32
  }
}

module attributes {stable_mosaic.version = 11 : i64} {
  func.func @_agg_kernel(%arg0: i32, %arg1: i32, %arg2: memref<4xi32, #tpu.memory_space<smem>>, %arg3: memref<4xi32, #tpu.memory_space<smem>>, %arg4: memref<128x32xf32, #tpu.memory_space<vmem>>, %arg5: memref<128x2xf32, #tpu.memory_space<vmem>>, %arg6: memref<2x512x17xf32, #tpu.memory_space<vmem>>, %arg7: memref<2x512xf32, #tpu.memory_space<vmem>>, %arg8: memref<128x512xf32, #tpu.memory_space<vmem>>, %arg9: memref<2x32xf32, #tpu.memory_space<vmem>>, %arg10: memref<2x32xf32, #tpu.memory_space<vmem>>, %arg11: memref<32x32xf32, #tpu.memory_space<vmem>>, %arg12: memref<128x32xf32, #tpu.memory_space<vmem>>, %arg13: memref<2x128x1xf32, #tpu.memory_space<vmem>>, %arg14: memref<2x128x17xf32, #tpu.memory_space<vmem>>) attributes {dimension_semantics = [#tpu.dimension_semantics<parallel>, #tpu.dimension_semantics<arbitrary>], iteration_bounds = array<i64: 4, 1>, scalar_prefetch = 2 : i64, scratch_operands = 2 : i64, tpu.core_type = #tpu.core_type<tc>, window_params = [{transform_indices = @transform_0, window_bounds = array<i64: 128, 32>}, {transform_indices = @transform_1, window_bounds = array<i64: 128, 2>}, {transform_indices = @transform_2, window_bounds = array<i64: 2, 512, 17>}, {transform_indices = @transform_3, window_bounds = array<i64: 2, 512>}, {transform_indices = @transform_4, window_bounds = array<i64: 128, 512>}, {pipeline_mode = #tpu.pipeline_mode<synchronous>, transform_indices = @transform_5, window_bounds = array<i64: 2, 32>}, {pipeline_mode = #tpu.pipeline_mode<synchronous>, transform_indices = @transform_6, window_bounds = array<i64: 2, 32>}, {pipeline_mode = #tpu.pipeline_mode<synchronous>, transform_indices = @transform_7, window_bounds = array<i64: 32, 32>}, {transform_indices = @transform_8, window_bounds = array<i64: 128, 32>}]} {
    %c0_i32 = arith.constant 0 : i32
    %0 = arith.cmpi eq, %arg1, %c0_i32 : i32
    %1 = arith.extui %0 : i1 to i32
    %c0_i32_0 = arith.constant 0 : i32
    %2 = arith.cmpi ne, %1, %c0_i32_0 : i32
    scf.if %2 {
      %cst = arith.constant -1.000000e+30 : f32
      %11 = vector.broadcast %cst : f32 to vector<2x128x1xf32>
      %c0 = arith.constant 0 : index
      %c0_4 = arith.constant 0 : index
      %c0_5 = arith.constant 0 : index
      %12 = vector.load %arg13[%c0, %c0_4, %c0_5] : memref<2x128x1xf32, #tpu.memory_space<vmem>>, vector<2x128x1xf32>
      tpu.vector_store %arg13[%c0, %c0_4, %c0_5], %11 {strides = array<i32>} : memref<2x128x1xf32, #tpu.memory_space<vmem>>, vector<2x128x1xf32>,
      %cst_6 = arith.constant 0.000000e+00 : f32
      %13 = vector.broadcast %cst_6 : f32 to vector<2x128x17xf32>
      %c0_7 = arith.constant 0 : index
      %c0_8 = arith.constant 0 : index
      %c0_9 = arith.constant 0 : index
      %14 = vector.load %arg14[%c0_7, %c0_8, %c0_9] : memref<2x128x17xf32, #tpu.memory_space<vmem>>, vector<2x128x17xf32>
      tpu.vector_store %arg14[%c0_7, %c0_8, %c0_9], %13 {strides = array<i32>} : memref<2x128x17xf32, #tpu.memory_space<vmem>>, vector<2x128x17xf32>,
    } else {
    }
    %3 = arith.index_cast %arg0 : i32 to index
    %4 = memref.load %arg3[%3] : memref<4xi32, #tpu.memory_space<smem>>
    %5 = arith.cmpi slt, %arg1, %4 : i32
    %6 = arith.extui %5 : i1 to i32
    %c0_i32_1 = arith.constant 0 : i32
    %7 = arith.cmpi ne, %6, %c0_i32_1 : i32
    scf.if %7 {
      %c0 = arith.constant 0 : index
      %c0_4 = arith.constant 0 : index
      %11 = vector.load %arg8[%c0, %c0_4] : memref<128x512xf32, #tpu.memory_space<vmem>>, vector<128x512xf32>
      %cst = arith.constant 0.000000e+00 : f32
      %12 = vector.broadcast %cst : f32 to vector<128x512xf32>
      %13 = arith.cmpf ogt, %11, %12 : vector<128x512xf32>
      %c0_5 = arith.constant 0 : index
      %c0_6 = arith.constant 0 : index
      %14 = vector.load %arg5[%c0_5, %c0_6] : memref<128x2xf32, #tpu.memory_space<vmem>>, vector<128x2xf32>
      %15 = vector.extract_strided_slice %14 {offsets = [0, 0], sizes = [128, 1], strides = [1, 1]} : vector<128x2xf32> to vector<128x1xf32>
      %c0_7 = arith.constant 0 : index
      %c0_8 = arith.constant 0 : index
      %16 = vector.load %arg7[%c0_7, %c0_8] : memref<2x512xf32, #tpu.memory_space<vmem>>, vector<1x512xf32>
      %17 = vector.broadcast %15 : vector<128x1xf32> to vector<128x512xf32>
      %18 = vector.broadcast %16 : vector<1x512xf32> to vector<128x512xf32>
      %19 = arith.addf %17, %18 : vector<128x512xf32>
      %cst_9 = arith.constant -1.000000e+30 : f32
      %20 = vector.broadcast %cst_9 : f32 to vector<128x512xf32>
      %21 = arith.select %13, %19, %20 : vector<128x512xi1>, vector<128x512xf32>
      %c0_10 = arith.constant 0 : index
      %c0_11 = arith.constant 0 : index
      %c0_12 = arith.constant 0 : index
      %22 = vector.load %arg13[%c0_10, %c0_11, %c0_12] : memref<2x128x1xf32, #tpu.memory_space<vmem>>, vector<1x128x1xf32>
      %23 = vector.shape_cast %22 : vector<1x128x1xf32> to vector<128x1xf32>
      %cst_13 = arith.constant dense<0xFF800000> : vector<128xf32>
      %24 = vector.multi_reduction <maximumf>, %21, %cst_13 [1] : vector<128x512xf32> to vector<128xf32>
      %25 = vector.shape_cast %24 : vector<128xf32> to vector<128x1xf32>
      %26 = arith.maximumf %23, %25 : vector<128x1xf32>
      %27 = vector.broadcast %26 : vector<128x1xf32> to vector<128x512xf32>
      %28 = arith.subf %21, %27 : vector<128x512xf32>
      %29 = math.exp %28 : vector<128x512xf32>
      %30 = arith.mulf %29, %11 : vector<128x512xf32>
      %31 = arith.subf %23, %26 : vector<128x1xf32>
      %32 = math.exp %31 : vector<128x1xf32>
      %c0_14 = arith.constant 0 : index
      %c0_15 = arith.constant 0 : index
      %c0_16 = arith.constant 0 : index
      %33 = vector.load %arg6[%c0_14, %c0_15, %c0_16] : memref<2x512x17xf32, #tpu.memory_space<vmem>>, vector<1x512x17xf32>
      %34 = vector.shape_cast %33 : vector<1x512x17xf32> to vector<512x17xf32>
      %cst_17 = arith.constant dense<0.000000e+00> : vector<128x17xf32>
      %35 = tpu.matmul %30, %34, %cst_17 {dimension_numbers = #tpu.dot_dimension_numbers<[1], [0], [0], [1], [0, 0, 1, 1], [], []>} : vector<128x512xf32>, vector<512x17xf32>, vector<128x17xf32> -> vector<128x17xf32>
      %c0_18 = arith.constant 0 : index
      %c0_19 = arith.constant 0 : index
      %c0_20 = arith.constant 0 : index
      %36 = vector.load %arg14[%c0_18, %c0_19, %c0_20] : memref<2x128x17xf32, #tpu.memory_space<vmem>>, vector<1x128x17xf32>
      %37 = vector.shape_cast %36 : vector<1x128x17xf32> to vector<128x17xf32>
      %38 = vector.broadcast %32 : vector<128x1xf32> to vector<128x17xf32>
      %39 = arith.mulf %38, %37 : vector<128x17xf32>
      %40 = arith.addf %39, %35 : vector<128x17xf32>
      %c0_21 = arith.constant 0 : index
      %c0_22 = arith.constant 0 : index
      %c0_23 = arith.constant 0 : index
      %41 = vector.load %arg14[%c0_21, %c0_22, %c0_23] : memref<2x128x17xf32, #tpu.memory_space<vmem>>, vector<1x128x17xf32>
      %42 = vector.shape_cast %41 : vector<1x128x17xf32> to vector<128x17xf32>
      %43 = vector.shape_cast %40 : vector<128x17xf32> to vector<1x128x17xf32>
      tpu.vector_store %arg14[%c0_21, %c0_22, %c0_23], %43 {strides = array<i32>} : memref<2x128x17xf32, #tpu.memory_space<vmem>>, vector<1x128x17xf32>,
      %c0_24 = arith.constant 0 : index
      %c0_25 = arith.constant 0 : index
      %c0_26 = arith.constant 0 : index
      %44 = vector.load %arg13[%c0_24, %c0_25, %c0_26] : memref<2x128x1xf32, #tpu.memory_space<vmem>>, vector<1x128x1xf32>
      %45 = vector.shape_cast %44 : vector<1x128x1xf32> to vector<128x1xf32>
      %46 = vector.shape_cast %26 : vector<128x1xf32> to vector<1x128x1xf32>
      tpu.vector_store %arg13[%c0_24, %c0_25, %c0_26], %46 {strides = array<i32>} : memref<2x128x1xf32, #tpu.memory_space<vmem>>, vector<1x128x1xf32>,
      %47 = vector.extract_strided_slice %14 {offsets = [0, 1], sizes = [128, 1], strides = [1, 1]} : vector<128x2xf32> to vector<128x1xf32>
      %c1 = arith.constant 1 : index
      %c0_27 = arith.constant 0 : index
      %48 = vector.load %arg7[%c1, %c0_27] : memref<2x512xf32, #tpu.memory_space<vmem>>, vector<1x512xf32>
      %49 = vector.broadcast %47 : vector<128x1xf32> to vector<128x512xf32>
      %50 = vector.broadcast %48 : vector<1x512xf32> to vector<128x512xf32>
      %51 = arith.addf %49, %50 : vector<128x512xf32>
      %cst_28 = arith.constant -1.000000e+30 : f32
      %52 = vector.broadcast %cst_28 : f32 to vector<128x512xf32>
      %53 = arith.select %13, %51, %52 : vector<128x512xi1>, vector<128x512xf32>
      %c1_29 = arith.constant 1 : index
      %c0_30 = arith.constant 0 : index
      %c0_31 = arith.constant 0 : index
      %54 = vector.load %arg13[%c1_29, %c0_30, %c0_31] : memref<2x128x1xf32, #tpu.memory_space<vmem>>, vector<1x128x1xf32>
      %55 = vector.shape_cast %54 : vector<1x128x1xf32> to vector<128x1xf32>
      %cst_32 = arith.constant dense<0xFF800000> : vector<128xf32>
      %56 = vector.multi_reduction <maximumf>, %53, %cst_32 [1] : vector<128x512xf32> to vector<128xf32>
      %57 = vector.shape_cast %56 : vector<128xf32> to vector<128x1xf32>
      %58 = arith.maximumf %55, %57 : vector<128x1xf32>
      %59 = vector.broadcast %58 : vector<128x1xf32> to vector<128x512xf32>
      %60 = arith.subf %53, %59 : vector<128x512xf32>
      %61 = math.exp %60 : vector<128x512xf32>
      %62 = arith.mulf %61, %11 : vector<128x512xf32>
      %63 = arith.subf %55, %58 : vector<128x1xf32>
      %64 = math.exp %63 : vector<128x1xf32>
      %c1_33 = arith.constant 1 : index
      %c0_34 = arith.constant 0 : index
      %c0_35 = arith.constant 0 : index
      %65 = vector.load %arg6[%c1_33, %c0_34, %c0_35] : memref<2x512x17xf32, #tpu.memory_space<vmem>>, vector<1x512x17xf32>
      %66 = vector.shape_cast %65 : vector<1x512x17xf32> to vector<512x17xf32>
      %cst_36 = arith.constant dense<0.000000e+00> : vector<128x17xf32>
      %67 = tpu.matmul %62, %66, %cst_36 {dimension_numbers = #tpu.dot_dimension_numbers<[1], [0], [0], [1], [0, 0, 1, 1], [], []>} : vector<128x512xf32>, vector<512x17xf32>, vector<128x17xf32> -> vector<128x17xf32>
      %c1_37 = arith.constant 1 : index
      %c0_38 = arith.constant 0 : index
      %c0_39 = arith.constant 0 : index
      %68 = vector.load %arg14[%c1_37, %c0_38, %c0_39] : memref<2x128x17xf32, #tpu.memory_space<vmem>>, vector<1x128x17xf32>
      %69 = vector.shape_cast %68 : vector<1x128x17xf32> to vector<128x17xf32>
      %70 = vector.broadcast %64 : vector<128x1xf32> to vector<128x17xf32>
      %71 = arith.mulf %70, %69 : vector<128x17xf32>
      %72 = arith.addf %71, %67 : vector<128x17xf32>
      %c1_40 = arith.constant 1 : index
      %c0_41 = arith.constant 0 : index
      %c0_42 = arith.constant 0 : index
      %73 = vector.load %arg14[%c1_40, %c0_41, %c0_42] : memref<2x128x17xf32, #tpu.memory_space<vmem>>, vector<1x128x17xf32>
      %74 = vector.shape_cast %73 : vector<1x128x17xf32> to vector<128x17xf32>
      %75 = vector.shape_cast %72 : vector<128x17xf32> to vector<1x128x17xf32>
      tpu.vector_store %arg14[%c1_40, %c0_41, %c0_42], %75 {strides = array<i32>} : memref<2x128x17xf32, #tpu.memory_space<vmem>>, vector<1x128x17xf32>,
      %c1_43 = arith.constant 1 : index
      %c0_44 = arith.constant 0 : index
      %c0_45 = arith.constant 0 : index
      %76 = vector.load %arg13[%c1_43, %c0_44, %c0_45] : memref<2x128x1xf32, #tpu.memory_space<vmem>>, vector<1x128x1xf32>
      %77 = vector.shape_cast %76 : vector<1x128x1xf32> to vector<128x1xf32>
      %78 = vector.shape_cast %58 : vector<128x1xf32> to vector<1x128x1xf32>
      tpu.vector_store %arg13[%c1_43, %c0_44, %c0_45], %78 {strides = array<i32>} : memref<2x128x1xf32, #tpu.memory_space<vmem>>, vector<1x128x1xf32>,
    } else {
    }
    %c0_i32_2 = arith.constant 0 : i32
    %8 = arith.cmpi eq, %arg1, %c0_i32_2 : i32
    %9 = arith.extui %8 : i1 to i32
    %c0_i32_3 = arith.constant 0 : i32
    %10 = arith.cmpi ne, %9, %c0_i32_3 : i32
    scf.if %10 {
      %c0 = arith.constant 0 : index
      %c0_4 = arith.constant 0 : index
      %c0_5 = arith.constant 0 : index
      %11 = vector.load %arg14[%c0, %c0_4, %c0_5] : memref<2x128x17xf32, #tpu.memory_space<vmem>>, vector<1x128x17xf32>
      %12 = vector.shape_cast %11 : vector<1x128x17xf32> to vector<128x17xf32>
      %13 = vector.extract_strided_slice %12 {offsets = [0, 16], sizes = [128, 1], strides = [1, 1]} : vector<128x17xf32> to vector<128x1xf32>
      %cst = arith.constant 1.000000e-10 : f32
      %14 = vector.broadcast %cst : f32 to vector<128x1xf32>
      %15 = arith.maximumf %13, %14 : vector<128x1xf32>
      %16 = vector.extract_strided_slice %12 {offsets = [0, 0], sizes = [128, 16], strides = [1, 1]} : vector<128x17xf32> to vector<128x16xf32>
      %17 = vector.broadcast %15 : vector<128x1xf32> to vector<128x16xf32>
      %18 = arith.divf %16, %17 : vector<128x16xf32>
      %c1 = arith.constant 1 : index
      %c0_6 = arith.constant 0 : index
      %c0_7 = arith.constant 0 : index
      %19 = vector.load %arg14[%c1, %c0_6, %c0_7] : memref<2x128x17xf32, #tpu.memory_space<vmem>>, vector<1x128x17xf32>
      %20 = vector.shape_cast %19 : vector<1x128x17xf32> to vector<128x17xf32>
      %21 = vector.extract_strided_slice %20 {offsets = [0, 16], sizes = [128, 1], strides = [1, 1]} : vector<128x17xf32> to vector<128x1xf32>
      %cst_8 = arith.constant 1.000000e-10 : f32
      %22 = vector.broadcast %cst_8 : f32 to vector<128x1xf32>
      %23 = arith.maximumf %21, %22 : vector<128x1xf32>
      %24 = vector.extract_strided_slice %20 {offsets = [0, 0], sizes = [128, 16], strides = [1, 1]} : vector<128x17xf32> to vector<128x16xf32>
      %25 = vector.broadcast %23 : vector<128x1xf32> to vector<128x16xf32>
      %26 = arith.divf %24, %25 : vector<128x16xf32>
      %27 = tpu.concatenate %18, %26 in 1 : vector<128x16xf32>, vector<128x16xf32> -> vector<128x32xf32>
      %c0_9 = arith.constant 0 : index
      %c0_10 = arith.constant 0 : index
      %28 = vector.load %arg4[%c0_9, %c0_10] : memref<128x32xf32, #tpu.memory_space<vmem>>, vector<128x32xf32>
      %c0_11 = arith.constant 0 : index
      %c0_12 = arith.constant 0 : index
      %29 = vector.load %arg11[%c0_11, %c0_12] : memref<32x32xf32, #tpu.memory_space<vmem>>, vector<32x32xf32>
      %c0_13 = arith.constant 0 : index
      %c0_14 = arith.constant 0 : index
      %30 = vector.load %arg9[%c0_13, %c0_14] : memref<2x32xf32, #tpu.memory_space<vmem>>, vector<1x32xf32>
      %c0_15 = arith.constant 0 : index
      %c0_16 = arith.constant 0 : index
      %31 = vector.load %arg10[%c0_15, %c0_16] : memref<2x32xf32, #tpu.memory_space<vmem>>, vector<1x32xf32>
      %cst_17 = arith.constant dense<0.000000e+00> : vector<128x32xf32>
      %32 = tpu.matmul %28, %29, %cst_17 {dimension_numbers = #tpu.dot_dimension_numbers<[1], [0], [0], [1], [0, 0, 1, 1], [], []>} : vector<128x32xf32>, vector<32x32xf32>, vector<128x32xf32> -> vector<128x32xf32>
      %33 = arith.subf %28, %32 : vector<128x32xf32>
      %34 = arith.subf %28, %32 : vector<128x32xf32>
      %35 = arith.mulf %33, %34 : vector<128x32xf32>
      %cst_18 = arith.constant dense<0.000000e+00> : vector<128x32xf32>
      %36 = tpu.matmul %35, %29, %cst_18 {dimension_numbers = #tpu.dot_dimension_numbers<[1], [0], [0], [1], [0, 0, 1, 1], [], []>} : vector<128x32xf32>, vector<32x32xf32>, vector<128x32xf32> -> vector<128x32xf32>
      %37 = arith.subf %28, %32 : vector<128x32xf32>
      %cst_19 = arith.constant 9.99999971E-10 : f32
      %38 = vector.broadcast %cst_19 : f32 to vector<128x32xf32>
      %39 = arith.addf %36, %38 : vector<128x32xf32>
      %40 = math.rsqrt %39 : vector<128x32xf32>
      %41 = arith.mulf %37, %40 : vector<128x32xf32>
      %42 = vector.broadcast %30 : vector<1x32xf32> to vector<128x32xf32>
      %43 = arith.mulf %41, %42 : vector<128x32xf32>
      %44 = vector.broadcast %31 : vector<1x32xf32> to vector<128x32xf32>
      %45 = arith.addf %43, %44 : vector<128x32xf32>
      %c1_20 = arith.constant 1 : index
      %c0_21 = arith.constant 0 : index
      %46 = vector.load %arg9[%c1_20, %c0_21] : memref<2x32xf32, #tpu.memory_space<vmem>>, vector<1x32xf32>
      %c1_22 = arith.constant 1 : index
      %c0_23 = arith.constant 0 : index
      %47 = vector.load %arg10[%c1_22, %c0_23] : memref<2x32xf32, #tpu.memory_space<vmem>>, vector<1x32xf32>
      %cst_24 = arith.constant dense<0.000000e+00> : vector<128x32xf32>
      %48 = tpu.matmul %27, %29, %cst_24 {dimension_numbers = #tpu.dot_dimension_numbers<[1], [0], [0], [1], [0, 0, 1, 1], [], []>} : vector<128x32xf32>, vector<32x32xf32>, vector<128x32xf32> -> vector<128x32xf32>
      %49 = arith.subf %27, %48 : vector<128x32xf32>
      %50 = arith.subf %27, %48 : vector<128x32xf32>
      %51 = arith.mulf %49, %50 : vector<128x32xf32>
      %cst_25 = arith.constant dense<0.000000e+00> : vector<128x32xf32>
      %52 = tpu.matmul %51, %29, %cst_25 {dimension_numbers = #tpu.dot_dimension_numbers<[1], [0], [0], [1], [0, 0, 1, 1], [], []>} : vector<128x32xf32>, vector<32x32xf32>, vector<128x32xf32> -> vector<128x32xf32>
      %53 = arith.subf %27, %48 : vector<128x32xf32>
      %cst_26 = arith.constant 9.99999971E-10 : f32
      %54 = vector.broadcast %cst_26 : f32 to vector<128x32xf32>
      %55 = arith.addf %52, %54 : vector<128x32xf32>
      %56 = math.rsqrt %55 : vector<128x32xf32>
      %57 = arith.mulf %53, %56 : vector<128x32xf32>
      %58 = vector.broadcast %46 : vector<1x32xf32> to vector<128x32xf32>
      %59 = arith.mulf %57, %58 : vector<128x32xf32>
      %60 = vector.broadcast %47 : vector<1x32xf32> to vector<128x32xf32>
      %61 = arith.addf %59, %60 : vector<128x32xf32>
      %62 = arith.addf %45, %61 : vector<128x32xf32>
      %cst_27 = arith.constant 5.000000e-01 : f32
      %63 = vector.broadcast %cst_27 : f32 to vector<128x32xf32>
      %64 = arith.mulf %62, %63 : vector<128x32xf32>
      %c0_28 = arith.constant 0 : index
      %c0_29 = arith.constant 0 : index
      %65 = vector.load %arg12[%c0_28, %c0_29] : memref<128x32xf32, #tpu.memory_space<vmem>>, vector<128x32xf32>
      tpu.vector_store %arg12[%c0_28, %c0_29], %64 {strides = array<i32>} : memref<128x32xf32, #tpu.memory_space<vmem>>, vector<128x32xf32>,
    } else {
    }
    return
  }
  func.func @transform_0(%arg0: i32, %arg1: i32, %arg2: memref<4xi32, #tpu.memory_space<smem>>, %arg3: memref<4xi32, #tpu.memory_space<smem>>) -> (i32, i32) {
    %c0_i32 = arith.constant 0 : i32
    %c0_i32_0 = arith.constant 0 : i32
    return %arg0, %c0_i32 : i32, i32
  }
  func.func @transform_1(%arg0: i32, %arg1: i32, %arg2: memref<4xi32, #tpu.memory_space<smem>>, %arg3: memref<4xi32, #tpu.memory_space<smem>>) -> (i32, i32) {
    %c0_i32 = arith.constant 0 : i32
    %c0_i32_0 = arith.constant 0 : i32
    return %arg0, %c0_i32 : i32, i32
  }
  func.func @transform_2(%arg0: i32, %arg1: i32, %arg2: memref<4xi32, #tpu.memory_space<smem>>, %arg3: memref<4xi32, #tpu.memory_space<smem>>) -> (i32, i32, i32) {
    %c1_i32 = arith.constant 1 : i32
    %0 = arith.muli %arg0, %c1_i32 : i32
    %1 = arith.addi %0, %arg1 : i32
    %2 = arith.index_cast %1 : i32 to index
    %3 = memref.load %arg2[%2] : memref<4xi32, #tpu.memory_space<smem>>
    %c0_i32 = arith.constant 0 : i32
    %c0_i32_0 = arith.constant 0 : i32
    %c0_i32_1 = arith.constant 0 : i32
    return %c0_i32, %3, %c0_i32_0 : i32, i32, i32
  }
  func.func @transform_3(%arg0: i32, %arg1: i32, %arg2: memref<4xi32, #tpu.memory_space<smem>>, %arg3: memref<4xi32, #tpu.memory_space<smem>>) -> (i32, i32) {
    %c1_i32 = arith.constant 1 : i32
    %0 = arith.muli %arg0, %c1_i32 : i32
    %1 = arith.addi %0, %arg1 : i32
    %2 = arith.index_cast %1 : i32 to index
    %3 = memref.load %arg2[%2] : memref<4xi32, #tpu.memory_space<smem>>
    %c0_i32 = arith.constant 0 : i32
    %c0_i32_0 = arith.constant 0 : i32
    return %c0_i32, %3 : i32, i32
  }
  func.func @transform_4(%arg0: i32, %arg1: i32, %arg2: memref<4xi32, #tpu.memory_space<smem>>, %arg3: memref<4xi32, #tpu.memory_space<smem>>) -> (i32, i32) {
    %c1_i32 = arith.constant 1 : i32
    %0 = arith.muli %arg0, %c1_i32 : i32
    %1 = arith.addi %0, %arg1 : i32
    %2 = arith.index_cast %1 : i32 to index
    %3 = memref.load %arg2[%2] : memref<4xi32, #tpu.memory_space<smem>>
    %c0_i32 = arith.constant 0 : i32
    return %arg0, %3 : i32, i32
  }
  func.func @transform_5(%arg0: i32, %arg1: i32, %arg2: memref<4xi32, #tpu.memory_space<smem>>, %arg3: memref<4xi32, #tpu.memory_space<smem>>) -> (i32, i32) {
    %c0_i32 = arith.constant 0 : i32
    %c0_i32_0 = arith.constant 0 : i32
    %c0_i32_1 = arith.constant 0 : i32
    return %c0_i32, %c0_i32_0 : i32, i32
  }
  func.func @transform_6(%arg0: i32, %arg1: i32, %arg2: memref<4xi32, #tpu.memory_space<smem>>, %arg3: memref<4xi32, #tpu.memory_space<smem>>) -> (i32, i32) {
    %c0_i32 = arith.constant 0 : i32
    %c0_i32_0 = arith.constant 0 : i32
    %c0_i32_1 = arith.constant 0 : i32
    return %c0_i32, %c0_i32_0 : i32, i32
  }
  func.func @transform_7(%arg0: i32, %arg1: i32, %arg2: memref<4xi32, #tpu.memory_space<smem>>, %arg3: memref<4xi32, #tpu.memory_space<smem>>) -> (i32, i32) {
    %c0_i32 = arith.constant 0 : i32
    %c0_i32_0 = arith.constant 0 : i32
    %c0_i32_1 = arith.constant 0 : i32
    return %c0_i32, %c0_i32_0 : i32, i32
  }
  func.func @transform_8(%arg0: i32, %arg1: i32, %arg2: memref<4xi32, #tpu.memory_space<smem>>, %arg3: memref<4xi32, #tpu.memory_space<smem>>) -> (i32, i32) {
    %c0_i32 = arith.constant 0 : i32
    %c0_i32_0 = arith.constant 0 : i32
    return %arg0, %c0_i32 : i32, i32
  }
}

</mosaic_0001>

<llo_original>
// kernel: gat_forward.2
$region0: #{gat_forward.2}
  #allocation0 [shape = 'u32[]', space=smem, size = 0x4, offset = 0x4, fixed_abs, tag = 'smem constant byte address 0x4 - core index']
  #allocation1 [shape = 'u32[144,128]{1,0:T(1,128)}', space=vmem, size = 0x12000, scoped, tag = 'internal scratch']
  %s0 = inlined_call_operand.vmem [shape: f32[512,32], index: 0, kind: input, shape index: {}]
  %s1 = inlined_call_operand.vmem [shape: f32[32,66], index: 1, kind: input, shape index: {}]
  %s2 = inlined_call_operand.vmem [shape: f32[1,66], index: 2, kind: input, shape index: {}]
  %s3 = inlined_call_operand.vmem [shape: f32[66,4], index: 3, kind: input, shape index: {}]
  %s4 = inlined_call_operand.vmem [shape: f32[512,32], index: 4, kind: output, shape index: {0}]
  %s5 = inlined_call_operand.vmem [shape: f32[2,512,17], index: 5, kind: output, shape index: {1}]
  %s6 = inlined_call_operand.vmem [shape: f32[512,4], index: 6, kind: output, shape index: {2}]
  %7 = xla_tuple %s4, %s5, %s6
  %s8 = sld [smem:[#allocation0]]
  $region42: #{gat_forward.2} parent=0
    _
  %s10 = ssub.s32 1, %s8
  %s11 = scalar_select 0, %s10, %s8
  // Predicated region
  $region2: #{gat_forward.2} parent=0 // pred_check
    _
  $region3: #{gat_forward.2} parent=0 // pred_check_branch
    %13 = sbr.rel (0) target = $region5
  $region4: #{gat_forward.2} parent=0 // pred_region
    _
  $region5: #{gat_forward.2} parent=0 // pred_fallthru
    _
  // Predicated region
  $region6: #{gat_forward.2} parent=0 // pred_check
    _
  $region7: #{gat_forward.2} parent=0 // pred_check_branch
    %15 = sbr.rel (0) target = $region9
  $region8: #{gat_forward.2} parent=0 // pred_region
    _
  $region9: #{gat_forward.2} parent=0 // pred_fallthru
    _
  // Predicated region
  $region10: #{gat_forward.2} parent=0 // pred_check
    _
  $region11: #{gat_forward.2} parent=0 // pred_check_branch
    %17 = sbr.rel (0) target = $region13
  $region12: #{gat_forward.2} parent=0 // pred_region
    _
  $region13: #{gat_forward.2} parent=0 // pred_fallthru
    _
  // Predicated region
  $region14: #{gat_forward.2} parent=0 // pred_check
    _
  $region15: #{gat_forward.2} parent=0 // pred_check_branch
    %19 = sbr.rel (0) target = $region17
  $region16: #{gat_forward.2} parent=0 // pred_region
    _
  $region17: #{gat_forward.2} parent=0 // pred_fallthru
    _
  %v20 = vld [vmem:[%s0] sm:$0xff]
  %v21 = vld [vmem:[%s0 + $0x8] sm:$0xff]
  %v22 = vld [vmem:[%s0 + $0x10] sm:$0xff]
  %v23 = vld [vmem:[%s0 + $0x18] sm:$0xff]
  %v24 = vld [vmem:[%s0 + $0x20] sm:$0xff]
  %v25 = vld [vmem:[%s0 + $0x28] sm:$0xff]
  %v26 = vld [vmem:[%s0 + $0x30] sm:$0xff]
  %v27 = vld [vmem:[%s0 + $0x38] sm:$0xff]
  %v28 = vld [vmem:[%s0 + $0x40] sm:$0xff]
  %v29 = vld [vmem:[%s0 + $0x48] sm:$0xff]
  %v30 = vld [vmem:[%s0 + $0x50] sm:$0xff]
  %v31 = vld [vmem:[%s0 + $0x58] sm:$0xff]
  %v32 = vld [vmem:[%s0 + $0x60] sm:$0xff]
  %v33 = vld [vmem:[%s0 + $0x68] sm:$0xff]
  %v34 = vld [vmem:[%s0 + $0x70] sm:$0xff]
  %v35 = vld [vmem:[%s0 + $0x78] sm:$0xff]
  %v36 = vld [vmem:[%s0 + $0x80] sm:$0xff]
  %v37 = vld [vmem:[%s0 + $0x88] sm:$0xff]
  %v38 = vld [vmem:[%s0 + $0x90] sm:$0xff]
  %v39 = vld [vmem:[%s0 + $0x98] sm:$0xff]
  %v40 = vld [vmem:[%s0 + $0xa0] sm:$0xff]
  %v41 = vld [vmem:[%s0 + $0xa8] sm:$0xff]
  %v42 = vld [vmem:[%s0 + $0xb0] sm:$0xff]
  %v43 = vld [vmem:[%s0 + $0xb8] sm:$0xff]
  %v44 = vld [vmem:[%s0 + $0xc0] sm:$0xff]
  %v45 = vld [vmem:[%s0 + $0xc8] sm:$0xff]
  %v46 = vld [vmem:[%s0 + $0xd0] sm:$0xff]
  %v47 = vld [vmem:[%s0 + $0xd8] sm:$0xff]
  %v48 = vld [vmem:[%s0 + $0xe0] sm:$0xff]
  %v49 = vld [vmem:[%s0 + $0xe8] sm:$0xff]
  %v50 = vld [vmem:[%s0 + $0xf0] sm:$0xff]
  %v51 = vld [vmem:[%s0 + $0xf8] sm:$0xff]
  %v52 = vld [vmem:[%s0 + $0x100] sm:$0xff]
  %v53 = vld [vmem:[%s0 + $0x108] sm:$0xff]
  %v54 = vld [vmem:[%s0 + $0x110] sm:$0xff]
  %v55 = vld [vmem:[%s0 + $0x118] sm:$0xff]
  %v56 = vld [vmem:[%s0 + $0x120] sm:$0xff]
  %v57 = vld [vmem:[%s0 + $0x128] sm:$0xff]
  %v58 = vld [vmem:[%s0 + $0x130] sm:$0xff]
  %v59 = vld [vmem:[%s0 + $0x138] sm:$0xff]
  %v60 = vld [vmem:[%s0 + $0x140] sm:$0xff]
  %v61 = vld [vmem:[%s0 + $0x148] sm:$0xff]
  %v62 = vld [vmem:[%s0 + $0x150] sm:$0xff]
  %v63 = vld [vmem:[%s0 + $0x158] sm:$0xff]
  %v64 = vld [vmem:[%s0 + $0x160] sm:$0xff]
  %v65 = vld [vmem:[%s0 + $0x168] sm:$0xff]
  %v66 = vld [vmem:[%s0 + $0x170] sm:$0xff]
  %v67 = vld [vmem:[%s0 + $0x178] sm:$0xff]
  %v68 = vld [vmem:[%s0 + $0x180] sm:$0xff]
  %v69 = vld [vmem:[%s0 + $0x188] sm:$0xff]
  %v70 = vld [vmem:[%s0 + $0x190] sm:$0xff]
  %v71 = vld [vmem:[%s0 + $0x198] sm:$0xff]
  %v72 = vld [vmem:[%s0 + $0x1a0] sm:$0xff]
  %v73 = vld [vmem:[%s0 + $0x1a8] sm:$0xff]
  %v74 = vld [vmem:[%s0 + $0x1b0] sm:$0xff]
  %v75 = vld [vmem:[%s0 + $0x1b8] sm:$0xff]
  %v76 = vld [vmem:[%s0 + $0x1c0] sm:$0xff]
  %v77 = vld [vmem:[%s0 + $0x1c8] sm:$0xff]
  %v78 = vld [vmem:[%s0 + $0x1d0] sm:$0xff]
  %v79 = vld [vmem:[%s0 + $0x1d8] sm:$0xff]
  %v80 = vld [vmem:[%s0 + $0x1e0] sm:$0xff]
  %v81 = vld [vmem:[%s0 + $0x1e8] sm:$0xff]
  %v82 = vld [vmem:[%s0 + $0x1f0] sm:$0xff]
  %v83 = vld [vmem:[%s0 + $0x1f8] sm:$0xff]
  %v84 = vld [vmem:[%s1] sm:$0xff]
  %v85 = vld [vmem:[%s1 + $0x8] sm:$0xff]
  %v86 = vld [vmem:[%s1 + $0x10] sm:$0xff]
  %v87 = vld [vmem:[%s1 + $0x18] sm:$0xff]
  %v88 = vld [vmem:[%s2] sm:$0x1]
  %v90 = vlaneseq
  %v91 = vshrl.u32 %v90, 7
  %v92 = vsub.s32 0, %v91
  %v93 = vrot.slane %v88, %v92
  %vm95 = vcmask 261120
  %v97 = vsel %vm95, %v20, 0
  %v100 = vsel %vm95, %v21, 0
  %v103 = vsel %vm95, %v22, 0
  %v106 = vsel %vm95, %v23, 0
  %v109 = vsel %vm95, %v24, 0
  %v112 = vsel %vm95, %v25, 0
  %v115 = vsel %vm95, %v26, 0
  %v118 = vsel %vm95, %v27, 0
  %v121 = vsel %vm95, %v28, 0
  %v124 = vsel %vm95, %v29, 0
  %v127 = vsel %vm95, %v30, 0
  %v130 = vsel %vm95, %v31, 0
  %v133 = vsel %vm95, %v32, 0
  %v136 = vsel %vm95, %v33, 0
  %v139 = vsel %vm95, %v34, 0
  %v142 = vsel %vm95, %v35, 0
  %v145 = vsel %vm95, %v36, 0
  %v148 = vsel %vm95, %v37, 0
  %v151 = vsel %vm95, %v38, 0
  %v154 = vsel %vm95, %v39, 0
  %v157 = vsel %vm95, %v40, 0
  %v160 = vsel %vm95, %v41, 0
  %v163 = vsel %vm95, %v42, 0
  %v166 = vsel %vm95, %v43, 0
  %v169 = vsel %vm95, %v44, 0
  %v172 = vsel %vm95, %v45, 0
  %v175 = vsel %vm95, %v46, 0
  %v178 = vsel %vm95, %v47, 0
  %v181 = vsel %vm95, %v48, 0
  %v184 = vsel %vm95, %v49, 0
  %v187 = vsel %vm95, %v50, 0
  %v190 = vsel %vm95, %v51, 0
  %v193 = vsel %vm95, %v52, 0
  %v196 = vsel %vm95, %v53, 0
  %v199 = vsel %vm95, %v54, 0
  %v202 = vsel %vm95, %v55, 0
  %v205 = vsel %vm95, %v56, 0
  %v208 = vsel %vm95, %v57, 0
  %v211 = vsel %vm95, %v58, 0
  %v214 = vsel %vm95, %v59, 0
  %v217 = vsel %vm95, %v60, 0
  %v220 = vsel %vm95, %v61, 0
  %v223 = vsel %vm95, %v62, 0
  %v226 = vsel %vm95, %v63, 0
  %v229 = vsel %vm95, %v64, 0
  %v232 = vsel %vm95, %v65, 0
  %v235 = vsel %vm95, %v66, 0
  %v238 = vsel %vm95, %v67, 0
  %v241 = vsel %vm95, %v68, 0
  %v244 = vsel %vm95, %v69, 0
  %v247 = vsel %vm95, %v70, 0
  %v250 = vsel %vm95, %v71, 0
  %v253 = vsel %vm95, %v72, 0
  %v256 = vsel %vm95, %v73, 0
  %v259 = vsel %vm95, %v74, 0
  %v262 = vsel %vm95, %v75, 0
  %v265 = vsel %vm95, %v76, 0
  %v268 = vsel %vm95, %v77, 0
  %v271 = vsel %vm95, %v78, 0
  %v274 = vsel %vm95, %v79, 0
  %v277 = vsel %vm95, %v80, 0
  %v280 = vsel %vm95, %v81, 0
  %v283 = vsel %vm95, %v82, 0
  %v286 = vsel %vm95, %v83, 0
  %288 = vmatprep.subr.mxu0 0.0
  %289 = vmatpush1.msra.mxu0 %v84
  %290 = vmatprep.subr.mxu0 0.0
  %291 = vmatpush1.msra.mxu0 %v85
  %292 = vmatprep.subr.mxu0 0.0
  %293 = vmatpush1.msra.mxu0 %v86
  %294 = vmatprep.subr.mxu0 0.0
  %295 = vmatpush1.msra.mxu0 %v87
  %296 = vmatprep.subr.mxu0 0.0
  %297 = vmatpush1.msra.mxu0 0.0
  %298 = vmatprep.subr.mxu0 0.0
  %299 = vmatpush1.msra.mxu0 0.0
  %300 = vmatprep.subr.mxu0 0.0
  %301 = vmatpush1.msra.mxu0 0.0
  %302 = vmatprep.subr.mxu0 0.0
  %303 = vmatpush1.msra.mxu0 0.0
  %304 = vmatprep.subr.mxu0 0.0
  %305 = vmatpush1.msra.mxu0 0.0
  %306 = vmatprep.subr.mxu0 0.0
  %307 = vmatpush1.msra.mxu0 0.0
  %308 = vmatprep.subr.mxu0 0.0
  %309 = vmatpush1.msra.mxu0 0.0
  %310 = vmatprep.subr.mxu0 0.0
  %311 = vmatpush1.msra.mxu0 0.0
  %312 = vmatprep.subr.mxu0 0.0
  %313 = vmatpush1.msra.mxu0 0.0
  %314 = vmatprep.subr.mxu0 0.0
  %315 = vmatpush1.msra.mxu0 0.0
  %316 = vmatprep.subr.mxu0 0.0
  %317 = vmatpush1.msra.mxu0 0.0
  %318 = vmatprep.subr.mxu0 0.0
  %319 = vmatpush1.msra.mxu0 0.0
  %320 = vmatprep.subr.mxu0 0.0
  %321 = vmatpush1.msra.mxu0 0.0
  %322 = vmatprep.subr.mxu0 0.0
  %323 = vmatpush1.msra.mxu0 0.0
  %324 = vmatprep.subr.mxu0 0.0
  %325 = vmatpush1.msra.mxu0 0.0
  %326 = vmatprep.subr.mxu0 0.0
  %327 = vmatpush1.msra.mxu0 0.0
  %328 = vmatprep.subr.mxu0 0.0
  %329 = vmatpush1.msra.mxu0 0.0
  %330 = vmatprep.subr.mxu0 0.0
  %331 = vmatpush1.msra.mxu0 0.0
  %332 = vmatprep.subr.mxu0 0.0
  %333 = vmatpush1.msra.mxu0 0.0
  %334 = vmatprep.subr.mxu0 0.0
  %335 = vmatpush1.msra.mxu0 0.0
  %336 = vmatprep.subr.mxu0 0.0
  %337 = vmatpush1.msra.mxu0 0.0
  %338 = vmatprep.subr.mxu0 0.0
  %339 = vmatpush1.msra.mxu0 0.0
  %340 = vmatprep.subr.mxu0 0.0
  %341 = vmatpush1.msra.mxu0 0.0
  %342 = vmatprep.subr.mxu0 0.0
  %343 = vmatpush1.msra.mxu0 0.0
  %344 = vmatprep.subr.mxu0 0.0
  %345 = vmatpush1.msra.mxu0 0.0
  %346 = vmatprep.subr.mxu0 0.0
  %347 = vmatpush1.msra.mxu0 0.0
  %348 = vmatprep.subr.mxu0 0.0
  %349 = vmatpush1.msra.mxu0 0.0
  %350 = vmatprep.subr.mxu0 0.0
  %351 = vmatpush1.msra.mxu0 0.0
  %352 = vmatprep.mubr.f32.mxu0 0.0
  %353 = vmatmul.mubr.f32.gmra.mrb[0].mxu0 %v97
  %v354 = vpop.f32.mrb[0].mxu0
  %v355 = vadd.f32 %v93, %v354
  %v356 = vpop.f32.mrb[0].mxu0
  %357 = vmatprep.mubr.f32.mxu0 0.0
  %358 = vmatmul.mubr.f32.gmra.mrb[0].mxu0 %v100
  %v359 = vpop.f32.mrb[0].mxu0
  %v360 = vadd.f32 %v93, %v359
  %v361 = vpop.f32.mrb[0].mxu0
  %362 = vmatprep.mubr.f32.mxu0 0.0
  %363 = vmatmul.mubr.f32.gmra.mrb[0].mxu0 %v103
  %v364 = vpop.f32.mrb[0].mxu0
  %v365 = vadd.f32 %v93, %v364
  %v366 = vpop.f32.mrb[0].mxu0
  %367 = vmatprep.mubr.f32.mxu0 0.0
  %368 = vmatmul.mubr.f32.gmra.mrb[0].mxu0 %v106
  %v369 = vpop.f32.mrb[0].mxu0
  %v370 = vadd.f32 %v93, %v369
  %v371 = vpop.f32.mrb[0].mxu0
  %372 = vmatprep.mubr.f32.mxu0 0.0
  %373 = vmatmul.mubr.f32.gmra.mrb[0].mxu0 %v109
  %v374 = vpop.f32.mrb[0].mxu0
  %v375 = vadd.f32 %v93, %v374
  %v376 = vpop.f32.mrb[0].mxu0
  %377 = vmatprep.mubr.f32.mxu0 0.0
  %378 = vmatmul.mubr.f32.gmra.mrb[0].mxu0 %v112
  %v379 = vpop.f32.mrb[0].mxu0
  %v380 = vadd.f32 %v93, %v379
  %v381 = vpop.f32.mrb[0].mxu0
  %382 = vmatprep.mubr.f32.mxu0 0.0
  %383 = vmatmul.mubr.f32.gmra.mrb[0].mxu0 %v115
  %v384 = vpop.f32.mrb[0].mxu0
  %v385 = vadd.f32 %v93, %v384
  %v386 = vpop.f32.mrb[0].mxu0
  %387 = vmatprep.mubr.f32.mxu0 0.0
  %388 = vmatmul.mubr.f32.gmra.mrb[0].mxu0 %v118
  %v389 = vpop.f32.mrb[0].mxu0
  %v390 = vadd.f32 %v93, %v389
  %v391 = vpop.f32.mrb[0].mxu0
  %392 = vmatprep.mubr.f32.mxu0 0.0
  %393 = vmatmul.mubr.f32.gmra.mrb[0].mxu0 %v121
  %v394 = vpop.f32.mrb[0].mxu0
  %v395 = vadd.f32 %v93, %v394
  %v396 = vpop.f32.mrb[0].mxu0
  %397 = vmatprep.mubr.f32.mxu0 0.0
  %398 = vmatmul.mubr.f32.gmra.mrb[0].mxu0 %v124
  %v399 = vpop.f32.mrb[0].mxu0
  %v400 = vadd.f32 %v93, %v399
  %v401 = vpop.f32.mrb[0].mxu0
  %402 = vmatprep.mubr.f32.mxu0 0.0
  %403 = vmatmul.mubr.f32.gmra.mrb[0].mxu0 %v127
  %v404 = vpop.f32.mrb[0].mxu0
  %v405 = vadd.f32 %v93, %v404
  %v406 = vpop.f32.mrb[0].mxu0
  %407 = vmatprep.mubr.f32.mxu0 0.0
  %408 = vmatmul.mubr.f32.gmra.mrb[0].mxu0 %v130
  %v409 = vpop.f32.mrb[0].mxu0
  %v410 = vadd.f32 %v93, %v409
  %v411 = vpop.f32.mrb[0].mxu0
  %412 = vmatprep.mubr.f32.mxu0 0.0
  %413 = vmatmul.mubr.f32.gmra.mrb[0].mxu0 %v133
  %v414 = vpop.f32.mrb[0].mxu0
  %v415 = vadd.f32 %v93, %v414
  %v416 = vpop.f32.mrb[0].mxu0
  %417 = vmatprep.mubr.f32.mxu0 0.0
  %418 = vmatmul.mubr.f32.gmra.mrb[0].mxu0 %v136
  %v419 = vpop.f32.mrb[0].mxu0
  %v420 = vadd.f32 %v93, %v419
  %v421 = vpop.f32.mrb[0].mxu0
  %422 = vmatprep.mubr.f32.mxu0 0.0
  %423 = vmatmul.mubr.f32.gmra.mrb[0].mxu0 %v139
  %v424 = vpop.f32.mrb[0].mxu0
  %v425 = vadd.f32 %v93, %v424
  %v426 = vpop.f32.mrb[0].mxu0
  %427 = vmatprep.mubr.f32.mxu0 0.0
  %428 = vmatmul.mubr.f32.gmra.mrb[0].mxu0 %v142
  %v429 = vpop.f32.mrb[0].mxu0
  %v430 = vadd.f32 %v93, %v429
  %v431 = vpop.f32.mrb[0].mxu0
  %432 = vmatprep.mubr.f32.mxu0 0.0
  %433 = vmatmul.mubr.f32.gmra.mrb[0].mxu0 %v145
  %v434 = vpop.f32.mrb[0].mxu0
  %v435 = vadd.f32 %v93, %v434
  %v436 = vpop.f32.mrb[0].mxu0
  %437 = vmatprep.mubr.f32.mxu0 0.0
  %438 = vmatmul.mubr.f32.gmra.mrb[0].mxu0 %v148
  %v439 = vpop.f32.mrb[0].mxu0
  %v440 = vadd.f32 %v93, %v439
  %v441 = vpop.f32.mrb[0].mxu0
  %442 = vmatprep.mubr.f32.mxu0 0.0
  %443 = vmatmul.mubr.f32.gmra.mrb[0].mxu0 %v151
  %v444 = vpop.f32.mrb[0].mxu0
  %v445 = vadd.f32 %v93, %v444
  %v446 = vpop.f32.mrb[0].mxu0
  %447 = vmatprep.mubr.f32.mxu0 0.0
  %448 = vmatmul.mubr.f32.gmra.mrb[0].mxu0 %v154
  %v449 = vpop.f32.mrb[0].mxu0
  %v450 = vadd.f32 %v93, %v449
  %v451 = vpop.f32.mrb[0].mxu0
  %452 = vmatprep.mubr.f32.mxu0 0.0
  %453 = vmatmul.mubr.f32.gmra.mrb[0].mxu0 %v157
  %v454 = vpop.f32.mrb[0].mxu0
  %v455 = vadd.f32 %v93, %v454
  %v456 = vpop.f32.mrb[0].mxu0
  %457 = vmatprep.mubr.f32.mxu0 0.0
  %458 = vmatmul.mubr.f32.gmra.mrb[0].mxu0 %v160
  %v459 = vpop.f32.mrb[0].mxu0
  %v460 = vadd.f32 %v93, %v459
  %v461 = vpop.f32.mrb[0].mxu0
  %462 = vmatprep.mubr.f32.mxu0 0.0
  %463 = vmatmul.mubr.f32.gmra.mrb[0].mxu0 %v163
  %v464 = vpop.f32.mrb[0].mxu0
  %v465 = vadd.f32 %v93, %v464
  %v466 = vpop.f32.mrb[0].mxu0
  %467 = vmatprep.mubr.f32.mxu0 0.0
  %468 = vmatmul.mubr.f32.gmra.mrb[0].mxu0 %v166
  %v469 = vpop.f32.mrb[0].mxu0
  %v470 = vadd.f32 %v93, %v469
  %v471 = vpop.f32.mrb[0].mxu0
  %472 = vmatprep.mubr.f32.mxu0 0.0
  %473 = vmatmul.mubr.f32.gmra.mrb[0].mxu0 %v169
  %v474 = vpop.f32.mrb[0].mxu0
  %v475 = vadd.f32 %v93, %v474
  %v476 = vpop.f32.mrb[0].mxu0
  %477 = vmatprep.mubr.f32.mxu0 0.0
  %478 = vmatmul.mubr.f32.gmra.mrb[0].mxu0 %v172
  %v479 = vpop.f32.mrb[0].mxu0
  %v480 = vadd.f32 %v93, %v479
  %v481 = vpop.f32.mrb[0].mxu0
  %482 = vmatprep.mubr.f32.mxu0 0.0
  %483 = vmatmul.mubr.f32.gmra.mrb[0].mxu0 %v175
  %v484 = vpop.f32.mrb[0].mxu0
  %v485 = vadd.f32 %v93, %v484
  %v486 = vpop.f32.mrb[0].mxu0
  %487 = vmatprep.mubr.f32.mxu0 0.0
  %488 = vmatmul.mubr.f32.gmra.mrb[0].mxu0 %v178
  %v489 = vpop.f32.mrb[0].mxu0
  %v490 = vadd.f32 %v93, %v489
  %v491 = vpop.f32.mrb[0].mxu0
  %492 = vmatprep.mubr.f32.mxu0 0.0
  %493 = vmatmul.mubr.f32.gmra.mrb[0].mxu0 %v181
  %v494 = vpop.f32.mrb[0].mxu0
  %v495 = vadd.f32 %v93, %v494
  %v496 = vpop.f32.mrb[0].mxu0
  %497 = vmatprep.mubr.f32.mxu0 0.0
  %498 = vmatmul.mubr.f32.gmra.mrb[0].mxu0 %v184
  %v499 = vpop.f32.mrb[0].mxu0
  %v500 = vadd.f32 %v93, %v499
  %v501 = vpop.f32.mrb[0].mxu0
  %502 = vmatprep.mubr.f32.mxu0 0.0
  %503 = vmatmul.mubr.f32.gmra.mrb[0].mxu0 %v187
  %v504 = vpop.f32.mrb[0].mxu0
  %v505 = vadd.f32 %v93, %v504
  %v506 = vpop.f32.mrb[0].mxu0
  %507 = vmatprep.mubr.f32.mxu0 0.0
  %508 = vmatmul.mubr.f32.gmra.mrb[0].mxu0 %v190
  %v509 = vpop.f32.mrb[0].mxu0
  %v510 = vadd.f32 %v93, %v509
  %v511 = vpop.f32.mrb[0].mxu0
  %512 = vmatprep.mubr.f32.mxu0 0.0
  %513 = vmatmul.mubr.f32.gmra.mrb[0].mxu0 %v193
  %v514 = vpop.f32.mrb[0].mxu0
  %v515 = vadd.f32 %v93, %v514
  %v516 = vpop.f32.mrb[0].mxu0
  %517 = vmatprep.mubr.f32.mxu0 0.0
  %518 = vmatmul.mubr.f32.gmra.mrb[0].mxu0 %v196
  %v519 = vpop.f32.mrb[0].mxu0
  %v520 = vadd.f32 %v93, %v519
  %v521 = vpop.f32.mrb[0].mxu0
  %522 = vmatprep.mubr.f32.mxu0 0.0
  %523 = vmatmul.mubr.f32.gmra.mrb[0].mxu0 %v199
  %v524 = vpop.f32.mrb[0].mxu0
  %v525 = vadd.f32 %v93, %v524
  %v526 = vpop.f32.mrb[0].mxu0
  %527 = vmatprep.mubr.f32.mxu0 0.0
  %528 = vmatmul.mubr.f32.gmra.mrb[0].mxu0 %v202
  %v529 = vpop.f32.mrb[0].mxu0
  %v530 = vadd.f32 %v93, %v529
  %v531 = vpop.f32.mrb[0].mxu0
  %532 = vmatprep.mubr.f32.mxu0 0.0
  %533 = vmatmul.mubr.f32.gmra.mrb[0].mxu0 %v205
  %v534 = vpop.f32.mrb[0].mxu0
  %v535 = vadd.f32 %v93, %v534
  %v536 = vpop.f32.mrb[0].mxu0
  %537 = vmatprep.mubr.f32.mxu0 0.0
  %538 = vmatmul.mubr.f32.gmra.mrb[0].mxu0 %v208
  %v539 = vpop.f32.mrb[0].mxu0
  %v540 = vadd.f32 %v93, %v539
  %v541 = vpop.f32.mrb[0].mxu0
  %542 = vmatprep.mubr.f32.mxu0 0.0
  %543 = vmatmul.mubr.f32.gmra.mrb[0].mxu0 %v211
  %v544 = vpop.f32.mrb[0].mxu0
  %v545 = vadd.f32 %v93, %v544
  %v546 = vpop.f32.mrb[0].mxu0
  %547 = vmatprep.mubr.f32.mxu0 0.0
  %548 = vmatmul.mubr.f32.gmra.mrb[0].mxu0 %v214
  %v549 = vpop.f32.mrb[0].mxu0
  %v550 = vadd.f32 %v93, %v549
  %v551 = vpop.f32.mrb[0].mxu0
  %552 = vmatprep.mubr.f32.mxu0 0.0
  %553 = vmatmul.mubr.f32.gmra.mrb[0].mxu0 %v217
  %v554 = vpop.f32.mrb[0].mxu0
  %v555 = vadd.f32 %v93, %v554
  %v556 = vpop.f32.mrb[0].mxu0
  %557 = vmatprep.mubr.f32.mxu0 0.0
  %558 = vmatmul.mubr.f32.gmra.mrb[0].mxu0 %v220
  %v559 = vpop.f32.mrb[0].mxu0
  %v560 = vadd.f32 %v93, %v559
  %v561 = vpop.f32.mrb[0].mxu0
  %562 = vmatprep.mubr.f32.mxu0 0.0
  %563 = vmatmul.mubr.f32.gmra.mrb[0].mxu0 %v223
  %v564 = vpop.f32.mrb[0].mxu0
  %v565 = vadd.f32 %v93, %v564
  %v566 = vpop.f32.mrb[0].mxu0
  %567 = vmatprep.mubr.f32.mxu0 0.0
  %568 = vmatmul.mubr.f32.gmra.mrb[0].mxu0 %v226
  %v569 = vpop.f32.mrb[0].mxu0
  %v570 = vadd.f32 %v93, %v569
  %v571 = vpop.f32.mrb[0].mxu0
  %572 = vmatprep.mubr.f32.mxu0 0.0
  %573 = vmatmul.mubr.f32.gmra.mrb[0].mxu0 %v229
  %v574 = vpop.f32.mrb[0].mxu0
  %v575 = vadd.f32 %v93, %v574
  %v576 = vpop.f32.mrb[0].mxu0
  %577 = vmatprep.mubr.f32.mxu0 0.0
  %578 = vmatmul.mubr.f32.gmra.mrb[0].mxu0 %v232
  %v579 = vpop.f32.mrb[0].mxu0
  %v580 = vadd.f32 %v93, %v579
  %v581 = vpop.f32.mrb[0].mxu0
  %582 = vmatprep.mubr.f32.mxu0 0.0
  %583 = vmatmul.mubr.f32.gmra.mrb[0].mxu0 %v235
  %v584 = vpop.f32.mrb[0].mxu0
  %v585 = vadd.f32 %v93, %v584
  %v586 = vpop.f32.mrb[0].mxu0
  %587 = vmatprep.mubr.f32.mxu0 0.0
  %588 = vmatmul.mubr.f32.gmra.mrb[0].mxu0 %v238
  %v589 = vpop.f32.mrb[0].mxu0
  %v590 = vadd.f32 %v93, %v589
  %v591 = vpop.f32.mrb[0].mxu0
  %592 = vmatprep.mubr.f32.mxu0 0.0
  %593 = vmatmul.mubr.f32.gmra.mrb[0].mxu0 %v241
  %v594 = vpop.f32.mrb[0].mxu0
  %v595 = vadd.f32 %v93, %v594
  %v596 = vpop.f32.mrb[0].mxu0
  %597 = vmatprep.mubr.f32.mxu0 0.0
  %598 = vmatmul.mubr.f32.gmra.mrb[0].mxu0 %v244
  %v599 = vpop.f32.mrb[0].mxu0
  %v600 = vadd.f32 %v93, %v599
  %v601 = vpop.f32.mrb[0].mxu0
  %602 = vmatprep.mubr.f32.mxu0 0.0
  %603 = vmatmul.mubr.f32.gmra.mrb[0].mxu0 %v247
  %v604 = vpop.f32.mrb[0].mxu0
  %v605 = vadd.f32 %v93, %v604
  %v606 = vpop.f32.mrb[0].mxu0
  %607 = vmatprep.mubr.f32.mxu0 0.0
  %608 = vmatmul.mubr.f32.gmra.mrb[0].mxu0 %v250
  %v609 = vpop.f32.mrb[0].mxu0
  %v610 = vadd.f32 %v93, %v609
  %v611 = vpop.f32.mrb[0].mxu0
  %612 = vmatprep.mubr.f32.mxu0 0.0
  %613 = vmatmul.mubr.f32.gmra.mrb[0].mxu0 %v253
  %v614 = vpop.f32.mrb[0].mxu0
  %v615 = vadd.f32 %v93, %v614
  %v616 = vpop.f32.mrb[0].mxu0
  %617 = vmatprep.mubr.f32.mxu0 0.0
  %618 = vmatmul.mubr.f32.gmra.mrb[0].mxu0 %v256
  %v619 = vpop.f32.mrb[0].mxu0
  %v620 = vadd.f32 %v93, %v619
  %v621 = vpop.f32.mrb[0].mxu0
  %622 = vmatprep.mubr.f32.mxu0 0.0
  %623 = vmatmul.mubr.f32.gmra.mrb[0].mxu0 %v259
  %v624 = vpop.f32.mrb[0].mxu0
  %v625 = vadd.f32 %v93, %v624
  %v626 = vpop.f32.mrb[0].mxu0
  %627 = vmatprep.mubr.f32.mxu0 0.0
  %628 = vmatmul.mubr.f32.gmra.mrb[0].mxu0 %v262
  %v629 = vpop.f32.mrb[0].mxu0
  %v630 = vadd.f32 %v93, %v629
  %v631 = vpop.f32.mrb[0].mxu0
  %632 = vmatprep.mubr.f32.mxu0 0.0
  %633 = vmatmul.mubr.f32.gmra.mrb[0].mxu0 %v265
  %v634 = vpop.f32.mrb[0].mxu0
  %v635 = vadd.f32 %v93, %v634
  %v636 = vpop.f32.mrb[0].mxu0
  %637 = vmatprep.mubr.f32.mxu0 0.0
  %638 = vmatmul.mubr.f32.gmra.mrb[0].mxu0 %v268
  %v639 = vpop.f32.mrb[0].mxu0
  %v640 = vadd.f32 %v93, %v639
  %v641 = vpop.f32.mrb[0].mxu0
  %642 = vmatprep.mubr.f32.mxu0 0.0
  %643 = vmatmul.mubr.f32.gmra.mrb[0].mxu0 %v271
  %v644 = vpop.f32.mrb[0].mxu0
  %v645 = vadd.f32 %v93, %v644
  %v646 = vpop.f32.mrb[0].mxu0
  %647 = vmatprep.mubr.f32.mxu0 0.0
  %648 = vmatmul.mubr.f32.gmra.mrb[0].mxu0 %v274
  %v649 = vpop.f32.mrb[0].mxu0
  %v650 = vadd.f32 %v93, %v649
  %v651 = vpop.f32.mrb[0].mxu0
  %652 = vmatprep.mubr.f32.mxu0 0.0
  %653 = vmatmul.mubr.f32.gmra.mrb[0].mxu0 %v277
  %v654 = vpop.f32.mrb[0].mxu0
  %v655 = vadd.f32 %v93, %v654
  %v656 = vpop.f32.mrb[0].mxu0
  %657 = vmatprep.mubr.f32.mxu0 0.0
  %658 = vmatmul.mubr.f32.gmra.mrb[0].mxu0 %v280
  %v659 = vpop.f32.mrb[0].mxu0
  %v660 = vadd.f32 %v93, %v659
  %v661 = vpop.f32.mrb[0].mxu0
  %662 = vmatprep.mubr.f32.mxu0 0.0
  %663 = vmatmul.mubr.f32.gmra.mrb[0].mxu0 %v283
  %v664 = vpop.f32.mrb[0].mxu0
  %v665 = vadd.f32 %v93, %v664
  %v666 = vpop.f32.mrb[0].mxu0
  %667 = vmatprep.mubr.f32.mxu0 0.0
  %668 = vmatmul.mubr.f32.gmra.mrb[0].mxu0 %v286
  %v669 = vpop.f32.mrb[0].mxu0
  %v670 = vadd.f32 %v93, %v669
  %v671 = vpop.f32.mrb[0].mxu0
  %672 = vdwg.mxu0
  %v673 = vmax.f32 %v355, 0.0
  %v674 = vmax.f32 %v360, 0.0
  %v675 = vmax.f32 %v365, 0.0
  %v676 = vmax.f32 %v370, 0.0
  %v677 = vmax.f32 %v375, 0.0
  %v678 = vmax.f32 %v380, 0.0
  %v679 = vmax.f32 %v385, 0.0
  %v680 = vmax.f32 %v390, 0.0
  %v681 = vmax.f32 %v395, 0.0
  %v682 = vmax.f32 %v400, 0.0
  %v683 = vmax.f32 %v405, 0.0
  %v684 = vmax.f32 %v410, 0.0
  %v685 = vmax.f32 %v415, 0.0
  %v686 = vmax.f32 %v420, 0.0
  %v687 = vmax.f32 %v425, 0.0
  %v688 = vmax.f32 %v430, 0.0
  %v689 = vmax.f32 %v435, 0.0
  %v690 = vmax.f32 %v440, 0.0
  %v691 = vmax.f32 %v445, 0.0
  %v692 = vmax.f32 %v450, 0.0
  %v693 = vmax.f32 %v455, 0.0
  %v694 = vmax.f32 %v460, 0.0
  %v695 = vmax.f32 %v465, 0.0
  %v696 = vmax.f32 %v470, 0.0
  %v697 = vmax.f32 %v475, 0.0
  %v698 = vmax.f32 %v480, 0.0
  %v699 = vmax.f32 %v485, 0.0
  %v700 = vmax.f32 %v490, 0.0
  %v701 = vmax.f32 %v495, 0.0
  %v702 = vmax.f32 %v500, 0.0
  %v703 = vmax.f32 %v505, 0.0
  %v704 = vmax.f32 %v510, 0.0
  %v705 = vmax.f32 %v515, 0.0
  %v706 = vmax.f32 %v520, 0.0
  %v707 = vmax.f32 %v525, 0.0
  %v708 = vmax.f32 %v530, 0.0
  %v709 = vmax.f32 %v535, 0.0
  %v710 = vmax.f32 %v540, 0.0
  %v711 = vmax.f32 %v545, 0.0
  %v712 = vmax.f32 %v550, 0.0
  %v713 = vmax.f32 %v555, 0.0
  %v714 = vmax.f32 %v560, 0.0
  %v715 = vmax.f32 %v565, 0.0
  %v716 = vmax.f32 %v570, 0.0
  %v717 = vmax.f32 %v575, 0.0
  %v718 = vmax.f32 %v580, 0.0
  %v719 = vmax.f32 %v585, 0.0
  %v720 = vmax.f32 %v590, 0.0
  %v721 = vmax.f32 %v595, 0.0
  %v722 = vmax.f32 %v600, 0.0
  %v723 = vmax.f32 %v605, 0.0
  %v724 = vmax.f32 %v610, 0.0
  %v725 = vmax.f32 %v615, 0.0
  %v726 = vmax.f32 %v620, 0.0
  %v727 = vmax.f32 %v625, 0.0
  %v728 = vmax.f32 %v630, 0.0
  %v729 = vmax.f32 %v635, 0.0
  %v730 = vmax.f32 %v640, 0.0
  %v731 = vmax.f32 %v645, 0.0
  %v732 = vmax.f32 %v650, 0.0
  %v733 = vmax.f32 %v655, 0.0
  %v734 = vmax.f32 %v660, 0.0
  %v735 = vmax.f32 %v665, 0.0
  %v736 = vmax.f32 %v670, 0.0
  %v737 = vld [vmem:[%s3] sm:$0xff]
  %v738 = vld [vmem:[%s3 + $0x8] sm:$0xff]
  %v739 = vld [vmem:[%s3 + $0x10] sm:$0xff]
  %v740 = vld [vmem:[%s3 + $0x18] sm:$0xff]
  %v741 = vld [vmem:[%s3 + $0x20] sm:$0xff]
  %v742 = vld [vmem:[%s3 + $0x28] sm:$0xff]
  %v743 = vld [vmem:[%s3 + $0x30] sm:$0xff]
  %v744 = vld [vmem:[%s3 + $0x38] sm:$0xff]
  %v745 = vld [vmem:[%s3 + $0x40] sm:$0x3]
  %vm746 = vcmask 539648
  %v748 = vsel %vm746, %v673, 0
  %v751 = vsel %vm746, %v674, 0
  %v754 = vsel %vm746, %v675, 0
  %v757 = vsel %vm746, %v676, 0
  %v760 = vsel %vm746, %v677, 0
  %v763 = vsel %vm746, %v678, 0
  %v766 = vsel %vm746, %v679, 0
  %v769 = vsel %vm746, %v680, 0
  %v772 = vsel %vm746, %v681, 0
  %v775 = vsel %vm746, %v682, 0
  %v778 = vsel %vm746, %v683, 0
  %v781 = vsel %vm746, %v684, 0
  %v784 = vsel %vm746, %v685, 0
  %v787 = vsel %vm746, %v686, 0
  %v790 = vsel %vm746, %v687, 0
  %v793 = vsel %vm746, %v688, 0
  %v796 = vsel %vm746, %v689, 0
  %v799 = vsel %vm746, %v690, 0
  %v802 = vsel %vm746, %v691, 0
  %v805 = vsel %vm746, %v692, 0
  %v808 = vsel %vm746, %v693, 0
  %v811 = vsel %vm746, %v694, 0
  %v814 = vsel %vm746, %v695, 0
  %v817 = vsel %vm746, %v696, 0
  %v820 = vsel %vm746, %v697, 0
  %v823 = vsel %vm746, %v698, 0
  %v826 = vsel %vm746, %v699, 0
  %v829 = vsel %vm746, %v700, 0
  %v832 = vsel %vm746, %v701, 0
  %v835 = vsel %vm746, %v702, 0
  %v838 = vsel %vm746, %v703, 0
  %v841 = vsel %vm746, %v704, 0
  %v844 = vsel %vm746, %v705, 0
  %v847 = vsel %vm746, %v706, 0
  %v850 = vsel %vm746, %v707, 0
  %v853 = vsel %vm746, %v708, 0
  %v856 = vsel %vm746, %v709, 0
  %v859 = vsel %vm746, %v710, 0
  %v862 = vsel %vm746, %v711, 0
  %v865 = vsel %vm746, %v712, 0
  %v868 = vsel %vm746, %v713, 0
  %v871 = vsel %vm746, %v714, 0
  %v874 = vsel %vm746, %v715, 0
  %v877 = vsel %vm746, %v716, 0
  %v880 = vsel %vm746, %v717, 0
  %v883 = vsel %vm746, %v718, 0
  %v886 = vsel %vm746, %v719, 0
  %v889 = vsel %vm746, %v720, 0
  %v892 = vsel %vm746, %v721, 0
  %v895 = vsel %vm746, %v722, 0
  %v898 = vsel %vm746, %v723, 0
  %v901 = vsel %vm746, %v724, 0
  %v904 = vsel %vm746, %v725, 0
  %v907 = vsel %vm746, %v726, 0
  %v910 = vsel %vm746, %v727, 0
  %v913 = vsel %vm746, %v728, 0
  %v916 = vsel %vm746, %v729, 0
  %v919 = vsel %vm746, %v730, 0
  %v922 = vsel %vm746, %v731, 0
  %v925 = vsel %vm746, %v732, 0
  %v928 = vsel %vm746, %v733, 0
  %v931 = vsel %vm746, %v734, 0
  %v934 = vsel %vm746, %v735, 0
  %v937 = vsel %vm746, %v736, 0
  %vm939 = vcmask 1041408
  %v941 = vsel %vm939, %v745, 0
  %943 = vmatprep.subr.mxu0 0.0
  %944 = vmatpush1.msra.mxu0 %v737
  %945 = vmatprep.subr.mxu0 0.0
  %946 = vmatpush1.msra.mxu0 %v738
  %947 = vmatprep.subr.mxu0 0.0
  %948 = vmatpush1.msra.mxu0 %v739
  %949 = vmatprep.subr.mxu0 0.0
  %950 = vmatpush1.msra.mxu0 %v740
  %951 = vmatprep.subr.mxu0 0.0
  %952 = vmatpush1.msra.mxu0 %v741
  %953 = vmatprep.subr.mxu0 0.0
  %954 = vmatpush1.msra.mxu0 %v742
  %955 = vmatprep.subr.mxu0 0.0
  %956 = vmatpush1.msra.mxu0 %v743
  %957 = vmatprep.subr.mxu0 0.0
  %958 = vmatpush1.msra.mxu0 %v744
  %959 = vmatprep.subr.mxu0 0.0
  %960 = vmatpush1.msra.mxu0 %v941
  %961 = vmatprep.subr.mxu0 0.0
  %962 = vmatpush1.msra.mxu0 0.0
  %963 = vmatprep.subr.mxu0 0.0
  %964 = vmatpush1.msra.mxu0 0.0
  %965 = vmatprep.subr.mxu0 0.0
  %966 = vmatpush1.msra.mxu0 0.0
  %967 = vmatprep.subr.mxu0 0.0
  %968 = vmatpush1.msra.mxu0 0.0
  %969 = vmatprep.subr.mxu0 0.0
  %970 = vmatpush1.msra.mxu0 0.0
  %971 = vmatprep.subr.mxu0 0.0
  %972 = vmatpush1.msra.mxu0 0.0
  %973 = vmatprep.subr.mxu0 0.0
  %974 = vmatpush1.msra.mxu0 0.0
  %975 = vmatprep.subr.mxu0 0.0
  %976 = vmatpush1.msra.mxu0 0.0
  %977 = vmatprep.subr.mxu0 0.0
  %978 = vmatpush1.msra.mxu0 0.0
  %979 = vmatprep.subr.mxu0 0.0
  %980 = vmatpush1.msra.mxu0 0.0
  %981 = vmatprep.subr.mxu0 0.0
  %982 = vmatpush1.msra.mxu0 0.0
  %983 = vmatprep.subr.mxu0 0.0
  %984 = vmatpush1.msra.mxu0 0.0
  %985 = vmatprep.subr.mxu0 0.0
  %986 = vmatpush1.msra.mxu0 0.0
  %987 = vmatprep.subr.mxu0 0.0
  %988 = vmatpush1.msra.mxu0 0.0
  %989 = vmatprep.subr.mxu0 0.0
  %990 = vmatpush1.msra.mxu0 0.0
  %991 = vmatprep.subr.mxu0 0.0
  %992 = vmatpush1.msra.mxu0 0.0
  %993 = vmatprep.subr.mxu0 0.0
  %994 = vmatpush1.msra.mxu0 0.0
  %995 = vmatprep.subr.mxu0 0.0
  %996 = vmatpush1.msra.mxu0 0.0
  %997 = vmatprep.subr.mxu0 0.0
  %998 = vmatpush1.msra.mxu0 0.0
  %999 = vmatprep.subr.mxu0 0.0
  %1000 = vmatpush1.msra.mxu0 0.0
  %1001 = vmatprep.subr.mxu0 0.0
  %1002 = vmatpush1.msra.mxu0 0.0
  %1003 = vmatprep.subr.mxu0 0.0
  %1004 = vmatpush1.msra.mxu0 0.0
  %1005 = vmatprep.subr.mxu0 0.0
  %1006 = vmatpush1.msra.mxu0 0.0
  %1007 = vmatprep.mubr.f32.mxu0 0.0
  %1008 = vmatmul.mubr.f32.gmra.mrb[0].mxu0 %v748
  %v1009 = vpop.f32.mrb[0].mxu0
  %v1010 = vadd.f32 0.0, %v1009
  %v1011 = vpop.f32.mrb[0].mxu0
  %1012 = vmatprep.mubr.f32.mxu0 0.0
  %1013 = vmatmul.mubr.f32.gmra.mrb[0].mxu0 %v751
  %v1014 = vpop.f32.mrb[0].mxu0
  %v1015 = vadd.f32 0.0, %v1014
  %v1016 = vpop.f32.mrb[0].mxu0
  %1017 = vmatprep.mubr.f32.mxu0 0.0
  %1018 = vmatmul.mubr.f32.gmra.mrb[0].mxu0 %v754
  %v1019 = vpop.f32.mrb[0].mxu0
  %v1020 = vadd.f32 0.0, %v1019
  %v1021 = vpop.f32.mrb[0].mxu0
  %1022 = vmatprep.mubr.f32.mxu0 0.0
  %1023 = vmatmul.mubr.f32.gmra.mrb[0].mxu0 %v757
  %v1024 = vpop.f32.mrb[0].mxu0
  %v1025 = vadd.f32 0.0, %v1024
  %v1026 = vpop.f32.mrb[0].mxu0
  %1027 = vmatprep.mubr.f32.mxu0 0.0
  %1028 = vmatmul.mubr.f32.gmra.mrb[0].mxu0 %v760
  %v1029 = vpop.f32.mrb[0].mxu0
  %v1030 = vadd.f32 0.0, %v1029
  %v1031 = vpop.f32.mrb[0].mxu0
  %1032 = vmatprep.mubr.f32.mxu0 0.0
  %1033 = vmatmul.mubr.f32.gmra.mrb[0].mxu0 %v763
  %v1034 = vpop.f32.mrb[0].mxu0
  %v1035 = vadd.f32 0.0, %v1034
  %v1036 = vpop.f32.mrb[0].mxu0
  %1037 = vmatprep.mubr.f32.mxu0 0.0
  %1038 = vmatmul.mubr.f32.gmra.mrb[0].mxu0 %v766
  %v1039 = vpop.f32.mrb[0].mxu0
  %v1040 = vadd.f32 0.0, %v1039
  %v1041 = vpop.f32.mrb[0].mxu0
  %1042 = vmatprep.mubr.f32.mxu0 0.0
  %1043 = vmatmul.mubr.f32.gmra.mrb[0].mxu0 %v769
  %v1044 = vpop.f32.mrb[0].mxu0
  %v1045 = vadd.f32 0.0, %v1044
  %v1046 = vpop.f32.mrb[0].mxu0
  %1047 = vmatprep.mubr.f32.mxu0 0.0
  %1048 = vmatmul.mubr.f32.gmra.mrb[0].mxu0 %v772
  %v1049 = vpop.f32.mrb[0].mxu0
  %v1050 = vadd.f32 0.0, %v1049
  %v1051 = vpop.f32.mrb[0].mxu0
  %1052 = vmatprep.mubr.f32.mxu0 0.0
  %1053 = vmatmul.mubr.f32.gmra.mrb[0].mxu0 %v775
  %v1054 = vpop.f32.mrb[0].mxu0
  %v1055 = vadd.f32 0.0, %v1054
  %v1056 = vpop.f32.mrb[0].mxu0
  %1057 = vmatprep.mubr.f32.mxu0 0.0
  %1058 = vmatmul.mubr.f32.gmra.mrb[0].mxu0 %v778
  %v1059 = vpop.f32.mrb[0].mxu0
  %v1060 = vadd.f32 0.0, %v1059
  %v1061 = vpop.f32.mrb[0].mxu0
  %1062 = vmatprep.mubr.f32.mxu0 0.0
  %1063 = vmatmul.mubr.f32.gmra.mrb[0].mxu0 %v781
  %v1064 = vpop.f32.mrb[0].mxu0
  %v1065 = vadd.f32 0.0, %v1064
  %v1066 = vpop.f32.mrb[0].mxu0
  %1067 = vmatprep.mubr.f32.mxu0 0.0
  %1068 = vmatmul.mubr.f32.gmra.mrb[0].mxu0 %v784
  %v1069 = vpop.f32.mrb[0].mxu0
  %v1070 = vadd.f32 0.0, %v1069
  %v1071 = vpop.f32.mrb[0].mxu0
  %1072 = vmatprep.mubr.f32.mxu0 0.0
  %1073 = vmatmul.mubr.f32.gmra.mrb[0].mxu0 %v787
  %v1074 = vpop.f32.mrb[0].mxu0
  %v1075 = vadd.f32 0.0, %v1074
  %v1076 = vpop.f32.mrb[0].mxu0
  %1077 = vmatprep.mubr.f32.mxu0 0.0
  %1078 = vmatmul.mubr.f32.gmra.mrb[0].mxu0 %v790
  %v1079 = vpop.f32.mrb[0].mxu0
  %v1080 = vadd.f32 0.0, %v1079
  %v1081 = vpop.f32.mrb[0].mxu0
  %1082 = vmatprep.mubr.f32.mxu0 0.0
  %1083 = vmatmul.mubr.f32.gmra.mrb[0].mxu0 %v793
  %v1084 = vpop.f32.mrb[0].mxu0
  %v1085 = vadd.f32 0.0, %v1084
  %v1086 = vpop.f32.mrb[0].mxu0
  %1087 = vmatprep.mubr.f32.mxu0 0.0
  %1088 = vmatmul.mubr.f32.gmra.mrb[0].mxu0 %v796
  %v1089 = vpop.f32.mrb[0].mxu0
  %v1090 = vadd.f32 0.0, %v1089
  %v1091 = vpop.f32.mrb[0].mxu0
  %1092 = vmatprep.mubr.f32.mxu0 0.0
  %1093 = vmatmul.mubr.f32.gmra.mrb[0].mxu0 %v799
  %v1094 = vpop.f32.mrb[0].mxu0
  %v1095 = vadd.f32 0.0, %v1094
  %v1096 = vpop.f32.mrb[0].mxu0
  %1097 = vmatprep.mubr.f32.mxu0 0.0
  %1098 = vmatmul.mubr.f32.gmra.mrb[0].mxu0 %v802
  %v1099 = vpop.f32.mrb[0].mxu0
  %v1100 = vadd.f32 0.0, %v1099
  %v1101 = vpop.f32.mrb[0].mxu0
  %1102 = vmatprep.mubr.f32.mxu0 0.0
  %1103 = vmatmul.mubr.f32.gmra.mrb[0].mxu0 %v805
  %v1104 = vpop.f32.mrb[0].mxu0
  %v1105 = vadd.f32 0.0, %v1104
  %v1106 = vpop.f32.mrb[0].mxu0
  %1107 = vmatprep.mubr.f32.mxu0 0.0
  %1108 = vmatmul.mubr.f32.gmra.mrb[0].mxu0 %v808
  %v1109 = vpop.f32.mrb[0].mxu0
  %v1110 = vadd.f32 0.0, %v1109
  %v1111 = vpop.f32.mrb[0].mxu0
  %1112 = vmatprep.mubr.f32.mxu0 0.0
  %1113 = vmatmul.mubr.f32.gmra.mrb[0].mxu0 %v811
  %v1114 = vpop.f32.mrb[0].mxu0
  %v1115 = vadd.f32 0.0, %v1114
  %v1116 = vpop.f32.mrb[0].mxu0
  %1117 = vmatprep.mubr.f32.mxu0 0.0
  %1118 = vmatmul.mubr.f32.gmra.mrb[0].mxu0 %v814
  %v1119 = vpop.f32.mrb[0].mxu0
  %v1120 = vadd.f32 0.0, %v1119
  %v1121 = vpop.f32.mrb[0].mxu0
  %1122 = vmatprep.mubr.f32.mxu0 0.0
  %1123 = vmatmul.mubr.f32.gmra.mrb[0].mxu0 %v817
  %v1124 = vpop.f32.mrb[0].mxu0
  %v1125 = vadd.f32 0.0, %v1124
  %v1126 = vpop.f32.mrb[0].mxu0
  %1127 = vmatprep.mubr.f32.mxu0 0.0
  %1128 = vmatmul.mubr.f32.gmra.mrb[0].mxu0 %v820
  %v1129 = vpop.f32.mrb[0].mxu0
  %v1130 = vadd.f32 0.0, %v1129
  %v1131 = vpop.f32.mrb[0].mxu0
  %1132 = vmatprep.mubr.f32.mxu0 0.0
  %1133 = vmatmul.mubr.f32.gmra.mrb[0].mxu0 %v823
  %v1134 = vpop.f32.mrb[0].mxu0
  %v1135 = vadd.f32 0.0, %v1134
  %v1136 = vpop.f32.mrb[0].mxu0
  %1137 = vmatprep.mubr.f32.mxu0 0.0
  %1138 = vmatmul.mubr.f32.gmra.mrb[0].mxu0 %v826
  %v1139 = vpop.f32.mrb[0].mxu0
  %v1140 = vadd.f32 0.0, %v1139
  %v1141 = vpop.f32.mrb[0].mxu0
  %1142 = vmatprep.mubr.f32.mxu0 0.0
  %1143 = vmatmul.mubr.f32.gmra.mrb[0].mxu0 %v829
  %v1144 = vpop.f32.mrb[0].mxu0
  %v1145 = vadd.f32 0.0, %v1144
  %v1146 = vpop.f32.mrb[0].mxu0
  %1147 = vmatprep.mubr.f32.mxu0 0.0
  %1148 = vmatmul.mubr.f32.gmra.mrb[0].mxu0 %v832
  %v1149 = vpop.f32.mrb[0].mxu0
  %v1150 = vadd.f32 0.0, %v1149
  %v1151 = vpop.f32.mrb[0].mxu0
  %1152 = vmatprep.mubr.f32.mxu0 0.0
  %1153 = vmatmul.mubr.f32.gmra.mrb[0].mxu0 %v835
  %v1154 = vpop.f32.mrb[0].mxu0
  %v1155 = vadd.f32 0.0, %v1154
  %v1156 = vpop.f32.mrb[0].mxu0
  %1157 = vmatprep.mubr.f32.mxu0 0.0
  %1158 = vmatmul.mubr.f32.gmra.mrb[0].mxu0 %v838
  %v1159 = vpop.f32.mrb[0].mxu0
  %v1160 = vadd.f32 0.0, %v1159
  %v1161 = vpop.f32.mrb[0].mxu0
  %1162 = vmatprep.mubr.f32.mxu0 0.0
  %1163 = vmatmul.mubr.f32.gmra.mrb[0].mxu0 %v841
  %v1164 = vpop.f32.mrb[0].mxu0
  %v1165 = vadd.f32 0.0, %v1164
  %v1166 = vpop.f32.mrb[0].mxu0
  %1167 = vmatprep.mubr.f32.mxu0 0.0
  %1168 = vmatmul.mubr.f32.gmra.mrb[0].mxu0 %v844
  %v1169 = vpop.f32.mrb[0].mxu0
  %v1170 = vadd.f32 0.0, %v1169
  %v1171 = vpop.f32.mrb[0].mxu0
  %1172 = vmatprep.mubr.f32.mxu0 0.0
  %1173 = vmatmul.mubr.f32.gmra.mrb[0].mxu0 %v847
  %v1174 = vpop.f32.mrb[0].mxu0
  %v1175 = vadd.f32 0.0, %v1174
  %v1176 = vpop.f32.mrb[0].mxu0
  %1177 = vmatprep.mubr.f32.mxu0 0.0
  %1178 = vmatmul.mubr.f32.gmra.mrb[0].mxu0 %v850
  %v1179 = vpop.f32.mrb[0].mxu0
  %v1180 = vadd.f32 0.0, %v1179
  %v1181 = vpop.f32.mrb[0].mxu0
  %1182 = vmatprep.mubr.f32.mxu0 0.0
  %1183 = vmatmul.mubr.f32.gmra.mrb[0].mxu0 %v853
  %v1184 = vpop.f32.mrb[0].mxu0
  %v1185 = vadd.f32 0.0, %v1184
  %v1186 = vpop.f32.mrb[0].mxu0
  %1187 = vmatprep.mubr.f32.mxu0 0.0
  %1188 = vmatmul.mubr.f32.gmra.mrb[0].mxu0 %v856
  %v1189 = vpop.f32.mrb[0].mxu0
  %v1190 = vadd.f32 0.0, %v1189
  %v1191 = vpop.f32.mrb[0].mxu0
  %1192 = vmatprep.mubr.f32.mxu0 0.0
  %1193 = vmatmul.mubr.f32.gmra.mrb[0].mxu0 %v859
  %v1194 = vpop.f32.mrb[0].mxu0
  %v1195 = vadd.f32 0.0, %v1194
  %v1196 = vpop.f32.mrb[0].mxu0
  %1197 = vmatprep.mubr.f32.mxu0 0.0
  %1198 = vmatmul.mubr.f32.gmra.mrb[0].mxu0 %v862
  %v1199 = vpop.f32.mrb[0].mxu0
  %v1200 = vadd.f32 0.0, %v1199
  %v1201 = vpop.f32.mrb[0].mxu0
  %1202 = vmatprep.mubr.f32.mxu0 0.0
  %1203 = vmatmul.mubr.f32.gmra.mrb[0].mxu0 %v865
  %v1204 = vpop.f32.mrb[0].mxu0
  %v1205 = vadd.f32 0.0, %v1204
  %v1206 = vpop.f32.mrb[0].mxu0
  %1207 = vmatprep.mubr.f32.mxu0 0.0
  %1208 = vmatmul.mubr.f32.gmra.mrb[0].mxu0 %v868
  %v1209 = vpop.f32.mrb[0].mxu0
  %v1210 = vadd.f32 0.0, %v1209
  %v1211 = vpop.f32.mrb[0].mxu0
  %1212 = vmatprep.mubr.f32.mxu0 0.0
  %1213 = vmatmul.mubr.f32.gmra.mrb[0].mxu0 %v871
  %v1214 = vpop.f32.mrb[0].mxu0
  %v1215 = vadd.f32 0.0, %v1214
  %v1216 = vpop.f32.mrb[0].mxu0
  %1217 = vmatprep.mubr.f32.mxu0 0.0
  %1218 = vmatmul.mubr.f32.gmra.mrb[0].mxu0 %v874
  %v1219 = vpop.f32.mrb[0].mxu0
  %v1220 = vadd.f32 0.0, %v1219
  %v1221 = vpop.f32.mrb[0].mxu0
  %1222 = vmatprep.mubr.f32.mxu0 0.0
  %1223 = vmatmul.mubr.f32.gmra.mrb[0].mxu0 %v877
  %v1224 = vpop.f32.mrb[0].mxu0
  %v1225 = vadd.f32 0.0, %v1224
  %v1226 = vpop.f32.mrb[0].mxu0
  %1227 = vmatprep.mubr.f32.mxu0 0.0
  %1228 = vmatmul.mubr.f32.gmra.mrb[0].mxu0 %v880
  %v1229 = vpop.f32.mrb[0].mxu0
  %v1230 = vadd.f32 0.0, %v1229
  %v1231 = vpop.f32.mrb[0].mxu0
  %1232 = vmatprep.mubr.f32.mxu0 0.0
  %1233 = vmatmul.mubr.f32.gmra.mrb[0].mxu0 %v883
  %v1234 = vpop.f32.mrb[0].mxu0
  %v1235 = vadd.f32 0.0, %v1234
  %v1236 = vpop.f32.mrb[0].mxu0
  %1237 = vmatprep.mubr.f32.mxu0 0.0
  %1238 = vmatmul.mubr.f32.gmra.mrb[0].mxu0 %v886
  %v1239 = vpop.f32.mrb[0].mxu0
  %v1240 = vadd.f32 0.0, %v1239
  %v1241 = vpop.f32.mrb[0].mxu0
  %1242 = vmatprep.mubr.f32.mxu0 0.0
  %1243 = vmatmul.mubr.f32.gmra.mrb[0].mxu0 %v889
  %v1244 = vpop.f32.mrb[0].mxu0
  %v1245 = vadd.f32 0.0, %v1244
  %v1246 = vpop.f32.mrb[0].mxu0
  %1247 = vmatprep.mubr.f32.mxu0 0.0
  %1248 = vmatmul.mubr.f32.gmra.mrb[0].mxu0 %v892
  %v1249 = vpop.f32.mrb[0].mxu0
  %v1250 = vadd.f32 0.0, %v1249
  %v1251 = vpop.f32.mrb[0].mxu0
  %1252 = vmatprep.mubr.f32.mxu0 0.0
  %1253 = vmatmul.mubr.f32.gmra.mrb[0].mxu0 %v895
  %v1254 = vpop.f32.mrb[0].mxu0
  %v1255 = vadd.f32 0.0, %v1254
  %v1256 = vpop.f32.mrb[0].mxu0
  %1257 = vmatprep.mubr.f32.mxu0 0.0
  %1258 = vmatmul.mubr.f32.gmra.mrb[0].mxu0 %v898
  %v1259 = vpop.f32.mrb[0].mxu0
  %v1260 = vadd.f32 0.0, %v1259
  %v1261 = vpop.f32.mrb[0].mxu0
  %1262 = vmatprep.mubr.f32.mxu0 0.0
  %1263 = vmatmul.mubr.f32.gmra.mrb[0].mxu0 %v901
  %v1264 = vpop.f32.mrb[0].mxu0
  %v1265 = vadd.f32 0.0, %v1264
  %v1266 = vpop.f32.mrb[0].mxu0
  %1267 = vmatprep.mubr.f32.mxu0 0.0
  %1268 = vmatmul.mubr.f32.gmra.mrb[0].mxu0 %v904
  %v1269 = vpop.f32.mrb[0].mxu0
  %v1270 = vadd.f32 0.0, %v1269
  %v1271 = vpop.f32.mrb[0].mxu0
  %1272 = vmatprep.mubr.f32.mxu0 0.0
  %1273 = vmatmul.mubr.f32.gmra.mrb[0].mxu0 %v907
  %v1274 = vpop.f32.mrb[0].mxu0
  %v1275 = vadd.f32 0.0, %v1274
  %v1276 = vpop.f32.mrb[0].mxu0
  %1277 = vmatprep.mubr.f32.mxu0 0.0
  %1278 = vmatmul.mubr.f32.gmra.mrb[0].mxu0 %v910
  %v1279 = vpop.f32.mrb[0].mxu0
  %v1280 = vadd.f32 0.0, %v1279
  %v1281 = vpop.f32.mrb[0].mxu0
  %1282 = vmatprep.mubr.f32.mxu0 0.0
  %1283 = vmatmul.mubr.f32.gmra.mrb[0].mxu0 %v913
  %v1284 = vpop.f32.mrb[0].mxu0
  %v1285 = vadd.f32 0.0, %v1284
  %v1286 = vpop.f32.mrb[0].mxu0
  %1287 = vmatprep.mubr.f32.mxu0 0.0
  %1288 = vmatmul.mubr.f32.gmra.mrb[0].mxu0 %v916
  %v1289 = vpop.f32.mrb[0].mxu0
  %v1290 = vadd.f32 0.0, %v1289
  %v1291 = vpop.f32.mrb[0].mxu0
  %1292 = vmatprep.mubr.f32.mxu0 0.0
  %1293 = vmatmul.mubr.f32.gmra.mrb[0].mxu0 %v919
  %v1294 = vpop.f32.mrb[0].mxu0
  %v1295 = vadd.f32 0.0, %v1294
  %v1296 = vpop.f32.mrb[0].mxu0
  %1297 = vmatprep.mubr.f32.mxu0 0.0
  %1298 = vmatmul.mubr.f32.gmra.mrb[0].mxu0 %v922
  %v1299 = vpop.f32.mrb[0].mxu0
  %v1300 = vadd.f32 0.0, %v1299
  %v1301 = vpop.f32.mrb[0].mxu0
  %1302 = vmatprep.mubr.f32.mxu0 0.0
  %1303 = vmatmul.mubr.f32.gmra.mrb[0].mxu0 %v925
  %v1304 = vpop.f32.mrb[0].mxu0
  %v1305 = vadd.f32 0.0, %v1304
  %v1306 = vpop.f32.mrb[0].mxu0
  %1307 = vmatprep.mubr.f32.mxu0 0.0
  %1308 = vmatmul.mubr.f32.gmra.mrb[0].mxu0 %v928
  %v1309 = vpop.f32.mrb[0].mxu0
  %v1310 = vadd.f32 0.0, %v1309
  %v1311 = vpop.f32.mrb[0].mxu0
  %1312 = vmatprep.mubr.f32.mxu0 0.0
  %1313 = vmatmul.mubr.f32.gmra.mrb[0].mxu0 %v931
  %v1314 = vpop.f32.mrb[0].mxu0
  %v1315 = vadd.f32 0.0, %v1314
  %v1316 = vpop.f32.mrb[0].mxu0
  %1317 = vmatprep.mubr.f32.mxu0 0.0
  %1318 = vmatmul.mubr.f32.gmra.mrb[0].mxu0 %v934
  %v1319 = vpop.f32.mrb[0].mxu0
  %v1320 = vadd.f32 0.0, %v1319
  %v1321 = vpop.f32.mrb[0].mxu0
  %1322 = vmatprep.mubr.f32.mxu0 0.0
  %1323 = vmatmul.mubr.f32.gmra.mrb[0].mxu0 %v937
  %v1324 = vpop.f32.mrb[0].mxu0
  %v1325 = vadd.f32 0.0, %v1324
  %v1326 = vpop.f32.mrb[0].mxu0
  %1327 = vdwg.mxu0
  %vm1328 = vcmp.gt.f32.partialorder %v1010, 0.0
  %vm1329 = vcmp.gt.f32.partialorder %v1015, 0.0
  %vm1330 = vcmp.gt.f32.partialorder %v1020, 0.0
  %vm1331 = vcmp.gt.f32.partialorder %v1025, 0.0
  %vm1332 = vcmp.gt.f32.partialorder %v1030, 0.0
  %vm1333 = vcmp.gt.f32.partialorder %v1035, 0.0
  %vm1334 = vcmp.gt.f32.partialorder %v1040, 0.0
  %vm1335 = vcmp.gt.f32.partialorder %v1045, 0.0
  %vm1336 = vcmp.gt.f32.partialorder %v1050, 0.0
  %vm1337 = vcmp.gt.f32.partialorder %v1055, 0.0
  %vm1338 = vcmp.gt.f32.partialorder %v1060, 0.0
  %vm1339 = vcmp.gt.f32.partialorder %v1065, 0.0
  %vm1340 = vcmp.gt.f32.partialorder %v1070, 0.0
  %vm1341 = vcmp.gt.f32.partialorder %v1075, 0.0
  %vm1342 = vcmp.gt.f32.partialorder %v1080, 0.0
  %vm1343 = vcmp.gt.f32.partialorder %v1085, 0.0
  %vm1344 = vcmp.gt.f32.partialorder %v1090, 0.0
  %vm1345 = vcmp.gt.f32.partialorder %v1095, 0.0
  %vm1346 = vcmp.gt.f32.partialorder %v1100, 0.0
  %vm1347 = vcmp.gt.f32.partialorder %v1105, 0.0
  %vm1348 = vcmp.gt.f32.partialorder %v1110, 0.0
  %vm1349 = vcmp.gt.f32.partialorder %v1115, 0.0
  %vm1350 = vcmp.gt.f32.partialorder %v1120, 0.0
  %vm1351 = vcmp.gt.f32.partialorder %v1125, 0.0
  %vm1352 = vcmp.gt.f32.partialorder %v1130, 0.0
  %vm1353 = vcmp.gt.f32.partialorder %v1135, 0.0
  %vm1354 = vcmp.gt.f32.partialorder %v1140, 0.0
  %vm1355 = vcmp.gt.f32.partialorder %v1145, 0.0
  %vm1356 = vcmp.gt.f32.partialorder %v1150, 0.0
  %vm1357 = vcmp.gt.f32.partialorder %v1155, 0.0
  %vm1358 = vcmp.gt.f32.partialorder %v1160, 0.0
  %vm1359 = vcmp.gt.f32.partialorder %v1165, 0.0
  %vm1360 = vcmp.gt.f32.partialorder %v1170, 0.0
  %vm1361 = vcmp.gt.f32.partialorder %v1175, 0.0
  %vm1362 = vcmp.gt.f32.partialorder %v1180, 0.0
  %vm1363 = vcmp.gt.f32.partialorder %v1185, 0.0
  %vm1364 = vcmp.gt.f32.partialorder %v1190, 0.0
  %vm1365 = vcmp.gt.f32.partialorder %v1195, 0.0
  %vm1366 = vcmp.gt.f32.partialorder %v1200, 0.0
  %vm1367 = vcmp.gt.f32.partialorder %v1205, 0.0
  %vm1368 = vcmp.gt.f32.partialorder %v1210, 0.0
  %vm1369 = vcmp.gt.f32.partialorder %v1215, 0.0
  %vm1370 = vcmp.gt.f32.partialorder %v1220, 0.0
  %vm1371 = vcmp.gt.f32.partialorder %v1225, 0.0
  %vm1372 = vcmp.gt.f32.partialorder %v1230, 0.0
  %vm1373 = vcmp.gt.f32.partialorder %v1235, 0.0
  %vm1374 = vcmp.gt.f32.partialorder %v1240, 0.0
  %vm1375 = vcmp.gt.f32.partialorder %v1245, 0.0
  %vm1376 = vcmp.gt.f32.partialorder %v1250, 0.0
  %vm1377 = vcmp.gt.f32.partialorder %v1255, 0.0
  %vm1378 = vcmp.gt.f32.partialorder %v1260, 0.0
  %vm1379 = vcmp.gt.f32.partialorder %v1265, 0.0
  %vm1380 = vcmp.gt.f32.partialorder %v1270, 0.0
  %vm1381 = vcmp.gt.f32.partialorder %v1275, 0.0
  %vm1382 = vcmp.gt.f32.partialorder %v1280, 0.0
  %vm1383 = vcmp.gt.f32.partialorder %v1285, 0.0
  %vm1384 = vcmp.gt.f32.partialorder %v1290, 0.0
  %vm1385 = vcmp.gt.f32.partialorder %v1295, 0.0
  %vm1386 = vcmp.gt.f32.partialorder %v1300, 0.0
  %vm1387 = vcmp.gt.f32.partialorder %v1305, 0.0
  %vm1388 = vcmp.gt.f32.partialorder %v1310, 0.0
  %vm1389 = vcmp.gt.f32.partialorder %v1315, 0.0
  %vm1390 = vcmp.gt.f32.partialorder %v1320, 0.0
  %vm1391 = vcmp.gt.f32.partialorder %v1325, 0.0
  %v1392 = vmul.f32 %v1010, 0.2
  %v1393 = vmul.f32 %v1015, 0.2
  %v1394 = vmul.f32 %v1020, 0.2
  %v1395 = vmul.f32 %v1025, 0.2
  %v1396 = vmul.f32 %v1030, 0.2
  %v1397 = vmul.f32 %v1035, 0.2
  %v1398 = vmul.f32 %v1040, 0.2
  %v1399 = vmul.f32 %v1045, 0.2
  %v1400 = vmul.f32 %v1050, 0.2
  %v1401 = vmul.f32 %v1055, 0.2
  %v1402 = vmul.f32 %v1060, 0.2
  %v1403 = vmul.f32 %v1065, 0.2
  %v1404 = vmul.f32 %v1070, 0.2
  %v1405 = vmul.f32 %v1075, 0.2
  %v1406 = vmul.f32 %v1080, 0.2
  %v1407 = vmul.f32 %v1085, 0.2
  %v1408 = vmul.f32 %v1090, 0.2
  %v1409 = vmul.f32 %v1095, 0.2
  %v1410 = vmul.f32 %v1100, 0.2
  %v1411 = vmul.f32 %v1105, 0.2
  %v1412 = vmul.f32 %v1110, 0.2
  %v1413 = vmul.f32 %v1115, 0.2
  %v1414 = vmul.f32 %v1120, 0.2
  %v1415 = vmul.f32 %v1125, 0.2
  %v1416 = vmul.f32 %v1130, 0.2
  %v1417 = vmul.f32 %v1135, 0.2
  %v1418 = vmul.f32 %v1140, 0.2
  %v1419 = vmul.f32 %v1145, 0.2
  %v1420 = vmul.f32 %v1150, 0.2
  %v1421 = vmul.f32 %v1155, 0.2
  %v1422 = vmul.f32 %v1160, 0.2
  %v1423 = vmul.f32 %v1165, 0.2
  %v1424 = vmul.f32 %v1170, 0.2
  %v1425 = vmul.f32 %v1175, 0.2
  %v1426 = vmul.f32 %v1180, 0.2
  %v1427 = vmul.f32 %v1185, 0.2
  %v1428 = vmul.f32 %v1190, 0.2
  %v1429 = vmul.f32 %v1195, 0.2
  %v1430 = vmul.f32 %v1200, 0.2
  %v1431 = vmul.f32 %v1205, 0.2
  %v1432 = vmul.f32 %v1210, 0.2
  %v1433 = vmul.f32 %v1215, 0.2
  %v1434 = vmul.f32 %v1220, 0.2
  %v1435 = vmul.f32 %v1225, 0.2
  %v1436 = vmul.f32 %v1230, 0.2
  %v1437 = vmul.f32 %v1235, 0.2
  %v1438 = vmul.f32 %v1240, 0.2
  %v1439 = vmul.f32 %v1245, 0.2
  %v1440 = vmul.f32 %v1250, 0.2
  %v1441 = vmul.f32 %v1255, 0.2
  %v1442 = vmul.f32 %v1260, 0.2
  %v1443 = vmul.f32 %v1265, 0.2
  %v1444 = vmul.f32 %v1270, 0.2
  %v1445 = vmul.f32 %v1275, 0.2
  %v1446 = vmul.f32 %v1280, 0.2
  %v1447 = vmul.f32 %v1285, 0.2
  %v1448 = vmul.f32 %v1290, 0.2
  %v1449 = vmul.f32 %v1295, 0.2
  %v1450 = vmul.f32 %v1300, 0.2
  %v1451 = vmul.f32 %v1305, 0.2
  %v1452 = vmul.f32 %v1310, 0.2
  %v1453 = vmul.f32 %v1315, 0.2
  %v1454 = vmul.f32 %v1320, 0.2
  %v1455 = vmul.f32 %v1325, 0.2
  %v1456 = vsel %vm1328, %v1010, %v1392
  %v1457 = vsel %vm1329, %v1015, %v1393
  %v1458 = vsel %vm1330, %v1020, %v1394
  %v1459 = vsel %vm1331, %v1025, %v1395
  %v1460 = vsel %vm1332, %v1030, %v1396
  %v1461 = vsel %vm1333, %v1035, %v1397
  %v1462 = vsel %vm1334, %v1040, %v1398
  %v1463 = vsel %vm1335, %v1045, %v1399
  %v1464 = vsel %vm1336, %v1050, %v1400
  %v1465 = vsel %vm1337, %v1055, %v1401
  %v1466 = vsel %vm1338, %v1060, %v1402
  %v1467 = vsel %vm1339, %v1065, %v1403
  %v1468 = vsel %vm1340, %v1070, %v1404
  %v1469 = vsel %vm1341, %v1075, %v1405
  %v1470 = vsel %vm1342, %v1080, %v1406
  %v1471 = vsel %vm1343, %v1085, %v1407
  %v1472 = vsel %vm1344, %v1090, %v1408
  %v1473 = vsel %vm1345, %v1095, %v1409
  %v1474 = vsel %vm1346, %v1100, %v1410
  %v1475 = vsel %vm1347, %v1105, %v1411
  %v1476 = vsel %vm1348, %v1110, %v1412
  %v1477 = vsel %vm1349, %v1115, %v1413
  %v1478 = vsel %vm1350, %v1120, %v1414
  %v1479 = vsel %vm1351, %v1125, %v1415
  %v1480 = vsel %vm1352, %v1130, %v1416
  %v1481 = vsel %vm1353, %v1135, %v1417
  %v1482 = vsel %vm1354, %v1140, %v1418
  %v1483 = vsel %vm1355, %v1145, %v1419
  %v1484 = vsel %vm1356, %v1150, %v1420
  %v1485 = vsel %vm1357, %v1155, %v1421
  %v1486 = vsel %vm1358, %v1160, %v1422
  %v1487 = vsel %vm1359, %v1165, %v1423
  %v1488 = vsel %vm1360, %v1170, %v1424
  %v1489 = vsel %vm1361, %v1175, %v1425
  %v1490 = vsel %vm1362, %v1180, %v1426
  %v1491 = vsel %vm1363, %v1185, %v1427
  %v1492 = vsel %vm1364, %v1190, %v1428
  %v1493 = vsel %vm1365, %v1195, %v1429
  %v1494 = vsel %vm1366, %v1200, %v1430
  %v1495 = vsel %vm1367, %v1205, %v1431
  %v1496 = vsel %vm1368, %v1210, %v1432
  %v1497 = vsel %vm1369, %v1215, %v1433
  %v1498 = vsel %vm1370, %v1220, %v1434
  %v1499 = vsel %vm1371, %v1225, %v1435
  %v1500 = vsel %vm1372, %v1230, %v1436
  %v1501 = vsel %vm1373, %v1235, %v1437
  %v1502 = vsel %vm1374, %v1240, %v1438
  %v1503 = vsel %vm1375, %v1245, %v1439
  %v1504 = vsel %vm1376, %v1250, %v1440
  %v1505 = vsel %vm1377, %v1255, %v1441
  %v1506 = vsel %vm1378, %v1260, %v1442
  %v1507 = vsel %vm1379, %v1265, %v1443
  %v1508 = vsel %vm1380, %v1270, %v1444
  %v1509 = vsel %vm1381, %v1275, %v1445
  %v1510 = vsel %vm1382, %v1280, %v1446
  %v1511 = vsel %vm1383, %v1285, %v1447
  %v1512 = vsel %vm1384, %v1290, %v1448
  %v1513 = vsel %vm1385, %v1295, %v1449
  %v1514 = vsel %vm1386, %v1300, %v1450
  %v1515 = vsel %vm1387, %v1305, %v1451
  %v1516 = vsel %vm1388, %v1310, %v1452
  %v1517 = vsel %vm1389, %v1315, %v1453
  %v1518 = vsel %vm1390, %v1320, %v1454
  %v1519 = vsel %vm1391, %v1325, %v1455
  %vm1520 = vcmask 31744
  %1521 = vst.msk [vmem:[%s6] sm:$0xff] %vm1520, %v1456
  %1522 = vst.msk [vmem:[%s6 + $0x8] sm:$0xff] %vm1520, %v1457
  %1523 = vst.msk [vmem:[%s6 + $0x10] sm:$0xff] %vm1520, %v1458
  %1524 = vst.msk [vmem:[%s6 + $0x18] sm:$0xff] %vm1520, %v1459
  %1525 = vst.msk [vmem:[%s6 + $0x20] sm:$0xff] %vm1520, %v1460
  %1526 = vst.msk [vmem:[%s6 + $0x28] sm:$0xff] %vm1520, %v1461
  %1527 = vst.msk [vmem:[%s6 + $0x30] sm:$0xff] %vm1520, %v1462
  %1528 = vst.msk [vmem:[%s6 + $0x38] sm:$0xff] %vm1520, %v1463
  %1529 = vst.msk [vmem:[%s6 + $0x40] sm:$0xff] %vm1520, %v1464
  %1530 = vst.msk [vmem:[%s6 + $0x48] sm:$0xff] %vm1520, %v1465
  %1531 = vst.msk [vmem:[%s6 + $0x50] sm:$0xff] %vm1520, %v1466
  %1532 = vst.msk [vmem:[%s6 + $0x58] sm:$0xff] %vm1520, %v1467
  %1533 = vst.msk [vmem:[%s6 + $0x60] sm:$0xff] %vm1520, %v1468
  %1534 = vst.msk [vmem:[%s6 + $0x68] sm:$0xff] %vm1520, %v1469
  %1535 = vst.msk [vmem:[%s6 + $0x70] sm:$0xff] %vm1520, %v1470
  %1536 = vst.msk [vmem:[%s6 + $0x78] sm:$0xff] %vm1520, %v1471
  %1537 = vst.msk [vmem:[%s6 + $0x80] sm:$0xff] %vm1520, %v1472
  %1538 = vst.msk [vmem:[%s6 + $0x88] sm:$0xff] %vm1520, %v1473
  %1539 = vst.msk [vmem:[%s6 + $0x90] sm:$0xff] %vm1520, %v1474
  %1540 = vst.msk [vmem:[%s6 + $0x98] sm:$0xff] %vm1520, %v1475
  %1541 = vst.msk [vmem:[%s6 + $0xa0] sm:$0xff] %vm1520, %v1476
  %1542 = vst.msk [vmem:[%s6 + $0xa8] sm:$0xff] %vm1520, %v1477
  %1543 = vst.msk [vmem:[%s6 + $0xb0] sm:$0xff] %vm1520, %v1478
  %1544 = vst.msk [vmem:[%s6 + $0xb8] sm:$0xff] %vm1520, %v1479
  %1545 = vst.msk [vmem:[%s6 + $0xc0] sm:$0xff] %vm1520, %v1480
  %1546 = vst.msk [vmem:[%s6 + $0xc8] sm:$0xff] %vm1520, %v1481
  %1547 = vst.msk [vmem:[%s6 + $0xd0] sm:$0xff] %vm1520, %v1482
  %1548 = vst.msk [vmem:[%s6 + $0xd8] sm:$0xff] %vm1520, %v1483
  %1549 = vst.msk [vmem:[%s6 + $0xe0] sm:$0xff] %vm1520, %v1484
  %1550 = vst.msk [vmem:[%s6 + $0xe8] sm:$0xff] %vm1520, %v1485
  %1551 = vst.msk [vmem:[%s6 + $0xf0] sm:$0xff] %vm1520, %v1486
  %1552 = vst.msk [vmem:[%s6 + $0xf8] sm:$0xff] %vm1520, %v1487
  %1553 = vst.msk [vmem:[%s6 + $0x100] sm:$0xff] %vm1520, %v1488
  %1554 = vst.msk [vmem:[%s6 + $0x108] sm:$0xff] %vm1520, %v1489
  %1555 = vst.msk [vmem:[%s6 + $0x110] sm:$0xff] %vm1520, %v1490
  %1556 = vst.msk [vmem:[%s6 + $0x118] sm:$0xff] %vm1520, %v1491
  %1557 = vst.msk [vmem:[%s6 + $0x120] sm:$0xff] %vm1520, %v1492
  %1558 = vst.msk [vmem:[%s6 + $0x128] sm:$0xff] %vm1520, %v1493
  %1559 = vst.msk [vmem:[%s6 + $0x130] sm:$0xff] %vm1520, %v1494
  %1560 = vst.msk [vmem:[%s6 + $0x138] sm:$0xff] %vm1520, %v1495
  %1561 = vst.msk [vmem:[%s6 + $0x140] sm:$0xff] %vm1520, %v1496
  %1562 = vst.msk [vmem:[%s6 + $0x148] sm:$0xff] %vm1520, %v1497
  %1563 = vst.msk [vmem:[%s6 + $0x150] sm:$0xff] %vm1520, %v1498
  %1564 = vst.msk [vmem:[%s6 + $0x158] sm:$0xff] %vm1520, %v1499
  %1565 = vst.msk [vmem:[%s6 + $0x160] sm:$0xff] %vm1520, %v1500
  %1566 = vst.msk [vmem:[%s6 + $0x168] sm:$0xff] %vm1520, %v1501
  %1567 = vst.msk [vmem:[%s6 + $0x170] sm:$0xff] %vm1520, %v1502
  %1568 = vst.msk [vmem:[%s6 + $0x178] sm:$0xff] %vm1520, %v1503
  %1569 = vst.msk [vmem:[%s6 + $0x180] sm:$0xff] %vm1520, %v1504
  %1570 = vst.msk [vmem:[%s6 + $0x188] sm:$0xff] %vm1520, %v1505
  %1571 = vst.msk [vmem:[%s6 + $0x190] sm:$0xff] %vm1520, %v1506
  %1572 = vst.msk [vmem:[%s6 + $0x198] sm:$0xff] %vm1520, %v1507
  %1573 = vst.msk [vmem:[%s6 + $0x1a0] sm:$0xff] %vm1520, %v1508
  %1574 = vst.msk [vmem:[%s6 + $0x1a8] sm:$0xff] %vm1520, %v1509
  %1575 = vst.msk [vmem:[%s6 + $0x1b0] sm:$0xff] %vm1520, %v1510
  %1576 = vst.msk [vmem:[%s6 + $0x1b8] sm:$0xff] %vm1520, %v1511
  %1577 = vst.msk [vmem:[%s6 + $0x1c0] sm:$0xff] %vm1520, %v1512
  %1578 = vst.msk [vmem:[%s6 + $0x1c8] sm:$0xff] %vm1520, %v1513
  %1579 = vst.msk [vmem:[%s6 + $0x1d0] sm:$0xff] %vm1520, %v1514
  %1580 = vst.msk [vmem:[%s6 + $0x1d8] sm:$0xff] %vm1520, %v1515
  %1581 = vst.msk [vmem:[%s6 + $0x1e0] sm:$0xff] %vm1520, %v1516
  %1582 = vst.msk [vmem:[%s6 + $0x1e8] sm:$0xff] %vm1520, %v1517
  %1583 = vst.msk [vmem:[%s6 + $0x1f0] sm:$0xff] %vm1520, %v1518
  %1584 = vst.msk [vmem:[%s6 + $0x1f8] sm:$0xff] %vm1520, %v1519
  %1585 = vst.msk [vmem:[%s4] sm:$0xff] %vm95, %v673
  %1586 = vst.msk [vmem:[%s4 + $0x8] sm:$0xff] %vm95, %v674
  %1587 = vst.msk [vmem:[%s4 + $0x10] sm:$0xff] %vm95, %v675
  %1588 = vst.msk [vmem:[%s4 + $0x18] sm:$0xff] %vm95, %v676
  %1589 = vst.msk [vmem:[%s4 + $0x20] sm:$0xff] %vm95, %v677
  %1590 = vst.msk [vmem:[%s4 + $0x28] sm:$0xff] %vm95, %v678
  %1591 = vst.msk [vmem:[%s4 + $0x30] sm:$0xff] %vm95, %v679
  %1592 = vst.msk [vmem:[%s4 + $0x38] sm:$0xff] %vm95, %v680
  %1593 = vst.msk [vmem:[%s4 + $0x40] sm:$0xff] %vm95, %v681
  %1594 = vst.msk [vmem:[%s4 + $0x48] sm:$0xff] %vm95, %v682
  %1595 = vst.msk [vmem:[%s4 + $0x50] sm:$0xff] %vm95, %v683
  %1596 = vst.msk [vmem:[%s4 + $0x58] sm:$0xff] %vm95, %v684
  %1597 = vst.msk [vmem:[%s4 + $0x60] sm:$0xff] %vm95, %v685
  %1598 = vst.msk [vmem:[%s4 + $0x68] sm:$0xff] %vm95, %v686
  %1599 = vst.msk [vmem:[%s4 + $0x70] sm:$0xff] %vm95, %v687
  %1600 = vst.msk [vmem:[%s4 + $0x78] sm:$0xff] %vm95, %v688
  %1601 = vst.msk [vmem:[%s4 + $0x80] sm:$0xff] %vm95, %v689
  %1602 = vst.msk [vmem:[%s4 + $0x88] sm:$0xff] %vm95, %v690
  %1603 = vst.msk [vmem:[%s4 + $0x90] sm:$0xff] %vm95, %v691
  %1604 = vst.msk [vmem:[%s4 + $0x98] sm:$0xff] %vm95, %v692
  %1605 = vst.msk [vmem:[%s4 + $0xa0] sm:$0xff] %vm95, %v693
  %1606 = vst.msk [vmem:[%s4 + $0xa8] sm:$0xff] %vm95, %v694
  %1607 = vst.msk [vmem:[%s4 + $0xb0] sm:$0xff] %vm95, %v695
  %1608 = vst.msk [vmem:[%s4 + $0xb8] sm:$0xff] %vm95, %v696
  %1609 = vst.msk [vmem:[%s4 + $0xc0] sm:$0xff] %vm95, %v697
  %1610 = vst.msk [vmem:[%s4 + $0xc8] sm:$0xff] %vm95, %v698
  %1611 = vst.msk [vmem:[%s4 + $0xd0] sm:$0xff] %vm95, %v699
  %1612 = vst.msk [vmem:[%s4 + $0xd8] sm:$0xff] %vm95, %v700
  %1613 = vst.msk [vmem:[%s4 + $0xe0] sm:$0xff] %vm95, %v701
  %1614 = vst.msk [vmem:[%s4 + $0xe8] sm:$0xff] %vm95, %v702
  %1615 = vst.msk [vmem:[%s4 + $0xf0] sm:$0xff] %vm95, %v703
  %1616 = vst.msk [vmem:[%s4 + $0xf8] sm:$0xff] %vm95, %v704
  %1617 = vst.msk [vmem:[%s4 + $0x100] sm:$0xff] %vm95, %v705
  %1618 = vst.msk [vmem:[%s4 + $0x108] sm:$0xff] %vm95, %v706
  %1619 = vst.msk [vmem:[%s4 + $0x110] sm:$0xff] %vm95, %v707
  %1620 = vst.msk [vmem:[%s4 + $0x118] sm:$0xff] %vm95, %v708
  %1621 = vst.msk [vmem:[%s4 + $0x120] sm:$0xff] %vm95, %v709
  %1622 = vst.msk [vmem:[%s4 + $0x128] sm:$0xff] %vm95, %v710
  %1623 = vst.msk [vmem:[%s4 + $0x130] sm:$0xff] %vm95, %v711
  %1624 = vst.msk [vmem:[%s4 + $0x138] sm:$0xff] %vm95, %v712
  %1625 = vst.msk [vmem:[%s4 + $0x140] sm:$0xff] %vm95, %v713
  %1626 = vst.msk [vmem:[%s4 + $0x148] sm:$0xff] %vm95, %v714
  %1627 = vst.msk [vmem:[%s4 + $0x150] sm:$0xff] %vm95, %v715
  %1628 = vst.msk [vmem:[%s4 + $0x158] sm:$0xff] %vm95, %v716
  %1629 = vst.msk [vmem:[%s4 + $0x160] sm:$0xff] %vm95, %v717
  %1630 = vst.msk [vmem:[%s4 + $0x168] sm:$0xff] %vm95, %v718
  %1631 = vst.msk [vmem:[%s4 + $0x170] sm:$0xff] %vm95, %v719
  %1632 = vst.msk [vmem:[%s4 + $0x178] sm:$0xff] %vm95, %v720
  %1633 = vst.msk [vmem:[%s4 + $0x180] sm:$0xff] %vm95, %v721
  %1634 = vst.msk [vmem:[%s4 + $0x188] sm:$0xff] %vm95, %v722
  %1635 = vst.msk [vmem:[%s4 + $0x190] sm:$0xff] %vm95, %v723
  %1636 = vst.msk [vmem:[%s4 + $0x198] sm:$0xff] %vm95, %v724
  %1637 = vst.msk [vmem:[%s4 + $0x1a0] sm:$0xff] %vm95, %v725
  %1638 = vst.msk [vmem:[%s4 + $0x1a8] sm:$0xff] %vm95, %v726
  %1639 = vst.msk [vmem:[%s4 + $0x1b0] sm:$0xff] %vm95, %v727
  %1640 = vst.msk [vmem:[%s4 + $0x1b8] sm:$0xff] %vm95, %v728
  %1641 = vst.msk [vmem:[%s4 + $0x1c0] sm:$0xff] %vm95, %v729
  %1642 = vst.msk [vmem:[%s4 + $0x1c8] sm:$0xff] %vm95, %v730
  %1643 = vst.msk [vmem:[%s4 + $0x1d0] sm:$0xff] %vm95, %v731
  %1644 = vst.msk [vmem:[%s4 + $0x1d8] sm:$0xff] %vm95, %v732
  %1645 = vst.msk [vmem:[%s4 + $0x1e0] sm:$0xff] %vm95, %v733
  %1646 = vst.msk [vmem:[%s4 + $0x1e8] sm:$0xff] %vm95, %v734
  %1647 = vst.msk [vmem:[%s4 + $0x1f0] sm:$0xff] %vm95, %v735
  %1648 = vst.msk [vmem:[%s4 + $0x1f8] sm:$0xff] %vm95, %v736
  %1649 = vrot.lane.b32.xlu0 %v673, 96
  %v1650 = vpop.permute.xlu0 %1649
  %1651 = vrot.lane.b32.xlu0 %v674, 96
  %v1652 = vpop.permute.xlu0 %1651
  %1653 = vrot.lane.b32.xlu0 %v675, 96
  %v1654 = vpop.permute.xlu0 %1653
  %1655 = vrot.lane.b32.xlu0 %v676, 96
  %v1656 = vpop.permute.xlu0 %1655
  %1657 = vrot.lane.b32.xlu0 %v677, 96
  %v1658 = vpop.permute.xlu0 %1657
  %1659 = vrot.lane.b32.xlu0 %v678, 96
  %v1660 = vpop.permute.xlu0 %1659
  %1661 = vrot.lane.b32.xlu0 %v679, 96
  %v1662 = vpop.permute.xlu0 %1661
  %1663 = vrot.lane.b32.xlu0 %v680, 96
  %v1664 = vpop.permute.xlu0 %1663
  %1665 = vrot.lane.b32.xlu0 %v681, 96
  %v1666 = vpop.permute.xlu0 %1665
  %1667 = vrot.lane.b32.xlu0 %v682, 96
  %v1668 = vpop.permute.xlu0 %1667
  %1669 = vrot.lane.b32.xlu0 %v683, 96
  %v1670 = vpop.permute.xlu0 %1669
  %1671 = vrot.lane.b32.xlu0 %v684, 96
  %v1672 = vpop.permute.xlu0 %1671
  %1673 = vrot.lane.b32.xlu0 %v685, 96
  %v1674 = vpop.permute.xlu0 %1673
  %1675 = vrot.lane.b32.xlu0 %v686, 96
  %v1676 = vpop.permute.xlu0 %1675
  %1677 = vrot.lane.b32.xlu0 %v687, 96
  %v1678 = vpop.permute.xlu0 %1677
  %1679 = vrot.lane.b32.xlu0 %v688, 96
  %v1680 = vpop.permute.xlu0 %1679
  %1681 = vrot.lane.b32.xlu0 %v689, 96
  %v1682 = vpop.permute.xlu0 %1681
  %1683 = vrot.lane.b32.xlu0 %v690, 96
  %v1684 = vpop.permute.xlu0 %1683
  %1685 = vrot.lane.b32.xlu0 %v691, 96
  %v1686 = vpop.permute.xlu0 %1685
  %1687 = vrot.lane.b32.xlu0 %v692, 96
  %v1688 = vpop.permute.xlu0 %1687
  %1689 = vrot.lane.b32.xlu0 %v693, 96
  %v1690 = vpop.permute.xlu0 %1689
  %1691 = vrot.lane.b32.xlu0 %v694, 96
  %v1692 = vpop.permute.xlu0 %1691
  %1693 = vrot.lane.b32.xlu0 %v695, 96
  %v1694 = vpop.permute.xlu0 %1693
  %1695 = vrot.lane.b32.xlu0 %v696, 96
  %v1696 = vpop.permute.xlu0 %1695
  %1697 = vrot.lane.b32.xlu0 %v697, 96
  %v1698 = vpop.permute.xlu0 %1697
  %1699 = vrot.lane.b32.xlu0 %v698, 96
  %v1700 = vpop.permute.xlu0 %1699
  %1701 = vrot.lane.b32.xlu0 %v699, 96
  %v1702 = vpop.permute.xlu0 %1701
  %1703 = vrot.lane.b32.xlu0 %v700, 96
  %v1704 = vpop.permute.xlu0 %1703
  %1705 = vrot.lane.b32.xlu0 %v701, 96
  %v1706 = vpop.permute.xlu0 %1705
  %1707 = vrot.lane.b32.xlu0 %v702, 96
  %v1708 = vpop.permute.xlu0 %1707
  %1709 = vrot.lane.b32.xlu0 %v703, 96
  %v1710 = vpop.permute.xlu0 %1709
  %1711 = vrot.lane.b32.xlu0 %v704, 96
  %v1712 = vpop.permute.xlu0 %1711
  %1713 = vrot.lane.b32.xlu0 %v705, 96
  %v1714 = vpop.permute.xlu0 %1713
  %1715 = vrot.lane.b32.xlu0 %v706, 96
  %v1716 = vpop.permute.xlu0 %1715
  %1717 = vrot.lane.b32.xlu0 %v707, 96
  %v1718 = vpop.permute.xlu0 %1717
  %1719 = vrot.lane.b32.xlu0 %v708, 96
  %v1720 = vpop.permute.xlu0 %1719
  %1721 = vrot.lane.b32.xlu0 %v709, 96
  %v1722 = vpop.permute.xlu0 %1721
  %1723 = vrot.lane.b32.xlu0 %v710, 96
  %v1724 = vpop.permute.xlu0 %1723
  %1725 = vrot.lane.b32.xlu0 %v711, 96
  %v1726 = vpop.permute.xlu0 %1725
  %1727 = vrot.lane.b32.xlu0 %v712, 96
  %v1728 = vpop.permute.xlu0 %1727
  %1729 = vrot.lane.b32.xlu0 %v713, 96
  %v1730 = vpop.permute.xlu0 %1729
  %1731 = vrot.lane.b32.xlu0 %v714, 96
  %v1732 = vpop.permute.xlu0 %1731
  %1733 = vrot.lane.b32.xlu0 %v715, 96
  %v1734 = vpop.permute.xlu0 %1733
  %1735 = vrot.lane.b32.xlu0 %v716, 96
  %v1736 = vpop.permute.xlu0 %1735
  %1737 = vrot.lane.b32.xlu0 %v717, 96
  %v1738 = vpop.permute.xlu0 %1737
  %1739 = vrot.lane.b32.xlu0 %v718, 96
  %v1740 = vpop.permute.xlu0 %1739
  %1741 = vrot.lane.b32.xlu0 %v719, 96
  %v1742 = vpop.permute.xlu0 %1741
  %1743 = vrot.lane.b32.xlu0 %v720, 96
  %v1744 = vpop.permute.xlu0 %1743
  %1745 = vrot.lane.b32.xlu0 %v721, 96
  %v1746 = vpop.permute.xlu0 %1745
  %1747 = vrot.lane.b32.xlu0 %v722, 96
  %v1748 = vpop.permute.xlu0 %1747
  %1749 = vrot.lane.b32.xlu0 %v723, 96
  %v1750 = vpop.permute.xlu0 %1749
  %1751 = vrot.lane.b32.xlu0 %v724, 96
  %v1752 = vpop.permute.xlu0 %1751
  %1753 = vrot.lane.b32.xlu0 %v725, 96
  %v1754 = vpop.permute.xlu0 %1753
  %1755 = vrot.lane.b32.xlu0 %v726, 96
  %v1756 = vpop.permute.xlu0 %1755
  %1757 = vrot.lane.b32.xlu0 %v727, 96
  %v1758 = vpop.permute.xlu0 %1757
  %1759 = vrot.lane.b32.xlu0 %v728, 96
  %v1760 = vpop.permute.xlu0 %1759
  %1761 = vrot.lane.b32.xlu0 %v729, 96
  %v1762 = vpop.permute.xlu0 %1761
  %1763 = vrot.lane.b32.xlu0 %v730, 96
  %v1764 = vpop.permute.xlu0 %1763
  %1765 = vrot.lane.b32.xlu0 %v731, 96
  %v1766 = vpop.permute.xlu0 %1765
  %1767 = vrot.lane.b32.xlu0 %v732, 96
  %v1768 = vpop.permute.xlu0 %1767
  %1769 = vrot.lane.b32.xlu0 %v733, 96
  %v1770 = vpop.permute.xlu0 %1769
  %1771 = vrot.lane.b32.xlu0 %v734, 96
  %v1772 = vpop.permute.xlu0 %1771
  %1773 = vrot.lane.b32.xlu0 %v735, 96
  %v1774 = vpop.permute.xlu0 %1773
  %1775 = vrot.lane.b32.xlu0 %v736, 96
  %v1776 = vpop.permute.xlu0 %1775
  %vm1841 = vcmask 138240
  %1842 = vst.msk [vmem:[%s5] sm:$0xff] %vm1841, %v1650
  %1843 = vst.msk [vmem:[%s5 + $0x8] sm:$0xff] %vm1841, %v1652
  %1844 = vst.msk [vmem:[%s5 + $0x10] sm:$0xff] %vm1841, %v1654
  %1845 = vst.msk [vmem:[%s5 + $0x18] sm:$0xff] %vm1841, %v1656
  %1846 = vst.msk [vmem:[%s5 + $0x20] sm:$0xff] %vm1841, %v1658
  %1847 = vst.msk [vmem:[%s5 + $0x28] sm:$0xff] %vm1841, %v1660
  %1848 = vst.msk [vmem:[%s5 + $0x30] sm:$0xff] %vm1841, %v1662
  %1849 = vst.msk [vmem:[%s5 + $0x38] sm:$0xff] %vm1841, %v1664
  %1850 = vst.msk [vmem:[%s5 + $0x40] sm:$0xff] %vm1841, %v1666
  %1851 = vst.msk [vmem:[%s5 + $0x48] sm:$0xff] %vm1841, %v1668
  %1852 = vst.msk [vmem:[%s5 + $0x50] sm:$0xff] %vm1841, %v1670
  %1853 = vst.msk [vmem:[%s5 + $0x58] sm:$0xff] %vm1841, %v1672
  %1854 = vst.msk [vmem:[%s5 + $0x60] sm:$0xff] %vm1841, %v1674
  %1855 = vst.msk [vmem:[%s5 + $0x68] sm:$0xff] %vm1841, %v1676
  %1856 = vst.msk [vmem:[%s5 + $0x70] sm:$0xff] %vm1841, %v1678
  %1857 = vst.msk [vmem:[%s5 + $0x78] sm:$0xff] %vm1841, %v1680
  %1858 = vst.msk [vmem:[%s5 + $0x80] sm:$0xff] %vm1841, %v1682
  %1859 = vst.msk [vmem:[%s5 + $0x88] sm:$0xff] %vm1841, %v1684
  %1860 = vst.msk [vmem:[%s5 + $0x90] sm:$0xff] %vm1841, %v1686
  %1861 = vst.msk [vmem:[%s5 + $0x98] sm:$0xff] %vm1841, %v1688
  %1862 = vst.msk [vmem:[%s5 + $0xa0] sm:$0xff] %vm1841, %v1690
  %1863 = vst.msk [vmem:[%s5 + $0xa8] sm:$0xff] %vm1841, %v1692
  %1864 = vst.msk [vmem:[%s5 + $0xb0] sm:$0xff] %vm1841, %v1694
  %1865 = vst.msk [vmem:[%s5 + $0xb8] sm:$0xff] %vm1841, %v1696
  %1866 = vst.msk [vmem:[%s5 + $0xc0] sm:$0xff] %vm1841, %v1698
  %1867 = vst.msk [vmem:[%s5 + $0xc8] sm:$0xff] %vm1841, %v1700
  %1868 = vst.msk [vmem:[%s5 + $0xd0] sm:$0xff] %vm1841, %v1702
  %1869 = vst.msk [vmem:[%s5 + $0xd8] sm:$0xff] %vm1841, %v1704
  %1870 = vst.msk [vmem:[%s5 + $0xe0] sm:$0xff] %vm1841, %v1706
  %1871 = vst.msk [vmem:[%s5 + $0xe8] sm:$0xff] %vm1841, %v1708
  %1872 = vst.msk [vmem:[%s5 + $0xf0] sm:$0xff] %vm1841, %v1710
  %1873 = vst.msk [vmem:[%s5 + $0xf8] sm:$0xff] %vm1841, %v1712
  %1874 = vst.msk [vmem:[%s5 + $0x100] sm:$0xff] %vm1841, %v1714
  %1875 = vst.msk [vmem:[%s5 + $0x108] sm:$0xff] %vm1841, %v1716
  %1876 = vst.msk [vmem:[%s5 + $0x110] sm:$0xff] %vm1841, %v1718
  %1877 = vst.msk [vmem:[%s5 + $0x118] sm:$0xff] %vm1841, %v1720
  %1878 = vst.msk [vmem:[%s5 + $0x120] sm:$0xff] %vm1841, %v1722
  %1879 = vst.msk [vmem:[%s5 + $0x128] sm:$0xff] %vm1841, %v1724
  %1880 = vst.msk [vmem:[%s5 + $0x130] sm:$0xff] %vm1841, %v1726
  %1881 = vst.msk [vmem:[%s5 + $0x138] sm:$0xff] %vm1841, %v1728
  %1882 = vst.msk [vmem:[%s5 + $0x140] sm:$0xff] %vm1841, %v1730
  %1883 = vst.msk [vmem:[%s5 + $0x148] sm:$0xff] %vm1841, %v1732
  %1884 = vst.msk [vmem:[%s5 + $0x150] sm:$0xff] %vm1841, %v1734
  %1885 = vst.msk [vmem:[%s5 + $0x158] sm:$0xff] %vm1841, %v1736
  %1886 = vst.msk [vmem:[%s5 + $0x160] sm:$0xff] %vm1841, %v1738
  %1887 = vst.msk [vmem:[%s5 + $0x168] sm:$0xff] %vm1841, %v1740
  %1888 = vst.msk [vmem:[%s5 + $0x170] sm:$0xff] %vm1841, %v1742
  %1889 = vst.msk [vmem:[%s5 + $0x178] sm:$0xff] %vm1841, %v1744
  %1890 = vst.msk [vmem:[%s5 + $0x180] sm:$0xff] %vm1841, %v1746
  %1891 = vst.msk [vmem:[%s5 + $0x188] sm:$0xff] %vm1841, %v1748
  %1892 = vst.msk [vmem:[%s5 + $0x190] sm:$0xff] %vm1841, %v1750
  %1893 = vst.msk [vmem:[%s5 + $0x198] sm:$0xff] %vm1841, %v1752
  %1894 = vst.msk [vmem:[%s5 + $0x1a0] sm:$0xff] %vm1841, %v1754
  %1895 = vst.msk [vmem:[%s5 + $0x1a8] sm:$0xff] %vm1841, %v1756
  %1896 = vst.msk [vmem:[%s5 + $0x1b0] sm:$0xff] %vm1841, %v1758
  %1897 = vst.msk [vmem:[%s5 + $0x1b8] sm:$0xff] %vm1841, %v1760
  %1898 = vst.msk [vmem:[%s5 + $0x1c0] sm:$0xff] %vm1841, %v1762
  %1899 = vst.msk [vmem:[%s5 + $0x1c8] sm:$0xff] %vm1841, %v1764
  %1900 = vst.msk [vmem:[%s5 + $0x1d0] sm:$0xff] %vm1841, %v1766
  %1901 = vst.msk [vmem:[%s5 + $0x1d8] sm:$0xff] %vm1841, %v1768
  %1902 = vst.msk [vmem:[%s5 + $0x1e0] sm:$0xff] %vm1841, %v1770
  %1903 = vst.msk [vmem:[%s5 + $0x1e8] sm:$0xff] %vm1841, %v1772
  %1904 = vst.msk [vmem:[%s5 + $0x1f0] sm:$0xff] %vm1841, %v1774
  %1905 = vst.msk [vmem:[%s5 + $0x1f8] sm:$0xff] %vm1841, %v1776
  %1906 = vrot.lane.b32.xlu0 %v673, 79
  %v1907 = vpop.permute.xlu0 %1906
  %1908 = vrot.lane.b32.xlu0 %v674, 79
  %v1909 = vpop.permute.xlu0 %1908
  %1910 = vrot.lane.b32.xlu0 %v675, 79
  %v1911 = vpop.permute.xlu0 %1910
  %1912 = vrot.lane.b32.xlu0 %v676, 79
  %v1913 = vpop.permute.xlu0 %1912
  %1914 = vrot.lane.b32.xlu0 %v677, 79
  %v1915 = vpop.permute.xlu0 %1914
  %1916 = vrot.lane.b32.xlu0 %v678, 79
  %v1917 = vpop.permute.xlu0 %1916
  %1918 = vrot.lane.b32.xlu0 %v679, 79
  %v1919 = vpop.permute.xlu0 %1918
  %1920 = vrot.lane.b32.xlu0 %v680, 79
  %v1921 = vpop.permute.xlu0 %1920
  %1922 = vrot.lane.b32.xlu0 %v681, 79
  %v1923 = vpop.permute.xlu0 %1922
  %1924 = vrot.lane.b32.xlu0 %v682, 79
  %v1925 = vpop.permute.xlu0 %1924
  %1926 = vrot.lane.b32.xlu0 %v683, 79
  %v1927 = vpop.permute.xlu0 %1926
  %1928 = vrot.lane.b32.xlu0 %v684, 79
  %v1929 = vpop.permute.xlu0 %1928
  %1930 = vrot.lane.b32.xlu0 %v685, 79
  %v1931 = vpop.permute.xlu0 %1930
  %1932 = vrot.lane.b32.xlu0 %v686, 79
  %v1933 = vpop.permute.xlu0 %1932
  %1934 = vrot.lane.b32.xlu0 %v687, 79
  %v1935 = vpop.permute.xlu0 %1934
  %1936 = vrot.lane.b32.xlu0 %v688, 79
  %v1937 = vpop.permute.xlu0 %1936
  %1938 = vrot.lane.b32.xlu0 %v689, 79
  %v1939 = vpop.permute.xlu0 %1938
  %1940 = vrot.lane.b32.xlu0 %v690, 79
  %v1941 = vpop.permute.xlu0 %1940
  %1942 = vrot.lane.b32.xlu0 %v691, 79
  %v1943 = vpop.permute.xlu0 %1942
  %1944 = vrot.lane.b32.xlu0 %v692, 79
  %v1945 = vpop.permute.xlu0 %1944
  %1946 = vrot.lane.b32.xlu0 %v693, 79
  %v1947 = vpop.permute.xlu0 %1946
  %1948 = vrot.lane.b32.xlu0 %v694, 79
  %v1949 = vpop.permute.xlu0 %1948
  %1950 = vrot.lane.b32.xlu0 %v695, 79
  %v1951 = vpop.permute.xlu0 %1950
  %1952 = vrot.lane.b32.xlu0 %v696, 79
  %v1953 = vpop.permute.xlu0 %1952
  %1954 = vrot.lane.b32.xlu0 %v697, 79
  %v1955 = vpop.permute.xlu0 %1954
  %1956 = vrot.lane.b32.xlu0 %v698, 79
  %v1957 = vpop.permute.xlu0 %1956
  %1958 = vrot.lane.b32.xlu0 %v699, 79
  %v1959 = vpop.permute.xlu0 %1958
  %1960 = vrot.lane.b32.xlu0 %v700, 79
  %v1961 = vpop.permute.xlu0 %1960
  %1962 = vrot.lane.b32.xlu0 %v701, 79
  %v1963 = vpop.permute.xlu0 %1962
  %1964 = vrot.lane.b32.xlu0 %v702, 79
  %v1965 = vpop.permute.xlu0 %1964
  %1966 = vrot.lane.b32.xlu0 %v703, 79
  %v1967 = vpop.permute.xlu0 %1966
  %1968 = vrot.lane.b32.xlu0 %v704, 79
  %v1969 = vpop.permute.xlu0 %1968
  %1970 = vrot.lane.b32.xlu0 %v705, 79
  %v1971 = vpop.permute.xlu0 %1970
  %1972 = vrot.lane.b32.xlu0 %v706, 79
  %v1973 = vpop.permute.xlu0 %1972
  %1974 = vrot.lane.b32.xlu0 %v707, 79
  %v1975 = vpop.permute.xlu0 %1974
  %1976 = vrot.lane.b32.xlu0 %v708, 79
  %v1977 = vpop.permute.xlu0 %1976
  %1978 = vrot.lane.b32.xlu0 %v709, 79
  %v1979 = vpop.permute.xlu0 %1978
  %1980 = vrot.lane.b32.xlu0 %v710, 79
  %v1981 = vpop.permute.xlu0 %1980
  %1982 = vrot.lane.b32.xlu0 %v711, 79
  %v1983 = vpop.permute.xlu0 %1982
  %1984 = vrot.lane.b32.xlu0 %v712, 79
  %v1985 = vpop.permute.xlu0 %1984
  %1986 = vrot.lane.b32.xlu0 %v713, 79
  %v1987 = vpop.permute.xlu0 %1986
  %1988 = vrot.lane.b32.xlu0 %v714, 79
  %v1989 = vpop.permute.xlu0 %1988
  %1990 = vrot.lane.b32.xlu0 %v715, 79
  %v1991 = vpop.permute.xlu0 %1990
  %1992 = vrot.lane.b32.xlu0 %v716, 79
  %v1993 = vpop.permute.xlu0 %1992
  %1994 = vrot.lane.b32.xlu0 %v717, 79
  %v1995 = vpop.permute.xlu0 %1994
  %1996 = vrot.lane.b32.xlu0 %v718, 79
  %v1997 = vpop.permute.xlu0 %1996
  %1998 = vrot.lane.b32.xlu0 %v719, 79
  %v1999 = vpop.permute.xlu0 %1998
  %2000 = vrot.lane.b32.xlu0 %v720, 79
  %v2001 = vpop.permute.xlu0 %2000
  %2002 = vrot.lane.b32.xlu0 %v721, 79
  %v2003 = vpop.permute.xlu0 %2002
  %2004 = vrot.lane.b32.xlu0 %v722, 79
  %v2005 = vpop.permute.xlu0 %2004
  %2006 = vrot.lane.b32.xlu0 %v723, 79
  %v2007 = vpop.permute.xlu0 %2006
  %2008 = vrot.lane.b32.xlu0 %v724, 79
  %v2009 = vpop.permute.xlu0 %2008
  %2010 = vrot.lane.b32.xlu0 %v725, 79
  %v2011 = vpop.permute.xlu0 %2010
  %2012 = vrot.lane.b32.xlu0 %v726, 79
  %v2013 = vpop.permute.xlu0 %2012
  %2014 = vrot.lane.b32.xlu0 %v727, 79
  %v2015 = vpop.permute.xlu0 %2014
  %2016 = vrot.lane.b32.xlu0 %v728, 79
  %v2017 = vpop.permute.xlu0 %2016
  %2018 = vrot.lane.b32.xlu0 %v729, 79
  %v2019 = vpop.permute.xlu0 %2018
  %2020 = vrot.lane.b32.xlu0 %v730, 79
  %v2021 = vpop.permute.xlu0 %2020
  %2022 = vrot.lane.b32.xlu0 %v731, 79
  %v2023 = vpop.permute.xlu0 %2022
  %2024 = vrot.lane.b32.xlu0 %v732, 79
  %v2025 = vpop.permute.xlu0 %2024
  %2026 = vrot.lane.b32.xlu0 %v733, 79
  %v2027 = vpop.permute.xlu0 %2026
  %2028 = vrot.lane.b32.xlu0 %v734, 79
  %v2029 = vpop.permute.xlu0 %2028
  %2030 = vrot.lane.b32.xlu0 %v735, 79
  %v2031 = vpop.permute.xlu0 %2030
  %2032 = vrot.lane.b32.xlu0 %v736, 79
  %v2033 = vpop.permute.xlu0 %2032
  %s2098 = scalar_lea.vmem %s5, 512
  %2099 = vst.msk [vmem:[%s2098] sm:$0xff] %vm1841, %v1907
  %2100 = vst.msk [vmem:[%s2098 + $0x8] sm:$0xff] %vm1841, %v1909
  %2101 = vst.msk [vmem:[%s2098 + $0x10] sm:$0xff] %vm1841, %v1911
  %2102 = vst.msk [vmem:[%s2098 + $0x18] sm:$0xff] %vm1841, %v1913
  %2103 = vst.msk [vmem:[%s2098 + $0x20] sm:$0xff] %vm1841, %v1915
  %2104 = vst.msk [vmem:[%s2098 + $0x28] sm:$0xff] %vm1841, %v1917
  %2105 = vst.msk [vmem:[%s2098 + $0x30] sm:$0xff] %vm1841, %v1919
  %2106 = vst.msk [vmem:[%s2098 + $0x38] sm:$0xff] %vm1841, %v1921
  %2107 = vst.msk [vmem:[%s2098 + $0x40] sm:$0xff] %vm1841, %v1923
  %2108 = vst.msk [vmem:[%s2098 + $0x48] sm:$0xff] %vm1841, %v1925
  %2109 = vst.msk [vmem:[%s2098 + $0x50] sm:$0xff] %vm1841, %v1927
  %2110 = vst.msk [vmem:[%s2098 + $0x58] sm:$0xff] %vm1841, %v1929
  %2111 = vst.msk [vmem:[%s2098 + $0x60] sm:$0xff] %vm1841, %v1931
  %2112 = vst.msk [vmem:[%s2098 + $0x68] sm:$0xff] %vm1841, %v1933
  %2113 = vst.msk [vmem:[%s2098 + $0x70] sm:$0xff] %vm1841, %v1935
  %2114 = vst.msk [vmem:[%s2098 + $0x78] sm:$0xff] %vm1841, %v1937
  %2115 = vst.msk [vmem:[%s2098 + $0x80] sm:$0xff] %vm1841, %v1939
  %2116 = vst.msk [vmem:[%s2098 + $0x88] sm:$0xff] %vm1841, %v1941
  %2117 = vst.msk [vmem:[%s2098 + $0x90] sm:$0xff] %vm1841, %v1943
  %2118 = vst.msk [vmem:[%s2098 + $0x98] sm:$0xff] %vm1841, %v1945
  %2119 = vst.msk [vmem:[%s2098 + $0xa0] sm:$0xff] %vm1841, %v1947
  %2120 = vst.msk [vmem:[%s2098 + $0xa8] sm:$0xff] %vm1841, %v1949
  %2121 = vst.msk [vmem:[%s2098 + $0xb0] sm:$0xff] %vm1841, %v1951
  %2122 = vst.msk [vmem:[%s2098 + $0xb8] sm:$0xff] %vm1841, %v1953
  %2123 = vst.msk [vmem:[%s2098 + $0xc0] sm:$0xff] %vm1841, %v1955
  %2124 = vst.msk [vmem:[%s2098 + $0xc8] sm:$0xff] %vm1841, %v1957
  %2125 = vst.msk [vmem:[%s2098 + $0xd0] sm:$0xff] %vm1841, %v1959
  %2126 = vst.msk [vmem:[%s2098 + $0xd8] sm:$0xff] %vm1841, %v1961
  %2127 = vst.msk [vmem:[%s2098 + $0xe0] sm:$0xff] %vm1841, %v1963
  %2128 = vst.msk [vmem:[%s2098 + $0xe8] sm:$0xff] %vm1841, %v1965
  %2129 = vst.msk [vmem:[%s2098 + $0xf0] sm:$0xff] %vm1841, %v1967
  %2130 = vst.msk [vmem:[%s2098 + $0xf8] sm:$0xff] %vm1841, %v1969
  %2131 = vst.msk [vmem:[%s2098 + $0x100] sm:$0xff] %vm1841, %v1971
  %2132 = vst.msk [vmem:[%s2098 + $0x108] sm:$0xff] %vm1841, %v1973
  %2133 = vst.msk [vmem:[%s2098 + $0x110] sm:$0xff] %vm1841, %v1975
  %2134 = vst.msk [vmem:[%s2098 + $0x118] sm:$0xff] %vm1841, %v1977
  %2135 = vst.msk [vmem:[%s2098 + $0x120] sm:$0xff] %vm1841, %v1979
  %2136 = vst.msk [vmem:[%s2098 + $0x128] sm:$0xff] %vm1841, %v1981
  %2137 = vst.msk [vmem:[%s2098 + $0x130] sm:$0xff] %vm1841, %v1983
  %2138 = vst.msk [vmem:[%s2098 + $0x138] sm:$0xff] %vm1841, %v1985
  %2139 = vst.msk [vmem:[%s2098 + $0x140] sm:$0xff] %vm1841, %v1987
  %2140 = vst.msk [vmem:[%s2098 + $0x148] sm:$0xff] %vm1841, %v1989
  %2141 = vst.msk [vmem:[%s2098 + $0x150] sm:$0xff] %vm1841, %v1991
  %2142 = vst.msk [vmem:[%s2098 + $0x158] sm:$0xff] %vm1841, %v1993
  %2143 = vst.msk [vmem:[%s2098 + $0x160] sm:$0xff] %vm1841, %v1995
  %2144 = vst.msk [vmem:[%s2098 + $0x168] sm:$0xff] %vm1841, %v1997
  %2145 = vst.msk [vmem:[%s2098 + $0x170] sm:$0xff] %vm1841, %v1999
  %2146 = vst.msk [vmem:[%s2098 + $0x178] sm:$0xff] %vm1841, %v2001
  %2147 = vst.msk [vmem:[%s2098 + $0x180] sm:$0xff] %vm1841, %v2003
  %2148 = vst.msk [vmem:[%s2098 + $0x188] sm:$0xff] %vm1841, %v2005
  %2149 = vst.msk [vmem:[%s2098 + $0x190] sm:$0xff] %vm1841, %v2007
  %2150 = vst.msk [vmem:[%s2098 + $0x198] sm:$0xff] %vm1841, %v2009
  %2151 = vst.msk [vmem:[%s2098 + $0x1a0] sm:$0xff] %vm1841, %v2011
  %2152 = vst.msk [vmem:[%s2098 + $0x1a8] sm:$0xff] %vm1841, %v2013
  %2153 = vst.msk [vmem:[%s2098 + $0x1b0] sm:$0xff] %vm1841, %v2015
  %2154 = vst.msk [vmem:[%s2098 + $0x1b8] sm:$0xff] %vm1841, %v2017
  %2155 = vst.msk [vmem:[%s2098 + $0x1c0] sm:$0xff] %vm1841, %v2019
  %2156 = vst.msk [vmem:[%s2098 + $0x1c8] sm:$0xff] %vm1841, %v2021
  %2157 = vst.msk [vmem:[%s2098 + $0x1d0] sm:$0xff] %vm1841, %v2023
  %2158 = vst.msk [vmem:[%s2098 + $0x1d8] sm:$0xff] %vm1841, %v2025
  %2159 = vst.msk [vmem:[%s2098 + $0x1e0] sm:$0xff] %vm1841, %v2027
  %2160 = vst.msk [vmem:[%s2098 + $0x1e8] sm:$0xff] %vm1841, %v2029
  %2161 = vst.msk [vmem:[%s2098 + $0x1f0] sm:$0xff] %vm1841, %v2031
  %2162 = vst.msk [vmem:[%s2098 + $0x1f8] sm:$0xff] %vm1841, %v2033
  // Predicated region
  $region18: #{gat_forward.2} parent=0 // pred_check
    _
  $region19: #{gat_forward.2} parent=0 // pred_check_branch
    %2164 = sbr.rel (0) target = $region21
  $region20: #{gat_forward.2} parent=0 // pred_region
    _
  $region21: #{gat_forward.2} parent=0 // pred_fallthru
    _
  // Predicated region
  $region22: #{gat_forward.2} parent=0 // pred_check
    _
  $region23: #{gat_forward.2} parent=0 // pred_check_branch
    %2166 = sbr.rel (0) target = $region25
  $region24: #{gat_forward.2} parent=0 // pred_region
    _
  $region25: #{gat_forward.2} parent=0 // pred_fallthru
    _
  // Predicated region
  $region26: #{gat_forward.2} parent=0 // pred_check
    _
  $region27: #{gat_forward.2} parent=0 // pred_check_branch
    %2168 = sbr.rel (0) target = $region29
  $region28: #{gat_forward.2} parent=0 // pred_region
    _
  $region29: #{gat_forward.2} parent=0 // pred_fallthru
    _
  // Predicated region
  $region30: #{gat_forward.2} parent=0 // pred_check
    _
  $region31: #{gat_forward.2} parent=0 // pred_check_branch
    %2170 = sbr.rel (0) target = $region33
  $region32: #{gat_forward.2} parent=0 // pred_region
    _
  $region33: #{gat_forward.2} parent=0 // pred_fallthru
    _
  // Predicated region
  $region34: #{gat_forward.2} parent=0 // pred_check
    _
  $region35: #{gat_forward.2} parent=0 // pred_check_branch
    %2172 = sbr.rel (0) target = $region37
  $region36: #{gat_forward.2} parent=0 // pred_region
    _
  $region37: #{gat_forward.2} parent=0 // pred_fallthru
    _
  // Predicated region
  $region38: #{gat_forward.2} parent=0 // pred_check
    _
  $region39: #{gat_forward.2} parent=0 // pred_check_branch
    %2174 = sbr.rel (0) target = $region41
  $region40: #{gat_forward.2} parent=0 // pred_region
    _
  $region41: #{gat_forward.2} parent=0 // pred_fallthru
    _

// kernel: gat_forward.3
$region0: #{gat_forward.3}
  #allocation0 [shape = 'u32[]', space=smem, size = 0x4, offset = 0x4, fixed_abs, tag = 'smem constant byte address 0x4 - core index']
  #allocation1 [shape = 'u32[144,128]{1,0:T(1,128)}', space=vmem, size = 0x12000, scoped, tag = 'internal scratch']
  #allocation2 [shape = 'f32[2,128,1]{2,1,0:T(8,128)}', space=vmem, size = 0x20000, scoped, tag = 'scratch operand']
  #allocation3 [shape = 'f32[2,128,17]{2,1,0:T(8,128)}', space=vmem, size = 0x20000, scoped, tag = 'scratch operand']
  #allocation4 [shape = 's32[1]{0}', space=sflag, size = 0x4, scoped, tag = 'scoped memory for gat_forward.3']
  #allocation5 [shape = 'u8[512]{0}', space=smem, size = 0x200, scoped, tag = 'prefetched SMEM operand 0']
  #allocation6 [shape = 'u8[512]{0}', space=smem, size = 0x200, scoped, tag = 'prefetched SMEM operand 1']
  %s0 = inlined_call_operand.vmem [shape: s32[4], index: 0, kind: input, shape index: {}]
  %s1 = inlined_call_operand.vmem [shape: s32[4], index: 1, kind: input, shape index: {}]
  %s2 = inlined_call_operand.vmem [shape: f32[512,32], index: 2, kind: input, shape index: {}]
  %s3 = inlined_call_operand.vmem [shape: f32[512,2], index: 3, kind: input, shape index: {}]
  %s4 = inlined_call_operand.vmem [shape: f32[2,512,17], index: 4, kind: input, shape index: {}]
  %s5 = inlined_call_operand.vmem [shape: f32[2,512], index: 5, kind: input, shape index: {}]
  %s6 = inlined_call_operand.vmem [shape: f32[512,512], index: 6, kind: input, shape index: {}]
  %s7 = inlined_call_operand.vmem [shape: f32[2,32], index: 7, kind: input, shape index: {}]
  %s8 = inlined_call_operand.vmem [shape: f32[2,32], index: 8, kind: input, shape index: {}]
  %s9 = inlined_call_operand.vmem [shape: f32[32,32], index: 9, kind: input, shape index: {}]
  %s10 = inlined_call_operand.vmem [shape: f32[512,32], index: 10, kind: output, shape index: {}]
  %s11 = sld [smem:[#allocation0]]
  $region77: #{gat_forward.3} parent=0
    _
  %s13 = ssub.s32 1, %s11
  %s14 = scalar_select 0, %s13, %s11
  %s15 = sshll.u32 %s0, 4
  %s16 = int_to_ptr.vmem [resolvable:$true] %s15
  %18 = dma.vmem_to_smem %s16, 16, [#allocation5], [#allocation4]
  %s19 = sshll.u32 %s1, 4
  %s20 = int_to_ptr.vmem [resolvable:$true] %s19
  %22 = dma.vmem_to_smem %s20, 16, [#allocation6], [#allocation4]
  %23 = dma.done [#allocation4], 32
  %24 = sfence
  loop: start=0, step=1, limit=6
  $region2: #{gat_forward.3} parent=0 // loop_pre_header
    _
  $region3: #{gat_forward.3} parent=0 // loop_header
    %s26 = sphi 0, %s30
    %p27 = scmp.ge.s32.totalorder %s26, 6
    %s33 = sphi 0, %s45
    %s34 = sphi 0, %s41
    %s35 = sphi 0, %s33
    %s36 = sphi 0, %s34
    %s37 = sphi 0, %s35
    %s38 = sphi 0, %s36
    %s48 = sphi 0, %s50
    %s51 = sphi 0, %s48
    %s52 = sphi 0, %s51
    %s68 = sphi 0, %s52
    %s74 = sphi 0, %s76
    %s77 = sphi 0, %s74
    %s78 = sphi 0, %s77
    %s94 = sphi 0, %s78
    %s104 = sphi 0, %s106
    %s107 = sphi 0, %s104
    %s108 = sphi 0, %s107
    %s124 = sphi 0, %s108
    %s134 = sphi 0, %s136
    %s137 = sphi 0, %s134
    %s138 = sphi 0, %s137
    %s154 = sphi 0, %s138
    %s166 = sphi 0, %s168
    %s169 = sphi 0, %s166
    %s170 = sphi 0, %s169
    %s186 = sphi 0, %s170
    %s190 = sphi 0, %s190
    %s192 = sphi 0, %s190
    %s193 = sphi 0, %s192
    %s207 = sphi 0, %s193
    %s211 = sphi 0, %s211
    %s213 = sphi 0, %s211
    %s214 = sphi 0, %s213
    %s228 = sphi 0, %s214
    %s232 = sphi 0, %s232
    %s234 = sphi 0, %s232
    %s235 = sphi 0, %s234
    %s249 = sphi 0, %s235
    %s255 = sphi 0, %s257
    %s258 = sphi 0, %s255
    %s259 = sphi 0, %s258
    %s275 = sphi 0, %s259
  $region4: #{gat_forward.3} parent=0 // loop_header_branch
    %29 = sbr.rel (%p27) target = $region8
  $region5: #{gat_forward.3} parent=0 // loop_body
    %s31 = ssub.s32 %s26, 1
    %s32 = ssub.s32 %s26, 2
    %s39 = sadd.s32 1, %s34
    %p40 = scmp.ge.s32.totalorder %s39, 1
    %s41 = scalar_select %p40, 0, %s39
    %s42 = sadd.s32 1, %s33
    %s43 = scalar_select %p40, %s42, %s33
    %p44 = scmp.ge.s32.totalorder %s43, 4
    %s45 = scalar_select %p44, 0, %s43
    %s46 = ssub.s32 %s33, %s45
    %p47 = scmp.eq.s32.totalorder %s46, 0
    %s49 = sadd.s32 %s48, 1
    %s50 = scalar_select %p47, %s48, %s49
    %p53 = pneg %p47
    %p54 = scmp.eq.s32.totalorder %s26, 3
    %p55 = por %p53, %p54
    %p56 = scmp.ne.s32.totalorder %s48, %s51
    %p57 = scmp.eq.s32.totalorder %s26, 0
    %p58 = por %p56, %p57
    %p59 = scmp.ne.s32.totalorder %s48, %s51
    %p60 = scmp.eq.s32.totalorder %s31, 3
    %p61 = por %p59, %p60
    %p62 = scmp.ne.s32.totalorder %s51, %s52
    %p63 = scmp.eq.s32.totalorder %s31, 0
    %p64 = por %p62, %p63
    %p65 = scmp.ne.s32.totalorder %s51, %s52
    %p66 = scmp.eq.s32.totalorder %s32, 3
    %p67 = por %p65, %p66
    %p69 = scmp.ne.s32.totalorder %s52, %s68
    %p70 = scmp.eq.s32.totalorder %s32, 0
    %p71 = por %p69, %p70
    %s72 = ssub.s32 %s33, %s45
    %p73 = scmp.eq.s32.totalorder %s72, 0
    %s75 = sadd.s32 %s74, 1
    %s76 = scalar_select %p73, %s74, %s75
    %p79 = pneg %p73
    %p80 = scmp.eq.s32.totalorder %s26, 3
    %p81 = por %p79, %p80
    %p82 = scmp.ne.s32.totalorder %s74, %s77
    %p83 = scmp.eq.s32.totalorder %s26, 0
    %p84 = por %p82, %p83
    %p85 = scmp.ne.s32.totalorder %s74, %s77
    %p86 = scmp.eq.s32.totalorder %s31, 3
    %p87 = por %p85, %p86
    %p88 = scmp.ne.s32.totalorder %s77, %s78
    %p89 = scmp.eq.s32.totalorder %s31, 0
    %p90 = por %p88, %p89
    %p91 = scmp.ne.s32.totalorder %s77, %s78
    %p92 = scmp.eq.s32.totalorder %s32, 3
    %p93 = por %p91, %p92
    %p95 = scmp.ne.s32.totalorder %s78, %s94
    %p96 = scmp.eq.s32.totalorder %s32, 0
    %p97 = por %p95, %p96
    %s98 = sadd.s32 %s33, %s34
    %s99 = sld [smem:[#allocation5 + %s98]]
    %s100 = sadd.s32 %s45, %s41
    %s101 = sld [smem:[#allocation5 + %s100]]
    %s102 = ssub.s32 %s99, %s101
    %p103 = scmp.eq.s32.totalorder %s102, 0
    %s105 = sadd.s32 %s104, 1
    %s106 = scalar_select %p103, %s104, %s105
    %p109 = pneg %p103
    %p110 = scmp.eq.s32.totalorder %s26, 3
    %p111 = por %p109, %p110
    %p112 = scmp.ne.s32.totalorder %s104, %s107
    %p113 = scmp.eq.s32.totalorder %s26, 0
    %p114 = por %p112, %p113
    %p115 = scmp.ne.s32.totalorder %s104, %s107
    %p116 = scmp.eq.s32.totalorder %s31, 3
    %p117 = por %p115, %p116
    %p118 = scmp.ne.s32.totalorder %s107, %s108
    %p119 = scmp.eq.s32.totalorder %s31, 0
    %p120 = por %p118, %p119
    %p121 = scmp.ne.s32.totalorder %s107, %s108
    %p122 = scmp.eq.s32.totalorder %s32, 3
    %p123 = por %p121, %p122
    %p125 = scmp.ne.s32.totalorder %s108, %s124
    %p126 = scmp.eq.s32.totalorder %s32, 0
    %p127 = por %p125, %p126
    %s128 = sadd.s32 %s33, %s34
    %s129 = sld [smem:[#allocation5 + %s128]]
    %s130 = sadd.s32 %s45, %s41
    %s131 = sld [smem:[#allocation5 + %s130]]
    %s132 = ssub.s32 %s129, %s131
    %p133 = scmp.eq.s32.totalorder %s132, 0
    %s135 = sadd.s32 %s134, 1
    %s136 = scalar_select %p133, %s134, %s135
    %p139 = pneg %p133
    %p140 = scmp.eq.s32.totalorder %s26, 3
    %p141 = por %p139, %p140
    %p142 = scmp.ne.s32.totalorder %s134, %s137
    %p143 = scmp.eq.s32.totalorder %s26, 0
    %p144 = por %p142, %p143
    %p145 = scmp.ne.s32.totalorder %s134, %s137
    %p146 = scmp.eq.s32.totalorder %s31, 3
    %p147 = por %p145, %p146
    %p148 = scmp.ne.s32.totalorder %s137, %s138
    %p149 = scmp.eq.s32.totalorder %s31, 0
    %p150 = por %p148, %p149
    %p151 = scmp.ne.s32.totalorder %s137, %s138
    %p152 = scmp.eq.s32.totalorder %s32, 3
    %p153 = por %p151, %p152
    %p155 = scmp.ne.s32.totalorder %s138, %s154
    %p156 = scmp.eq.s32.totalorder %s32, 0
    %p157 = por %p155, %p156
    %s158 = sadd.s32 %s33, %s34
    %s159 = sld [smem:[#allocation5 + %s158]]
    %s160 = sadd.s32 %s45, %s41
    %s161 = sld [smem:[#allocation5 + %s160]]
    %s162 = ssub.s32 %s33, %s45
    %s163 = ssub.s32 %s159, %s161
    %s164 = sor.u32 %s162, %s163
    %p165 = scmp.eq.s32.totalorder %s164, 0
    %s167 = sadd.s32 %s166, 1
    %s168 = scalar_select %p165, %s166, %s167
    %p171 = pneg %p165
    %p172 = scmp.eq.s32.totalorder %s26, 3
    %p173 = por %p171, %p172
    %p174 = scmp.ne.s32.totalorder %s166, %s169
    %p175 = scmp.eq.s32.totalorder %s26, 0
    %p176 = por %p174, %p175
    %p177 = scmp.ne.s32.totalorder %s166, %s169
    %p178 = scmp.eq.s32.totalorder %s31, 3
    %p179 = por %p177, %p178
    %p180 = scmp.ne.s32.totalorder %s169, %s170
    %p181 = scmp.eq.s32.totalorder %s31, 0
    %p182 = por %p180, %p181
    %p183 = scmp.ne.s32.totalorder %s169, %s170
    %p184 = scmp.eq.s32.totalorder %s32, 3
    %p185 = por %p183, %p184
    %p187 = scmp.ne.s32.totalorder %s170, %s186
    %p188 = scmp.eq.s32.totalorder %s32, 0
    %p189 = por %p187, %p188
    %s191 = sadd.s32 %s190, 1
    %p194 = scmp.eq.s32.totalorder %s26, 3
    %p195 = scmp.ne.s32.totalorder %s190, %s192
    %p196 = scmp.eq.s32.totalorder %s26, 0
    %p197 = por %p195, %p196
    %p198 = scmp.ne.s32.totalorder %s190, %s192
    %p199 = scmp.eq.s32.totalorder %s31, 3
    %p200 = por %p198, %p199
    %p201 = scmp.ne.s32.totalorder %s192, %s193
    %p202 = scmp.eq.s32.totalorder %s31, 0
    %p203 = por %p201, %p202
    %p204 = scmp.ne.s32.totalorder %s192, %s193
    %p205 = scmp.eq.s32.totalorder %s32, 3
    %p206 = por %p204, %p205
    %p208 = scmp.ne.s32.totalorder %s193, %s207
    %p209 = scmp.eq.s32.totalorder %s32, 0
    %p210 = por %p208, %p209
    %s212 = sadd.s32 %s211, 1
    %p215 = scmp.eq.s32.totalorder %s26, 3
    %p216 = scmp.ne.s32.totalorder %s211, %s213
    %p217 = scmp.eq.s32.totalorder %s26, 0
    %p218 = por %p216, %p217
    %p219 = scmp.ne.s32.totalorder %s211, %s213
    %p220 = scmp.eq.s32.totalorder %s31, 3
    %p221 = por %p219, %p220
    %p222 = scmp.ne.s32.totalorder %s213, %s214
    %p223 = scmp.eq.s32.totalorder %s31, 0
    %p224 = por %p222, %p223
    %p225 = scmp.ne.s32.totalorder %s213, %s214
    %p226 = scmp.eq.s32.totalorder %s32, 3
    %p227 = por %p225, %p226
    %p229 = scmp.ne.s32.totalorder %s214, %s228
    %p230 = scmp.eq.s32.totalorder %s32, 0
    %p231 = por %p229, %p230
    %s233 = sadd.s32 %s232, 1
    %p236 = scmp.eq.s32.totalorder %s26, 3
    %p237 = scmp.ne.s32.totalorder %s232, %s234
    %p238 = scmp.eq.s32.totalorder %s26, 0
    %p239 = por %p237, %p238
    %p240 = scmp.ne.s32.totalorder %s232, %s234
    %p241 = scmp.eq.s32.totalorder %s31, 3
    %p242 = por %p240, %p241
    %p243 = scmp.ne.s32.totalorder %s234, %s235
    %p244 = scmp.eq.s32.totalorder %s31, 0
    %p245 = por %p243, %p244
    %p246 = scmp.ne.s32.totalorder %s234, %s235
    %p247 = scmp.eq.s32.totalorder %s32, 3
    %p248 = por %p246, %p247
    %p250 = scmp.ne.s32.totalorder %s235, %s249
    %p251 = scmp.eq.s32.totalorder %s32, 0
    %p252 = por %p250, %p251
    %s253 = ssub.s32 %s33, %s45
    %p254 = scmp.eq.s32.totalorder %s253, 0
    %s256 = sadd.s32 %s255, 1
    %s257 = scalar_select %p254, %s255, %s256
    %p260 = pneg %p254
    %p261 = scmp.eq.s32.totalorder %s26, 3
    %p262 = por %p260, %p261
    %p263 = scmp.ne.s32.totalorder %s255, %s258
    %p264 = scmp.eq.s32.totalorder %s26, 0
    %p265 = por %p263, %p264
    %p266 = scmp.ne.s32.totalorder %s255, %s258
    %p267 = scmp.eq.s32.totalorder %s31, 3
    %p268 = por %p266, %p267
    %p269 = scmp.ne.s32.totalorder %s258, %s259
    %p270 = scmp.eq.s32.totalorder %s31, 0
    %p271 = por %p269, %p270
    %p272 = scmp.ne.s32.totalorder %s258, %s259
    %p273 = scmp.eq.s32.totalorder %s32, 3
    %p274 = por %p272, %p273
    %p276 = scmp.ne.s32.totalorder %s259, %s275
    %p277 = scmp.eq.s32.totalorder %s32, 0
    %p278 = por %p276, %p277
    %p279 = scmp.le.s32.totalorder 1, %s26
    %p280 = scmp.lt.s32.totalorder %s26, 5
    %p281 = pnand %p279, %p280
    %p282 = pneg %p281
    // Predicated region
    $region9: #{gat_forward.3} parent=5 // pred_check
      _
    $region10: #{gat_forward.3} parent=5 // pred_check_branch
      %284 = sbr.rel (%p281) target = $region12
    $region11: #{gat_forward.3} parent=5 // pred_region
      %s285 = ssub.s32 %s26, 1
      // Predicated region
      $region13: #{gat_forward.3} parent=11 // pred_check
        %p286 = pneg %p203
      $region14: #{gat_forward.3} parent=11 // pred_check_branch
        %288 = sbr.rel (%p286) target = $region16
      $region15: #{gat_forward.3} parent=11 // pred_region
        _
      $region16: #{gat_forward.3} parent=11 // pred_fallthru
        _
      // Predicated region
      $region17: #{gat_forward.3} parent=11 // pred_check
        %p289 = pneg %p224
      $region18: #{gat_forward.3} parent=11 // pred_check_branch
        %291 = sbr.rel (%p289) target = $region20
      $region19: #{gat_forward.3} parent=11 // pred_region
        _
      $region20: #{gat_forward.3} parent=11 // pred_fallthru
        _
      // Predicated region
      $region21: #{gat_forward.3} parent=11 // pred_check
        %p292 = pneg %p245
      $region22: #{gat_forward.3} parent=11 // pred_check_branch
        %294 = sbr.rel (%p292) target = $region24
      $region23: #{gat_forward.3} parent=11 // pred_region
        _
      $region24: #{gat_forward.3} parent=11 // pred_fallthru
        _
    $region12: #{gat_forward.3} parent=5 // pred_fallthru
      _
    %p295 = scmp.lt.s32.totalorder %s26, 4
    // Predicated region
    $region25: #{gat_forward.3} parent=5 // pred_check
      %p296 = pneg %p295
    $region26: #{gat_forward.3} parent=5 // pred_check_branch
      %298 = sbr.rel (%p296) target = $region28
    $region27: #{gat_forward.3} parent=5 // pred_region
      // Predicated region
      $region29: #{gat_forward.3} parent=27 // pred_check
        %p299 = pneg %p58
      $region30: #{gat_forward.3} parent=27 // pred_check_branch
        %301 = sbr.rel (%p299) target = $region32
      $region31: #{gat_forward.3} parent=27 // pred_region
        %s302 = smul.u32 16, %s33
        %p303 = scmp.lt.s32.totalorder %s302, 63
        %s304 = scalar_select %p303, %s302, 63
        %s305 = smul.addr %s304, 8
        %s306 = scalar_lea.vmem %s2, %s305
        %s307 = smul.u32 16, %s33
      $region32: #{gat_forward.3} parent=27 // pred_fallthru
        _
      // Predicated region
      $region33: #{gat_forward.3} parent=27 // pred_check
        %p308 = pneg %p84
      $region34: #{gat_forward.3} parent=27 // pred_check_branch
        %310 = sbr.rel (%p308) target = $region36
      $region35: #{gat_forward.3} parent=27 // pred_region
        %s311 = smul.u32 16, %s33
        %p312 = scmp.lt.s32.totalorder %s311, 63
        %s313 = scalar_select %p312, %s311, 63
        %s314 = smul.addr %s313, 8
        %s315 = scalar_lea.vmem %s3, %s314
        %s316 = smul.u32 16, %s33
      $region36: #{gat_forward.3} parent=27 // pred_fallthru
        _
      // Predicated region
      $region37: #{gat_forward.3} parent=27 // pred_check
        %p317 = pneg %p114
      $region38: #{gat_forward.3} parent=27 // pred_check_branch
        %319 = sbr.rel (%p317) target = $region40
      $region39: #{gat_forward.3} parent=27 // pred_region
        %s320 = sadd.s32 %s33, %s34
        %s321 = sld [smem:[#allocation5 + %s320]]
        %s322 = smul.u32 64, %s321
        %p323 = scmp.lt.s32.totalorder %s322, 63
        %s324 = scalar_select %p323, %s322, 63
        %s325 = smul.addr %s324, 8
        %s326 = scalar_lea.vmem %s4, %s325
        %s327 = sadd.s32 %s33, %s34
        %s328 = sld [smem:[#allocation5 + %s327]]
        %s329 = smul.u32 64, %s328
      $region40: #{gat_forward.3} parent=27 // pred_fallthru
        _
      // Predicated region
      $region41: #{gat_forward.3} parent=27 // pred_check
        %p330 = pneg %p144
      $region42: #{gat_forward.3} parent=27 // pred_check_branch
        %332 = sbr.rel (%p330) target = $region44
      $region43: #{gat_forward.3} parent=27 // pred_region
        %s333 = sadd.s32 %s33, %s34
        %s334 = sld [smem:[#allocation5 + %s333]]
        %s335 = smul.u32 4, %s334
        %p336 = scmp.lt.s32.totalorder %s335, 3
        %s337 = scalar_select %p336, %s335, 3
        %s338 = smul.addr %s337, 2
        %s339 = scalar_lea.vmem %s5, %s338
        %s340 = sadd.s32 %s33, %s34
        %s341 = sld [smem:[#allocation5 + %s340]]
        %s342 = smul.u32 4, %s341
      $region44: #{gat_forward.3} parent=27 // pred_fallthru
        _
      // Predicated region
      $region45: #{gat_forward.3} parent=27 // pred_check
        %p343 = pneg %p176
      $region46: #{gat_forward.3} parent=27 // pred_check_branch
        %345 = sbr.rel (%p343) target = $region48
      $region47: #{gat_forward.3} parent=27 // pred_region
        %s346 = sadd.s32 %s33, %s34
        %s347 = sld [smem:[#allocation5 + %s346]]
        %s348 = smul.u32 16, %s33
        %s349 = smul.u32 4, %s347
        %p350 = scmp.lt.s32.totalorder %s348, 63
        %s351 = scalar_select %p350, %s348, 63
        %p352 = scmp.lt.s32.totalorder %s349, 3
        %s353 = scalar_select %p352, %s349, 3
        %s354 = smul.addr %s351, 4
        %s355 = sadd.s32 %s353, %s354
        %s356 = smul.addr %s355, 8
        %s357 = scalar_lea.vmem %s6, %s356
        %s358 = sadd.s32 %s33, %s34
        %s359 = sld [smem:[#allocation5 + %s358]]
        %s360 = smul.u32 16, %s33
        %s361 = smul.u32 4, %s359
      $region48: #{gat_forward.3} parent=27 // pred_fallthru
        _
    $region28: #{gat_forward.3} parent=5 // pred_fallthru
      _
    %p362 = scmp.le.s32.totalorder 1, %s26
    %p363 = scmp.lt.s32.totalorder %s26, 5
    %p364 = pnand %p362, %p363
    %p365 = pneg %p364
    // Predicated region
    $region49: #{gat_forward.3} parent=5 // pred_check
      _
    $region50: #{gat_forward.3} parent=5 // pred_check_branch
      %367 = sbr.rel (%p364) target = $region52
    $region51: #{gat_forward.3} parent=5 // pred_region
      %s368 = ssub.s32 %s26, 1
      %s369 = smul.u32 16, %s35
      %p370 = scmp.lt.s32.totalorder %s369, 63
      %s371 = scalar_select %p370, %s369, 63
      %s372 = smul.addr %s371, 8
      %s373 = scalar_lea.vmem %s2, %s372
      %p374 = pneg %p64
      %p375 = pneg %p61
      %s376 = smul.u32 16, %s35
      %p377 = scmp.lt.s32.totalorder %s376, 63
      %s378 = scalar_select %p377, %s376, 63
      %s379 = smul.addr %s378, 8
      %s380 = scalar_lea.vmem %s3, %s379
      %p381 = pneg %p90
      %p382 = pneg %p87
      %s383 = sadd.s32 %s35, %s36
      %s384 = sld [smem:[#allocation5 + %s383]]
      %s385 = smul.u32 64, %s384
      %p386 = scmp.lt.s32.totalorder %s385, 63
      %s387 = scalar_select %p386, %s385, 63
      %s388 = smul.addr %s387, 8
      %s389 = scalar_lea.vmem %s4, %s388
      %p390 = pneg %p120
      %p391 = pneg %p117
      %s392 = sadd.s32 %s35, %s36
      %s393 = sld [smem:[#allocation5 + %s392]]
      %s394 = smul.u32 4, %s393
      %p395 = scmp.lt.s32.totalorder %s394, 3
      %s396 = scalar_select %p395, %s394, 3
      %s397 = smul.addr %s396, 2
      %s398 = scalar_lea.vmem %s5, %s397
      %p399 = pneg %p150
      %p400 = pneg %p147
      %s401 = sadd.s32 %s35, %s36
      %s402 = sld [smem:[#allocation5 + %s401]]
      %s403 = smul.u32 16, %s35
      %s404 = smul.u32 4, %s402
      %p405 = scmp.lt.s32.totalorder %s403, 63
      %s406 = scalar_select %p405, %s403, 63
      %p407 = scmp.lt.s32.totalorder %s404, 3
      %s408 = scalar_select %p407, %s404, 3
      %s409 = smul.addr %s406, 4
      %s410 = sadd.s32 %s408, %s409
      %s411 = smul.addr %s410, 8
      %s412 = scalar_lea.vmem %s6, %s411
      %p413 = pneg %p182
      %p414 = pneg %p179
      %p415 = pneg %p203
      %p416 = pneg %p200
      %p417 = pneg %p224
      %p418 = pneg %p221
      %p419 = pneg %p245
      %p420 = pneg %p242
      %p421 = pneg %p271
      %p422 = pneg %p268
      %s423 = smul.u32 16, %s35
      %p424 = scmp.lt.s32.totalorder %s423, 63
      %s425 = scalar_select %p424, %s423, 63
      %s426 = smul.addr %s425, 8
      %s427 = scalar_lea.vmem %s10, %s426
      %s428 = smul.u32 16, %s35
      %p429 = scmp.lt.s32.totalorder %s428, 63
      %s430 = scalar_select %p429, %s428, 63
      %s431 = smul.addr %s430, 8
      %s432 = scalar_lea.vmem %s2, %s431
      %s433 = smul.u32 16, %s35
      %s434 = smul.u32 16, %s35
      %p435 = scmp.lt.s32.totalorder %s434, 63
      %s436 = scalar_select %p435, %s434, 63
      %s437 = smul.addr %s436, 8
      %s438 = scalar_lea.vmem %s3, %s437
      %s439 = smul.u32 16, %s35
      %s440 = sadd.s32 %s35, %s36
      %s441 = sld [smem:[#allocation5 + %s440]]
      %s442 = smul.u32 64, %s441
      %p443 = scmp.lt.s32.totalorder %s442, 63
      %s444 = scalar_select %p443, %s442, 63
      %s445 = smul.addr %s444, 8
      %s446 = scalar_lea.vmem %s4, %s445
      %s447 = sadd.s32 %s35, %s36
      %s448 = sld [smem:[#allocation5 + %s447]]
      %s449 = smul.u32 64, %s448
      %s450 = sadd.s32 %s35, %s36
      %s451 = sld [smem:[#allocation5 + %s450]]
      %s452 = smul.u32 4, %s451
      %p453 = scmp.lt.s32.totalorder %s452, 3
      %s454 = scalar_select %p453, %s452, 3
      %s455 = smul.addr %s454, 2
      %s456 = scalar_lea.vmem %s5, %s455
      %s457 = sadd.s32 %s35, %s36
      %s458 = sld [smem:[#allocation5 + %s457]]
      %s459 = smul.u32 4, %s458
      %s460 = sadd.s32 %s35, %s36
      %s461 = sld [smem:[#allocation5 + %s460]]
      %s462 = smul.u32 16, %s35
      %s463 = smul.u32 4, %s461
      %p464 = scmp.lt.s32.totalorder %s462, 63
      %s465 = scalar_select %p464, %s462, 63
      %p466 = scmp.lt.s32.totalorder %s463, 3
      %s467 = scalar_select %p466, %s463, 3
      %s468 = smul.addr %s465, 4
      %s469 = sadd.s32 %s467, %s468
      %s470 = smul.addr %s469, 8
      %s471 = scalar_lea.vmem %s6, %s470
      %s472 = sadd.s32 %s35, %s36
      %s473 = sld [smem:[#allocation5 + %s472]]
      %s474 = smul.u32 16, %s35
      %s475 = smul.u32 4, %s473
      %s476 = smul.u32 16, %s35
      %p477 = scmp.lt.s32.totalorder %s476, 63
      %s478 = scalar_select %p477, %s476, 63
      %s479 = smul.addr %s478, 8
      %s480 = scalar_lea.vmem %s10, %s479
      %s481 = smul.u32 16, %s35
      %p482 = scmp.eq.s32.totalorder %s36, 0
      // Predicated region
      $region53: #{gat_forward.3} parent=51 // pred_check
        %p483 = pneg %p482
      $region54: #{gat_forward.3} parent=51 // pred_check_branch
        %485 = sbr.rel (%p483) target = $region56
      $region55: #{gat_forward.3} parent=51 // pred_region
        %vm486 = vcmask 7168
        %487 = vst.msk [vmem:[#allocation2] sm:$0xff] %vm486, -1e+30
        %488 = vst.msk [vmem:[#allocation2 + $0x8] sm:$0xff] %vm486, -1e+30
        %489 = vst.msk [vmem:[#allocation2 + $0x10] sm:$0xff] %vm486, -1e+30
        %490 = vst.msk [vmem:[#allocation2 + $0x18] sm:$0xff] %vm486, -1e+30
        %491 = vst.msk [vmem:[#allocation2 + $0x20] sm:$0xff] %vm486, -1e+30
        %492 = vst.msk [vmem:[#allocation2 + $0x28] sm:$0xff] %vm486, -1e+30
        %493 = vst.msk [vmem:[#allocation2 + $0x30] sm:$0xff] %vm486, -1e+30
        %494 = vst.msk [vmem:[#allocation2 + $0x38] sm:$0xff] %vm486, -1e+30
        %495 = vst.msk [vmem:[#allocation2 + $0x40] sm:$0xff] %vm486, -1e+30
        %496 = vst.msk [vmem:[#allocation2 + $0x48] sm:$0xff] %vm486, -1e+30
        %497 = vst.msk [vmem:[#allocation2 + $0x50] sm:$0xff] %vm486, -1e+30
        %498 = vst.msk [vmem:[#allocation2 + $0x58] sm:$0xff] %vm486, -1e+30
        %499 = vst.msk [vmem:[#allocation2 + $0x60] sm:$0xff] %vm486, -1e+30
        %500 = vst.msk [vmem:[#allocation2 + $0x68] sm:$0xff] %vm486, -1e+30
        %501 = vst.msk [vmem:[#allocation2 + $0x70] sm:$0xff] %vm486, -1e+30
        %502 = vst.msk [vmem:[#allocation2 + $0x78] sm:$0xff] %vm486, -1e+30
        %503 = vst.msk [vmem:[#allocation2 + $0x80] sm:$0xff] %vm486, -1e+30
        %504 = vst.msk [vmem:[#allocation2 + $0x88] sm:$0xff] %vm486, -1e+30
        %505 = vst.msk [vmem:[#allocation2 + $0x90] sm:$0xff] %vm486, -1e+30
        %506 = vst.msk [vmem:[#allocation2 + $0x98] sm:$0xff] %vm486, -1e+30
        %507 = vst.msk [vmem:[#allocation2 + $0xa0] sm:$0xff] %vm486, -1e+30
        %508 = vst.msk [vmem:[#allocation2 + $0xa8] sm:$0xff] %vm486, -1e+30
        %509 = vst.msk [vmem:[#allocation2 + $0xb0] sm:$0xff] %vm486, -1e+30
        %510 = vst.msk [vmem:[#allocation2 + $0xb8] sm:$0xff] %vm486, -1e+30
        %511 = vst.msk [vmem:[#allocation2 + $0xc0] sm:$0xff] %vm486, -1e+30
        %512 = vst.msk [vmem:[#allocation2 + $0xc8] sm:$0xff] %vm486, -1e+30
        %513 = vst.msk [vmem:[#allocation2 + $0xd0] sm:$0xff] %vm486, -1e+30
        %514 = vst.msk [vmem:[#allocation2 + $0xd8] sm:$0xff] %vm486, -1e+30
        %515 = vst.msk [vmem:[#allocation2 + $0xe0] sm:$0xff] %vm486, -1e+30
        %516 = vst.msk [vmem:[#allocation2 + $0xe8] sm:$0xff] %vm486, -1e+30
        %517 = vst.msk [vmem:[#allocation2 + $0xf0] sm:$0xff] %vm486, -1e+30
        %518 = vst.msk [vmem:[#allocation2 + $0xf8] sm:$0xff] %vm486, -1e+30
        %vm519 = vcmask 138240
        %520 = vst.msk [vmem:[#allocation3] sm:$0xff] %vm519, 0.0
        %521 = vst.msk [vmem:[#allocation3 + $0x8] sm:$0xff] %vm519, 0.0
        %522 = vst.msk [vmem:[#allocation3 + $0x10] sm:$0xff] %vm519, 0.0
        %523 = vst.msk [vmem:[#allocation3 + $0x18] sm:$0xff] %vm519, 0.0
        %524 = vst.msk [vmem:[#allocation3 + $0x20] sm:$0xff] %vm519, 0.0
        %525 = vst.msk [vmem:[#allocation3 + $0x28] sm:$0xff] %vm519, 0.0
        %526 = vst.msk [vmem:[#allocation3 + $0x30] sm:$0xff] %vm519, 0.0
        %527 = vst.msk [vmem:[#allocation3 + $0x38] sm:$0xff] %vm519, 0.0
        %528 = vst.msk [vmem:[#allocation3 + $0x40] sm:$0xff] %vm519, 0.0
        %529 = vst.msk [vmem:[#allocation3 + $0x48] sm:$0xff] %vm519, 0.0
        %530 = vst.msk [vmem:[#allocation3 + $0x50] sm:$0xff] %vm519, 0.0
        %531 = vst.msk [vmem:[#allocation3 + $0x58] sm:$0xff] %vm519, 0.0
        %532 = vst.msk [vmem:[#allocation3 + $0x60] sm:$0xff] %vm519, 0.0
        %533 = vst.msk [vmem:[#allocation3 + $0x68] sm:$0xff] %vm519, 0.0
        %534 = vst.msk [vmem:[#allocation3 + $0x70] sm:$0xff] %vm519, 0.0
        %535 = vst.msk [vmem:[#allocation3 + $0x78] sm:$0xff] %vm519, 0.0
        %536 = vst.msk [vmem:[#allocation3 + $0x80] sm:$0xff] %vm519, 0.0
        %537 = vst.msk [vmem:[#allocation3 + $0x88] sm:$0xff] %vm519, 0.0
        %538 = vst.msk [vmem:[#allocation3 + $0x90] sm:$0xff] %vm519, 0.0
        %539 = vst.msk [vmem:[#allocation3 + $0x98] sm:$0xff] %vm519, 0.0
        %540 = vst.msk [vmem:[#allocation3 + $0xa0] sm:$0xff] %vm519, 0.0
        %541 = vst.msk [vmem:[#allocation3 + $0xa8] sm:$0xff] %vm519, 0.0
        %542 = vst.msk [vmem:[#allocation3 + $0xb0] sm:$0xff] %vm519, 0.0
        %543 = vst.msk [vmem:[#allocation3 + $0xb8] sm:$0xff] %vm519, 0.0
        %544 = vst.msk [vmem:[#allocation3 + $0xc0] sm:$0xff] %vm519, 0.0
        %545 = vst.msk [vmem:[#allocation3 + $0xc8] sm:$0xff] %vm519, 0.0
        %546 = vst.msk [vmem:[#allocation3 + $0xd0] sm:$0xff] %vm519, 0.0
        %547 = vst.msk [vmem:[#allocation3 + $0xd8] sm:$0xff] %vm519, 0.0
        %548 = vst.msk [vmem:[#allocation3 + $0xe0] sm:$0xff] %vm519, 0.0
        %549 = vst.msk [vmem:[#allocation3 + $0xe8] sm:$0xff] %vm519, 0.0
        %550 = vst.msk [vmem:[#allocation3 + $0xf0] sm:$0xff] %vm519, 0.0
        %551 = vst.msk [vmem:[#allocation3 + $0xf8] sm:$0xff] %vm519, 0.0
      $region56: #{gat_forward.3} parent=51 // pred_fallthru
        _
      %s552 = sld [smem:[#allocation6 + %s35]]
      %p553 = scmp.lt.s32.totalorder %s36, %s552
      // Predicated region
      $region57: #{gat_forward.3} parent=51 // pred_check
        %p554 = pneg %p553
      $region58: #{gat_forward.3} parent=51 // pred_check_branch
        %556 = sbr.rel (%p554) target = $region60
      $region59: #{gat_forward.3} parent=51 // pred_region
        %v557 = vld [vmem:[%s471] sm:$0xff]
        %v558 = vld [vmem:[%s471 + $0x8] sm:$0xff]
        %v559 = vld [vmem:[%s471 + $0x10] sm:$0xff]
        %v560 = vld [vmem:[%s471 + $0x18] sm:$0xff]
        %v561 = vld [vmem:[%s471 + $0x20] sm:$0xff]
        %v562 = vld [vmem:[%s471 + $0x28] sm:$0xff]
        %v563 = vld [vmem:[%s471 + $0x30] sm:$0xff]
        %v564 = vld [vmem:[%s471 + $0x38] sm:$0xff]
        %v565 = vld [vmem:[%s471 + $0x40] sm:$0xff]
        %v566 = vld [vmem:[%s471 + $0x48] sm:$0xff]
        %v567 = vld [vmem:[%s471 + $0x50] sm:$0xff]
        %v568 = vld [vmem:[%s471 + $0x58] sm:$0xff]
        %v569 = vld [vmem:[%s471 + $0x60] sm:$0xff]
        %v570 = vld [vmem:[%s471 + $0x68] sm:$0xff]
        %v571 = vld [vmem:[%s471 + $0x70] sm:$0xff]
        %v572 = vld [vmem:[%s471 + $0x78] sm:$0xff]
        %v573 = vld [vmem:[%s471 + $0x80] sm:$0xff]
        %v574 = vld [vmem:[%s471 + $0x88] sm:$0xff]
        %v575 = vld [vmem:[%s471 + $0x90] sm:$0xff]
        %v576 = vld [vmem:[%s471 + $0x98] sm:$0xff]
        %v577 = vld [vmem:[%s471 + $0xa0] sm:$0xff]
        %v578 = vld [vmem:[%s471 + $0xa8] sm:$0xff]
        %v579 = vld [vmem:[%s471 + $0xb0] sm:$0xff]
        %v580 = vld [vmem:[%s471 + $0xb8] sm:$0xff]
        %v581 = vld [vmem:[%s471 + $0xc0] sm:$0xff]
        %v582 = vld [vmem:[%s471 + $0xc8] sm:$0xff]
        %v583 = vld [vmem:[%s471 + $0xd0] sm:$0xff]
        %v584 = vld [vmem:[%s471 + $0xd8] sm:$0xff]
        %v585 = vld [vmem:[%s471 + $0xe0] sm:$0xff]
        %v586 = vld [vmem:[%s471 + $0xe8] sm:$0xff]
        %v587 = vld [vmem:[%s471 + $0xf0] sm:$0xff]
        %v588 = vld [vmem:[%s471 + $0xf8] sm:$0xff]
        %v589 = vld [vmem:[%s471 + $0x100] sm:$0xff]
        %v590 = vld [vmem:[%s471 + $0x108] sm:$0xff]
        %v591 = vld [vmem:[%s471 + $0x110] sm:$0xff]
        %v592 = vld [vmem:[%s471 + $0x118] sm:$0xff]
        %v593 = vld [vmem:[%s471 + $0x120] sm:$0xff]
        %v594 = vld [vmem:[%s471 + $0x128] sm:$0xff]
        %v595 = vld [vmem:[%s471 + $0x130] sm:$0xff]
        %v596 = vld [vmem:[%s471 + $0x138] sm:$0xff]
        %v597 = vld [vmem:[%s471 + $0x140] sm:$0xff]
        %v598 = vld [vmem:[%s471 + $0x148] sm:$0xff]
        %v599 = vld [vmem:[%s471 + $0x150] sm:$0xff]
        %v600 = vld [vmem:[%s471 + $0x158] sm:$0xff]
        %v601 = vld [vmem:[%s471 + $0x160] sm:$0xff]
        %v602 = vld [vmem:[%s471 + $0x168] sm:$0xff]
        %v603 = vld [vmem:[%s471 + $0x170] sm:$0xff]
        %v604 = vld [vmem:[%s471 + $0x178] sm:$0xff]
        %v605 = vld [vmem:[%s471 + $0x180] sm:$0xff]
        %v606 = vld [vmem:[%s471 + $0x188] sm:$0xff]
        %v607 = vld [vmem:[%s471 + $0x190] sm:$0xff]
        %v608 = vld [vmem:[%s471 + $0x198] sm:$0xff]
        %v609 = vld [vmem:[%s471 + $0x1a0] sm:$0xff]
        %v610 = vld [vmem:[%s471 + $0x1a8] sm:$0xff]
        %v611 = vld [vmem:[%s471 + $0x1b0] sm:$0xff]
        %v612 = vld [vmem:[%s471 + $0x1b8] sm:$0xff]
        %v613 = vld [vmem:[%s471 + $0x1c0] sm:$0xff]
        %v614 = vld [vmem:[%s471 + $0x1c8] sm:$0xff]
        %v615 = vld [vmem:[%s471 + $0x1d0] sm:$0xff]
        %v616 = vld [vmem:[%s471 + $0x1d8] sm:$0xff]
        %v617 = vld [vmem:[%s471 + $0x1e0] sm:$0xff]
        %v618 = vld [vmem:[%s471 + $0x1e8] sm:$0xff]
        %v619 = vld [vmem:[%s471 + $0x1f0] sm:$0xff]
        %v620 = vld [vmem:[%s471 + $0x1f8] sm:$0xff]
        %vm621 = vcmp.gt.f32.partialorder %v557, 0.0
        %vm622 = vcmp.gt.f32.partialorder %v558, 0.0
        %vm623 = vcmp.gt.f32.partialorder %v559, 0.0
        %vm624 = vcmp.gt.f32.partialorder %v560, 0.0
        %vm625 = vcmp.gt.f32.partialorder %v561, 0.0
        %vm626 = vcmp.gt.f32.partialorder %v562, 0.0
        %vm627 = vcmp.gt.f32.partialorder %v563, 0.0
        %vm628 = vcmp.gt.f32.partialorder %v564, 0.0
        %vm629 = vcmp.gt.f32.partialorder %v565, 0.0
        %vm630 = vcmp.gt.f32.partialorder %v566, 0.0
        %vm631 = vcmp.gt.f32.partialorder %v567, 0.0
        %vm632 = vcmp.gt.f32.partialorder %v568, 0.0
        %vm633 = vcmp.gt.f32.partialorder %v569, 0.0
        %vm634 = vcmp.gt.f32.partialorder %v570, 0.0
        %vm635 = vcmp.gt.f32.partialorder %v571, 0.0
        %vm636 = vcmp.gt.f32.partialorder %v572, 0.0
        %vm637 = vcmp.gt.f32.partialorder %v573, 0.0
        %vm638 = vcmp.gt.f32.partialorder %v574, 0.0
        %vm639 = vcmp.gt.f32.partialorder %v575, 0.0
        %vm640 = vcmp.gt.f32.partialorder %v576, 0.0
        %vm641 = vcmp.gt.f32.partialorder %v577, 0.0
        %vm642 = vcmp.gt.f32.partialorder %v578, 0.0
        %vm643 = vcmp.gt.f32.partialorder %v579, 0.0
        %vm644 = vcmp.gt.f32.partialorder %v580, 0.0
        %vm645 = vcmp.gt.f32.partialorder %v581, 0.0
        %vm646 = vcmp.gt.f32.partialorder %v582, 0.0
        %vm647 = vcmp.gt.f32.partialorder %v583, 0.0
        %vm648 = vcmp.gt.f32.partialorder %v584, 0.0
        %vm649 = vcmp.gt.f32.partialorder %v585, 0.0
        %vm650 = vcmp.gt.f32.partialorder %v586, 0.0
        %vm651 = vcmp.gt.f32.partialorder %v587, 0.0
        %vm652 = vcmp.gt.f32.partialorder %v588, 0.0
        %vm653 = vcmp.gt.f32.partialorder %v589, 0.0
        %vm654 = vcmp.gt.f32.partialorder %v590, 0.0
        %vm655 = vcmp.gt.f32.partialorder %v591, 0.0
        %vm656 = vcmp.gt.f32.partialorder %v592, 0.0
        %vm657 = vcmp.gt.f32.partialorder %v593, 0.0
        %vm658 = vcmp.gt.f32.partialorder %v594, 0.0
        %vm659 = vcmp.gt.f32.partialorder %v595, 0.0
        %vm660 = vcmp.gt.f32.partialorder %v596, 0.0
        %vm661 = vcmp.gt.f32.partialorder %v597, 0.0
        %vm662 = vcmp.gt.f32.partialorder %v598, 0.0
        %vm663 = vcmp.gt.f32.partialorder %v599, 0.0
        %vm664 = vcmp.gt.f32.partialorder %v600, 0.0
        %vm665 = vcmp.gt.f32.partialorder %v601, 0.0
        %vm666 = vcmp.gt.f32.partialorder %v602, 0.0
        %vm667 = vcmp.gt.f32.partialorder %v603, 0.0
        %vm668 = vcmp.gt.f32.partialorder %v604, 0.0
        %vm669 = vcmp.gt.f32.partialorder %v605, 0.0
        %vm670 = vcmp.gt.f32.partialorder %v606, 0.0
        %vm671 = vcmp.gt.f32.partialorder %v607, 0.0
        %vm672 = vcmp.gt.f32.partialorder %v608, 0.0
        %vm673 = vcmp.gt.f32.partialorder %v609, 0.0
        %vm674 = vcmp.gt.f32.partialorder %v610, 0.0
        %vm675 = vcmp.gt.f32.partialorder %v611, 0.0
        %vm676 = vcmp.gt.f32.partialorder %v612, 0.0
        %vm677 = vcmp.gt.f32.partialorder %v613, 0.0
        %vm678 = vcmp.gt.f32.partialorder %v614, 0.0
        %vm679 = vcmp.gt.f32.partialorder %v615, 0.0
        %vm680 = vcmp.gt.f32.partialorder %v616, 0.0
        %vm681 = vcmp.gt.f32.partialorder %v617, 0.0
        %vm682 = vcmp.gt.f32.partialorder %v618, 0.0
        %vm683 = vcmp.gt.f32.partialorder %v619, 0.0
        %vm684 = vcmp.gt.f32.partialorder %v620, 0.0
        %v685 = vld [vmem:[%s438] sm:$0xff]
        %v686 = vld [vmem:[%s438 + $0x8] sm:$0xff]
        %v687 = vld [vmem:[%s438 + $0x10] sm:$0xff]
        %v688 = vld [vmem:[%s438 + $0x18] sm:$0xff]
        %v689 = vld [vmem:[%s438 + $0x20] sm:$0xff]
        %v690 = vld [vmem:[%s438 + $0x28] sm:$0xff]
        %v691 = vld [vmem:[%s438 + $0x30] sm:$0xff]
        %v692 = vld [vmem:[%s438 + $0x38] sm:$0xff]
        %v693 = vld [vmem:[%s438 + $0x40] sm:$0xff]
        %v694 = vld [vmem:[%s438 + $0x48] sm:$0xff]
        %v695 = vld [vmem:[%s438 + $0x50] sm:$0xff]
        %v696 = vld [vmem:[%s438 + $0x58] sm:$0xff]
        %v697 = vld [vmem:[%s438 + $0x60] sm:$0xff]
        %v698 = vld [vmem:[%s438 + $0x68] sm:$0xff]
        %v699 = vld [vmem:[%s438 + $0x70] sm:$0xff]
        %v700 = vld [vmem:[%s438 + $0x78] sm:$0xff]
        %v701 = vld [vmem:[%s456] ss:$2 sm:$0xf]
        %703 = vset.pattern.permute.xlu0 0
        %704 = vperm.xlu0 %703, %v685
        %v705 = vpop.permute.xlu0 %704
        %708 = vset.pattern.permute.xlu0 0
        %709 = vperm.xlu0 %708, %v686
        %v710 = vpop.permute.xlu0 %709
        %713 = vset.pattern.permute.xlu0 0
        %714 = vperm.xlu0 %713, %v687
        %v715 = vpop.permute.xlu0 %714
        %718 = vset.pattern.permute.xlu0 0
        %719 = vperm.xlu0 %718, %v688
        %v720 = vpop.permute.xlu0 %719
        %723 = vset.pattern.permute.xlu0 0
        %724 = vperm.xlu0 %723, %v689
        %v725 = vpop.permute.xlu0 %724
        %728 = vset.pattern.permute.xlu0 0
        %729 = vperm.xlu0 %728, %v690
        %v730 = vpop.permute.xlu0 %729
        %733 = vset.pattern.permute.xlu0 0
        %734 = vperm.xlu0 %733, %v691
        %v735 = vpop.permute.xlu0 %734
        %738 = vset.pattern.permute.xlu0 0
        %739 = vperm.xlu0 %738, %v692
        %v740 = vpop.permute.xlu0 %739
        %743 = vset.pattern.permute.xlu0 0
        %744 = vperm.xlu0 %743, %v693
        %v745 = vpop.permute.xlu0 %744
        %748 = vset.pattern.permute.xlu0 0
        %749 = vperm.xlu0 %748, %v694
        %v750 = vpop.permute.xlu0 %749
        %753 = vset.pattern.permute.xlu0 0
        %754 = vperm.xlu0 %753, %v695
        %v755 = vpop.permute.xlu0 %754
        %758 = vset.pattern.permute.xlu0 0
        %759 = vperm.xlu0 %758, %v696
        %v760 = vpop.permute.xlu0 %759
        %763 = vset.pattern.permute.xlu0 0
        %764 = vperm.xlu0 %763, %v697
        %v765 = vpop.permute.xlu0 %764
        %768 = vset.pattern.permute.xlu0 0
        %769 = vperm.xlu0 %768, %v698
        %v770 = vpop.permute.xlu0 %769
        %773 = vset.pattern.permute.xlu0 0
        %774 = vperm.xlu0 %773, %v699
        %v775 = vpop.permute.xlu0 %774
        %778 = vset.pattern.permute.xlu0 0
        %779 = vperm.xlu0 %778, %v700
        %v780 = vpop.permute.xlu0 %779
        %v783 = vlaneseq
        %v784 = vshrl.u32 %v783, 7
        %v785 = vsub.s32 0, %v784
        %v786 = vrot.slane %v701, %v785
        %v787 = vlaneseq
        %v788 = vshrl.u32 %v787, 7
        %v789 = vsub.s32 1, %v788
        %v790 = vrot.slane %v701, %v789
        %v791 = vlaneseq
        %v792 = vshrl.u32 %v791, 7
        %v793 = vsub.s32 2, %v792
        %v794 = vrot.slane %v701, %v793
        %v795 = vlaneseq
        %v796 = vshrl.u32 %v795, 7
        %v797 = vsub.s32 3, %v796
        %v798 = vrot.slane %v701, %v797
        %v803 = vadd.f32 %v705, %v786
        %v804 = vadd.f32 %v705, %v790
        %v805 = vadd.f32 %v705, %v794
        %v806 = vadd.f32 %v705, %v798
        %v807 = vadd.f32 %v710, %v786
        %v808 = vadd.f32 %v710, %v790
        %v809 = vadd.f32 %v710, %v794
        %v810 = vadd.f32 %v710, %v798
        %v811 = vadd.f32 %v715, %v786
        %v812 = vadd.f32 %v715, %v790
        %v813 = vadd.f32 %v715, %v794
        %v814 = vadd.f32 %v715, %v798
        %v815 = vadd.f32 %v720, %v786
        %v816 = vadd.f32 %v720, %v790
        %v817 = vadd.f32 %v720, %v794
        %v818 = vadd.f32 %v720, %v798
        %v819 = vadd.f32 %v725, %v786
        %v820 = vadd.f32 %v725, %v790
        %v821 = vadd.f32 %v725, %v794
        %v822 = vadd.f32 %v725, %v798
        %v823 = vadd.f32 %v730, %v786
        %v824 = vadd.f32 %v730, %v790
        %v825 = vadd.f32 %v730, %v794
        %v826 = vadd.f32 %v730, %v798
        %v827 = vadd.f32 %v735, %v786
        %v828 = vadd.f32 %v735, %v790
        %v829 = vadd.f32 %v735, %v794
        %v830 = vadd.f32 %v735, %v798
        %v831 = vadd.f32 %v740, %v786
        %v832 = vadd.f32 %v740, %v790
        %v833 = vadd.f32 %v740, %v794
        %v834 = vadd.f32 %v740, %v798
        %v835 = vadd.f32 %v745, %v786
        %v836 = vadd.f32 %v745, %v790
        %v837 = vadd.f32 %v745, %v794
        %v838 = vadd.f32 %v745, %v798
        %v839 = vadd.f32 %v750, %v786
        %v840 = vadd.f32 %v750, %v790
        %v841 = vadd.f32 %v750, %v794
        %v842 = vadd.f32 %v750, %v798
        %v843 = vadd.f32 %v755, %v786
        %v844 = vadd.f32 %v755, %v790
        %v845 = vadd.f32 %v755, %v794
        %v846 = vadd.f32 %v755, %v798
        %v847 = vadd.f32 %v760, %v786
        %v848 = vadd.f32 %v760, %v790
        %v849 = vadd.f32 %v760, %v794
        %v850 = vadd.f32 %v760, %v798
        %v851 = vadd.f32 %v765, %v786
        %v852 = vadd.f32 %v765, %v790
        %v853 = vadd.f32 %v765, %v794
        %v854 = vadd.f32 %v765, %v798
        %v855 = vadd.f32 %v770, %v786
        %v856 = vadd.f32 %v770, %v790
        %v857 = vadd.f32 %v770, %v794
        %v858 = vadd.f32 %v770, %v798
        %v859 = vadd.f32 %v775, %v786
        %v860 = vadd.f32 %v775, %v790
        %v861 = vadd.f32 %v775, %v794
        %v862 = vadd.f32 %v775, %v798
        %v863 = vadd.f32 %v780, %v786
        %v864 = vadd.f32 %v780, %v790
        %v865 = vadd.f32 %v780, %v794
        %v866 = vadd.f32 %v780, %v798
        %v867 = vsel %vm621, %v803, -1e+30
        %v868 = vsel %vm622, %v804, -1e+30
        %v869 = vsel %vm623, %v805, -1e+30
        %v870 = vsel %vm624, %v806, -1e+30
        %v871 = vsel %vm625, %v807, -1e+30
        %v872 = vsel %vm626, %v808, -1e+30
        %v873 = vsel %vm627, %v809, -1e+30
        %v874 = vsel %vm628, %v810, -1e+30
        %v875 = vsel %vm629, %v811, -1e+30
        %v876 = vsel %vm630, %v812, -1e+30
        %v877 = vsel %vm631, %v813, -1e+30
        %v878 = vsel %vm632, %v814, -1e+30
        %v879 = vsel %vm633, %v815, -1e+30
        %v880 = vsel %vm634, %v816, -1e+30
        %v881 = vsel %vm635, %v817, -1e+30
        %v882 = vsel %vm636, %v818, -1e+30
        %v883 = vsel %vm637, %v819, -1e+30
        %v884 = vsel %vm638, %v820, -1e+30
        %v885 = vsel %vm639, %v821, -1e+30
        %v886 = vsel %vm640, %v822, -1e+30
        %v887 = vsel %vm641, %v823, -1e+30
        %v888 = vsel %vm642, %v824, -1e+30
        %v889 = vsel %vm643, %v825, -1e+30
        %v890 = vsel %vm644, %v826, -1e+30
        %v891 = vsel %vm645, %v827, -1e+30
        %v892 = vsel %vm646, %v828, -1e+30
        %v893 = vsel %vm647, %v829, -1e+30
        %v894 = vsel %vm648, %v830, -1e+30
        %v895 = vsel %vm649, %v831, -1e+30
        %v896 = vsel %vm650, %v832, -1e+30
        %v897 = vsel %vm651, %v833, -1e+30
        %v898 = vsel %vm652, %v834, -1e+30
        %v899 = vsel %vm653, %v835, -1e+30
        %v900 = vsel %vm654, %v836, -1e+30
        %v901 = vsel %vm655, %v837, -1e+30
        %v902 = vsel %vm656, %v838, -1e+30
        %v903 = vsel %vm657, %v839, -1e+30
        %v904 = vsel %vm658, %v840, -1e+30
        %v905 = vsel %vm659, %v841, -1e+30
        %v906 = vsel %vm660, %v842, -1e+30
        %v907 = vsel %vm661, %v843, -1e+30
        %v908 = vsel %vm662, %v844, -1e+30
        %v909 = vsel %vm663, %v845, -1e+30
        %v910 = vsel %vm664, %v846, -1e+30
        %v911 = vsel %vm665, %v847, -1e+30
        %v912 = vsel %vm666, %v848, -1e+30
        %v913 = vsel %vm667, %v849, -1e+30
        %v914 = vsel %vm668, %v850, -1e+30
        %v915 = vsel %vm669, %v851, -1e+30
        %v916 = vsel %vm670, %v852, -1e+30
        %v917 = vsel %vm671, %v853, -1e+30
        %v918 = vsel %vm672, %v854, -1e+30
        %v919 = vsel %vm673, %v855, -1e+30
        %v920 = vsel %vm674, %v856, -1e+30
        %v921 = vsel %vm675, %v857, -1e+30
        %v922 = vsel %vm676, %v858, -1e+30
        %v923 = vsel %vm677, %v859, -1e+30
        %v924 = vsel %vm678, %v860, -1e+30
        %v925 = vsel %vm679, %v861, -1e+30
        %v926 = vsel %vm680, %v862, -1e+30
        %v927 = vsel %vm681, %v863, -1e+30
        %v928 = vsel %vm682, %v864, -1e+30
        %v929 = vsel %vm683, %v865, -1e+30
        %v930 = vsel %vm684, %v866, -1e+30
        %v931 = vld [vmem:[#allocation2] sm:$0xff]
        %v932 = vld [vmem:[#allocation2 + $0x8] sm:$0xff]
        %v933 = vld [vmem:[#allocation2 + $0x10] sm:$0xff]
        %v934 = vld [vmem:[#allocation2 + $0x18] sm:$0xff]
        %v935 = vld [vmem:[#allocation2 + $0x20] sm:$0xff]
        %v936 = vld [vmem:[#allocation2 + $0x28] sm:$0xff]
        %v937 = vld [vmem:[#allocation2 + $0x30] sm:$0xff]
        %v938 = vld [vmem:[#allocation2 + $0x38] sm:$0xff]
        %v939 = vld [vmem:[#allocation2 + $0x40] sm:$0xff]
        %v940 = vld [vmem:[#allocation2 + $0x48] sm:$0xff]
        %v941 = vld [vmem:[#allocation2 + $0x50] sm:$0xff]
        %v942 = vld [vmem:[#allocation2 + $0x58] sm:$0xff]
        %v943 = vld [vmem:[#allocation2 + $0x60] sm:$0xff]
        %v944 = vld [vmem:[#allocation2 + $0x68] sm:$0xff]
        %v945 = vld [vmem:[#allocation2 + $0x70] sm:$0xff]
        %v946 = vld [vmem:[#allocation2 + $0x78] sm:$0xff]
        %v947 = vmax.f32 %v867, %v868
        %v948 = vmax.f32 %v947, %v869
        %v949 = vmax.f32 %v948, %v870
        %950 = vmax.xlane.f32.xlu0 %v949
        %v951 = vpop.xlane.xlu0 %950
        %v952 = vmax.f32 %v871, %v872
        %v953 = vmax.f32 %v952, %v873
        %v954 = vmax.f32 %v953, %v874
        %955 = vmax.xlane.f32.xlu0 %v954
        %v956 = vpop.xlane.xlu0 %955
        %v957 = vmax.f32 %v875, %v876
        %v958 = vmax.f32 %v957, %v877
        %v959 = vmax.f32 %v958, %v878
        %960 = vmax.xlane.f32.xlu0 %v959
        %v961 = vpop.xlane.xlu0 %960
        %v962 = vmax.f32 %v879, %v880
        %v963 = vmax.f32 %v962, %v881
        %v964 = vmax.f32 %v963, %v882
        %965 = vmax.xlane.f32.xlu0 %v964
        %v966 = vpop.xlane.xlu0 %965
        %v967 = vmax.f32 %v883, %v884
        %v968 = vmax.f32 %v967, %v885
        %v969 = vmax.f32 %v968, %v886
        %970 = vmax.xlane.f32.xlu0 %v969
        %v971 = vpop.xlane.xlu0 %970
        %v972 = vmax.f32 %v887, %v888
        %v973 = vmax.f32 %v972, %v889
        %v974 = vmax.f32 %v973, %v890
        %975 = vmax.xlane.f32.xlu0 %v974
        %v976 = vpop.xlane.xlu0 %975
        %v977 = vmax.f32 %v891, %v892
        %v978 = vmax.f32 %v977, %v893
        %v979 = vmax.f32 %v978, %v894
        %980 = vmax.xlane.f32.xlu0 %v979
        %v981 = vpop.xlane.xlu0 %980
        %v982 = vmax.f32 %v895, %v896
        %v983 = vmax.f32 %v982, %v897
        %v984 = vmax.f32 %v983, %v898
        %985 = vmax.xlane.f32.xlu0 %v984
        %v986 = vpop.xlane.xlu0 %985
        %v987 = vmax.f32 %v899, %v900
        %v988 = vmax.f32 %v987, %v901
        %v989 = vmax.f32 %v988, %v902
        %990 = vmax.xlane.f32.xlu0 %v989
        %v991 = vpop.xlane.xlu0 %990
        %v992 = vmax.f32 %v903, %v904
        %v993 = vmax.f32 %v992, %v905
        %v994 = vmax.f32 %v993, %v906
        %995 = vmax.xlane.f32.xlu0 %v994
        %v996 = vpop.xlane.xlu0 %995
        %v997 = vmax.f32 %v907, %v908
        %v998 = vmax.f32 %v997, %v909
        %v999 = vmax.f32 %v998, %v910
        %1000 = vmax.xlane.f32.xlu0 %v999
        %v1001 = vpop.xlane.xlu0 %1000
        %v1002 = vmax.f32 %v911, %v912
        %v1003 = vmax.f32 %v1002, %v913
        %v1004 = vmax.f32 %v1003, %v914
        %1005 = vmax.xlane.f32.xlu0 %v1004
        %v1006 = vpop.xlane.xlu0 %1005
        %v1007 = vmax.f32 %v915, %v916
        %v1008 = vmax.f32 %v1007, %v917
        %v1009 = vmax.f32 %v1008, %v918
        %1010 = vmax.xlane.f32.xlu0 %v1009
        %v1011 = vpop.xlane.xlu0 %1010
        %v1012 = vmax.f32 %v919, %v920
        %v1013 = vmax.f32 %v1012, %v921
        %v1014 = vmax.f32 %v1013, %v922
        %1015 = vmax.xlane.f32.xlu0 %v1014
        %v1016 = vpop.xlane.xlu0 %1015
        %v1017 = vmax.f32 %v923, %v924
        %v1018 = vmax.f32 %v1017, %v925
        %v1019 = vmax.f32 %v1018, %v926
        %1020 = vmax.xlane.f32.xlu0 %v1019
        %v1021 = vpop.xlane.xlu0 %1020
        %v1022 = vmax.f32 %v927, %v928
        %v1023 = vmax.f32 %v1022, %v929
        %v1024 = vmax.f32 %v1023, %v930
        %1025 = vmax.xlane.f32.xlu0 %v1024
        %v1026 = vpop.xlane.xlu0 %1025
        %v1027 = vmax.f32 %v931, %v951
        %v1028 = vmax.f32 %v932, %v956
        %v1029 = vmax.f32 %v933, %v961
        %v1030 = vmax.f32 %v934, %v966
        %v1031 = vmax.f32 %v935, %v971
        %v1032 = vmax.f32 %v936, %v976
        %v1033 = vmax.f32 %v937, %v981
        %v1034 = vmax.f32 %v938, %v986
        %v1035 = vmax.f32 %v939, %v991
        %v1036 = vmax.f32 %v940, %v996
        %v1037 = vmax.f32 %v941, %v1001
        %v1038 = vmax.f32 %v942, %v1006
        %v1039 = vmax.f32 %v943, %v1011
        %v1040 = vmax.f32 %v944, %v1016
        %v1041 = vmax.f32 %v945, %v1021
        %v1042 = vmax.f32 %v946, %v1026
        %1044 = vset.pattern.permute.xlu0 0
        %1045 = vperm.xlu0 %1044, %v1027
        %v1046 = vpop.permute.xlu0 %1045
        %1049 = vset.pattern.permute.xlu0 0
        %1050 = vperm.xlu0 %1049, %v1028
        %v1051 = vpop.permute.xlu0 %1050
        %1054 = vset.pattern.permute.xlu0 0
        %1055 = vperm.xlu0 %1054, %v1029
        %v1056 = vpop.permute.xlu0 %1055
        %1059 = vset.pattern.permute.xlu0 0
        %1060 = vperm.xlu0 %1059, %v1030
        %v1061 = vpop.permute.xlu0 %1060
        %1064 = vset.pattern.permute.xlu0 0
        %1065 = vperm.xlu0 %1064, %v1031
        %v1066 = vpop.permute.xlu0 %1065
        %1069 = vset.pattern.permute.xlu0 0
        %1070 = vperm.xlu0 %1069, %v1032
        %v1071 = vpop.permute.xlu0 %1070
        %1074 = vset.pattern.permute.xlu0 0
        %1075 = vperm.xlu0 %1074, %v1033
        %v1076 = vpop.permute.xlu0 %1075
        %1079 = vset.pattern.permute.xlu0 0
        %1080 = vperm.xlu0 %1079, %v1034
        %v1081 = vpop.permute.xlu0 %1080
        %1084 = vset.pattern.permute.xlu0 0
        %1085 = vperm.xlu0 %1084, %v1035
        %v1086 = vpop.permute.xlu0 %1085
        %1089 = vset.pattern.permute.xlu0 0
        %1090 = vperm.xlu0 %1089, %v1036
        %v1091 = vpop.permute.xlu0 %1090
        %1094 = vset.pattern.permute.xlu0 0
        %1095 = vperm.xlu0 %1094, %v1037
        %v1096 = vpop.permute.xlu0 %1095
        %1099 = vset.pattern.permute.xlu0 0
        %1100 = vperm.xlu0 %1099, %v1038
        %v1101 = vpop.permute.xlu0 %1100
        %1104 = vset.pattern.permute.xlu0 0
        %1105 = vperm.xlu0 %1104, %v1039
        %v1106 = vpop.permute.xlu0 %1105
        %1109 = vset.pattern.permute.xlu0 0
        %1110 = vperm.xlu0 %1109, %v1040
        %v1111 = vpop.permute.xlu0 %1110
        %1114 = vset.pattern.permute.xlu0 0
        %1115 = vperm.xlu0 %1114, %v1041
        %v1116 = vpop.permute.xlu0 %1115
        %1119 = vset.pattern.permute.xlu0 0
        %1120 = vperm.xlu0 %1119, %v1042
        %v1121 = vpop.permute.xlu0 %1120
        %v1123 = vsub.f32 %v867, %v1046
        %v1124 = vsub.f32 %v868, %v1046
        %v1125 = vsub.f32 %v869, %v1046
        %v1126 = vsub.f32 %v870, %v1046
        %v1127 = vsub.f32 %v871, %v1051
        %v1128 = vsub.f32 %v872, %v1051
        %v1129 = vsub.f32 %v873, %v1051
        %v1130 = vsub.f32 %v874, %v1051
        %v1131 = vsub.f32 %v875, %v1056
        %v1132 = vsub.f32 %v876, %v1056
        %v1133 = vsub.f32 %v877, %v1056
        %v1134 = vsub.f32 %v878, %v1056
        %v1135 = vsub.f32 %v879, %v1061
        %v1136 = vsub.f32 %v880, %v1061
        %v1137 = vsub.f32 %v881, %v1061
        %v1138 = vsub.f32 %v882, %v1061
        %v1139 = vsub.f32 %v883, %v1066
        %v1140 = vsub.f32 %v884, %v1066
        %v1141 = vsub.f32 %v885, %v1066
        %v1142 = vsub.f32 %v886, %v1066
        %v1143 = vsub.f32 %v887, %v1071
        %v1144 = vsub.f32 %v888, %v1071
        %v1145 = vsub.f32 %v889, %v1071
        %v1146 = vsub.f32 %v890, %v1071
        %v1147 = vsub.f32 %v891, %v1076
        %v1148 = vsub.f32 %v892, %v1076
        %v1149 = vsub.f32 %v893, %v1076
        %v1150 = vsub.f32 %v894, %v1076
        %v1151 = vsub.f32 %v895, %v1081
        %v1152 = vsub.f32 %v896, %v1081
        %v1153 = vsub.f32 %v897, %v1081
        %v1154 = vsub.f32 %v898, %v1081
        %v1155 = vsub.f32 %v899, %v1086
        %v1156 = vsub.f32 %v900, %v1086
        %v1157 = vsub.f32 %v901, %v1086
        %v1158 = vsub.f32 %v902, %v1086
        %v1159 = vsub.f32 %v903, %v1091
        %v1160 = vsub.f32 %v904, %v1091
        %v1161 = vsub.f32 %v905, %v1091
        %v1162 = vsub.f32 %v906, %v1091
        %v1163 = vsub.f32 %v907, %v1096
        %v1164 = vsub.f32 %v908, %v1096
        %v1165 = vsub.f32 %v909, %v1096
        %v1166 = vsub.f32 %v910, %v1096
        %v1167 = vsub.f32 %v911, %v1101
        %v1168 = vsub.f32 %v912, %v1101
        %v1169 = vsub.f32 %v913, %v1101
        %v1170 = vsub.f32 %v914, %v1101
        %v1171 = vsub.f32 %v915, %v1106
        %v1172 = vsub.f32 %v916, %v1106
        %v1173 = vsub.f32 %v917, %v1106
        %v1174 = vsub.f32 %v918, %v1106
        %v1175 = vsub.f32 %v919, %v1111
        %v1176 = vsub.f32 %v920, %v1111
        %v1177 = vsub.f32 %v921, %v1111
        %v1178 = vsub.f32 %v922, %v1111
        %v1179 = vsub.f32 %v923, %v1116
        %v1180 = vsub.f32 %v924, %v1116
        %v1181 = vsub.f32 %v925, %v1116
        %v1182 = vsub.f32 %v926, %v1116
        %v1183 = vsub.f32 %v927, %v1121
        %v1184 = vsub.f32 %v928, %v1121
        %v1185 = vsub.f32 %v929, %v1121
        %v1186 = vsub.f32 %v930, %v1121
        %v1187 = vmul.f32 %v1123, 1.442695
        %v1188 = vpow.pop %v1187
        %v1189 = vmul.f32 %v1124, 1.442695
        %v1190 = vpow.pop %v1189
        %v1191 = vmul.f32 %v1125, 1.442695
        %v1192 = vpow.pop %v1191
        %v1193 = vmul.f32 %v1126, 1.442695
        %v1194 = vpow.pop %v1193
        %v1195 = vmul.f32 %v1127, 1.442695
        %v1196 = vpow.pop %v1195
        %v1197 = vmul.f32 %v1128, 1.442695
        %v1198 = vpow.pop %v1197
        %v1199 = vmul.f32 %v1129, 1.442695
        %v1200 = vpow.pop %v1199
        %v1201 = vmul.f32 %v1130, 1.442695
        %v1202 = vpow.pop %v1201
        %v1203 = vmul.f32 %v1131, 1.442695
        %v1204 = vpow.pop %v1203
        %v1205 = vmul.f32 %v1132, 1.442695
        %v1206 = vpow.pop %v1205
        %v1207 = vmul.f32 %v1133, 1.442695
        %v1208 = vpow.pop %v1207
        %v1209 = vmul.f32 %v1134, 1.442695
        %v1210 = vpow.pop %v1209
        %v1211 = vmul.f32 %v1135, 1.442695
        %v1212 = vpow.pop %v1211
        %v1213 = vmul.f32 %v1136, 1.442695
        %v1214 = vpow.pop %v1213
        %v1215 = vmul.f32 %v1137, 1.442695
        %v1216 = vpow.pop %v1215
        %v1217 = vmul.f32 %v1138, 1.442695
        %v1218 = vpow.pop %v1217
        %v1219 = vmul.f32 %v1139, 1.442695
        %v1220 = vpow.pop %v1219
        %v1221 = vmul.f32 %v1140, 1.442695
        %v1222 = vpow.pop %v1221
        %v1223 = vmul.f32 %v1141, 1.442695
        %v1224 = vpow.pop %v1223
        %v1225 = vmul.f32 %v1142, 1.442695
        %v1226 = vpow.pop %v1225
        %v1227 = vmul.f32 %v1143, 1.442695
        %v1228 = vpow.pop %v1227
        %v1229 = vmul.f32 %v1144, 1.442695
        %v1230 = vpow.pop %v1229
        %v1231 = vmul.f32 %v1145, 1.442695
        %v1232 = vpow.pop %v1231
        %v1233 = vmul.f32 %v1146, 1.442695
        %v1234 = vpow.pop %v1233
        %v1235 = vmul.f32 %v1147, 1.442695
        %v1236 = vpow.pop %v1235
        %v1237 = vmul.f32 %v1148, 1.442695
        %v1238 = vpow.pop %v1237
        %v1239 = vmul.f32 %v1149, 1.442695
        %v1240 = vpow.pop %v1239
        %v1241 = vmul.f32 %v1150, 1.442695
        %v1242 = vpow.pop %v1241
        %v1243 = vmul.f32 %v1151, 1.442695
        %v1244 = vpow.pop %v1243
        %v1245 = vmul.f32 %v1152, 1.442695
        %v1246 = vpow.pop %v1245
        %v1247 = vmul.f32 %v1153, 1.442695
        %v1248 = vpow.pop %v1247
        %v1249 = vmul.f32 %v1154, 1.442695
        %v1250 = vpow.pop %v1249
        %v1251 = vmul.f32 %v1155, 1.442695
        %v1252 = vpow.pop %v1251
        %v1253 = vmul.f32 %v1156, 1.442695
        %v1254 = vpow.pop %v1253
        %v1255 = vmul.f32 %v1157, 1.442695
        %v1256 = vpow.pop %v1255
        %v1257 = vmul.f32 %v1158, 1.442695
        %v1258 = vpow.pop %v1257
        %v1259 = vmul.f32 %v1159, 1.442695
        %v1260 = vpow.pop %v1259
        %v1261 = vmul.f32 %v1160, 1.442695
        %v1262 = vpow.pop %v1261
        %v1263 = vmul.f32 %v1161, 1.442695
        %v1264 = vpow.pop %v1263
        %v1265 = vmul.f32 %v1162, 1.442695
        %v1266 = vpow.pop %v1265
        %v1267 = vmul.f32 %v1163, 1.442695
        %v1268 = vpow.pop %v1267
        %v1269 = vmul.f32 %v1164, 1.442695
        %v1270 = vpow.pop %v1269
        %v1271 = vmul.f32 %v1165, 1.442695
        %v1272 = vpow.pop %v1271
        %v1273 = vmul.f32 %v1166, 1.442695
        %v1274 = vpow.pop %v1273
        %v1275 = vmul.f32 %v1167, 1.442695
        %v1276 = vpow.pop %v1275
        %v1277 = vmul.f32 %v1168, 1.442695
        %v1278 = vpow.pop %v1277
        %v1279 = vmul.f32 %v1169, 1.442695
        %v1280 = vpow.pop %v1279
        %v1281 = vmul.f32 %v1170, 1.442695
        %v1282 = vpow.pop %v1281
        %v1283 = vmul.f32 %v1171, 1.442695
        %v1284 = vpow.pop %v1283
        %v1285 = vmul.f32 %v1172, 1.442695
        %v1286 = vpow.pop %v1285
        %v1287 = vmul.f32 %v1173, 1.442695
        %v1288 = vpow.pop %v1287
        %v1289 = vmul.f32 %v1174, 1.442695
        %v1290 = vpow.pop %v1289
        %v1291 = vmul.f32 %v1175, 1.442695
        %v1292 = vpow.pop %v1291
        %v1293 = vmul.f32 %v1176, 1.442695
        %v1294 = vpow.pop %v1293
        %v1295 = vmul.f32 %v1177, 1.442695
        %v1296 = vpow.pop %v1295
        %v1297 = vmul.f32 %v1178, 1.442695
        %v1298 = vpow.pop %v1297
        %v1299 = vmul.f32 %v1179, 1.442695
        %v1300 = vpow.pop %v1299
        %v1301 = vmul.f32 %v1180, 1.442695
        %v1302 = vpow.pop %v1301
        %v1303 = vmul.f32 %v1181, 1.442695
        %v1304 = vpow.pop %v1303
        %v1305 = vmul.f32 %v1182, 1.442695
        %v1306 = vpow.pop %v1305
        %v1307 = vmul.f32 %v1183, 1.442695
        %v1308 = vpow.pop %v1307
        %v1309 = vmul.f32 %v1184, 1.442695
        %v1310 = vpow.pop %v1309
        %v1311 = vmul.f32 %v1185, 1.442695
        %v1312 = vpow.pop %v1311
        %v1313 = vmul.f32 %v1186, 1.442695
        %v1314 = vpow.pop %v1313
        %v1315 = vmul.f32 %v1188, %v557
        %v1316 = vmul.f32 %v1190, %v558
        %v1317 = vmul.f32 %v1192, %v559
        %v1318 = vmul.f32 %v1194, %v560
        %v1319 = vmul.f32 %v1196, %v561
        %v1320 = vmul.f32 %v1198, %v562
        %v1321 = vmul.f32 %v1200, %v563
        %v1322 = vmul.f32 %v1202, %v564
        %v1323 = vmul.f32 %v1204, %v565
        %v1324 = vmul.f32 %v1206, %v566
        %v1325 = vmul.f32 %v1208, %v567
        %v1326 = vmul.f32 %v1210, %v568
        %v1327 = vmul.f32 %v1212, %v569
        %v1328 = vmul.f32 %v1214, %v570
        %v1329 = vmul.f32 %v1216, %v571
        %v1330 = vmul.f32 %v1218, %v572
        %v1331 = vmul.f32 %v1220, %v573
        %v1332 = vmul.f32 %v1222, %v574
        %v1333 = vmul.f32 %v1224, %v575
        %v1334 = vmul.f32 %v1226, %v576
        %v1335 = vmul.f32 %v1228, %v577
        %v1336 = vmul.f32 %v1230, %v578
        %v1337 = vmul.f32 %v1232, %v579
        %v1338 = vmul.f32 %v1234, %v580
        %v1339 = vmul.f32 %v1236, %v581
        %v1340 = vmul.f32 %v1238, %v582
        %v1341 = vmul.f32 %v1240, %v583
        %v1342 = vmul.f32 %v1242, %v584
        %v1343 = vmul.f32 %v1244, %v585
        %v1344 = vmul.f32 %v1246, %v586
        %v1345 = vmul.f32 %v1248, %v587
        %v1346 = vmul.f32 %v1250, %v588
        %v1347 = vmul.f32 %v1252, %v589
        %v1348 = vmul.f32 %v1254, %v590
        %v1349 = vmul.f32 %v1256, %v591
        %v1350 = vmul.f32 %v1258, %v592
        %v1351 = vmul.f32 %v1260, %v593
        %v1352 = vmul.f32 %v1262, %v594
        %v1353 = vmul.f32 %v1264, %v595
        %v1354 = vmul.f32 %v1266, %v596
        %v1355 = vmul.f32 %v1268, %v597
        %v1356 = vmul.f32 %v1270, %v598
        %v1357 = vmul.f32 %v1272, %v599
        %v1358 = vmul.f32 %v1274, %v600
        %v1359 = vmul.f32 %v1276, %v601
        %v1360 = vmul.f32 %v1278, %v602
        %v1361 = vmul.f32 %v1280, %v603
        %v1362 = vmul.f32 %v1282, %v604
        %v1363 = vmul.f32 %v1284, %v605
        %v1364 = vmul.f32 %v1286, %v606
        %v1365 = vmul.f32 %v1288, %v607
        %v1366 = vmul.f32 %v1290, %v608
        %v1367 = vmul.f32 %v1292, %v609
        %v1368 = vmul.f32 %v1294, %v610
        %v1369 = vmul.f32 %v1296, %v611
        %v1370 = vmul.f32 %v1298, %v612
        %v1371 = vmul.f32 %v1300, %v613
        %v1372 = vmul.f32 %v1302, %v614
        %v1373 = vmul.f32 %v1304, %v615
        %v1374 = vmul.f32 %v1306, %v616
        %v1375 = vmul.f32 %v1308, %v617
        %v1376 = vmul.f32 %v1310, %v618
        %v1377 = vmul.f32 %v1312, %v619
        %v1378 = vmul.f32 %v1314, %v620
        %v1379 = vsub.f32 %v931, %v1027
        %v1380 = vsub.f32 %v932, %v1028
        %v1381 = vsub.f32 %v933, %v1029
        %v1382 = vsub.f32 %v934, %v1030
        %v1383 = vsub.f32 %v935, %v1031
        %v1384 = vsub.f32 %v936, %v1032
        %v1385 = vsub.f32 %v937, %v1033
        %v1386 = vsub.f32 %v938, %v1034
        %v1387 = vsub.f32 %v939, %v1035
        %v1388 = vsub.f32 %v940, %v1036
        %v1389 = vsub.f32 %v941, %v1037
        %v1390 = vsub.f32 %v942, %v1038
        %v1391 = vsub.f32 %v943, %v1039
        %v1392 = vsub.f32 %v944, %v1040
        %v1393 = vsub.f32 %v945, %v1041
        %v1394 = vsub.f32 %v946, %v1042
        %v1395 = vmul.f32 %v1379, 1.442695
        %v1396 = vpow.pop %v1395
        %v1397 = vmul.f32 %v1380, 1.442695
        %v1398 = vpow.pop %v1397
        %v1399 = vmul.f32 %v1381, 1.442695
        %v1400 = vpow.pop %v1399
        %v1401 = vmul.f32 %v1382, 1.442695
        %v1402 = vpow.pop %v1401
        %v1403 = vmul.f32 %v1383, 1.442695
        %v1404 = vpow.pop %v1403
        %v1405 = vmul.f32 %v1384, 1.442695
        %v1406 = vpow.pop %v1405
        %v1407 = vmul.f32 %v1385, 1.442695
        %v1408 = vpow.pop %v1407
        %v1409 = vmul.f32 %v1386, 1.442695
        %v1410 = vpow.pop %v1409
        %v1411 = vmul.f32 %v1387, 1.442695
        %v1412 = vpow.pop %v1411
        %v1413 = vmul.f32 %v1388, 1.442695
        %v1414 = vpow.pop %v1413
        %v1415 = vmul.f32 %v1389, 1.442695
        %v1416 = vpow.pop %v1415
        %v1417 = vmul.f32 %v1390, 1.442695
        %v1418 = vpow.pop %v1417
        %v1419 = vmul.f32 %v1391, 1.442695
        %v1420 = vpow.pop %v1419
        %v1421 = vmul.f32 %v1392, 1.442695
        %v1422 = vpow.pop %v1421
        %v1423 = vmul.f32 %v1393, 1.442695
        %v1424 = vpow.pop %v1423
        %v1425 = vmul.f32 %v1394, 1.442695
        %v1426 = vpow.pop %v1425
        %v1427 = vld [vmem:[%s446] sm:$0xff]
        %v1428 = vld [vmem:[%s446 + $0x8] sm:$0xff]
        %v1429 = vld [vmem:[%s446 + $0x10] sm:$0xff]
        %v1430 = vld [vmem:[%s446 + $0x18] sm:$0xff]
        %v1431 = vld [vmem:[%s446 + $0x20] sm:$0xff]
        %v1432 = vld [vmem:[%s446 + $0x28] sm:$0xff]
        %v1433 = vld [vmem:[%s446 + $0x30] sm:$0xff]
        %v1434 = vld [vmem:[%s446 + $0x38] sm:$0xff]
        %v1435 = vld [vmem:[%s446 + $0x40] sm:$0xff]
        %v1436 = vld [vmem:[%s446 + $0x48] sm:$0xff]
        %v1437 = vld [vmem:[%s446 + $0x50] sm:$0xff]
        %v1438 = vld [vmem:[%s446 + $0x58] sm:$0xff]
        %v1439 = vld [vmem:[%s446 + $0x60] sm:$0xff]
        %v1440 = vld [vmem:[%s446 + $0x68] sm:$0xff]
        %v1441 = vld [vmem:[%s446 + $0x70] sm:$0xff]
        %v1442 = vld [vmem:[%s446 + $0x78] sm:$0xff]
        %v1443 = vld [vmem:[%s446 + $0x80] sm:$0xff]
        %v1444 = vld [vmem:[%s446 + $0x88] sm:$0xff]
        %v1445 = vld [vmem:[%s446 + $0x90] sm:$0xff]
        %v1446 = vld [vmem:[%s446 + $0x98] sm:$0xff]
        %v1447 = vld [vmem:[%s446 + $0xa0] sm:$0xff]
        %v1448 = vld [vmem:[%s446 + $0xa8] sm:$0xff]
        %v1449 = vld [vmem:[%s446 + $0xb0] sm:$0xff]
        %v1450 = vld [vmem:[%s446 + $0xb8] sm:$0xff]
        %v1451 = vld [vmem:[%s446 + $0xc0] sm:$0xff]
        %v1452 = vld [vmem:[%s446 + $0xc8] sm:$0xff]
        %v1453 = vld [vmem:[%s446 + $0xd0] sm:$0xff]
        %v1454 = vld [vmem:[%s446 + $0xd8] sm:$0xff]
        %v1455 = vld [vmem:[%s446 + $0xe0] sm:$0xff]
        %v1456 = vld [vmem:[%s446 + $0xe8] sm:$0xff]
        %v1457 = vld [vmem:[%s446 + $0xf0] sm:$0xff]
        %v1458 = vld [vmem:[%s446 + $0xf8] sm:$0xff]
        %v1459 = vld [vmem:[%s446 + $0x100] sm:$0xff]
        %v1460 = vld [vmem:[%s446 + $0x108] sm:$0xff]
        %v1461 = vld [vmem:[%s446 + $0x110] sm:$0xff]
        %v1462 = vld [vmem:[%s446 + $0x118] sm:$0xff]
        %v1463 = vld [vmem:[%s446 + $0x120] sm:$0xff]
        %v1464 = vld [vmem:[%s446 + $0x128] sm:$0xff]
        %v1465 = vld [vmem:[%s446 + $0x130] sm:$0xff]
        %v1466 = vld [vmem:[%s446 + $0x138] sm:$0xff]
        %v1467 = vld [vmem:[%s446 + $0x140] sm:$0xff]
        %v1468 = vld [vmem:[%s446 + $0x148] sm:$0xff]
        %v1469 = vld [vmem:[%s446 + $0x150] sm:$0xff]
        %v1470 = vld [vmem:[%s446 + $0x158] sm:$0xff]
        %v1471 = vld [vmem:[%s446 + $0x160] sm:$0xff]
        %v1472 = vld [vmem:[%s446 + $0x168] sm:$0xff]
        %v1473 = vld [vmem:[%s446 + $0x170] sm:$0xff]
        %v1474 = vld [vmem:[%s446 + $0x178] sm:$0xff]
        %v1475 = vld [vmem:[%s446 + $0x180] sm:$0xff]
        %v1476 = vld [vmem:[%s446 + $0x188] sm:$0xff]
        %v1477 = vld [vmem:[%s446 + $0x190] sm:$0xff]
        %v1478 = vld [vmem:[%s446 + $0x198] sm:$0xff]
        %v1479 = vld [vmem:[%s446 + $0x1a0] sm:$0xff]
        %v1480 = vld [vmem:[%s446 + $0x1a8] sm:$0xff]
        %v1481 = vld [vmem:[%s446 + $0x1b0] sm:$0xff]
        %v1482 = vld [vmem:[%s446 + $0x1b8] sm:$0xff]
        %v1483 = vld [vmem:[%s446 + $0x1c0] sm:$0xff]
        %v1484 = vld [vmem:[%s446 + $0x1c8] sm:$0xff]
        %v1485 = vld [vmem:[%s446 + $0x1d0] sm:$0xff]
        %v1486 = vld [vmem:[%s446 + $0x1d8] sm:$0xff]
        %v1487 = vld [vmem:[%s446 + $0x1e0] sm:$0xff]
        %v1488 = vld [vmem:[%s446 + $0x1e8] sm:$0xff]
        %v1489 = vld [vmem:[%s446 + $0x1f0] sm:$0xff]
        %v1490 = vld [vmem:[%s446 + $0x1f8] sm:$0xff]
        %1491 = vmatprep.subr.mxu0 0.0
        %1492 = vmatpush1.msra.mxu0 %v1427
        %1493 = vmatprep.subr.mxu0 0.0
        %1494 = vmatpush1.msra.mxu0 %v1428
        %1495 = vmatprep.subr.mxu0 0.0
        %1496 = vmatpush1.msra.mxu0 %v1429
        %1497 = vmatprep.subr.mxu0 0.0
        %1498 = vmatpush1.msra.mxu0 %v1430
        %1499 = vmatprep.subr.mxu0 0.0
        %1500 = vmatpush1.msra.mxu0 %v1431
        %1501 = vmatprep.subr.mxu0 0.0
        %1502 = vmatpush1.msra.mxu0 %v1432
        %1503 = vmatprep.subr.mxu0 0.0
        %1504 = vmatpush1.msra.mxu0 %v1433
        %1505 = vmatprep.subr.mxu0 0.0
        %1506 = vmatpush1.msra.mxu0 %v1434
        %1507 = vmatprep.subr.mxu0 0.0
        %1508 = vmatpush1.msra.mxu0 %v1435
        %1509 = vmatprep.subr.mxu0 0.0
        %1510 = vmatpush1.msra.mxu0 %v1436
        %1511 = vmatprep.subr.mxu0 0.0
        %1512 = vmatpush1.msra.mxu0 %v1437
        %1513 = vmatprep.subr.mxu0 0.0
        %1514 = vmatpush1.msra.mxu0 %v1438
        %1515 = vmatprep.subr.mxu0 0.0
        %1516 = vmatpush1.msra.mxu0 %v1439
        %1517 = vmatprep.subr.mxu0 0.0
        %1518 = vmatpush1.msra.mxu0 %v1440
        %1519 = vmatprep.subr.mxu0 0.0
        %1520 = vmatpush1.msra.mxu0 %v1441
        %1521 = vmatprep.subr.mxu0 0.0
        %1522 = vmatpush1.msra.mxu0 %v1442
        %1523 = vmatprep.subr.mxu0 0.0
        %1524 = vmatpush1.msra.mxu0 %v1443
        %1525 = vmatprep.subr.mxu0 0.0
        %1526 = vmatpush1.msra.mxu0 %v1444
        %1527 = vmatprep.subr.mxu0 0.0
        %1528 = vmatpush1.msra.mxu0 %v1445
        %1529 = vmatprep.subr.mxu0 0.0
        %1530 = vmatpush1.msra.mxu0 %v1446
        %1531 = vmatprep.subr.mxu0 0.0
        %1532 = vmatpush1.msra.mxu0 %v1447
        %1533 = vmatprep.subr.mxu0 0.0
        %1534 = vmatpush1.msra.mxu0 %v1448
        %1535 = vmatprep.subr.mxu0 0.0
        %1536 = vmatpush1.msra.mxu0 %v1449
        %1537 = vmatprep.subr.mxu0 0.0
        %1538 = vmatpush1.msra.mxu0 %v1450
        %1539 = vmatprep.subr.mxu0 0.0
        %1540 = vmatpush1.msra.mxu0 %v1451
        %1541 = vmatprep.subr.mxu0 0.0
        %1542 = vmatpush1.msra.mxu0 %v1452
        %1543 = vmatprep.subr.mxu0 0.0
        %1544 = vmatpush1.msra.mxu0 %v1453
        %1545 = vmatprep.subr.mxu0 0.0
        %1546 = vmatpush1.msra.mxu0 %v1454
        %1547 = vmatprep.subr.mxu0 0.0
        %1548 = vmatpush1.msra.mxu0 %v1455
        %1549 = vmatprep.subr.mxu0 0.0
        %1550 = vmatpush1.msra.mxu0 %v1456
        %1551 = vmatprep.subr.mxu0 0.0
        %1552 = vmatpush1.msra.mxu0 %v1457
        %1553 = vmatprep.subr.mxu0 0.0
        %1554 = vmatpush1.msra.mxu0 %v1458
        %1555 = vmatprep.mubr.f32.mxu0 %v1316
        %1556 = vmatmul.mubr.f32.gmra.mrb[0].mxu0 %v1315
        %v1557 = vpop.f32.mrb[0].mxu0
        %v1558 = vadd.f32 0.0, %v1557
        %v1559 = vpop.f32.mrb[0].mxu0
        %1560 = vmatprep.mubr.f32.mxu0 %v1320
        %1561 = vmatmul.mubr.f32.gmra.mrb[0].mxu0 %v1319
        %v1562 = vpop.f32.mrb[0].mxu0
        %v1563 = vadd.f32 0.0, %v1562
        %v1564 = vpop.f32.mrb[0].mxu0
        %1565 = vmatprep.mubr.f32.mxu0 %v1324
        %1566 = vmatmul.mubr.f32.gmra.mrb[0].mxu0 %v1323
        %v1567 = vpop.f32.mrb[0].mxu0
        %v1568 = vadd.f32 0.0, %v1567
        %v1569 = vpop.f32.mrb[0].mxu0
        %1570 = vmatprep.mubr.f32.mxu0 %v1328
        %1571 = vmatmul.mubr.f32.gmra.mrb[0].mxu0 %v1327
        %v1572 = vpop.f32.mrb[0].mxu0
        %v1573 = vadd.f32 0.0, %v1572
        %v1574 = vpop.f32.mrb[0].mxu0
        %1575 = vmatprep.mubr.f32.mxu0 %v1332
        %1576 = vmatmul.mubr.f32.gmra.mrb[0].mxu0 %v1331
        %v1577 = vpop.f32.mrb[0].mxu0
        %v1578 = vadd.f32 0.0, %v1577
        %v1579 = vpop.f32.mrb[0].mxu0
        %1580 = vmatprep.mubr.f32.mxu0 %v1336
        %1581 = vmatmul.mubr.f32.gmra.mrb[0].mxu0 %v1335
        %v1582 = vpop.f32.mrb[0].mxu0
        %v1583 = vadd.f32 0.0, %v1582
        %v1584 = vpop.f32.mrb[0].mxu0
        %1585 = vmatprep.mubr.f32.mxu0 %v1340
        %1586 = vmatmul.mubr.f32.gmra.mrb[0].mxu0 %v1339
        %v1587 = vpop.f32.mrb[0].mxu0
        %v1588 = vadd.f32 0.0, %v1587
        %v1589 = vpop.f32.mrb[0].mxu0
        %1590 = vmatprep.mubr.f32.mxu0 %v1344
        %1591 = vmatmul.mubr.f32.gmra.mrb[0].mxu0 %v1343
        %v1592 = vpop.f32.mrb[0].mxu0
        %v1593 = vadd.f32 0.0, %v1592
        %v1594 = vpop.f32.mrb[0].mxu0
        %1595 = vmatprep.mubr.f32.mxu0 %v1348
        %1596 = vmatmul.mubr.f32.gmra.mrb[0].mxu0 %v1347
        %v1597 = vpop.f32.mrb[0].mxu0
        %v1598 = vadd.f32 0.0, %v1597
        %v1599 = vpop.f32.mrb[0].mxu0
        %1600 = vmatprep.mubr.f32.mxu0 %v1352
        %1601 = vmatmul.mubr.f32.gmra.mrb[0].mxu0 %v1351
        %v1602 = vpop.f32.mrb[0].mxu0
        %v1603 = vadd.f32 0.0, %v1602
        %v1604 = vpop.f32.mrb[0].mxu0
        %1605 = vmatprep.mubr.f32.mxu0 %v1356
        %1606 = vmatmul.mubr.f32.gmra.mrb[0].mxu0 %v1355
        %v1607 = vpop.f32.mrb[0].mxu0
        %v1608 = vadd.f32 0.0, %v1607
        %v1609 = vpop.f32.mrb[0].mxu0
        %1610 = vmatprep.mubr.f32.mxu0 %v1360
        %1611 = vmatmul.mubr.f32.gmra.mrb[0].mxu0 %v1359
        %v1612 = vpop.f32.mrb[0].mxu0
        %v1613 = vadd.f32 0.0, %v1612
        %v1614 = vpop.f32.mrb[0].mxu0
        %1615 = vmatprep.mubr.f32.mxu0 %v1364
        %1616 = vmatmul.mubr.f32.gmra.mrb[0].mxu0 %v1363
        %v1617 = vpop.f32.mrb[0].mxu0
        %v1618 = vadd.f32 0.0, %v1617
        %v1619 = vpop.f32.mrb[0].mxu0
        %1620 = vmatprep.mubr.f32.mxu0 %v1368
        %1621 = vmatmul.mubr.f32.gmra.mrb[0].mxu0 %v1367
        %v1622 = vpop.f32.mrb[0].mxu0
        %v1623 = vadd.f32 0.0, %v1622
        %v1624 = vpop.f32.mrb[0].mxu0
        %1625 = vmatprep.mubr.f32.mxu0 %v1372
        %1626 = vmatmul.mubr.f32.gmra.mrb[0].mxu0 %v1371
        %v1627 = vpop.f32.mrb[0].mxu0
        %v1628 = vadd.f32 0.0, %v1627
        %v1629 = vpop.f32.mrb[0].mxu0
        %1630 = vmatprep.mubr.f32.mxu0 %v1376
        %1631 = vmatmul.mubr.f32.gmra.mrb[0].mxu0 %v1375
        %v1632 = vpop.f32.mrb[0].mxu0
        %v1633 = vadd.f32 0.0, %v1632
        %v1634 = vpop.f32.mrb[0].mxu0
        %1635 = vdwg.mxu0
        %1636 = vmatprep.subr.mxu0 0.0
        %1637 = vmatpush1.msra.mxu0 %v1459
        %1638 = vmatprep.subr.mxu0 0.0
        %1639 = vmatpush1.msra.mxu0 %v1460
        %1640 = vmatprep.subr.mxu0 0.0
        %1641 = vmatpush1.msra.mxu0 %v1461
        %1642 = vmatprep.subr.mxu0 0.0
        %1643 = vmatpush1.msra.mxu0 %v1462
        %1644 = vmatprep.subr.mxu0 0.0
        %1645 = vmatpush1.msra.mxu0 %v1463
        %1646 = vmatprep.subr.mxu0 0.0
        %1647 = vmatpush1.msra.mxu0 %v1464
        %1648 = vmatprep.subr.mxu0 0.0
        %1649 = vmatpush1.msra.mxu0 %v1465
        %1650 = vmatprep.subr.mxu0 0.0
        %1651 = vmatpush1.msra.mxu0 %v1466
        %1652 = vmatprep.subr.mxu0 0.0
        %1653 = vmatpush1.msra.mxu0 %v1467
        %1654 = vmatprep.subr.mxu0 0.0
        %1655 = vmatpush1.msra.mxu0 %v1468
        %1656 = vmatprep.subr.mxu0 0.0
        %1657 = vmatpush1.msra.mxu0 %v1469
        %1658 = vmatprep.subr.mxu0 0.0
        %1659 = vmatpush1.msra.mxu0 %v1470
        %1660 = vmatprep.subr.mxu0 0.0
        %1661 = vmatpush1.msra.mxu0 %v1471
        %1662 = vmatprep.subr.mxu0 0.0
        %1663 = vmatpush1.msra.mxu0 %v1472
        %1664 = vmatprep.subr.mxu0 0.0
        %1665 = vmatpush1.msra.mxu0 %v1473
        %1666 = vmatprep.subr.mxu0 0.0
        %1667 = vmatpush1.msra.mxu0 %v1474
        %1668 = vmatprep.subr.mxu0 0.0
        %1669 = vmatpush1.msra.mxu0 %v1475
        %1670 = vmatprep.subr.mxu0 0.0
        %1671 = vmatpush1.msra.mxu0 %v1476
        %1672 = vmatprep.subr.mxu0 0.0
        %1673 = vmatpush1.msra.mxu0 %v1477
        %1674 = vmatprep.subr.mxu0 0.0
        %1675 = vmatpush1.msra.mxu0 %v1478
        %1676 = vmatprep.subr.mxu0 0.0
        %1677 = vmatpush1.msra.mxu0 %v1479
        %1678 = vmatprep.subr.mxu0 0.0
        %1679 = vmatpush1.msra.mxu0 %v1480
        %1680 = vmatprep.subr.mxu0 0.0
        %1681 = vmatpush1.msra.mxu0 %v1481
        %1682 = vmatprep.subr.mxu0 0.0
        %1683 = vmatpush1.msra.mxu0 %v1482
        %1684 = vmatprep.subr.mxu0 0.0
        %1685 = vmatpush1.msra.mxu0 %v1483
        %1686 = vmatprep.subr.mxu0 0.0
        %1687 = vmatpush1.msra.mxu0 %v1484
        %1688 = vmatprep.subr.mxu0 0.0
        %1689 = vmatpush1.msra.mxu0 %v1485
        %1690 = vmatprep.subr.mxu0 0.0
        %1691 = vmatpush1.msra.mxu0 %v1486
        %1692 = vmatprep.subr.mxu0 0.0
        %1693 = vmatpush1.msra.mxu0 %v1487
        %1694 = vmatprep.subr.mxu0 0.0
        %1695 = vmatpush1.msra.mxu0 %v1488
        %1696 = vmatprep.subr.mxu0 0.0
        %1697 = vmatpush1.msra.mxu0 %v1489
        %1698 = vmatprep.subr.mxu0 0.0
        %1699 = vmatpush1.msra.mxu0 %v1490
        %1700 = vmatprep.mubr.f32.mxu0 %v1318
        %1701 = vmatmul.mubr.f32.gmra.mrb[0].mxu0 %v1317
        %v1702 = vpop.f32.mrb[0].mxu0
        %v1703 = vadd.f32 %v1558, %v1702
        %v1704 = vpop.f32.mrb[0].mxu0
        %1705 = vmatprep.mubr.f32.mxu0 %v1322
        %1706 = vmatmul.mubr.f32.gmra.mrb[0].mxu0 %v1321
        %v1707 = vpop.f32.mrb[0].mxu0
        %v1708 = vadd.f32 %v1563, %v1707
        %v1709 = vpop.f32.mrb[0].mxu0
        %1710 = vmatprep.mubr.f32.mxu0 %v1326
        %1711 = vmatmul.mubr.f32.gmra.mrb[0].mxu0 %v1325
        %v1712 = vpop.f32.mrb[0].mxu0
        %v1713 = vadd.f32 %v1568, %v1712
        %v1714 = vpop.f32.mrb[0].mxu0
        %1715 = vmatprep.mubr.f32.mxu0 %v1330
        %1716 = vmatmul.mubr.f32.gmra.mrb[0].mxu0 %v1329
        %v1717 = vpop.f32.mrb[0].mxu0
        %v1718 = vadd.f32 %v1573, %v1717
        %v1719 = vpop.f32.mrb[0].mxu0
        %1720 = vmatprep.mubr.f32.mxu0 %v1334
        %1721 = vmatmul.mubr.f32.gmra.mrb[0].mxu0 %v1333
        %v1722 = vpop.f32.mrb[0].mxu0
        %v1723 = vadd.f32 %v1578, %v1722
        %v1724 = vpop.f32.mrb[0].mxu0
        %1725 = vmatprep.mubr.f32.mxu0 %v1338
        %1726 = vmatmul.mubr.f32.gmra.mrb[0].mxu0 %v1337
        %v1727 = vpop.f32.mrb[0].mxu0
        %v1728 = vadd.f32 %v1583, %v1727
        %v1729 = vpop.f32.mrb[0].mxu0
        %1730 = vmatprep.mubr.f32.mxu0 %v1342
        %1731 = vmatmul.mubr.f32.gmra.mrb[0].mxu0 %v1341
        %v1732 = vpop.f32.mrb[0].mxu0
        %v1733 = vadd.f32 %v1588, %v1732
        %v1734 = vpop.f32.mrb[0].mxu0
        %1735 = vmatprep.mubr.f32.mxu0 %v1346
        %1736 = vmatmul.mubr.f32.gmra.mrb[0].mxu0 %v1345
        %v1737 = vpop.f32.mrb[0].mxu0
        %v1738 = vadd.f32 %v1593, %v1737
        %v1739 = vpop.f32.mrb[0].mxu0
        %1740 = vmatprep.mubr.f32.mxu0 %v1350
        %1741 = vmatmul.mubr.f32.gmra.mrb[0].mxu0 %v1349
        %v1742 = vpop.f32.mrb[0].mxu0
        %v1743 = vadd.f32 %v1598, %v1742
        %v1744 = vpop.f32.mrb[0].mxu0
        %1745 = vmatprep.mubr.f32.mxu0 %v1354
        %1746 = vmatmul.mubr.f32.gmra.mrb[0].mxu0 %v1353
        %v1747 = vpop.f32.mrb[0].mxu0
        %v1748 = vadd.f32 %v1603, %v1747
        %v1749 = vpop.f32.mrb[0].mxu0
        %1750 = vmatprep.mubr.f32.mxu0 %v1358
        %1751 = vmatmul.mubr.f32.gmra.mrb[0].mxu0 %v1357
        %v1752 = vpop.f32.mrb[0].mxu0
        %v1753 = vadd.f32 %v1608, %v1752
        %v1754 = vpop.f32.mrb[0].mxu0
        %1755 = vmatprep.mubr.f32.mxu0 %v1362
        %1756 = vmatmul.mubr.f32.gmra.mrb[0].mxu0 %v1361
        %v1757 = vpop.f32.mrb[0].mxu0
        %v1758 = vadd.f32 %v1613, %v1757
        %v1759 = vpop.f32.mrb[0].mxu0
        %1760 = vmatprep.mubr.f32.mxu0 %v1366
        %1761 = vmatmul.mubr.f32.gmra.mrb[0].mxu0 %v1365
        %v1762 = vpop.f32.mrb[0].mxu0
        %v1763 = vadd.f32 %v1618, %v1762
        %v1764 = vpop.f32.mrb[0].mxu0
        %1765 = vmatprep.mubr.f32.mxu0 %v1370
        %1766 = vmatmul.mubr.f32.gmra.mrb[0].mxu0 %v1369
        %v1767 = vpop.f32.mrb[0].mxu0
        %v1768 = vadd.f32 %v1623, %v1767
        %v1769 = vpop.f32.mrb[0].mxu0
        %1770 = vmatprep.mubr.f32.mxu0 %v1374
        %1771 = vmatmul.mubr.f32.gmra.mrb[0].mxu0 %v1373
        %v1772 = vpop.f32.mrb[0].mxu0
        %v1773 = vadd.f32 %v1628, %v1772
        %v1774 = vpop.f32.mrb[0].mxu0
        %1775 = vmatprep.mubr.f32.mxu0 %v1378
        %1776 = vmatmul.mubr.f32.gmra.mrb[0].mxu0 %v1377
        %v1777 = vpop.f32.mrb[0].mxu0
        %v1778 = vadd.f32 %v1633, %v1777
        %v1779 = vpop.f32.mrb[0].mxu0
        %1780 = vdwg.mxu0
        %v1781 = vld [vmem:[#allocation3] sm:$0xff]
        %v1782 = vld [vmem:[#allocation3 + $0x8] sm:$0xff]
        %v1783 = vld [vmem:[#allocation3 + $0x10] sm:$0xff]
        %v1784 = vld [vmem:[#allocation3 + $0x18] sm:$0xff]
        %v1785 = vld [vmem:[#allocation3 + $0x20] sm:$0xff]
        %v1786 = vld [vmem:[#allocation3 + $0x28] sm:$0xff]
        %v1787 = vld [vmem:[#allocation3 + $0x30] sm:$0xff]
        %v1788 = vld [vmem:[#allocation3 + $0x38] sm:$0xff]
        %v1789 = vld [vmem:[#allocation3 + $0x40] sm:$0xff]
        %v1790 = vld [vmem:[#allocation3 + $0x48] sm:$0xff]
        %v1791 = vld [vmem:[#allocation3 + $0x50] sm:$0xff]
        %v1792 = vld [vmem:[#allocation3 + $0x58] sm:$0xff]
        %v1793 = vld [vmem:[#allocation3 + $0x60] sm:$0xff]
        %v1794 = vld [vmem:[#allocation3 + $0x68] sm:$0xff]
        %v1795 = vld [vmem:[#allocation3 + $0x70] sm:$0xff]
        %v1796 = vld [vmem:[#allocation3 + $0x78] sm:$0xff]
        %1798 = vset.pattern.permute.xlu0 0
        %1799 = vperm.xlu0 %1798, %v1396
        %v1800 = vpop.permute.xlu0 %1799
        %1803 = vset.pattern.permute.xlu0 0
        %1804 = vperm.xlu0 %1803, %v1398
        %v1805 = vpop.permute.xlu0 %1804
        %1808 = vset.pattern.permute.xlu0 0
        %1809 = vperm.xlu0 %1808, %v1400
        %v1810 = vpop.permute.xlu0 %1809
        %1813 = vset.pattern.permute.xlu0 0
        %1814 = vperm.xlu0 %1813, %v1402
        %v1815 = vpop.permute.xlu0 %1814
        %1818 = vset.pattern.permute.xlu0 0
        %1819 = vperm.xlu0 %1818, %v1404
        %v1820 = vpop.permute.xlu0 %1819
        %1823 = vset.pattern.permute.xlu0 0
        %1824 = vperm.xlu0 %1823, %v1406
        %v1825 = vpop.permute.xlu0 %1824
        %1828 = vset.pattern.permute.xlu0 0
        %1829 = vperm.xlu0 %1828, %v1408
        %v1830 = vpop.permute.xlu0 %1829
        %1833 = vset.pattern.permute.xlu0 0
        %1834 = vperm.xlu0 %1833, %v1410
        %v1835 = vpop.permute.xlu0 %1834
        %1838 = vset.pattern.permute.xlu0 0
        %1839 = vperm.xlu0 %1838, %v1412
        %v1840 = vpop.permute.xlu0 %1839
        %1843 = vset.pattern.permute.xlu0 0
        %1844 = vperm.xlu0 %1843, %v1414
        %v1845 = vpop.permute.xlu0 %1844
        %1848 = vset.pattern.permute.xlu0 0
        %1849 = vperm.xlu0 %1848, %v1416
        %v1850 = vpop.permute.xlu0 %1849
        %1853 = vset.pattern.permute.xlu0 0
        %1854 = vperm.xlu0 %1853, %v1418
        %v1855 = vpop.permute.xlu0 %1854
        %1858 = vset.pattern.permute.xlu0 0
        %1859 = vperm.xlu0 %1858, %v1420
        %v1860 = vpop.permute.xlu0 %1859
        %1863 = vset.pattern.permute.xlu0 0
        %1864 = vperm.xlu0 %1863, %v1422
        %v1865 = vpop.permute.xlu0 %1864
        %1868 = vset.pattern.permute.xlu0 0
        %1869 = vperm.xlu0 %1868, %v1424
        %v1870 = vpop.permute.xlu0 %1869
        %1873 = vset.pattern.permute.xlu0 0
        %1874 = vperm.xlu0 %1873, %v1426
        %v1875 = vpop.permute.xlu0 %1874
        %v1877 = vmul.f32 %v1800, %v1781
        %v1878 = vmul.f32 %v1805, %v1782
        %v1879 = vmul.f32 %v1810, %v1783
        %v1880 = vmul.f32 %v1815, %v1784
        %v1881 = vmul.f32 %v1820, %v1785
        %v1882 = vmul.f32 %v1825, %v1786
        %v1883 = vmul.f32 %v1830, %v1787
        %v1884 = vmul.f32 %v1835, %v1788
        %v1885 = vmul.f32 %v1840, %v1789
        %v1886 = vmul.f32 %v1845, %v1790
        %v1887 = vmul.f32 %v1850, %v1791
        %v1888 = vmul.f32 %v1855, %v1792
        %v1889 = vmul.f32 %v1860, %v1793
        %v1890 = vmul.f32 %v1865, %v1794
        %v1891 = vmul.f32 %v1870, %v1795
        %v1892 = vmul.f32 %v1875, %v1796
        %v1893 = vadd.f32 %v1877, %v1703
        %v1894 = vadd.f32 %v1878, %v1708
        %v1895 = vadd.f32 %v1879, %v1713
        %v1896 = vadd.f32 %v1880, %v1718
        %v1897 = vadd.f32 %v1881, %v1723
        %v1898 = vadd.f32 %v1882, %v1728
        %v1899 = vadd.f32 %v1883, %v1733
        %v1900 = vadd.f32 %v1884, %v1738
        %v1901 = vadd.f32 %v1885, %v1743
        %v1902 = vadd.f32 %v1886, %v1748
        %v1903 = vadd.f32 %v1887, %v1753
        %v1904 = vadd.f32 %v1888, %v1758
        %v1905 = vadd.f32 %v1889, %v1763
        %v1906 = vadd.f32 %v1890, %v1768
        %v1907 = vadd.f32 %v1891, %v1773
        %v1908 = vadd.f32 %v1892, %v1778
        %vm1909 = vcmask 138240
        %1910 = vst.msk [vmem:[#allocation3] sm:$0xff] %vm1909, %v1893
        %1911 = vst.msk [vmem:[#allocation3 + $0x8] sm:$0xff] %vm1909, %v1894
        %1912 = vst.msk [vmem:[#allocation3 + $0x10] sm:$0xff] %vm1909, %v1895
        %1913 = vst.msk [vmem:[#allocation3 + $0x18] sm:$0xff] %vm1909, %v1896
        %1914 = vst.msk [vmem:[#allocation3 + $0x20] sm:$0xff] %vm1909, %v1897
        %1915 = vst.msk [vmem:[#allocation3 + $0x28] sm:$0xff] %vm1909, %v1898
        %1916 = vst.msk [vmem:[#allocation3 + $0x30] sm:$0xff] %vm1909, %v1899
        %1917 = vst.msk [vmem:[#allocation3 + $0x38] sm:$0xff] %vm1909, %v1900
        %1918 = vst.msk [vmem:[#allocation3 + $0x40] sm:$0xff] %vm1909, %v1901
        %1919 = vst.msk [vmem:[#allocation3 + $0x48] sm:$0xff] %vm1909, %v1902
        %1920 = vst.msk [vmem:[#allocation3 + $0x50] sm:$0xff] %vm1909, %v1903
        %1921 = vst.msk [vmem:[#allocation3 + $0x58] sm:$0xff] %vm1909, %v1904
        %1922 = vst.msk [vmem:[#allocation3 + $0x60] sm:$0xff] %vm1909, %v1905
        %1923 = vst.msk [vmem:[#allocation3 + $0x68] sm:$0xff] %vm1909, %v1906
        %1924 = vst.msk [vmem:[#allocation3 + $0x70] sm:$0xff] %vm1909, %v1907
        %1925 = vst.msk [vmem:[#allocation3 + $0x78] sm:$0xff] %vm1909, %v1908
        %vm1926 = vcmask 7168
        %1927 = vst.msk [vmem:[#allocation2] sm:$0xff] %vm1926, %v1027
        %1928 = vst.msk [vmem:[#allocation2 + $0x8] sm:$0xff] %vm1926, %v1028
        %1929 = vst.msk [vmem:[#allocation2 + $0x10] sm:$0xff] %vm1926, %v1029
        %1930 = vst.msk [vmem:[#allocation2 + $0x18] sm:$0xff] %vm1926, %v1030
        %1931 = vst.msk [vmem:[#allocation2 + $0x20] sm:$0xff] %vm1926, %v1031
        %1932 = vst.msk [vmem:[#allocation2 + $0x28] sm:$0xff] %vm1926, %v1032
        %1933 = vst.msk [vmem:[#allocation2 + $0x30] sm:$0xff] %vm1926, %v1033
        %1934 = vst.msk [vmem:[#allocation2 + $0x38] sm:$0xff] %vm1926, %v1034
        %1935 = vst.msk [vmem:[#allocation2 + $0x40] sm:$0xff] %vm1926, %v1035
        %1936 = vst.msk [vmem:[#allocation2 + $0x48] sm:$0xff] %vm1926, %v1036
        %1937 = vst.msk [vmem:[#allocation2 + $0x50] sm:$0xff] %vm1926, %v1037
        %1938 = vst.msk [vmem:[#allocation2 + $0x58] sm:$0xff] %vm1926, %v1038
        %1939 = vst.msk [vmem:[#allocation2 + $0x60] sm:$0xff] %vm1926, %v1039
        %1940 = vst.msk [vmem:[#allocation2 + $0x68] sm:$0xff] %vm1926, %v1040
        %1941 = vst.msk [vmem:[#allocation2 + $0x70] sm:$0xff] %vm1926, %v1041
        %1942 = vst.msk [vmem:[#allocation2 + $0x78] sm:$0xff] %vm1926, %v1042
        %s1943 = scalar_lea.vmem %s456, 1
        %v1944 = vld [vmem:[%s1943] ss:$2 sm:$0xf]
        %1945 = vset.pattern.permute.xlu0 1
        %1946 = vperm.xlu0 %1945, %v685
        %v1947 = vpop.permute.xlu0 %1946
        %1949 = vset.pattern.permute.xlu0 1
        %1950 = vperm.xlu0 %1949, %v686
        %v1951 = vpop.permute.xlu0 %1950
        %1953 = vset.pattern.permute.xlu0 1
        %1954 = vperm.xlu0 %1953, %v687
        %v1955 = vpop.permute.xlu0 %1954
        %1957 = vset.pattern.permute.xlu0 1
        %1958 = vperm.xlu0 %1957, %v688
        %v1959 = vpop.permute.xlu0 %1958
        %1961 = vset.pattern.permute.xlu0 1
        %1962 = vperm.xlu0 %1961, %v689
        %v1963 = vpop.permute.xlu0 %1962
        %1965 = vset.pattern.permute.xlu0 1
        %1966 = vperm.xlu0 %1965, %v690
        %v1967 = vpop.permute.xlu0 %1966
        %1969 = vset.pattern.permute.xlu0 1
        %1970 = vperm.xlu0 %1969, %v691
        %v1971 = vpop.permute.xlu0 %1970
        %1973 = vset.pattern.permute.xlu0 1
        %1974 = vperm.xlu0 %1973, %v692
        %v1975 = vpop.permute.xlu0 %1974
        %1977 = vset.pattern.permute.xlu0 1
        %1978 = vperm.xlu0 %1977, %v693
        %v1979 = vpop.permute.xlu0 %1978
        %1981 = vset.pattern.permute.xlu0 1
        %1982 = vperm.xlu0 %1981, %v694
        %v1983 = vpop.permute.xlu0 %1982
        %1985 = vset.pattern.permute.xlu0 1
        %1986 = vperm.xlu0 %1985, %v695
        %v1987 = vpop.permute.xlu0 %1986
        %1989 = vset.pattern.permute.xlu0 1
        %1990 = vperm.xlu0 %1989, %v696
        %v1991 = vpop.permute.xlu0 %1990
        %1993 = vset.pattern.permute.xlu0 1
        %1994 = vperm.xlu0 %1993, %v697
        %v1995 = vpop.permute.xlu0 %1994
        %1997 = vset.pattern.permute.xlu0 1
        %1998 = vperm.xlu0 %1997, %v698
        %v1999 = vpop.permute.xlu0 %1998
        %2001 = vset.pattern.permute.xlu0 1
        %2002 = vperm.xlu0 %2001, %v699
        %v2003 = vpop.permute.xlu0 %2002
        %2005 = vset.pattern.permute.xlu0 1
        %2006 = vperm.xlu0 %2005, %v700
        %v2007 = vpop.permute.xlu0 %2006
        %v2010 = vlaneseq
        %v2011 = vshrl.u32 %v2010, 7
        %v2012 = vsub.s32 0, %v2011
        %v2013 = vrot.slane %v1944, %v2012
        %v2014 = vlaneseq
        %v2015 = vshrl.u32 %v2014, 7
        %v2016 = vsub.s32 1, %v2015
        %v2017 = vrot.slane %v1944, %v2016
        %v2018 = vlaneseq
        %v2019 = vshrl.u32 %v2018, 7
        %v2020 = vsub.s32 2, %v2019
        %v2021 = vrot.slane %v1944, %v2020
        %v2022 = vlaneseq
        %v2023 = vshrl.u32 %v2022, 7
        %v2024 = vsub.s32 3, %v2023
        %v2025 = vrot.slane %v1944, %v2024
        %v2030 = vadd.f32 %v1947, %v2013
        %v2031 = vadd.f32 %v1947, %v2017
        %v2032 = vadd.f32 %v1947, %v2021
        %v2033 = vadd.f32 %v1947, %v2025
        %v2034 = vadd.f32 %v1951, %v2013
        %v2035 = vadd.f32 %v1951, %v2017
        %v2036 = vadd.f32 %v1951, %v2021
        %v2037 = vadd.f32 %v1951, %v2025
        %v2038 = vadd.f32 %v1955, %v2013
        %v2039 = vadd.f32 %v1955, %v2017
        %v2040 = vadd.f32 %v1955, %v2021
        %v2041 = vadd.f32 %v1955, %v2025
        %v2042 = vadd.f32 %v1959, %v2013
        %v2043 = vadd.f32 %v1959, %v2017
        %v2044 = vadd.f32 %v1959, %v2021
        %v2045 = vadd.f32 %v1959, %v2025
        %v2046 = vadd.f32 %v1963, %v2013
        %v2047 = vadd.f32 %v1963, %v2017
        %v2048 = vadd.f32 %v1963, %v2021
        %v2049 = vadd.f32 %v1963, %v2025
        %v2050 = vadd.f32 %v1967, %v2013
        %v2051 = vadd.f32 %v1967, %v2017
        %v2052 = vadd.f32 %v1967, %v2021
        %v2053 = vadd.f32 %v1967, %v2025
        %v2054 = vadd.f32 %v1971, %v2013
        %v2055 = vadd.f32 %v1971, %v2017
        %v2056 = vadd.f32 %v1971, %v2021
        %v2057 = vadd.f32 %v1971, %v2025
        %v2058 = vadd.f32 %v1975, %v2013
        %v2059 = vadd.f32 %v1975, %v2017
        %v2060 = vadd.f32 %v1975, %v2021
        %v2061 = vadd.f32 %v1975, %v2025
        %v2062 = vadd.f32 %v1979, %v2013
        %v2063 = vadd.f32 %v1979, %v2017
        %v2064 = vadd.f32 %v1979, %v2021
        %v2065 = vadd.f32 %v1979, %v2025
        %v2066 = vadd.f32 %v1983, %v2013
        %v2067 = vadd.f32 %v1983, %v2017
        %v2068 = vadd.f32 %v1983, %v2021
        %v2069 = vadd.f32 %v1983, %v2025
        %v2070 = vadd.f32 %v1987, %v2013
        %v2071 = vadd.f32 %v1987, %v2017
        %v2072 = vadd.f32 %v1987, %v2021
        %v2073 = vadd.f32 %v1987, %v2025
        %v2074 = vadd.f32 %v1991, %v2013
        %v2075 = vadd.f32 %v1991, %v2017
        %v2076 = vadd.f32 %v1991, %v2021
        %v2077 = vadd.f32 %v1991, %v2025
        %v2078 = vadd.f32 %v1995, %v2013
        %v2079 = vadd.f32 %v1995, %v2017
        %v2080 = vadd.f32 %v1995, %v2021
        %v2081 = vadd.f32 %v1995, %v2025
        %v2082 = vadd.f32 %v1999, %v2013
        %v2083 = vadd.f32 %v1999, %v2017
        %v2084 = vadd.f32 %v1999, %v2021
        %v2085 = vadd.f32 %v1999, %v2025
        %v2086 = vadd.f32 %v2003, %v2013
        %v2087 = vadd.f32 %v2003, %v2017
        %v2088 = vadd.f32 %v2003, %v2021
        %v2089 = vadd.f32 %v2003, %v2025
        %v2090 = vadd.f32 %v2007, %v2013
        %v2091 = vadd.f32 %v2007, %v2017
        %v2092 = vadd.f32 %v2007, %v2021
        %v2093 = vadd.f32 %v2007, %v2025
        %v2094 = vsel %vm621, %v2030, -1e+30
        %v2095 = vsel %vm622, %v2031, -1e+30
        %v2096 = vsel %vm623, %v2032, -1e+30
        %v2097 = vsel %vm624, %v2033, -1e+30
        %v2098 = vsel %vm625, %v2034, -1e+30
        %v2099 = vsel %vm626, %v2035, -1e+30
        %v2100 = vsel %vm627, %v2036, -1e+30
        %v2101 = vsel %vm628, %v2037, -1e+30
        %v2102 = vsel %vm629, %v2038, -1e+30
        %v2103 = vsel %vm630, %v2039, -1e+30
        %v2104 = vsel %vm631, %v2040, -1e+30
        %v2105 = vsel %vm632, %v2041, -1e+30
        %v2106 = vsel %vm633, %v2042, -1e+30
        %v2107 = vsel %vm634, %v2043, -1e+30
        %v2108 = vsel %vm635, %v2044, -1e+30
        %v2109 = vsel %vm636, %v2045, -1e+30
        %v2110 = vsel %vm637, %v2046, -1e+30
        %v2111 = vsel %vm638, %v2047, -1e+30
        %v2112 = vsel %vm639, %v2048, -1e+30
        %v2113 = vsel %vm640, %v2049, -1e+30
        %v2114 = vsel %vm641, %v2050, -1e+30
        %v2115 = vsel %vm642, %v2051, -1e+30
        %v2116 = vsel %vm643, %v2052, -1e+30
        %v2117 = vsel %vm644, %v2053, -1e+30
        %v2118 = vsel %vm645, %v2054, -1e+30
        %v2119 = vsel %vm646, %v2055, -1e+30
        %v2120 = vsel %vm647, %v2056, -1e+30
        %v2121 = vsel %vm648, %v2057, -1e+30
        %v2122 = vsel %vm649, %v2058, -1e+30
        %v2123 = vsel %vm650, %v2059, -1e+30
        %v2124 = vsel %vm651, %v2060, -1e+30
        %v2125 = vsel %vm652, %v2061, -1e+30
        %v2126 = vsel %vm653, %v2062, -1e+30
        %v2127 = vsel %vm654, %v2063, -1e+30
        %v2128 = vsel %vm655, %v2064, -1e+30
        %v2129 = vsel %vm656, %v2065, -1e+30
        %v2130 = vsel %vm657, %v2066, -1e+30
        %v2131 = vsel %vm658, %v2067, -1e+30
        %v2132 = vsel %vm659, %v2068, -1e+30
        %v2133 = vsel %vm660, %v2069, -1e+30
        %v2134 = vsel %vm661, %v2070, -1e+30
        %v2135 = vsel %vm662, %v2071, -1e+30
        %v2136 = vsel %vm663, %v2072, -1e+30
        %v2137 = vsel %vm664, %v2073, -1e+30
        %v2138 = vsel %vm665, %v2074, -1e+30
        %v2139 = vsel %vm666, %v2075, -1e+30
        %v2140 = vsel %vm667, %v2076, -1e+30
        %v2141 = vsel %vm668, %v2077, -1e+30
        %v2142 = vsel %vm669, %v2078, -1e+30
        %v2143 = vsel %vm670, %v2079, -1e+30
        %v2144 = vsel %vm671, %v2080, -1e+30
        %v2145 = vsel %vm672, %v2081, -1e+30
        %v2146 = vsel %vm673, %v2082, -1e+30
        %v2147 = vsel %vm674, %v2083, -1e+30
        %v2148 = vsel %vm675, %v2084, -1e+30
        %v2149 = vsel %vm676, %v2085, -1e+30
        %v2150 = vsel %vm677, %v2086, -1e+30
        %v2151 = vsel %vm678, %v2087, -1e+30
        %v2152 = vsel %vm679, %v2088, -1e+30
        %v2153 = vsel %vm680, %v2089, -1e+30
        %v2154 = vsel %vm681, %v2090, -1e+30
        %v2155 = vsel %vm682, %v2091, -1e+30
        %v2156 = vsel %vm683, %v2092, -1e+30
        %v2157 = vsel %vm684, %v2093, -1e+30
        %s2158 = scalar_lea.vmem [#allocation2], 128
        %v2159 = vld [vmem:[%s2158] sm:$0xff]
        %v2160 = vld [vmem:[%s2158 + $0x8] sm:$0xff]
        %v2161 = vld [vmem:[%s2158 + $0x10] sm:$0xff]
        %v2162 = vld [vmem:[%s2158 + $0x18] sm:$0xff]
        %v2163 = vld [vmem:[%s2158 + $0x20] sm:$0xff]
        %v2164 = vld [vmem:[%s2158 + $0x28] sm:$0xff]
        %v2165 = vld [vmem:[%s2158 + $0x30] sm:$0xff]
        %v2166 = vld [vmem:[%s2158 + $0x38] sm:$0xff]
        %v2167 = vld [vmem:[%s2158 + $0x40] sm:$0xff]
        %v2168 = vld [vmem:[%s2158 + $0x48] sm:$0xff]
        %v2169 = vld [vmem:[%s2158 + $0x50] sm:$0xff]
        %v2170 = vld [vmem:[%s2158 + $0x58] sm:$0xff]
        %v2171 = vld [vmem:[%s2158 + $0x60] sm:$0xff]
        %v2172 = vld [vmem:[%s2158 + $0x68] sm:$0xff]
        %v2173 = vld [vmem:[%s2158 + $0x70] sm:$0xff]
        %v2174 = vld [vmem:[%s2158 + $0x78] sm:$0xff]
        %v2175 = vmax.f32 %v2094, %v2095
        %v2176 = vmax.f32 %v2175, %v2096
        %v2177 = vmax.f32 %v2176, %v2097
        %2178 = vmax.xlane.f32.xlu0 %v2177
        %v2179 = vpop.xlane.xlu0 %2178
        %v2180 = vmax.f32 %v2098, %v2099
        %v2181 = vmax.f32 %v2180, %v2100
        %v2182 = vmax.f32 %v2181, %v2101
        %2183 = vmax.xlane.f32.xlu0 %v2182
        %v2184 = vpop.xlane.xlu0 %2183
        %v2185 = vmax.f32 %v2102, %v2103
        %v2186 = vmax.f32 %v2185, %v2104
        %v2187 = vmax.f32 %v2186, %v2105
        %2188 = vmax.xlane.f32.xlu0 %v2187
        %v2189 = vpop.xlane.xlu0 %2188
        %v2190 = vmax.f32 %v2106, %v2107
        %v2191 = vmax.f32 %v2190, %v2108
        %v2192 = vmax.f32 %v2191, %v2109
        %2193 = vmax.xlane.f32.xlu0 %v2192
        %v2194 = vpop.xlane.xlu0 %2193
        %v2195 = vmax.f32 %v2110, %v2111
        %v2196 = vmax.f32 %v2195, %v2112
        %v2197 = vmax.f32 %v2196, %v2113
        %2198 = vmax.xlane.f32.xlu0 %v2197
        %v2199 = vpop.xlane.xlu0 %2198
        %v2200 = vmax.f32 %v2114, %v2115
        %v2201 = vmax.f32 %v2200, %v2116
        %v2202 = vmax.f32 %v2201, %v2117
        %2203 = vmax.xlane.f32.xlu0 %v2202
        %v2204 = vpop.xlane.xlu0 %2203
        %v2205 = vmax.f32 %v2118, %v2119
        %v2206 = vmax.f32 %v2205, %v2120
        %v2207 = vmax.f32 %v2206, %v2121
        %2208 = vmax.xlane.f32.xlu0 %v2207
        %v2209 = vpop.xlane.xlu0 %2208
        %v2210 = vmax.f32 %v2122, %v2123
        %v2211 = vmax.f32 %v2210, %v2124
        %v2212 = vmax.f32 %v2211, %v2125
        %2213 = vmax.xlane.f32.xlu0 %v2212
        %v2214 = vpop.xlane.xlu0 %2213
        %v2215 = vmax.f32 %v2126, %v2127
        %v2216 = vmax.f32 %v2215, %v2128
        %v2217 = vmax.f32 %v2216, %v2129
        %2218 = vmax.xlane.f32.xlu0 %v2217
        %v2219 = vpop.xlane.xlu0 %2218
        %v2220 = vmax.f32 %v2130, %v2131
        %v2221 = vmax.f32 %v2220, %v2132
        %v2222 = vmax.f32 %v2221, %v2133
        %2223 = vmax.xlane.f32.xlu0 %v2222
        %v2224 = vpop.xlane.xlu0 %2223
        %v2225 = vmax.f32 %v2134, %v2135
        %v2226 = vmax.f32 %v2225, %v2136
        %v2227 = vmax.f32 %v2226, %v2137
        %2228 = vmax.xlane.f32.xlu0 %v2227
        %v2229 = vpop.xlane.xlu0 %2228
        %v2230 = vmax.f32 %v2138, %v2139
        %v2231 = vmax.f32 %v2230, %v2140
        %v2232 = vmax.f32 %v2231, %v2141
        %2233 = vmax.xlane.f32.xlu0 %v2232
        %v2234 = vpop.xlane.xlu0 %2233
        %v2235 = vmax.f32 %v2142, %v2143
        %v2236 = vmax.f32 %v2235, %v2144
        %v2237 = vmax.f32 %v2236, %v2145
        %2238 = vmax.xlane.f32.xlu0 %v2237
        %v2239 = vpop.xlane.xlu0 %2238
        %v2240 = vmax.f32 %v2146, %v2147
        %v2241 = vmax.f32 %v2240, %v2148
        %v2242 = vmax.f32 %v2241, %v2149
        %2243 = vmax.xlane.f32.xlu0 %v2242
        %v2244 = vpop.xlane.xlu0 %2243
        %v2245 = vmax.f32 %v2150, %v2151
        %v2246 = vmax.f32 %v2245, %v2152
        %v2247 = vmax.f32 %v2246, %v2153
        %2248 = vmax.xlane.f32.xlu0 %v2247
        %v2249 = vpop.xlane.xlu0 %2248
        %v2250 = vmax.f32 %v2154, %v2155
        %v2251 = vmax.f32 %v2250, %v2156
        %v2252 = vmax.f32 %v2251, %v2157
        %2253 = vmax.xlane.f32.xlu0 %v2252
        %v2254 = vpop.xlane.xlu0 %2253
        %v2255 = vmax.f32 %v2159, %v2179
        %v2256 = vmax.f32 %v2160, %v2184
        %v2257 = vmax.f32 %v2161, %v2189
        %v2258 = vmax.f32 %v2162, %v2194
        %v2259 = vmax.f32 %v2163, %v2199
        %v2260 = vmax.f32 %v2164, %v2204
        %v2261 = vmax.f32 %v2165, %v2209
        %v2262 = vmax.f32 %v2166, %v2214
        %v2263 = vmax.f32 %v2167, %v2219
        %v2264 = vmax.f32 %v2168, %v2224
        %v2265 = vmax.f32 %v2169, %v2229
        %v2266 = vmax.f32 %v2170, %v2234
        %v2267 = vmax.f32 %v2171, %v2239
        %v2268 = vmax.f32 %v2172, %v2244
        %v2269 = vmax.f32 %v2173, %v2249
        %v2270 = vmax.f32 %v2174, %v2254
        %2272 = vset.pattern.permute.xlu0 0
        %2273 = vperm.xlu0 %2272, %v2255
        %v2274 = vpop.permute.xlu0 %2273
        %2277 = vset.pattern.permute.xlu0 0
        %2278 = vperm.xlu0 %2277, %v2256
        %v2279 = vpop.permute.xlu0 %2278
        %2282 = vset.pattern.permute.xlu0 0
        %2283 = vperm.xlu0 %2282, %v2257
        %v2284 = vpop.permute.xlu0 %2283
        %2287 = vset.pattern.permute.xlu0 0
        %2288 = vperm.xlu0 %2287, %v2258
        %v2289 = vpop.permute.xlu0 %2288
        %2292 = vset.pattern.permute.xlu0 0
        %2293 = vperm.xlu0 %2292, %v2259
        %v2294 = vpop.permute.xlu0 %2293
        %2297 = vset.pattern.permute.xlu0 0
        %2298 = vperm.xlu0 %2297, %v2260
        %v2299 = vpop.permute.xlu0 %2298
        %2302 = vset.pattern.permute.xlu0 0
        %2303 = vperm.xlu0 %2302, %v2261
        %v2304 = vpop.permute.xlu0 %2303
        %2307 = vset.pattern.permute.xlu0 0
        %2308 = vperm.xlu0 %2307, %v2262
        %v2309 = vpop.permute.xlu0 %2308
        %2312 = vset.pattern.permute.xlu0 0
        %2313 = vperm.xlu0 %2312, %v2263
        %v2314 = vpop.permute.xlu0 %2313
        %2317 = vset.pattern.permute.xlu0 0
        %2318 = vperm.xlu0 %2317, %v2264
        %v2319 = vpop.permute.xlu0 %2318
        %2322 = vset.pattern.permute.xlu0 0
        %2323 = vperm.xlu0 %2322, %v2265
        %v2324 = vpop.permute.xlu0 %2323
        %2327 = vset.pattern.permute.xlu0 0
        %2328 = vperm.xlu0 %2327, %v2266
        %v2329 = vpop.permute.xlu0 %2328
        %2332 = vset.pattern.permute.xlu0 0
        %2333 = vperm.xlu0 %2332, %v2267
        %v2334 = vpop.permute.xlu0 %2333
        %2337 = vset.pattern.permute.xlu0 0
        %2338 = vperm.xlu0 %2337, %v2268
        %v2339 = vpop.permute.xlu0 %2338
        %2342 = vset.pattern.permute.xlu0 0
        %2343 = vperm.xlu0 %2342, %v2269
        %v2344 = vpop.permute.xlu0 %2343
        %2347 = vset.pattern.permute.xlu0 0
        %2348 = vperm.xlu0 %2347, %v2270
        %v2349 = vpop.permute.xlu0 %2348
        %v2351 = vsub.f32 %v2094, %v2274
        %v2352 = vsub.f32 %v2095, %v2274
        %v2353 = vsub.f32 %v2096, %v2274
        %v2354 = vsub.f32 %v2097, %v2274
        %v2355 = vsub.f32 %v2098, %v2279
        %v2356 = vsub.f32 %v2099, %v2279
        %v2357 = vsub.f32 %v2100, %v2279
        %v2358 = vsub.f32 %v2101, %v2279
        %v2359 = vsub.f32 %v2102, %v2284
        %v2360 = vsub.f32 %v2103, %v2284
        %v2361 = vsub.f32 %v2104, %v2284
        %v2362 = vsub.f32 %v2105, %v2284
        %v2363 = vsub.f32 %v2106, %v2289
        %v2364 = vsub.f32 %v2107, %v2289
        %v2365 = vsub.f32 %v2108, %v2289
        %v2366 = vsub.f32 %v2109, %v2289
        %v2367 = vsub.f32 %v2110, %v2294
        %v2368 = vsub.f32 %v2111, %v2294
        %v2369 = vsub.f32 %v2112, %v2294
        %v2370 = vsub.f32 %v2113, %v2294
        %v2371 = vsub.f32 %v2114, %v2299
        %v2372 = vsub.f32 %v2115, %v2299
        %v2373 = vsub.f32 %v2116, %v2299
        %v2374 = vsub.f32 %v2117, %v2299
        %v2375 = vsub.f32 %v2118, %v2304
        %v2376 = vsub.f32 %v2119, %v2304
        %v2377 = vsub.f32 %v2120, %v2304
        %v2378 = vsub.f32 %v2121, %v2304
        %v2379 = vsub.f32 %v2122, %v2309
        %v2380 = vsub.f32 %v2123, %v2309
        %v2381 = vsub.f32 %v2124, %v2309
        %v2382 = vsub.f32 %v2125, %v2309
        %v2383 = vsub.f32 %v2126, %v2314
        %v2384 = vsub.f32 %v2127, %v2314
        %v2385 = vsub.f32 %v2128, %v2314
        %v2386 = vsub.f32 %v2129, %v2314
        %v2387 = vsub.f32 %v2130, %v2319
        %v2388 = vsub.f32 %v2131, %v2319
        %v2389 = vsub.f32 %v2132, %v2319
        %v2390 = vsub.f32 %v2133, %v2319
        %v2391 = vsub.f32 %v2134, %v2324
        %v2392 = vsub.f32 %v2135, %v2324
        %v2393 = vsub.f32 %v2136, %v2324
        %v2394 = vsub.f32 %v2137, %v2324
        %v2395 = vsub.f32 %v2138, %v2329
        %v2396 = vsub.f32 %v2139, %v2329
        %v2397 = vsub.f32 %v2140, %v2329
        %v2398 = vsub.f32 %v2141, %v2329
        %v2399 = vsub.f32 %v2142, %v2334
        %v2400 = vsub.f32 %v2143, %v2334
        %v2401 = vsub.f32 %v2144, %v2334
        %v2402 = vsub.f32 %v2145, %v2334
        %v2403 = vsub.f32 %v2146, %v2339
        %v2404 = vsub.f32 %v2147, %v2339
        %v2405 = vsub.f32 %v2148, %v2339
        %v2406 = vsub.f32 %v2149, %v2339
        %v2407 = vsub.f32 %v2150, %v2344
        %v2408 = vsub.f32 %v2151, %v2344
        %v2409 = vsub.f32 %v2152, %v2344
        %v2410 = vsub.f32 %v2153, %v2344
        %v2411 = vsub.f32 %v2154, %v2349
        %v2412 = vsub.f32 %v2155, %v2349
        %v2413 = vsub.f32 %v2156, %v2349
        %v2414 = vsub.f32 %v2157, %v2349
        %v2415 = vmul.f32 %v2351, 1.442695
        %v2416 = vpow.pop %v2415
        %v2417 = vmul.f32 %v2352, 1.442695
        %v2418 = vpow.pop %v2417
        %v2419 = vmul.f32 %v2353, 1.442695
        %v2420 = vpow.pop %v2419
        %v2421 = vmul.f32 %v2354, 1.442695
        %v2422 = vpow.pop %v2421
        %v2423 = vmul.f32 %v2355, 1.442695
        %v2424 = vpow.pop %v2423
        %v2425 = vmul.f32 %v2356, 1.442695
        %v2426 = vpow.pop %v2425
        %v2427 = vmul.f32 %v2357, 1.442695
        %v2428 = vpow.pop %v2427
        %v2429 = vmul.f32 %v2358, 1.442695
        %v2430 = vpow.pop %v2429
        %v2431 = vmul.f32 %v2359, 1.442695
        %v2432 = vpow.pop %v2431
        %v2433 = vmul.f32 %v2360, 1.442695
        %v2434 = vpow.pop %v2433
        %v2435 = vmul.f32 %v2361, 1.442695
        %v2436 = vpow.pop %v2435
        %v2437 = vmul.f32 %v2362, 1.442695
        %v2438 = vpow.pop %v2437
        %v2439 = vmul.f32 %v2363, 1.442695
        %v2440 = vpow.pop %v2439
        %v2441 = vmul.f32 %v2364, 1.442695
        %v2442 = vpow.pop %v2441
        %v2443 = vmul.f32 %v2365, 1.442695
        %v2444 = vpow.pop %v2443
        %v2445 = vmul.f32 %v2366, 1.442695
        %v2446 = vpow.pop %v2445
        %v2447 = vmul.f32 %v2367, 1.442695
        %v2448 = vpow.pop %v2447
        %v2449 = vmul.f32 %v2368, 1.442695
        %v2450 = vpow.pop %v2449
        %v2451 = vmul.f32 %v2369, 1.442695
        %v2452 = vpow.pop %v2451
        %v2453 = vmul.f32 %v2370, 1.442695
        %v2454 = vpow.pop %v2453
        %v2455 = vmul.f32 %v2371, 1.442695
        %v2456 = vpow.pop %v2455
        %v2457 = vmul.f32 %v2372, 1.442695
        %v2458 = vpow.pop %v2457
        %v2459 = vmul.f32 %v2373, 1.442695
        %v2460 = vpow.pop %v2459
        %v2461 = vmul.f32 %v2374, 1.442695
        %v2462 = vpow.pop %v2461
        %v2463 = vmul.f32 %v2375, 1.442695
        %v2464 = vpow.pop %v2463
        %v2465 = vmul.f32 %v2376, 1.442695
        %v2466 = vpow.pop %v2465
        %v2467 = vmul.f32 %v2377, 1.442695
        %v2468 = vpow.pop %v2467
        %v2469 = vmul.f32 %v2378, 1.442695
        %v2470 = vpow.pop %v2469
        %v2471 = vmul.f32 %v2379, 1.442695
        %v2472 = vpow.pop %v2471
        %v2473 = vmul.f32 %v2380, 1.442695
        %v2474 = vpow.pop %v2473
        %v2475 = vmul.f32 %v2381, 1.442695
        %v2476 = vpow.pop %v2475
        %v2477 = vmul.f32 %v2382, 1.442695
        %v2478 = vpow.pop %v2477
        %v2479 = vmul.f32 %v2383, 1.442695
        %v2480 = vpow.pop %v2479
        %v2481 = vmul.f32 %v2384, 1.442695
        %v2482 = vpow.pop %v2481
        %v2483 = vmul.f32 %v2385, 1.442695
        %v2484 = vpow.pop %v2483
        %v2485 = vmul.f32 %v2386, 1.442695
        %v2486 = vpow.pop %v2485
        %v2487 = vmul.f32 %v2387, 1.442695
        %v2488 = vpow.pop %v2487
        %v2489 = vmul.f32 %v2388, 1.442695
        %v2490 = vpow.pop %v2489
        %v2491 = vmul.f32 %v2389, 1.442695
        %v2492 = vpow.pop %v2491
        %v2493 = vmul.f32 %v2390, 1.442695
        %v2494 = vpow.pop %v2493
        %v2495 = vmul.f32 %v2391, 1.442695
        %v2496 = vpow.pop %v2495
        %v2497 = vmul.f32 %v2392, 1.442695
        %v2498 = vpow.pop %v2497
        %v2499 = vmul.f32 %v2393, 1.442695
        %v2500 = vpow.pop %v2499
        %v2501 = vmul.f32 %v2394, 1.442695
        %v2502 = vpow.pop %v2501
        %v2503 = vmul.f32 %v2395, 1.442695
        %v2504 = vpow.pop %v2503
        %v2505 = vmul.f32 %v2396, 1.442695
        %v2506 = vpow.pop %v2505
        %v2507 = vmul.f32 %v2397, 1.442695
        %v2508 = vpow.pop %v2507
        %v2509 = vmul.f32 %v2398, 1.442695
        %v2510 = vpow.pop %v2509
        %v2511 = vmul.f32 %v2399, 1.442695
        %v2512 = vpow.pop %v2511
        %v2513 = vmul.f32 %v2400, 1.442695
        %v2514 = vpow.pop %v2513
        %v2515 = vmul.f32 %v2401, 1.442695
        %v2516 = vpow.pop %v2515
        %v2517 = vmul.f32 %v2402, 1.442695
        %v2518 = vpow.pop %v2517
        %v2519 = vmul.f32 %v2403, 1.442695
        %v2520 = vpow.pop %v2519
        %v2521 = vmul.f32 %v2404, 1.442695
        %v2522 = vpow.pop %v2521
        %v2523 = vmul.f32 %v2405, 1.442695
        %v2524 = vpow.pop %v2523
        %v2525 = vmul.f32 %v2406, 1.442695
        %v2526 = vpow.pop %v2525
        %v2527 = vmul.f32 %v2407, 1.442695
        %v2528 = vpow.pop %v2527
        %v2529 = vmul.f32 %v2408, 1.442695
        %v2530 = vpow.pop %v2529
        %v2531 = vmul.f32 %v2409, 1.442695
        %v2532 = vpow.pop %v2531
        %v2533 = vmul.f32 %v2410, 1.442695
        %v2534 = vpow.pop %v2533
        %v2535 = vmul.f32 %v2411, 1.442695
        %v2536 = vpow.pop %v2535
        %v2537 = vmul.f32 %v2412, 1.442695
        %v2538 = vpow.pop %v2537
        %v2539 = vmul.f32 %v2413, 1.442695
        %v2540 = vpow.pop %v2539
        %v2541 = vmul.f32 %v2414, 1.442695
        %v2542 = vpow.pop %v2541
        %v2543 = vmul.f32 %v2416, %v557
        %v2544 = vmul.f32 %v2418, %v558
        %v2545 = vmul.f32 %v2420, %v559
        %v2546 = vmul.f32 %v2422, %v560
        %v2547 = vmul.f32 %v2424, %v561
        %v2548 = vmul.f32 %v2426, %v562
        %v2549 = vmul.f32 %v2428, %v563
        %v2550 = vmul.f32 %v2430, %v564
        %v2551 = vmul.f32 %v2432, %v565
        %v2552 = vmul.f32 %v2434, %v566
        %v2553 = vmul.f32 %v2436, %v567
        %v2554 = vmul.f32 %v2438, %v568
        %v2555 = vmul.f32 %v2440, %v569
        %v2556 = vmul.f32 %v2442, %v570
        %v2557 = vmul.f32 %v2444, %v571
        %v2558 = vmul.f32 %v2446, %v572
        %v2559 = vmul.f32 %v2448, %v573
        %v2560 = vmul.f32 %v2450, %v574
        %v2561 = vmul.f32 %v2452, %v575
        %v2562 = vmul.f32 %v2454, %v576
        %v2563 = vmul.f32 %v2456, %v577
        %v2564 = vmul.f32 %v2458, %v578
        %v2565 = vmul.f32 %v2460, %v579
        %v2566 = vmul.f32 %v2462, %v580
        %v2567 = vmul.f32 %v2464, %v581
        %v2568 = vmul.f32 %v2466, %v582
        %v2569 = vmul.f32 %v2468, %v583
        %v2570 = vmul.f32 %v2470, %v584
        %v2571 = vmul.f32 %v2472, %v585
        %v2572 = vmul.f32 %v2474, %v586
        %v2573 = vmul.f32 %v2476, %v587
        %v2574 = vmul.f32 %v2478, %v588
        %v2575 = vmul.f32 %v2480, %v589
        %v2576 = vmul.f32 %v2482, %v590
        %v2577 = vmul.f32 %v2484, %v591
        %v2578 = vmul.f32 %v2486, %v592
        %v2579 = vmul.f32 %v2488, %v593
        %v2580 = vmul.f32 %v2490, %v594
        %v2581 = vmul.f32 %v2492, %v595
        %v2582 = vmul.f32 %v2494, %v596
        %v2583 = vmul.f32 %v2496, %v597
        %v2584 = vmul.f32 %v2498, %v598
        %v2585 = vmul.f32 %v2500, %v599
        %v2586 = vmul.f32 %v2502, %v600
        %v2587 = vmul.f32 %v2504, %v601
        %v2588 = vmul.f32 %v2506, %v602
        %v2589 = vmul.f32 %v2508, %v603
        %v2590 = vmul.f32 %v2510, %v604
        %v2591 = vmul.f32 %v2512, %v605
        %v2592 = vmul.f32 %v2514, %v606
        %v2593 = vmul.f32 %v2516, %v607
        %v2594 = vmul.f32 %v2518, %v608
        %v2595 = vmul.f32 %v2520, %v609
        %v2596 = vmul.f32 %v2522, %v610
        %v2597 = vmul.f32 %v2524, %v611
        %v2598 = vmul.f32 %v2526, %v612
        %v2599 = vmul.f32 %v2528, %v613
        %v2600 = vmul.f32 %v2530, %v614
        %v2601 = vmul.f32 %v2532, %v615
        %v2602 = vmul.f32 %v2534, %v616
        %v2603 = vmul.f32 %v2536, %v617
        %v2604 = vmul.f32 %v2538, %v618
        %v2605 = vmul.f32 %v2540, %v619
        %v2606 = vmul.f32 %v2542, %v620
        %v2607 = vsub.f32 %v2159, %v2255
        %v2608 = vsub.f32 %v2160, %v2256
        %v2609 = vsub.f32 %v2161, %v2257
        %v2610 = vsub.f32 %v2162, %v2258
        %v2611 = vsub.f32 %v2163, %v2259
        %v2612 = vsub.f32 %v2164, %v2260
        %v2613 = vsub.f32 %v2165, %v2261
        %v2614 = vsub.f32 %v2166, %v2262
        %v2615 = vsub.f32 %v2167, %v2263
        %v2616 = vsub.f32 %v2168, %v2264
        %v2617 = vsub.f32 %v2169, %v2265
        %v2618 = vsub.f32 %v2170, %v2266
        %v2619 = vsub.f32 %v2171, %v2267
        %v2620 = vsub.f32 %v2172, %v2268
        %v2621 = vsub.f32 %v2173, %v2269
        %v2622 = vsub.f32 %v2174, %v2270
        %v2623 = vmul.f32 %v2607, 1.442695
        %v2624 = vpow.pop %v2623
        %v2625 = vmul.f32 %v2608, 1.442695
        %v2626 = vpow.pop %v2625
        %v2627 = vmul.f32 %v2609, 1.442695
        %v2628 = vpow.pop %v2627
        %v2629 = vmul.f32 %v2610, 1.442695
        %v2630 = vpow.pop %v2629
        %v2631 = vmul.f32 %v2611, 1.442695
        %v2632 = vpow.pop %v2631
        %v2633 = vmul.f32 %v2612, 1.442695
        %v2634 = vpow.pop %v2633
        %v2635 = vmul.f32 %v2613, 1.442695
        %v2636 = vpow.pop %v2635
        %v2637 = vmul.f32 %v2614, 1.442695
        %v2638 = vpow.pop %v2637
        %v2639 = vmul.f32 %v2615, 1.442695
        %v2640 = vpow.pop %v2639
        %v2641 = vmul.f32 %v2616, 1.442695
        %v2642 = vpow.pop %v2641
        %v2643 = vmul.f32 %v2617, 1.442695
        %v2644 = vpow.pop %v2643
        %v2645 = vmul.f32 %v2618, 1.442695
        %v2646 = vpow.pop %v2645
        %v2647 = vmul.f32 %v2619, 1.442695
        %v2648 = vpow.pop %v2647
        %v2649 = vmul.f32 %v2620, 1.442695
        %v2650 = vpow.pop %v2649
        %v2651 = vmul.f32 %v2621, 1.442695
        %v2652 = vpow.pop %v2651
        %v2653 = vmul.f32 %v2622, 1.442695
        %v2654 = vpow.pop %v2653
        %s2655 = scalar_lea.vmem %s446, 512
        %v2656 = vld [vmem:[%s2655] sm:$0xff]
        %v2657 = vld [vmem:[%s2655 + $0x8] sm:$0xff]
        %v2658 = vld [vmem:[%s2655 + $0x10] sm:$0xff]
        %v2659 = vld [vmem:[%s2655 + $0x18] sm:$0xff]
        %v2660 = vld [vmem:[%s2655 + $0x20] sm:$0xff]
        %v2661 = vld [vmem:[%s2655 + $0x28] sm:$0xff]
        %v2662 = vld [vmem:[%s2655 + $0x30] sm:$0xff]
        %v2663 = vld [vmem:[%s2655 + $0x38] sm:$0xff]
        %v2664 = vld [vmem:[%s2655 + $0x40] sm:$0xff]
        %v2665 = vld [vmem:[%s2655 + $0x48] sm:$0xff]
        %v2666 = vld [vmem:[%s2655 + $0x50] sm:$0xff]
        %v2667 = vld [vmem:[%s2655 + $0x58] sm:$0xff]
        %v2668 = vld [vmem:[%s2655 + $0x60] sm:$0xff]
        %v2669 = vld [vmem:[%s2655 + $0x68] sm:$0xff]
        %v2670 = vld [vmem:[%s2655 + $0x70] sm:$0xff]
        %v2671 = vld [vmem:[%s2655 + $0x78] sm:$0xff]
        %v2672 = vld [vmem:[%s2655 + $0x80] sm:$0xff]
        %v2673 = vld [vmem:[%s2655 + $0x88] sm:$0xff]
        %v2674 = vld [vmem:[%s2655 + $0x90] sm:$0xff]
        %v2675 = vld [vmem:[%s2655 + $0x98] sm:$0xff]
        %v2676 = vld [vmem:[%s2655 + $0xa0] sm:$0xff]
        %v2677 = vld [vmem:[%s2655 + $0xa8] sm:$0xff]
        %v2678 = vld [vmem:[%s2655 + $0xb0] sm:$0xff]
        %v2679 = vld [vmem:[%s2655 + $0xb8] sm:$0xff]
        %v2680 = vld [vmem:[%s2655 + $0xc0] sm:$0xff]
        %v2681 = vld [vmem:[%s2655 + $0xc8] sm:$0xff]
        %v2682 = vld [vmem:[%s2655 + $0xd0] sm:$0xff]
        %v2683 = vld [vmem:[%s2655 + $0xd8] sm:$0xff]
        %v2684 = vld [vmem:[%s2655 + $0xe0] sm:$0xff]
        %v2685 = vld [vmem:[%s2655 + $0xe8] sm:$0xff]
        %v2686 = vld [vmem:[%s2655 + $0xf0] sm:$0xff]
        %v2687 = vld [vmem:[%s2655 + $0xf8] sm:$0xff]
        %v2688 = vld [vmem:[%s2655 + $0x100] sm:$0xff]
        %v2689 = vld [vmem:[%s2655 + $0x108] sm:$0xff]
        %v2690 = vld [vmem:[%s2655 + $0x110] sm:$0xff]
        %v2691 = vld [vmem:[%s2655 + $0x118] sm:$0xff]
        %v2692 = vld [vmem:[%s2655 + $0x120] sm:$0xff]
        %v2693 = vld [vmem:[%s2655 + $0x128] sm:$0xff]
        %v2694 = vld [vmem:[%s2655 + $0x130] sm:$0xff]
        %v2695 = vld [vmem:[%s2655 + $0x138] sm:$0xff]
        %v2696 = vld [vmem:[%s2655 + $0x140] sm:$0xff]
        %v2697 = vld [vmem:[%s2655 + $0x148] sm:$0xff]
        %v2698 = vld [vmem:[%s2655 + $0x150] sm:$0xff]
        %v2699 = vld [vmem:[%s2655 + $0x158] sm:$0xff]
        %v2700 = vld [vmem:[%s2655 + $0x160] sm:$0xff]
        %v2701 = vld [vmem:[%s2655 + $0x168] sm:$0xff]
        %v2702 = vld [vmem:[%s2655 + $0x170] sm:$0xff]
        %v2703 = vld [vmem:[%s2655 + $0x178] sm:$0xff]
        %v2704 = vld [vmem:[%s2655 + $0x180] sm:$0xff]
        %v2705 = vld [vmem:[%s2655 + $0x188] sm:$0xff]
        %v2706 = vld [vmem:[%s2655 + $0x190] sm:$0xff]
        %v2707 = vld [vmem:[%s2655 + $0x198] sm:$0xff]
        %v2708 = vld [vmem:[%s2655 + $0x1a0] sm:$0xff]
        %v2709 = vld [vmem:[%s2655 + $0x1a8] sm:$0xff]
        %v2710 = vld [vmem:[%s2655 + $0x1b0] sm:$0xff]
        %v2711 = vld [vmem:[%s2655 + $0x1b8] sm:$0xff]
        %v2712 = vld [vmem:[%s2655 + $0x1c0] sm:$0xff]
        %v2713 = vld [vmem:[%s2655 + $0x1c8] sm:$0xff]
        %v2714 = vld [vmem:[%s2655 + $0x1d0] sm:$0xff]
        %v2715 = vld [vmem:[%s2655 + $0x1d8] sm:$0xff]
        %v2716 = vld [vmem:[%s2655 + $0x1e0] sm:$0xff]
        %v2717 = vld [vmem:[%s2655 + $0x1e8] sm:$0xff]
        %v2718 = vld [vmem:[%s2655 + $0x1f0] sm:$0xff]
        %v2719 = vld [vmem:[%s2655 + $0x1f8] sm:$0xff]
        %2720 = vmatprep.subr.mxu0 0.0
        %2721 = vmatpush1.msra.mxu0 %v2656
        %2722 = vmatprep.subr.mxu0 0.0
        %2723 = vmatpush1.msra.mxu0 %v2657
        %2724 = vmatprep.subr.mxu0 0.0
        %2725 = vmatpush1.msra.mxu0 %v2658
        %2726 = vmatprep.subr.mxu0 0.0
        %2727 = vmatpush1.msra.mxu0 %v2659
        %2728 = vmatprep.subr.mxu0 0.0
        %2729 = vmatpush1.msra.mxu0 %v2660
        %2730 = vmatprep.subr.mxu0 0.0
        %2731 = vmatpush1.msra.mxu0 %v2661
        %2732 = vmatprep.subr.mxu0 0.0
        %2733 = vmatpush1.msra.mxu0 %v2662
        %2734 = vmatprep.subr.mxu0 0.0
        %2735 = vmatpush1.msra.mxu0 %v2663
        %2736 = vmatprep.subr.mxu0 0.0
        %2737 = vmatpush1.msra.mxu0 %v2664
        %2738 = vmatprep.subr.mxu0 0.0
        %2739 = vmatpush1.msra.mxu0 %v2665
        %2740 = vmatprep.subr.mxu0 0.0
        %2741 = vmatpush1.msra.mxu0 %v2666
        %2742 = vmatprep.subr.mxu0 0.0
        %2743 = vmatpush1.msra.mxu0 %v2667
        %2744 = vmatprep.subr.mxu0 0.0
        %2745 = vmatpush1.msra.mxu0 %v2668
        %2746 = vmatprep.subr.mxu0 0.0
        %2747 = vmatpush1.msra.mxu0 %v2669
        %2748 = vmatprep.subr.mxu0 0.0
        %2749 = vmatpush1.msra.mxu0 %v2670
        %2750 = vmatprep.subr.mxu0 0.0
        %2751 = vmatpush1.msra.mxu0 %v2671
        %2752 = vmatprep.subr.mxu0 0.0
        %2753 = vmatpush1.msra.mxu0 %v2672
        %2754 = vmatprep.subr.mxu0 0.0
        %2755 = vmatpush1.msra.mxu0 %v2673
        %2756 = vmatprep.subr.mxu0 0.0
        %2757 = vmatpush1.msra.mxu0 %v2674
        %2758 = vmatprep.subr.mxu0 0.0
        %2759 = vmatpush1.msra.mxu0 %v2675
        %2760 = vmatprep.subr.mxu0 0.0
        %2761 = vmatpush1.msra.mxu0 %v2676
        %2762 = vmatprep.subr.mxu0 0.0
        %2763 = vmatpush1.msra.mxu0 %v2677
        %2764 = vmatprep.subr.mxu0 0.0
        %2765 = vmatpush1.msra.mxu0 %v2678
        %2766 = vmatprep.subr.mxu0 0.0
        %2767 = vmatpush1.msra.mxu0 %v2679
        %2768 = vmatprep.subr.mxu0 0.0
        %2769 = vmatpush1.msra.mxu0 %v2680
        %2770 = vmatprep.subr.mxu0 0.0
        %2771 = vmatpush1.msra.mxu0 %v2681
        %2772 = vmatprep.subr.mxu0 0.0
        %2773 = vmatpush1.msra.mxu0 %v2682
        %2774 = vmatprep.subr.mxu0 0.0
        %2775 = vmatpush1.msra.mxu0 %v2683
        %2776 = vmatprep.subr.mxu0 0.0
        %2777 = vmatpush1.msra.mxu0 %v2684
        %2778 = vmatprep.subr.mxu0 0.0
        %2779 = vmatpush1.msra.mxu0 %v2685
        %2780 = vmatprep.subr.mxu0 0.0
        %2781 = vmatpush1.msra.mxu0 %v2686
        %2782 = vmatprep.subr.mxu0 0.0
        %2783 = vmatpush1.msra.mxu0 %v2687
        %2784 = vmatprep.mubr.f32.mxu0 %v2544
        %2785 = vmatmul.mubr.f32.gmra.mrb[0].mxu0 %v2543
        %v2786 = vpop.f32.mrb[0].mxu0
        %v2787 = vadd.f32 0.0, %v2786
        %v2788 = vpop.f32.mrb[0].mxu0
        %2789 = vmatprep.mubr.f32.mxu0 %v2548
        %2790 = vmatmul.mubr.f32.gmra.mrb[0].mxu0 %v2547
        %v2791 = vpop.f32.mrb[0].mxu0
        %v2792 = vadd.f32 0.0, %v2791
        %v2793 = vpop.f32.mrb[0].mxu0
        %2794 = vmatprep.mubr.f32.mxu0 %v2552
        %2795 = vmatmul.mubr.f32.gmra.mrb[0].mxu0 %v2551
        %v2796 = vpop.f32.mrb[0].mxu0
        %v2797 = vadd.f32 0.0, %v2796
        %v2798 = vpop.f32.mrb[0].mxu0
        %2799 = vmatprep.mubr.f32.mxu0 %v2556
        %2800 = vmatmul.mubr.f32.gmra.mrb[0].mxu0 %v2555
        %v2801 = vpop.f32.mrb[0].mxu0
        %v2802 = vadd.f32 0.0, %v2801
        %v2803 = vpop.f32.mrb[0].mxu0
        %2804 = vmatprep.mubr.f32.mxu0 %v2560
        %2805 = vmatmul.mubr.f32.gmra.mrb[0].mxu0 %v2559
        %v2806 = vpop.f32.mrb[0].mxu0
        %v2807 = vadd.f32 0.0, %v2806
        %v2808 = vpop.f32.mrb[0].mxu0
        %2809 = vmatprep.mubr.f32.mxu0 %v2564
        %2810 = vmatmul.mubr.f32.gmra.mrb[0].mxu0 %v2563
        %v2811 = vpop.f32.mrb[0].mxu0
        %v2812 = vadd.f32 0.0, %v2811
        %v2813 = vpop.f32.mrb[0].mxu0
        %2814 = vmatprep.mubr.f32.mxu0 %v2568
        %2815 = vmatmul.mubr.f32.gmra.mrb[0].mxu0 %v2567
        %v2816 = vpop.f32.mrb[0].mxu0
        %v2817 = vadd.f32 0.0, %v2816
        %v2818 = vpop.f32.mrb[0].mxu0
        %2819 = vmatprep.mubr.f32.mxu0 %v2572
        %2820 = vmatmul.mubr.f32.gmra.mrb[0].mxu0 %v2571
        %v2821 = vpop.f32.mrb[0].mxu0
        %v2822 = vadd.f32 0.0, %v2821
        %v2823 = vpop.f32.mrb[0].mxu0
        %2824 = vmatprep.mubr.f32.mxu0 %v2576
        %2825 = vmatmul.mubr.f32.gmra.mrb[0].mxu0 %v2575
        %v2826 = vpop.f32.mrb[0].mxu0
        %v2827 = vadd.f32 0.0, %v2826
        %v2828 = vpop.f32.mrb[0].mxu0
        %2829 = vmatprep.mubr.f32.mxu0 %v2580
        %2830 = vmatmul.mubr.f32.gmra.mrb[0].mxu0 %v2579
        %v2831 = vpop.f32.mrb[0].mxu0
        %v2832 = vadd.f32 0.0, %v2831
        %v2833 = vpop.f32.mrb[0].mxu0
        %2834 = vmatprep.mubr.f32.mxu0 %v2584
        %2835 = vmatmul.mubr.f32.gmra.mrb[0].mxu0 %v2583
        %v2836 = vpop.f32.mrb[0].mxu0
        %v2837 = vadd.f32 0.0, %v2836
        %v2838 = vpop.f32.mrb[0].mxu0
        %2839 = vmatprep.mubr.f32.mxu0 %v2588
        %2840 = vmatmul.mubr.f32.gmra.mrb[0].mxu0 %v2587
        %v2841 = vpop.f32.mrb[0].mxu0
        %v2842 = vadd.f32 0.0, %v2841
        %v2843 = vpop.f32.mrb[0].mxu0
        %2844 = vmatprep.mubr.f32.mxu0 %v2592
        %2845 = vmatmul.mubr.f32.gmra.mrb[0].mxu0 %v2591
        %v2846 = vpop.f32.mrb[0].mxu0
        %v2847 = vadd.f32 0.0, %v2846
        %v2848 = vpop.f32.mrb[0].mxu0
        %2849 = vmatprep.mubr.f32.mxu0 %v2596
        %2850 = vmatmul.mubr.f32.gmra.mrb[0].mxu0 %v2595
        %v2851 = vpop.f32.mrb[0].mxu0
        %v2852 = vadd.f32 0.0, %v2851
        %v2853 = vpop.f32.mrb[0].mxu0
        %2854 = vmatprep.mubr.f32.mxu0 %v2600
        %2855 = vmatmul.mubr.f32.gmra.mrb[0].mxu0 %v2599
        %v2856 = vpop.f32.mrb[0].mxu0
        %v2857 = vadd.f32 0.0, %v2856
        %v2858 = vpop.f32.mrb[0].mxu0
        %2859 = vmatprep.mubr.f32.mxu0 %v2604
        %2860 = vmatmul.mubr.f32.gmra.mrb[0].mxu0 %v2603
        %v2861 = vpop.f32.mrb[0].mxu0
        %v2862 = vadd.f32 0.0, %v2861
        %v2863 = vpop.f32.mrb[0].mxu0
        %2864 = vdwg.mxu0
        %2865 = vmatprep.subr.mxu0 0.0
        %2866 = vmatpush1.msra.mxu0 %v2688
        %2867 = vmatprep.subr.mxu0 0.0
        %2868 = vmatpush1.msra.mxu0 %v2689
        %2869 = vmatprep.subr.mxu0 0.0
        %2870 = vmatpush1.msra.mxu0 %v2690
        %2871 = vmatprep.subr.mxu0 0.0
        %2872 = vmatpush1.msra.mxu0 %v2691
        %2873 = vmatprep.subr.mxu0 0.0
        %2874 = vmatpush1.msra.mxu0 %v2692
        %2875 = vmatprep.subr.mxu0 0.0
        %2876 = vmatpush1.msra.mxu0 %v2693
        %2877 = vmatprep.subr.mxu0 0.0
        %2878 = vmatpush1.msra.mxu0 %v2694
        %2879 = vmatprep.subr.mxu0 0.0
        %2880 = vmatpush1.msra.mxu0 %v2695
        %2881 = vmatprep.subr.mxu0 0.0
        %2882 = vmatpush1.msra.mxu0 %v2696
        %2883 = vmatprep.subr.mxu0 0.0
        %2884 = vmatpush1.msra.mxu0 %v2697
        %2885 = vmatprep.subr.mxu0 0.0
        %2886 = vmatpush1.msra.mxu0 %v2698
        %2887 = vmatprep.subr.mxu0 0.0
        %2888 = vmatpush1.msra.mxu0 %v2699
        %2889 = vmatprep.subr.mxu0 0.0
        %2890 = vmatpush1.msra.mxu0 %v2700
        %2891 = vmatprep.subr.mxu0 0.0
        %2892 = vmatpush1.msra.mxu0 %v2701
        %2893 = vmatprep.subr.mxu0 0.0
        %2894 = vmatpush1.msra.mxu0 %v2702
        %2895 = vmatprep.subr.mxu0 0.0
        %2896 = vmatpush1.msra.mxu0 %v2703
        %2897 = vmatprep.subr.mxu0 0.0
        %2898 = vmatpush1.msra.mxu0 %v2704
        %2899 = vmatprep.subr.mxu0 0.0
        %2900 = vmatpush1.msra.mxu0 %v2705
        %2901 = vmatprep.subr.mxu0 0.0
        %2902 = vmatpush1.msra.mxu0 %v2706
        %2903 = vmatprep.subr.mxu0 0.0
        %2904 = vmatpush1.msra.mxu0 %v2707
        %2905 = vmatprep.subr.mxu0 0.0
        %2906 = vmatpush1.msra.mxu0 %v2708
        %2907 = vmatprep.subr.mxu0 0.0
        %2908 = vmatpush1.msra.mxu0 %v2709
        %2909 = vmatprep.subr.mxu0 0.0
        %2910 = vmatpush1.msra.mxu0 %v2710
        %2911 = vmatprep.subr.mxu0 0.0
        %2912 = vmatpush1.msra.mxu0 %v2711
        %2913 = vmatprep.subr.mxu0 0.0
        %2914 = vmatpush1.msra.mxu0 %v2712
        %2915 = vmatprep.subr.mxu0 0.0
        %2916 = vmatpush1.msra.mxu0 %v2713
        %2917 = vmatprep.subr.mxu0 0.0
        %2918 = vmatpush1.msra.mxu0 %v2714
        %2919 = vmatprep.subr.mxu0 0.0
        %2920 = vmatpush1.msra.mxu0 %v2715
        %2921 = vmatprep.subr.mxu0 0.0
        %2922 = vmatpush1.msra.mxu0 %v2716
        %2923 = vmatprep.subr.mxu0 0.0
        %2924 = vmatpush1.msra.mxu0 %v2717
        %2925 = vmatprep.subr.mxu0 0.0
        %2926 = vmatpush1.msra.mxu0 %v2718
        %2927 = vmatprep.subr.mxu0 0.0
        %2928 = vmatpush1.msra.mxu0 %v2719
        %2929 = vmatprep.mubr.f32.mxu0 %v2546
        %2930 = vmatmul.mubr.f32.gmra.mrb[0].mxu0 %v2545
        %v2931 = vpop.f32.mrb[0].mxu0
        %v2932 = vadd.f32 %v2787, %v2931
        %v2933 = vpop.f32.mrb[0].mxu0
        %2934 = vmatprep.mubr.f32.mxu0 %v2550
        %2935 = vmatmul.mubr.f32.gmra.mrb[0].mxu0 %v2549
        %v2936 = vpop.f32.mrb[0].mxu0
        %v2937 = vadd.f32 %v2792, %v2936
        %v2938 = vpop.f32.mrb[0].mxu0
        %2939 = vmatprep.mubr.f32.mxu0 %v2554
        %2940 = vmatmul.mubr.f32.gmra.mrb[0].mxu0 %v2553
        %v2941 = vpop.f32.mrb[0].mxu0
        %v2942 = vadd.f32 %v2797, %v2941
        %v2943 = vpop.f32.mrb[0].mxu0
        %2944 = vmatprep.mubr.f32.mxu0 %v2558
        %2945 = vmatmul.mubr.f32.gmra.mrb[0].mxu0 %v2557
        %v2946 = vpop.f32.mrb[0].mxu0
        %v2947 = vadd.f32 %v2802, %v2946
        %v2948 = vpop.f32.mrb[0].mxu0
        %2949 = vmatprep.mubr.f32.mxu0 %v2562
        %2950 = vmatmul.mubr.f32.gmra.mrb[0].mxu0 %v2561
        %v2951 = vpop.f32.mrb[0].mxu0
        %v2952 = vadd.f32 %v2807, %v2951
        %v2953 = vpop.f32.mrb[0].mxu0
        %2954 = vmatprep.mubr.f32.mxu0 %v2566
        %2955 = vmatmul.mubr.f32.gmra.mrb[0].mxu0 %v2565
        %v2956 = vpop.f32.mrb[0].mxu0
        %v2957 = vadd.f32 %v2812, %v2956
        %v2958 = vpop.f32.mrb[0].mxu0
        %2959 = vmatprep.mubr.f32.mxu0 %v2570
        %2960 = vmatmul.mubr.f32.gmra.mrb[0].mxu0 %v2569
        %v2961 = vpop.f32.mrb[0].mxu0
        %v2962 = vadd.f32 %v2817, %v2961
        %v2963 = vpop.f32.mrb[0].mxu0
        %2964 = vmatprep.mubr.f32.mxu0 %v2574
        %2965 = vmatmul.mubr.f32.gmra.mrb[0].mxu0 %v2573
        %v2966 = vpop.f32.mrb[0].mxu0
        %v2967 = vadd.f32 %v2822, %v2966
        %v2968 = vpop.f32.mrb[0].mxu0
        %2969 = vmatprep.mubr.f32.mxu0 %v2578
        %2970 = vmatmul.mubr.f32.gmra.mrb[0].mxu0 %v2577
        %v2971 = vpop.f32.mrb[0].mxu0
        %v2972 = vadd.f32 %v2827, %v2971
        %v2973 = vpop.f32.mrb[0].mxu0
        %2974 = vmatprep.mubr.f32.mxu0 %v2582
        %2975 = vmatmul.mubr.f32.gmra.mrb[0].mxu0 %v2581
        %v2976 = vpop.f32.mrb[0].mxu0
        %v2977 = vadd.f32 %v2832, %v2976
        %v2978 = vpop.f32.mrb[0].mxu0
        %2979 = vmatprep.mubr.f32.mxu0 %v2586
        %2980 = vmatmul.mubr.f32.gmra.mrb[0].mxu0 %v2585
        %v2981 = vpop.f32.mrb[0].mxu0
        %v2982 = vadd.f32 %v2837, %v2981
        %v2983 = vpop.f32.mrb[0].mxu0
        %2984 = vmatprep.mubr.f32.mxu0 %v2590
        %2985 = vmatmul.mubr.f32.gmra.mrb[0].mxu0 %v2589
        %v2986 = vpop.f32.mrb[0].mxu0
        %v2987 = vadd.f32 %v2842, %v2986
        %v2988 = vpop.f32.mrb[0].mxu0
        %2989 = vmatprep.mubr.f32.mxu0 %v2594
        %2990 = vmatmul.mubr.f32.gmra.mrb[0].mxu0 %v2593
        %v2991 = vpop.f32.mrb[0].mxu0
        %v2992 = vadd.f32 %v2847, %v2991
        %v2993 = vpop.f32.mrb[0].mxu0
        %2994 = vmatprep.mubr.f32.mxu0 %v2598
        %2995 = vmatmul.mubr.f32.gmra.mrb[0].mxu0 %v2597
        %v2996 = vpop.f32.mrb[0].mxu0
        %v2997 = vadd.f32 %v2852, %v2996
        %v2998 = vpop.f32.mrb[0].mxu0
        %2999 = vmatprep.mubr.f32.mxu0 %v2602
        %3000 = vmatmul.mubr.f32.gmra.mrb[0].mxu0 %v2601
        %v3001 = vpop.f32.mrb[0].mxu0
        %v3002 = vadd.f32 %v2857, %v3001
        %v3003 = vpop.f32.mrb[0].mxu0
        %3004 = vmatprep.mubr.f32.mxu0 %v2606
        %3005 = vmatmul.mubr.f32.gmra.mrb[0].mxu0 %v2605
        %v3006 = vpop.f32.mrb[0].mxu0
        %v3007 = vadd.f32 %v2862, %v3006
        %v3008 = vpop.f32.mrb[0].mxu0
        %3009 = vdwg.mxu0
        %s3010 = scalar_lea.vmem [#allocation3], 128
        %v3011 = vld [vmem:[%s3010] sm:$0xff]
        %v3012 = vld [vmem:[%s3010 + $0x8] sm:$0xff]
        %v3013 = vld [vmem:[%s3010 + $0x10] sm:$0xff]
        %v3014 = vld [vmem:[%s3010 + $0x18] sm:$0xff]
        %v3015 = vld [vmem:[%s3010 + $0x20] sm:$0xff]
        %v3016 = vld [vmem:[%s3010 + $0x28] sm:$0xff]
        %v3017 = vld [vmem:[%s3010 + $0x30] sm:$0xff]
        %v3018 = vld [vmem:[%s3010 + $0x38] sm:$0xff]
        %v3019 = vld [vmem:[%s3010 + $0x40] sm:$0xff]
        %v3020 = vld [vmem:[%s3010 + $0x48] sm:$0xff]
        %v3021 = vld [vmem:[%s3010 + $0x50] sm:$0xff]
        %v3022 = vld [vmem:[%s3010 + $0x58] sm:$0xff]
        %v3023 = vld [vmem:[%s3010 + $0x60] sm:$0xff]
        %v3024 = vld [vmem:[%s3010 + $0x68] sm:$0xff]
        %v3025 = vld [vmem:[%s3010 + $0x70] sm:$0xff]
        %v3026 = vld [vmem:[%s3010 + $0x78] sm:$0xff]
        %3028 = vset.pattern.permute.xlu0 0
        %3029 = vperm.xlu0 %3028, %v2624
        %v3030 = vpop.permute.xlu0 %3029
        %3033 = vset.pattern.permute.xlu0 0
        %3034 = vperm.xlu0 %3033, %v2626
        %v3035 = vpop.permute.xlu0 %3034
        %3038 = vset.pattern.permute.xlu0 0
        %3039 = vperm.xlu0 %3038, %v2628
        %v3040 = vpop.permute.xlu0 %3039
        %3043 = vset.pattern.permute.xlu0 0
        %3044 = vperm.xlu0 %3043, %v2630
        %v3045 = vpop.permute.xlu0 %3044
        %3048 = vset.pattern.permute.xlu0 0
        %3049 = vperm.xlu0 %3048, %v2632
        %v3050 = vpop.permute.xlu0 %3049
        %3053 = vset.pattern.permute.xlu0 0
        %3054 = vperm.xlu0 %3053, %v2634
        %v3055 = vpop.permute.xlu0 %3054
        %3058 = vset.pattern.permute.xlu0 0
        %3059 = vperm.xlu0 %3058, %v2636
        %v3060 = vpop.permute.xlu0 %3059
        %3063 = vset.pattern.permute.xlu0 0
        %3064 = vperm.xlu0 %3063, %v2638
        %v3065 = vpop.permute.xlu0 %3064
        %3068 = vset.pattern.permute.xlu0 0
        %3069 = vperm.xlu0 %3068, %v2640
        %v3070 = vpop.permute.xlu0 %3069
        %3073 = vset.pattern.permute.xlu0 0
        %3074 = vperm.xlu0 %3073, %v2642
        %v3075 = vpop.permute.xlu0 %3074
        %3078 = vset.pattern.permute.xlu0 0
        %3079 = vperm.xlu0 %3078, %v2644
        %v3080 = vpop.permute.xlu0 %3079
        %3083 = vset.pattern.permute.xlu0 0
        %3084 = vperm.xlu0 %3083, %v2646
        %v3085 = vpop.permute.xlu0 %3084
        %3088 = vset.pattern.permute.xlu0 0
        %3089 = vperm.xlu0 %3088, %v2648
        %v3090 = vpop.permute.xlu0 %3089
        %3093 = vset.pattern.permute.xlu0 0
        %3094 = vperm.xlu0 %3093, %v2650
        %v3095 = vpop.permute.xlu0 %3094
        %3098 = vset.pattern.permute.xlu0 0
        %3099 = vperm.xlu0 %3098, %v2652
        %v3100 = vpop.permute.xlu0 %3099
        %3103 = vset.pattern.permute.xlu0 0
        %3104 = vperm.xlu0 %3103, %v2654
        %v3105 = vpop.permute.xlu0 %3104
        %v3107 = vmul.f32 %v3030, %v3011
        %v3108 = vmul.f32 %v3035, %v3012
        %v3109 = vmul.f32 %v3040, %v3013
        %v3110 = vmul.f32 %v3045, %v3014
        %v3111 = vmul.f32 %v3050, %v3015
        %v3112 = vmul.f32 %v3055, %v3016
        %v3113 = vmul.f32 %v3060, %v3017
        %v3114 = vmul.f32 %v3065, %v3018
        %v3115 = vmul.f32 %v3070, %v3019
        %v3116 = vmul.f32 %v3075, %v3020
        %v3117 = vmul.f32 %v3080, %v3021
        %v3118 = vmul.f32 %v3085, %v3022
        %v3119 = vmul.f32 %v3090, %v3023
        %v3120 = vmul.f32 %v3095, %v3024
        %v3121 = vmul.f32 %v3100, %v3025
        %v3122 = vmul.f32 %v3105, %v3026
        %v3123 = vadd.f32 %v3107, %v2932
        %v3124 = vadd.f32 %v3108, %v2937
        %v3125 = vadd.f32 %v3109, %v2942
        %v3126 = vadd.f32 %v3110, %v2947
        %v3127 = vadd.f32 %v3111, %v2952
        %v3128 = vadd.f32 %v3112, %v2957
        %v3129 = vadd.f32 %v3113, %v2962
        %v3130 = vadd.f32 %v3114, %v2967
        %v3131 = vadd.f32 %v3115, %v2972
        %v3132 = vadd.f32 %v3116, %v2977
        %v3133 = vadd.f32 %v3117, %v2982
        %v3134 = vadd.f32 %v3118, %v2987
        %v3135 = vadd.f32 %v3119, %v2992
        %v3136 = vadd.f32 %v3120, %v2997
        %v3137 = vadd.f32 %v3121, %v3002
        %v3138 = vadd.f32 %v3122, %v3007
        %3139 = vst.msk [vmem:[%s3010] sm:$0xff] %vm1909, %v3123
        %3140 = vst.msk [vmem:[%s3010 + $0x8] sm:$0xff] %vm1909, %v3124
        %3141 = vst.msk [vmem:[%s3010 + $0x10] sm:$0xff] %vm1909, %v3125
        %3142 = vst.msk [vmem:[%s3010 + $0x18] sm:$0xff] %vm1909, %v3126
        %3143 = vst.msk [vmem:[%s3010 + $0x20] sm:$0xff] %vm1909, %v3127
        %3144 = vst.msk [vmem:[%s3010 + $0x28] sm:$0xff] %vm1909, %v3128
        %3145 = vst.msk [vmem:[%s3010 + $0x30] sm:$0xff] %vm1909, %v3129
        %3146 = vst.msk [vmem:[%s3010 + $0x38] sm:$0xff] %vm1909, %v3130
        %3147 = vst.msk [vmem:[%s3010 + $0x40] sm:$0xff] %vm1909, %v3131
        %3148 = vst.msk [vmem:[%s3010 + $0x48] sm:$0xff] %vm1909, %v3132
        %3149 = vst.msk [vmem:[%s3010 + $0x50] sm:$0xff] %vm1909, %v3133
        %3150 = vst.msk [vmem:[%s3010 + $0x58] sm:$0xff] %vm1909, %v3134
        %3151 = vst.msk [vmem:[%s3010 + $0x60] sm:$0xff] %vm1909, %v3135
        %3152 = vst.msk [vmem:[%s3010 + $0x68] sm:$0xff] %vm1909, %v3136
        %3153 = vst.msk [vmem:[%s3010 + $0x70] sm:$0xff] %vm1909, %v3137
        %3154 = vst.msk [vmem:[%s3010 + $0x78] sm:$0xff] %vm1909, %v3138
        %3155 = vst.msk [vmem:[%s2158] sm:$0xff] %vm1926, %v2255
        %3156 = vst.msk [vmem:[%s2158 + $0x8] sm:$0xff] %vm1926, %v2256
        %3157 = vst.msk [vmem:[%s2158 + $0x10] sm:$0xff] %vm1926, %v2257
        %3158 = vst.msk [vmem:[%s2158 + $0x18] sm:$0xff] %vm1926, %v2258
        %3159 = vst.msk [vmem:[%s2158 + $0x20] sm:$0xff] %vm1926, %v2259
        %3160 = vst.msk [vmem:[%s2158 + $0x28] sm:$0xff] %vm1926, %v2260
        %3161 = vst.msk [vmem:[%s2158 + $0x30] sm:$0xff] %vm1926, %v2261
        %3162 = vst.msk [vmem:[%s2158 + $0x38] sm:$0xff] %vm1926, %v2262
        %3163 = vst.msk [vmem:[%s2158 + $0x40] sm:$0xff] %vm1926, %v2263
        %3164 = vst.msk [vmem:[%s2158 + $0x48] sm:$0xff] %vm1926, %v2264
        %3165 = vst.msk [vmem:[%s2158 + $0x50] sm:$0xff] %vm1926, %v2265
        %3166 = vst.msk [vmem:[%s2158 + $0x58] sm:$0xff] %vm1926, %v2266
        %3167 = vst.msk [vmem:[%s2158 + $0x60] sm:$0xff] %vm1926, %v2267
        %3168 = vst.msk [vmem:[%s2158 + $0x68] sm:$0xff] %vm1926, %v2268
        %3169 = vst.msk [vmem:[%s2158 + $0x70] sm:$0xff] %vm1926, %v2269
        %3170 = vst.msk [vmem:[%s2158 + $0x78] sm:$0xff] %vm1926, %v2270
      $region60: #{gat_forward.3} parent=51 // pred_fallthru
        _
      // Predicated region
      $region61: #{gat_forward.3} parent=51 // pred_check
        %p3171 = pneg %p482
      $region62: #{gat_forward.3} parent=51 // pred_check_branch
        %3173 = sbr.rel (%p3171) target = $region64
      $region63: #{gat_forward.3} parent=51 // pred_region
        %v3174 = vld [vmem:[#allocation3] sm:$0xff]
        %v3175 = vld [vmem:[#allocation3 + $0x8] sm:$0xff]
        %v3176 = vld [vmem:[#allocation3 + $0x10] sm:$0xff]
        %v3177 = vld [vmem:[#allocation3 + $0x18] sm:$0xff]
        %v3178 = vld [vmem:[#allocation3 + $0x20] sm:$0xff]
        %v3179 = vld [vmem:[#allocation3 + $0x28] sm:$0xff]
        %v3180 = vld [vmem:[#allocation3 + $0x30] sm:$0xff]
        %v3181 = vld [vmem:[#allocation3 + $0x38] sm:$0xff]
        %v3182 = vld [vmem:[#allocation3 + $0x40] sm:$0xff]
        %v3183 = vld [vmem:[#allocation3 + $0x48] sm:$0xff]
        %v3184 = vld [vmem:[#allocation3 + $0x50] sm:$0xff]
        %v3185 = vld [vmem:[#allocation3 + $0x58] sm:$0xff]
        %v3186 = vld [vmem:[#allocation3 + $0x60] sm:$0xff]
        %v3187 = vld [vmem:[#allocation3 + $0x68] sm:$0xff]
        %v3188 = vld [vmem:[#allocation3 + $0x70] sm:$0xff]
        %v3189 = vld [vmem:[#allocation3 + $0x78] sm:$0xff]
        %v3190 = vmax.f32 %v3174, 1e-10
        %v3191 = vmax.f32 %v3175, 1e-10
        %v3192 = vmax.f32 %v3176, 1e-10
        %v3193 = vmax.f32 %v3177, 1e-10
        %v3194 = vmax.f32 %v3178, 1e-10
        %v3195 = vmax.f32 %v3179, 1e-10
        %v3196 = vmax.f32 %v3180, 1e-10
        %v3197 = vmax.f32 %v3181, 1e-10
        %v3198 = vmax.f32 %v3182, 1e-10
        %v3199 = vmax.f32 %v3183, 1e-10
        %v3200 = vmax.f32 %v3184, 1e-10
        %v3201 = vmax.f32 %v3185, 1e-10
        %v3202 = vmax.f32 %v3186, 1e-10
        %v3203 = vmax.f32 %v3187, 1e-10
        %v3204 = vmax.f32 %v3188, 1e-10
        %v3205 = vmax.f32 %v3189, 1e-10
        %3207 = vset.pattern.permute.xlu0 16
        %3208 = vperm.xlu0 %3207, %v3190
        %v3209 = vpop.permute.xlu0 %3208
        %3212 = vset.pattern.permute.xlu0 16
        %3213 = vperm.xlu0 %3212, %v3191
        %v3214 = vpop.permute.xlu0 %3213
        %3217 = vset.pattern.permute.xlu0 16
        %3218 = vperm.xlu0 %3217, %v3192
        %v3219 = vpop.permute.xlu0 %3218
        %3222 = vset.pattern.permute.xlu0 16
        %3223 = vperm.xlu0 %3222, %v3193
        %v3224 = vpop.permute.xlu0 %3223
        %3227 = vset.pattern.permute.xlu0 16
        %3228 = vperm.xlu0 %3227, %v3194
        %v3229 = vpop.permute.xlu0 %3228
        %3232 = vset.pattern.permute.xlu0 16
        %3233 = vperm.xlu0 %3232, %v3195
        %v3234 = vpop.permute.xlu0 %3233
        %3237 = vset.pattern.permute.xlu0 16
        %3238 = vperm.xlu0 %3237, %v3196
        %v3239 = vpop.permute.xlu0 %3238
        %3242 = vset.pattern.permute.xlu0 16
        %3243 = vperm.xlu0 %3242, %v3197
        %v3244 = vpop.permute.xlu0 %3243
        %3247 = vset.pattern.permute.xlu0 16
        %3248 = vperm.xlu0 %3247, %v3198
        %v3249 = vpop.permute.xlu0 %3248
        %3252 = vset.pattern.permute.xlu0 16
        %3253 = vperm.xlu0 %3252, %v3199
        %v3254 = vpop.permute.xlu0 %3253
        %3257 = vset.pattern.permute.xlu0 16
        %3258 = vperm.xlu0 %3257, %v3200
        %v3259 = vpop.permute.xlu0 %3258
        %3262 = vset.pattern.permute.xlu0 16
        %3263 = vperm.xlu0 %3262, %v3201
        %v3264 = vpop.permute.xlu0 %3263
        %3267 = vset.pattern.permute.xlu0 16
        %3268 = vperm.xlu0 %3267, %v3202
        %v3269 = vpop.permute.xlu0 %3268
        %3272 = vset.pattern.permute.xlu0 16
        %3273 = vperm.xlu0 %3272, %v3203
        %v3274 = vpop.permute.xlu0 %3273
        %3277 = vset.pattern.permute.xlu0 16
        %3278 = vperm.xlu0 %3277, %v3204
        %v3279 = vpop.permute.xlu0 %3278
        %3282 = vset.pattern.permute.xlu0 16
        %3283 = vperm.xlu0 %3282, %v3205
        %v3284 = vpop.permute.xlu0 %3283
        %v3286 = vrcp.pop %v3209
        %v3287 = vmul.f32 %v3174, %v3286
        %v3288 = vrcp.pop %v3214
        %v3289 = vmul.f32 %v3175, %v3288
        %v3290 = vrcp.pop %v3219
        %v3291 = vmul.f32 %v3176, %v3290
        %v3292 = vrcp.pop %v3224
        %v3293 = vmul.f32 %v3177, %v3292
        %v3294 = vrcp.pop %v3229
        %v3295 = vmul.f32 %v3178, %v3294
        %v3296 = vrcp.pop %v3234
        %v3297 = vmul.f32 %v3179, %v3296
        %v3298 = vrcp.pop %v3239
        %v3299 = vmul.f32 %v3180, %v3298
        %v3300 = vrcp.pop %v3244
        %v3301 = vmul.f32 %v3181, %v3300
        %v3302 = vrcp.pop %v3249
        %v3303 = vmul.f32 %v3182, %v3302
        %v3304 = vrcp.pop %v3254
        %v3305 = vmul.f32 %v3183, %v3304
        %v3306 = vrcp.pop %v3259
        %v3307 = vmul.f32 %v3184, %v3306
        %v3308 = vrcp.pop %v3264
        %v3309 = vmul.f32 %v3185, %v3308
        %v3310 = vrcp.pop %v3269
        %v3311 = vmul.f32 %v3186, %v3310
        %v3312 = vrcp.pop %v3274
        %v3313 = vmul.f32 %v3187, %v3312
        %v3314 = vrcp.pop %v3279
        %v3315 = vmul.f32 %v3188, %v3314
        %v3316 = vrcp.pop %v3284
        %v3317 = vmul.f32 %v3189, %v3316
        %s3318 = scalar_lea.vmem [#allocation3], 128
        %v3319 = vld [vmem:[%s3318] sm:$0xff]
        %v3320 = vld [vmem:[%s3318 + $0x8] sm:$0xff]
        %v3321 = vld [vmem:[%s3318 + $0x10] sm:$0xff]
        %v3322 = vld [vmem:[%s3318 + $0x18] sm:$0xff]
        %v3323 = vld [vmem:[%s3318 + $0x20] sm:$0xff]
        %v3324 = vld [vmem:[%s3318 + $0x28] sm:$0xff]
        %v3325 = vld [vmem:[%s3318 + $0x30] sm:$0xff]
        %v3326 = vld [vmem:[%s3318 + $0x38] sm:$0xff]
        %v3327 = vld [vmem:[%s3318 + $0x40] sm:$0xff]
        %v3328 = vld [vmem:[%s3318 + $0x48] sm:$0xff]
        %v3329 = vld [vmem:[%s3318 + $0x50] sm:$0xff]
        %v3330 = vld [vmem:[%s3318 + $0x58] sm:$0xff]
        %v3331 = vld [vmem:[%s3318 + $0x60] sm:$0xff]
        %v3332 = vld [vmem:[%s3318 + $0x68] sm:$0xff]
        %v3333 = vld [vmem:[%s3318 + $0x70] sm:$0xff]
        %v3334 = vld [vmem:[%s3318 + $0x78] sm:$0xff]
        %v3335 = vmax.f32 %v3319, 1e-10
        %v3336 = vmax.f32 %v3320, 1e-10
        %v3337 = vmax.f32 %v3321, 1e-10
        %v3338 = vmax.f32 %v3322, 1e-10
        %v3339 = vmax.f32 %v3323, 1e-10
        %v3340 = vmax.f32 %v3324, 1e-10
        %v3341 = vmax.f32 %v3325, 1e-10
        %v3342 = vmax.f32 %v3326, 1e-10
        %v3343 = vmax.f32 %v3327, 1e-10
        %v3344 = vmax.f32 %v3328, 1e-10
        %v3345 = vmax.f32 %v3329, 1e-10
        %v3346 = vmax.f32 %v3330, 1e-10
        %v3347 = vmax.f32 %v3331, 1e-10
        %v3348 = vmax.f32 %v3332, 1e-10
        %v3349 = vmax.f32 %v3333, 1e-10
        %v3350 = vmax.f32 %v3334, 1e-10
        %3352 = vset.pattern.permute.xlu0 16
        %3353 = vperm.xlu0 %3352, %v3335
        %v3354 = vpop.permute.xlu0 %3353
        %3357 = vset.pattern.permute.xlu0 16
        %3358 = vperm.xlu0 %3357, %v3336
        %v3359 = vpop.permute.xlu0 %3358
        %3362 = vset.pattern.permute.xlu0 16
        %3363 = vperm.xlu0 %3362, %v3337
        %v3364 = vpop.permute.xlu0 %3363
        %3367 = vset.pattern.permute.xlu0 16
        %3368 = vperm.xlu0 %3367, %v3338
        %v3369 = vpop.permute.xlu0 %3368
        %3372 = vset.pattern.permute.xlu0 16
        %3373 = vperm.xlu0 %3372, %v3339
        %v3374 = vpop.permute.xlu0 %3373
        %3377 = vset.pattern.permute.xlu0 16
        %3378 = vperm.xlu0 %3377, %v3340
        %v3379 = vpop.permute.xlu0 %3378
        %3382 = vset.pattern.permute.xlu0 16
        %3383 = vperm.xlu0 %3382, %v3341
        %v3384 = vpop.permute.xlu0 %3383
        %3387 = vset.pattern.permute.xlu0 16
        %3388 = vperm.xlu0 %3387, %v3342
        %v3389 = vpop.permute.xlu0 %3388
        %3392 = vset.pattern.permute.xlu0 16
        %3393 = vperm.xlu0 %3392, %v3343
        %v3394 = vpop.permute.xlu0 %3393
        %3397 = vset.pattern.permute.xlu0 16
        %3398 = vperm.xlu0 %3397, %v3344
        %v3399 = vpop.permute.xlu0 %3398
        %3402 = vset.pattern.permute.xlu0 16
        %3403 = vperm.xlu0 %3402, %v3345
        %v3404 = vpop.permute.xlu0 %3403
        %3407 = vset.pattern.permute.xlu0 16
        %3408 = vperm.xlu0 %3407, %v3346
        %v3409 = vpop.permute.xlu0 %3408
        %3412 = vset.pattern.permute.xlu0 16
        %3413 = vperm.xlu0 %3412, %v3347
        %v3414 = vpop.permute.xlu0 %3413
        %3417 = vset.pattern.permute.xlu0 16
        %3418 = vperm.xlu0 %3417, %v3348
        %v3419 = vpop.permute.xlu0 %3418
        %3422 = vset.pattern.permute.xlu0 16
        %3423 = vperm.xlu0 %3422, %v3349
        %v3424 = vpop.permute.xlu0 %3423
        %3427 = vset.pattern.permute.xlu0 16
        %3428 = vperm.xlu0 %3427, %v3350
        %v3429 = vpop.permute.xlu0 %3428
        %v3431 = vrcp.pop %v3354
        %v3432 = vmul.f32 %v3319, %v3431
        %v3433 = vrcp.pop %v3359
        %v3434 = vmul.f32 %v3320, %v3433
        %v3435 = vrcp.pop %v3364
        %v3436 = vmul.f32 %v3321, %v3435
        %v3437 = vrcp.pop %v3369
        %v3438 = vmul.f32 %v3322, %v3437
        %v3439 = vrcp.pop %v3374
        %v3440 = vmul.f32 %v3323, %v3439
        %v3441 = vrcp.pop %v3379
        %v3442 = vmul.f32 %v3324, %v3441
        %v3443 = vrcp.pop %v3384
        %v3444 = vmul.f32 %v3325, %v3443
        %v3445 = vrcp.pop %v3389
        %v3446 = vmul.f32 %v3326, %v3445
        %v3447 = vrcp.pop %v3394
        %v3448 = vmul.f32 %v3327, %v3447
        %v3449 = vrcp.pop %v3399
        %v3450 = vmul.f32 %v3328, %v3449
        %v3451 = vrcp.pop %v3404
        %v3452 = vmul.f32 %v3329, %v3451
        %v3453 = vrcp.pop %v3409
        %v3454 = vmul.f32 %v3330, %v3453
        %v3455 = vrcp.pop %v3414
        %v3456 = vmul.f32 %v3331, %v3455
        %v3457 = vrcp.pop %v3419
        %v3458 = vmul.f32 %v3332, %v3457
        %v3459 = vrcp.pop %v3424
        %v3460 = vmul.f32 %v3333, %v3459
        %v3461 = vrcp.pop %v3429
        %v3462 = vmul.f32 %v3334, %v3461
        %3479 = vrot.lane.b32.xlu0 %v3432, 16
        %v3480 = vpop.permute.xlu0 %3479
        %3481 = vrot.lane.b32.xlu0 %v3434, 16
        %v3482 = vpop.permute.xlu0 %3481
        %3483 = vrot.lane.b32.xlu0 %v3436, 16
        %v3484 = vpop.permute.xlu0 %3483
        %3485 = vrot.lane.b32.xlu0 %v3438, 16
        %v3486 = vpop.permute.xlu0 %3485
        %3487 = vrot.lane.b32.xlu0 %v3440, 16
        %v3488 = vpop.permute.xlu0 %3487
        %3489 = vrot.lane.b32.xlu0 %v3442, 16
        %v3490 = vpop.permute.xlu0 %3489
        %3491 = vrot.lane.b32.xlu0 %v3444, 16
        %v3492 = vpop.permute.xlu0 %3491
        %3493 = vrot.lane.b32.xlu0 %v3446, 16
        %v3494 = vpop.permute.xlu0 %3493
        %3495 = vrot.lane.b32.xlu0 %v3448, 16
        %v3496 = vpop.permute.xlu0 %3495
        %3497 = vrot.lane.b32.xlu0 %v3450, 16
        %v3498 = vpop.permute.xlu0 %3497
        %3499 = vrot.lane.b32.xlu0 %v3452, 16
        %v3500 = vpop.permute.xlu0 %3499
        %3501 = vrot.lane.b32.xlu0 %v3454, 16
        %v3502 = vpop.permute.xlu0 %3501
        %3503 = vrot.lane.b32.xlu0 %v3456, 16
        %v3504 = vpop.permute.xlu0 %3503
        %3505 = vrot.lane.b32.xlu0 %v3458, 16
        %v3506 = vpop.permute.xlu0 %3505
        %3507 = vrot.lane.b32.xlu0 %v3460, 16
        %v3508 = vpop.permute.xlu0 %3507
        %3509 = vrot.lane.b32.xlu0 %v3462, 16
        %v3510 = vpop.permute.xlu0 %3509
        %vm3527 = vcmask 130048
        %v3528 = vsel %vm3527, %v3287, %v3480
        %v3529 = vsel %vm3527, %v3289, %v3482
        %v3530 = vsel %vm3527, %v3291, %v3484
        %v3531 = vsel %vm3527, %v3293, %v3486
        %v3532 = vsel %vm3527, %v3295, %v3488
        %v3533 = vsel %vm3527, %v3297, %v3490
        %v3534 = vsel %vm3527, %v3299, %v3492
        %v3535 = vsel %vm3527, %v3301, %v3494
        %v3536 = vsel %vm3527, %v3303, %v3496
        %v3537 = vsel %vm3527, %v3305, %v3498
        %v3538 = vsel %vm3527, %v3307, %v3500
        %v3539 = vsel %vm3527, %v3309, %v3502
        %v3540 = vsel %vm3527, %v3311, %v3504
        %v3541 = vsel %vm3527, %v3313, %v3506
        %v3542 = vsel %vm3527, %v3315, %v3508
        %v3543 = vsel %vm3527, %v3317, %v3510
        %v3544 = vld [vmem:[%s432] sm:$0xff]
        %v3545 = vld [vmem:[%s432 + $0x8] sm:$0xff]
        %v3546 = vld [vmem:[%s432 + $0x10] sm:$0xff]
        %v3547 = vld [vmem:[%s432 + $0x18] sm:$0xff]
        %v3548 = vld [vmem:[%s432 + $0x20] sm:$0xff]
        %v3549 = vld [vmem:[%s432 + $0x28] sm:$0xff]
        %v3550 = vld [vmem:[%s432 + $0x30] sm:$0xff]
        %v3551 = vld [vmem:[%s432 + $0x38] sm:$0xff]
        %v3552 = vld [vmem:[%s432 + $0x40] sm:$0xff]
        %v3553 = vld [vmem:[%s432 + $0x48] sm:$0xff]
        %v3554 = vld [vmem:[%s432 + $0x50] sm:$0xff]
        %v3555 = vld [vmem:[%s432 + $0x58] sm:$0xff]
        %v3556 = vld [vmem:[%s432 + $0x60] sm:$0xff]
        %v3557 = vld [vmem:[%s432 + $0x68] sm:$0xff]
        %v3558 = vld [vmem:[%s432 + $0x70] sm:$0xff]
        %v3559 = vld [vmem:[%s432 + $0x78] sm:$0xff]
        %v3560 = vld [vmem:[%s9] sm:$0xff]
        %v3561 = vld [vmem:[%s9 + $0x8] sm:$0xff]
        %v3562 = vld [vmem:[%s9 + $0x10] sm:$0xff]
        %v3563 = vld [vmem:[%s9 + $0x18] sm:$0xff]
        %v3564 = vld [vmem:[%s7] sm:$0x1]
        %v3565 = vld [vmem:[%s8] sm:$0x1]
        %vm3566 = vcmask 261120
        %v3568 = vsel %vm3566, %v3544, 0
        %v3571 = vsel %vm3566, %v3545, 0
        %v3574 = vsel %vm3566, %v3546, 0
        %v3577 = vsel %vm3566, %v3547, 0
        %v3580 = vsel %vm3566, %v3548, 0
        %v3583 = vsel %vm3566, %v3549, 0
        %v3586 = vsel %vm3566, %v3550, 0
        %v3589 = vsel %vm3566, %v3551, 0
        %v3592 = vsel %vm3566, %v3552, 0
        %v3595 = vsel %vm3566, %v3553, 0
        %v3598 = vsel %vm3566, %v3554, 0
        %v3601 = vsel %vm3566, %v3555, 0
        %v3604 = vsel %vm3566, %v3556, 0
        %v3607 = vsel %vm3566, %v3557, 0
        %v3610 = vsel %vm3566, %v3558, 0
        %v3613 = vsel %vm3566, %v3559, 0
        %3615 = vmatprep.subr.mxu0 0.0
        %3616 = vmatpush1.msra.mxu0 %v3560
        %3617 = vmatprep.subr.mxu0 0.0
        %3618 = vmatpush1.msra.mxu0 %v3561
        %3619 = vmatprep.subr.mxu0 0.0
        %3620 = vmatpush1.msra.mxu0 %v3562
        %3621 = vmatprep.subr.mxu0 0.0
        %3622 = vmatpush1.msra.mxu0 %v3563
        %3623 = vmatprep.subr.mxu0 0.0
        %3624 = vmatpush1.msra.mxu0 0.0
        %3625 = vmatprep.subr.mxu0 0.0
        %3626 = vmatpush1.msra.mxu0 0.0
        %3627 = vmatprep.subr.mxu0 0.0
        %3628 = vmatpush1.msra.mxu0 0.0
        %3629 = vmatprep.subr.mxu0 0.0
        %3630 = vmatpush1.msra.mxu0 0.0
        %3631 = vmatprep.subr.mxu0 0.0
        %3632 = vmatpush1.msra.mxu0 0.0
        %3633 = vmatprep.subr.mxu0 0.0
        %3634 = vmatpush1.msra.mxu0 0.0
        %3635 = vmatprep.subr.mxu0 0.0
        %3636 = vmatpush1.msra.mxu0 0.0
        %3637 = vmatprep.subr.mxu0 0.0
        %3638 = vmatpush1.msra.mxu0 0.0
        %3639 = vmatprep.subr.mxu0 0.0
        %3640 = vmatpush1.msra.mxu0 0.0
        %3641 = vmatprep.subr.mxu0 0.0
        %3642 = vmatpush1.msra.mxu0 0.0
        %3643 = vmatprep.subr.mxu0 0.0
        %3644 = vmatpush1.msra.mxu0 0.0
        %3645 = vmatprep.subr.mxu0 0.0
        %3646 = vmatpush1.msra.mxu0 0.0
        %3647 = vmatprep.subr.mxu0 0.0
        %3648 = vmatpush1.msra.mxu0 0.0
        %3649 = vmatprep.subr.mxu0 0.0
        %3650 = vmatpush1.msra.mxu0 0.0
        %3651 = vmatprep.subr.mxu0 0.0
        %3652 = vmatpush1.msra.mxu0 0.0
        %3653 = vmatprep.subr.mxu0 0.0
        %3654 = vmatpush1.msra.mxu0 0.0
        %3655 = vmatprep.subr.mxu0 0.0
        %3656 = vmatpush1.msra.mxu0 0.0
        %3657 = vmatprep.subr.mxu0 0.0
        %3658 = vmatpush1.msra.mxu0 0.0
        %3659 = vmatprep.subr.mxu0 0.0
        %3660 = vmatpush1.msra.mxu0 0.0
        %3661 = vmatprep.subr.mxu0 0.0
        %3662 = vmatpush1.msra.mxu0 0.0
        %3663 = vmatprep.subr.mxu0 0.0
        %3664 = vmatpush1.msra.mxu0 0.0
        %3665 = vmatprep.subr.mxu0 0.0
        %3666 = vmatpush1.msra.mxu0 0.0
        %3667 = vmatprep.subr.mxu0 0.0
        %3668 = vmatpush1.msra.mxu0 0.0
        %3669 = vmatprep.subr.mxu0 0.0
        %3670 = vmatpush1.msra.mxu0 0.0
        %3671 = vmatprep.subr.mxu0 0.0
        %3672 = vmatpush1.msra.mxu0 0.0
        %3673 = vmatprep.subr.mxu0 0.0
        %3674 = vmatpush1.msra.mxu0 0.0
        %3675 = vmatprep.subr.mxu0 0.0
        %3676 = vmatpush1.msra.mxu0 0.0
        %3677 = vmatprep.subr.mxu0 0.0
        %3678 = vmatpush1.msra.mxu0 0.0
        %3679 = vmatprep.mubr.f32.mxu0 0.0
        %3680 = vmatmul.mubr.f32.gmra.mrb[0].mxu0 %v3568
        %v3681 = vpop.f32.mrb[0].mxu0
        %v3682 = vadd.f32 0.0, %v3681
        %v3683 = vpop.f32.mrb[0].mxu0
        %3684 = vmatprep.mubr.f32.mxu0 0.0
        %3685 = vmatmul.mubr.f32.gmra.mrb[0].mxu0 %v3571
        %v3686 = vpop.f32.mrb[0].mxu0
        %v3687 = vadd.f32 0.0, %v3686
        %v3688 = vpop.f32.mrb[0].mxu0
        %3689 = vmatprep.mubr.f32.mxu0 0.0
        %3690 = vmatmul.mubr.f32.gmra.mrb[0].mxu0 %v3574
        %v3691 = vpop.f32.mrb[0].mxu0
        %v3692 = vadd.f32 0.0, %v3691
        %v3693 = vpop.f32.mrb[0].mxu0
        %3694 = vmatprep.mubr.f32.mxu0 0.0
        %3695 = vmatmul.mubr.f32.gmra.mrb[0].mxu0 %v3577
        %v3696 = vpop.f32.mrb[0].mxu0
        %v3697 = vadd.f32 0.0, %v3696
        %v3698 = vpop.f32.mrb[0].mxu0
        %3699 = vmatprep.mubr.f32.mxu0 0.0
        %3700 = vmatmul.mubr.f32.gmra.mrb[0].mxu0 %v3580
        %v3701 = vpop.f32.mrb[0].mxu0
        %v3702 = vadd.f32 0.0, %v3701
        %v3703 = vpop.f32.mrb[0].mxu0
        %3704 = vmatprep.mubr.f32.mxu0 0.0
        %3705 = vmatmul.mubr.f32.gmra.mrb[0].mxu0 %v3583
        %v3706 = vpop.f32.mrb[0].mxu0
        %v3707 = vadd.f32 0.0, %v3706
        %v3708 = vpop.f32.mrb[0].mxu0
        %3709 = vmatprep.mubr.f32.mxu0 0.0
        %3710 = vmatmul.mubr.f32.gmra.mrb[0].mxu0 %v3586
        %v3711 = vpop.f32.mrb[0].mxu0
        %v3712 = vadd.f32 0.0, %v3711
        %v3713 = vpop.f32.mrb[0].mxu0
        %3714 = vmatprep.mubr.f32.mxu0 0.0
        %3715 = vmatmul.mubr.f32.gmra.mrb[0].mxu0 %v3589
        %v3716 = vpop.f32.mrb[0].mxu0
        %v3717 = vadd.f32 0.0, %v3716
        %v3718 = vpop.f32.mrb[0].mxu0
        %3719 = vmatprep.mubr.f32.mxu0 0.0
        %3720 = vmatmul.mubr.f32.gmra.mrb[0].mxu0 %v3592
        %v3721 = vpop.f32.mrb[0].mxu0
        %v3722 = vadd.f32 0.0, %v3721
        %v3723 = vpop.f32.mrb[0].mxu0
        %3724 = vmatprep.mubr.f32.mxu0 0.0
        %3725 = vmatmul.mubr.f32.gmra.mrb[0].mxu0 %v3595
        %v3726 = vpop.f32.mrb[0].mxu0
        %v3727 = vadd.f32 0.0, %v3726
        %v3728 = vpop.f32.mrb[0].mxu0
        %3729 = vmatprep.mubr.f32.mxu0 0.0
        %3730 = vmatmul.mubr.f32.gmra.mrb[0].mxu0 %v3598
        %v3731 = vpop.f32.mrb[0].mxu0
        %v3732 = vadd.f32 0.0, %v3731
        %v3733 = vpop.f32.mrb[0].mxu0
        %3734 = vmatprep.mubr.f32.mxu0 0.0
        %3735 = vmatmul.mubr.f32.gmra.mrb[0].mxu0 %v3601
        %v3736 = vpop.f32.mrb[0].mxu0
        %v3737 = vadd.f32 0.0, %v3736
        %v3738 = vpop.f32.mrb[0].mxu0
        %3739 = vmatprep.mubr.f32.mxu0 0.0
        %3740 = vmatmul.mubr.f32.gmra.mrb[0].mxu0 %v3604
        %v3741 = vpop.f32.mrb[0].mxu0
        %v3742 = vadd.f32 0.0, %v3741
        %v3743 = vpop.f32.mrb[0].mxu0
        %3744 = vmatprep.mubr.f32.mxu0 0.0
        %3745 = vmatmul.mubr.f32.gmra.mrb[0].mxu0 %v3607
        %v3746 = vpop.f32.mrb[0].mxu0
        %v3747 = vadd.f32 0.0, %v3746
        %v3748 = vpop.f32.mrb[0].mxu0
        %3749 = vmatprep.mubr.f32.mxu0 0.0
        %3750 = vmatmul.mubr.f32.gmra.mrb[0].mxu0 %v3610
        %v3751 = vpop.f32.mrb[0].mxu0
        %v3752 = vadd.f32 0.0, %v3751
        %v3753 = vpop.f32.mrb[0].mxu0
        %3754 = vmatprep.mubr.f32.mxu0 0.0
        %3755 = vmatmul.mubr.f32.gmra.mrb[0].mxu0 %v3613
        %v3756 = vpop.f32.mrb[0].mxu0
        %v3757 = vadd.f32 0.0, %v3756
        %v3758 = vpop.f32.mrb[0].mxu0
        %3759 = vdwg.mxu0
        %v3760 = vsub.f32 %v3544, %v3682
        %v3761 = vsub.f32 %v3545, %v3687
        %v3762 = vsub.f32 %v3546, %v3692
        %v3763 = vsub.f32 %v3547, %v3697
        %v3764 = vsub.f32 %v3548, %v3702
        %v3765 = vsub.f32 %v3549, %v3707
        %v3766 = vsub.f32 %v3550, %v3712
        %v3767 = vsub.f32 %v3551, %v3717
        %v3768 = vsub.f32 %v3552, %v3722
        %v3769 = vsub.f32 %v3553, %v3727
        %v3770 = vsub.f32 %v3554, %v3732
        %v3771 = vsub.f32 %v3555, %v3737
        %v3772 = vsub.f32 %v3556, %v3742
        %v3773 = vsub.f32 %v3557, %v3747
        %v3774 = vsub.f32 %v3558, %v3752
        %v3775 = vsub.f32 %v3559, %v3757
        %v3776 = vmul.f32 %v3760, %v3760
        %v3777 = vmul.f32 %v3761, %v3761
        %v3778 = vmul.f32 %v3762, %v3762
        %v3779 = vmul.f32 %v3763, %v3763
        %v3780 = vmul.f32 %v3764, %v3764
        %v3781 = vmul.f32 %v3765, %v3765
        %v3782 = vmul.f32 %v3766, %v3766
        %v3783 = vmul.f32 %v3767, %v3767
        %v3784 = vmul.f32 %v3768, %v3768
        %v3785 = vmul.f32 %v3769, %v3769
        %v3786 = vmul.f32 %v3770, %v3770
        %v3787 = vmul.f32 %v3771, %v3771
        %v3788 = vmul.f32 %v3772, %v3772
        %v3789 = vmul.f32 %v3773, %v3773
        %v3790 = vmul.f32 %v3774, %v3774
        %v3791 = vmul.f32 %v3775, %v3775
        %v3793 = vsel %vm3566, %v3776, 0
        %v3796 = vsel %vm3566, %v3777, 0
        %v3799 = vsel %vm3566, %v3778, 0
        %v3802 = vsel %vm3566, %v3779, 0
        %v3805 = vsel %vm3566, %v3780, 0
        %v3808 = vsel %vm3566, %v3781, 0
        %v3811 = vsel %vm3566, %v3782, 0
        %v3814 = vsel %vm3566, %v3783, 0
        %v3817 = vsel %vm3566, %v3784, 0
        %v3820 = vsel %vm3566, %v3785, 0
        %v3823 = vsel %vm3566, %v3786, 0
        %v3826 = vsel %vm3566, %v3787, 0
        %v3829 = vsel %vm3566, %v3788, 0
        %v3832 = vsel %vm3566, %v3789, 0
        %v3835 = vsel %vm3566, %v3790, 0
        %v3838 = vsel %vm3566, %v3791, 0
        %3840 = vmatprep.subr.mxu0 0.0
        %3841 = vmatpush1.msra.mxu0 %v3560
        %3842 = vmatprep.subr.mxu0 0.0
        %3843 = vmatpush1.msra.mxu0 %v3561
        %3844 = vmatprep.subr.mxu0 0.0
        %3845 = vmatpush1.msra.mxu0 %v3562
        %3846 = vmatprep.subr.mxu0 0.0
        %3847 = vmatpush1.msra.mxu0 %v3563
        %3848 = vmatprep.subr.mxu0 0.0
        %3849 = vmatpush1.msra.mxu0 0.0
        %3850 = vmatprep.subr.mxu0 0.0
        %3851 = vmatpush1.msra.mxu0 0.0
        %3852 = vmatprep.subr.mxu0 0.0
        %3853 = vmatpush1.msra.mxu0 0.0
        %3854 = vmatprep.subr.mxu0 0.0
        %3855 = vmatpush1.msra.mxu0 0.0
        %3856 = vmatprep.subr.mxu0 0.0
        %3857 = vmatpush1.msra.mxu0 0.0
        %3858 = vmatprep.subr.mxu0 0.0
        %3859 = vmatpush1.msra.mxu0 0.0
        %3860 = vmatprep.subr.mxu0 0.0
        %3861 = vmatpush1.msra.mxu0 0.0
        %3862 = vmatprep.subr.mxu0 0.0
        %3863 = vmatpush1.msra.mxu0 0.0
        %3864 = vmatprep.subr.mxu0 0.0
        %3865 = vmatpush1.msra.mxu0 0.0
        %3866 = vmatprep.subr.mxu0 0.0
        %3867 = vmatpush1.msra.mxu0 0.0
        %3868 = vmatprep.subr.mxu0 0.0
        %3869 = vmatpush1.msra.mxu0 0.0
        %3870 = vmatprep.subr.mxu0 0.0
        %3871 = vmatpush1.msra.mxu0 0.0
        %3872 = vmatprep.subr.mxu0 0.0
        %3873 = vmatpush1.msra.mxu0 0.0
        %3874 = vmatprep.subr.mxu0 0.0
        %3875 = vmatpush1.msra.mxu0 0.0
        %3876 = vmatprep.subr.mxu0 0.0
        %3877 = vmatpush1.msra.mxu0 0.0
        %3878 = vmatprep.subr.mxu0 0.0
        %3879 = vmatpush1.msra.mxu0 0.0
        %3880 = vmatprep.subr.mxu0 0.0
        %3881 = vmatpush1.msra.mxu0 0.0
        %3882 = vmatprep.subr.mxu0 0.0
        %3883 = vmatpush1.msra.mxu0 0.0
        %3884 = vmatprep.subr.mxu0 0.0
        %3885 = vmatpush1.msra.mxu0 0.0
        %3886 = vmatprep.subr.mxu0 0.0
        %3887 = vmatpush1.msra.mxu0 0.0
        %3888 = vmatprep.subr.mxu0 0.0
        %3889 = vmatpush1.msra.mxu0 0.0
        %3890 = vmatprep.subr.mxu0 0.0
        %3891 = vmatpush1.msra.mxu0 0.0
        %3892 = vmatprep.subr.mxu0 0.0
        %3893 = vmatpush1.msra.mxu0 0.0
        %3894 = vmatprep.subr.mxu0 0.0
        %3895 = vmatpush1.msra.mxu0 0.0
        %3896 = vmatprep.subr.mxu0 0.0
        %3897 = vmatpush1.msra.mxu0 0.0
        %3898 = vmatprep.subr.mxu0 0.0
        %3899 = vmatpush1.msra.mxu0 0.0
        %3900 = vmatprep.subr.mxu0 0.0
        %3901 = vmatpush1.msra.mxu0 0.0
        %3902 = vmatprep.subr.mxu0 0.0
        %3903 = vmatpush1.msra.mxu0 0.0
        %3904 = vmatprep.mubr.f32.mxu0 0.0
        %3905 = vmatmul.mubr.f32.gmra.mrb[0].mxu0 %v3793
        %v3906 = vpop.f32.mrb[0].mxu0
        %v3907 = vadd.f32 1e-09, %v3906
        %v3908 = vpop.f32.mrb[0].mxu0
        %3909 = vmatprep.mubr.f32.mxu0 0.0
        %3910 = vmatmul.mubr.f32.gmra.mrb[0].mxu0 %v3796
        %v3911 = vpop.f32.mrb[0].mxu0
        %v3912 = vadd.f32 1e-09, %v3911
        %v3913 = vpop.f32.mrb[0].mxu0
        %3914 = vmatprep.mubr.f32.mxu0 0.0
        %3915 = vmatmul.mubr.f32.gmra.mrb[0].mxu0 %v3799
        %v3916 = vpop.f32.mrb[0].mxu0
        %v3917 = vadd.f32 1e-09, %v3916
        %v3918 = vpop.f32.mrb[0].mxu0
        %3919 = vmatprep.mubr.f32.mxu0 0.0
        %3920 = vmatmul.mubr.f32.gmra.mrb[0].mxu0 %v3802
        %v3921 = vpop.f32.mrb[0].mxu0
        %v3922 = vadd.f32 1e-09, %v3921
        %v3923 = vpop.f32.mrb[0].mxu0
        %3924 = vmatprep.mubr.f32.mxu0 0.0
        %3925 = vmatmul.mubr.f32.gmra.mrb[0].mxu0 %v3805
        %v3926 = vpop.f32.mrb[0].mxu0
        %v3927 = vadd.f32 1e-09, %v3926
        %v3928 = vpop.f32.mrb[0].mxu0
        %3929 = vmatprep.mubr.f32.mxu0 0.0
        %3930 = vmatmul.mubr.f32.gmra.mrb[0].mxu0 %v3808
        %v3931 = vpop.f32.mrb[0].mxu0
        %v3932 = vadd.f32 1e-09, %v3931
        %v3933 = vpop.f32.mrb[0].mxu0
        %3934 = vmatprep.mubr.f32.mxu0 0.0
        %3935 = vmatmul.mubr.f32.gmra.mrb[0].mxu0 %v3811
        %v3936 = vpop.f32.mrb[0].mxu0
        %v3937 = vadd.f32 1e-09, %v3936
        %v3938 = vpop.f32.mrb[0].mxu0
        %3939 = vmatprep.mubr.f32.mxu0 0.0
        %3940 = vmatmul.mubr.f32.gmra.mrb[0].mxu0 %v3814
        %v3941 = vpop.f32.mrb[0].mxu0
        %v3942 = vadd.f32 1e-09, %v3941
        %v3943 = vpop.f32.mrb[0].mxu0
        %3944 = vmatprep.mubr.f32.mxu0 0.0
        %3945 = vmatmul.mubr.f32.gmra.mrb[0].mxu0 %v3817
        %v3946 = vpop.f32.mrb[0].mxu0
        %v3947 = vadd.f32 1e-09, %v3946
        %v3948 = vpop.f32.mrb[0].mxu0
        %3949 = vmatprep.mubr.f32.mxu0 0.0
        %3950 = vmatmul.mubr.f32.gmra.mrb[0].mxu0 %v3820
        %v3951 = vpop.f32.mrb[0].mxu0
        %v3952 = vadd.f32 1e-09, %v3951
        %v3953 = vpop.f32.mrb[0].mxu0
        %3954 = vmatprep.mubr.f32.mxu0 0.0
        %3955 = vmatmul.mubr.f32.gmra.mrb[0].mxu0 %v3823
        %v3956 = vpop.f32.mrb[0].mxu0
        %v3957 = vadd.f32 1e-09, %v3956
        %v3958 = vpop.f32.mrb[0].mxu0
        %3959 = vmatprep.mubr.f32.mxu0 0.0
        %3960 = vmatmul.mubr.f32.gmra.mrb[0].mxu0 %v3826
        %v3961 = vpop.f32.mrb[0].mxu0
        %v3962 = vadd.f32 1e-09, %v3961
        %v3963 = vpop.f32.mrb[0].mxu0
        %3964 = vmatprep.mubr.f32.mxu0 0.0
        %3965 = vmatmul.mubr.f32.gmra.mrb[0].mxu0 %v3829
        %v3966 = vpop.f32.mrb[0].mxu0
        %v3967 = vadd.f32 1e-09, %v3966
        %v3968 = vpop.f32.mrb[0].mxu0
        %3969 = vmatprep.mubr.f32.mxu0 0.0
        %3970 = vmatmul.mubr.f32.gmra.mrb[0].mxu0 %v3832
        %v3971 = vpop.f32.mrb[0].mxu0
        %v3972 = vadd.f32 1e-09, %v3971
        %v3973 = vpop.f32.mrb[0].mxu0
        %3974 = vmatprep.mubr.f32.mxu0 0.0
        %3975 = vmatmul.mubr.f32.gmra.mrb[0].mxu0 %v3835
        %v3976 = vpop.f32.mrb[0].mxu0
        %v3977 = vadd.f32 1e-09, %v3976
        %v3978 = vpop.f32.mrb[0].mxu0
        %3979 = vmatprep.mubr.f32.mxu0 0.0
        %3980 = vmatmul.mubr.f32.gmra.mrb[0].mxu0 %v3838
        %v3981 = vpop.f32.mrb[0].mxu0
        %v3982 = vadd.f32 1e-09, %v3981
        %v3983 = vpop.f32.mrb[0].mxu0
        %3984 = vdwg.mxu0
        %v3985 = vrsqrt.pop %v3907
        %v3986 = vrsqrt.pop %v3912
        %v3987 = vrsqrt.pop %v3917
        %v3988 = vrsqrt.pop %v3922
        %v3989 = vrsqrt.pop %v3927
        %v3990 = vrsqrt.pop %v3932
        %v3991 = vrsqrt.pop %v3937
        %v3992 = vrsqrt.pop %v3942
        %v3993 = vrsqrt.pop %v3947
        %v3994 = vrsqrt.pop %v3952
        %v3995 = vrsqrt.pop %v3957
        %v3996 = vrsqrt.pop %v3962
        %v3997 = vrsqrt.pop %v3967
        %v3998 = vrsqrt.pop %v3972
        %v3999 = vrsqrt.pop %v3977
        %v4000 = vrsqrt.pop %v3982
        %v4001 = vmul.f32 %v3760, %v3985
        %v4002 = vmul.f32 %v3761, %v3986
        %v4003 = vmul.f32 %v3762, %v3987
        %v4004 = vmul.f32 %v3763, %v3988
        %v4005 = vmul.f32 %v3764, %v3989
        %v4006 = vmul.f32 %v3765, %v3990
        %v4007 = vmul.f32 %v3766, %v3991
        %v4008 = vmul.f32 %v3767, %v3992
        %v4009 = vmul.f32 %v3768, %v3993
        %v4010 = vmul.f32 %v3769, %v3994
        %v4011 = vmul.f32 %v3770, %v3995
        %v4012 = vmul.f32 %v3771, %v3996
        %v4013 = vmul.f32 %v3772, %v3997
        %v4014 = vmul.f32 %v3773, %v3998
        %v4015 = vmul.f32 %v3774, %v3999
        %v4016 = vmul.f32 %v3775, %v4000
        %v4017 = vlaneseq
        %v4018 = vshrl.u32 %v4017, 7
        %v4019 = vsub.s32 0, %v4018
        %v4020 = vrot.slane %v3564, %v4019
        %v4021 = vmul.f32 %v4001, %v4020
        %v4022 = vmul.f32 %v4002, %v4020
        %v4023 = vmul.f32 %v4003, %v4020
        %v4024 = vmul.f32 %v4004, %v4020
        %v4025 = vmul.f32 %v4005, %v4020
        %v4026 = vmul.f32 %v4006, %v4020
        %v4027 = vmul.f32 %v4007, %v4020
        %v4028 = vmul.f32 %v4008, %v4020
        %v4029 = vmul.f32 %v4009, %v4020
        %v4030 = vmul.f32 %v4010, %v4020
        %v4031 = vmul.f32 %v4011, %v4020
        %v4032 = vmul.f32 %v4012, %v4020
        %v4033 = vmul.f32 %v4013, %v4020
        %v4034 = vmul.f32 %v4014, %v4020
        %v4035 = vmul.f32 %v4015, %v4020
        %v4036 = vmul.f32 %v4016, %v4020
        %v4037 = vlaneseq
        %v4038 = vshrl.u32 %v4037, 7
        %v4039 = vsub.s32 0, %v4038
        %v4040 = vrot.slane %v3565, %v4039
        %v4041 = vadd.f32 %v4021, %v4040
        %v4042 = vadd.f32 %v4022, %v4040
        %v4043 = vadd.f32 %v4023, %v4040
        %v4044 = vadd.f32 %v4024, %v4040
        %v4045 = vadd.f32 %v4025, %v4040
        %v4046 = vadd.f32 %v4026, %v4040
        %v4047 = vadd.f32 %v4027, %v4040
        %v4048 = vadd.f32 %v4028, %v4040
        %v4049 = vadd.f32 %v4029, %v4040
        %v4050 = vadd.f32 %v4030, %v4040
        %v4051 = vadd.f32 %v4031, %v4040
        %v4052 = vadd.f32 %v4032, %v4040
        %v4053 = vadd.f32 %v4033, %v4040
        %v4054 = vadd.f32 %v4034, %v4040
        %v4055 = vadd.f32 %v4035, %v4040
        %v4056 = vadd.f32 %v4036, %v4040
        %v4057 = vld [vmem:[%s7 + $0x1] sm:$0x1]
        %v4058 = vld [vmem:[%s8 + $0x1] sm:$0x1]
        %v4060 = vsel %vm3566, %v3528, 0
        %v4063 = vsel %vm3566, %v3529, 0
        %v4066 = vsel %vm3566, %v3530, 0
        %v4069 = vsel %vm3566, %v3531, 0
        %v4072 = vsel %vm3566, %v3532, 0
        %v4075 = vsel %vm3566, %v3533, 0
        %v4078 = vsel %vm3566, %v3534, 0
        %v4081 = vsel %vm3566, %v3535, 0
        %v4084 = vsel %vm3566, %v3536, 0
        %v4087 = vsel %vm3566, %v3537, 0
        %v4090 = vsel %vm3566, %v3538, 0
        %v4093 = vsel %vm3566, %v3539, 0
        %v4096 = vsel %vm3566, %v3540, 0
        %v4099 = vsel %vm3566, %v3541, 0
        %v4102 = vsel %vm3566, %v3542, 0
        %v4105 = vsel %vm3566, %v3543, 0
        %4107 = vmatprep.subr.mxu0 0.0
        %4108 = vmatpush1.msra.mxu0 %v3560
        %4109 = vmatprep.subr.mxu0 0.0
        %4110 = vmatpush1.msra.mxu0 %v3561
        %4111 = vmatprep.subr.mxu0 0.0
        %4112 = vmatpush1.msra.mxu0 %v3562
        %4113 = vmatprep.subr.mxu0 0.0
        %4114 = vmatpush1.msra.mxu0 %v3563
        %4115 = vmatprep.subr.mxu0 0.0
        %4116 = vmatpush1.msra.mxu0 0.0
        %4117 = vmatprep.subr.mxu0 0.0
        %4118 = vmatpush1.msra.mxu0 0.0
        %4119 = vmatprep.subr.mxu0 0.0
        %4120 = vmatpush1.msra.mxu0 0.0
        %4121 = vmatprep.subr.mxu0 0.0
        %4122 = vmatpush1.msra.mxu0 0.0
        %4123 = vmatprep.subr.mxu0 0.0
        %4124 = vmatpush1.msra.mxu0 0.0
        %4125 = vmatprep.subr.mxu0 0.0
        %4126 = vmatpush1.msra.mxu0 0.0
        %4127 = vmatprep.subr.mxu0 0.0
        %4128 = vmatpush1.msra.mxu0 0.0
        %4129 = vmatprep.subr.mxu0 0.0
        %4130 = vmatpush1.msra.mxu0 0.0
        %4131 = vmatprep.subr.mxu0 0.0
        %4132 = vmatpush1.msra.mxu0 0.0
        %4133 = vmatprep.subr.mxu0 0.0
        %4134 = vmatpush1.msra.mxu0 0.0
        %4135 = vmatprep.subr.mxu0 0.0
        %4136 = vmatpush1.msra.mxu0 0.0
        %4137 = vmatprep.subr.mxu0 0.0
        %4138 = vmatpush1.msra.mxu0 0.0
        %4139 = vmatprep.subr.mxu0 0.0
        %4140 = vmatpush1.msra.mxu0 0.0
        %4141 = vmatprep.subr.mxu0 0.0
        %4142 = vmatpush1.msra.mxu0 0.0
        %4143 = vmatprep.subr.mxu0 0.0
        %4144 = vmatpush1.msra.mxu0 0.0
        %4145 = vmatprep.subr.mxu0 0.0
        %4146 = vmatpush1.msra.mxu0 0.0
        %4147 = vmatprep.subr.mxu0 0.0
        %4148 = vmatpush1.msra.mxu0 0.0
        %4149 = vmatprep.subr.mxu0 0.0
        %4150 = vmatpush1.msra.mxu0 0.0
        %4151 = vmatprep.subr.mxu0 0.0
        %4152 = vmatpush1.msra.mxu0 0.0
        %4153 = vmatprep.subr.mxu0 0.0
        %4154 = vmatpush1.msra.mxu0 0.0
        %4155 = vmatprep.subr.mxu0 0.0
        %4156 = vmatpush1.msra.mxu0 0.0
        %4157 = vmatprep.subr.mxu0 0.0
        %4158 = vmatpush1.msra.mxu0 0.0
        %4159 = vmatprep.subr.mxu0 0.0
        %4160 = vmatpush1.msra.mxu0 0.0
        %4161 = vmatprep.subr.mxu0 0.0
        %4162 = vmatpush1.msra.mxu0 0.0
        %4163 = vmatprep.subr.mxu0 0.0
        %4164 = vmatpush1.msra.mxu0 0.0
        %4165 = vmatprep.subr.mxu0 0.0
        %4166 = vmatpush1.msra.mxu0 0.0
        %4167 = vmatprep.subr.mxu0 0.0
        %4168 = vmatpush1.msra.mxu0 0.0
        %4169 = vmatprep.subr.mxu0 0.0
        %4170 = vmatpush1.msra.mxu0 0.0
        %4171 = vmatprep.mubr.f32.mxu0 0.0
        %4172 = vmatmul.mubr.f32.gmra.mrb[0].mxu0 %v4060
        %v4173 = vpop.f32.mrb[0].mxu0
        %v4174 = vadd.f32 0.0, %v4173
        %v4175 = vpop.f32.mrb[0].mxu0
        %4176 = vmatprep.mubr.f32.mxu0 0.0
        %4177 = vmatmul.mubr.f32.gmra.mrb[0].mxu0 %v4063
        %v4178 = vpop.f32.mrb[0].mxu0
        %v4179 = vadd.f32 0.0, %v4178
        %v4180 = vpop.f32.mrb[0].mxu0
        %4181 = vmatprep.mubr.f32.mxu0 0.0
        %4182 = vmatmul.mubr.f32.gmra.mrb[0].mxu0 %v4066
        %v4183 = vpop.f32.mrb[0].mxu0
        %v4184 = vadd.f32 0.0, %v4183
        %v4185 = vpop.f32.mrb[0].mxu0
        %4186 = vmatprep.mubr.f32.mxu0 0.0
        %4187 = vmatmul.mubr.f32.gmra.mrb[0].mxu0 %v4069
        %v4188 = vpop.f32.mrb[0].mxu0
        %v4189 = vadd.f32 0.0, %v4188
        %v4190 = vpop.f32.mrb[0].mxu0
        %4191 = vmatprep.mubr.f32.mxu0 0.0
        %4192 = vmatmul.mubr.f32.gmra.mrb[0].mxu0 %v4072
        %v4193 = vpop.f32.mrb[0].mxu0
        %v4194 = vadd.f32 0.0, %v4193
        %v4195 = vpop.f32.mrb[0].mxu0
        %4196 = vmatprep.mubr.f32.mxu0 0.0
        %4197 = vmatmul.mubr.f32.gmra.mrb[0].mxu0 %v4075
        %v4198 = vpop.f32.mrb[0].mxu0
        %v4199 = vadd.f32 0.0, %v4198
        %v4200 = vpop.f32.mrb[0].mxu0
        %4201 = vmatprep.mubr.f32.mxu0 0.0
        %4202 = vmatmul.mubr.f32.gmra.mrb[0].mxu0 %v4078
        %v4203 = vpop.f32.mrb[0].mxu0
        %v4204 = vadd.f32 0.0, %v4203
        %v4205 = vpop.f32.mrb[0].mxu0
        %4206 = vmatprep.mubr.f32.mxu0 0.0
        %4207 = vmatmul.mubr.f32.gmra.mrb[0].mxu0 %v4081
        %v4208 = vpop.f32.mrb[0].mxu0
        %v4209 = vadd.f32 0.0, %v4208
        %v4210 = vpop.f32.mrb[0].mxu0
        %4211 = vmatprep.mubr.f32.mxu0 0.0
        %4212 = vmatmul.mubr.f32.gmra.mrb[0].mxu0 %v4084
        %v4213 = vpop.f32.mrb[0].mxu0
        %v4214 = vadd.f32 0.0, %v4213
        %v4215 = vpop.f32.mrb[0].mxu0
        %4216 = vmatprep.mubr.f32.mxu0 0.0
        %4217 = vmatmul.mubr.f32.gmra.mrb[0].mxu0 %v4087
        %v4218 = vpop.f32.mrb[0].mxu0
        %v4219 = vadd.f32 0.0, %v4218
        %v4220 = vpop.f32.mrb[0].mxu0
        %4221 = vmatprep.mubr.f32.mxu0 0.0
        %4222 = vmatmul.mubr.f32.gmra.mrb[0].mxu0 %v4090
        %v4223 = vpop.f32.mrb[0].mxu0
        %v4224 = vadd.f32 0.0, %v4223
        %v4225 = vpop.f32.mrb[0].mxu0
        %4226 = vmatprep.mubr.f32.mxu0 0.0
        %4227 = vmatmul.mubr.f32.gmra.mrb[0].mxu0 %v4093
        %v4228 = vpop.f32.mrb[0].mxu0
        %v4229 = vadd.f32 0.0, %v4228
        %v4230 = vpop.f32.mrb[0].mxu0
        %4231 = vmatprep.mubr.f32.mxu0 0.0
        %4232 = vmatmul.mubr.f32.gmra.mrb[0].mxu0 %v4096
        %v4233 = vpop.f32.mrb[0].mxu0
        %v4234 = vadd.f32 0.0, %v4233
        %v4235 = vpop.f32.mrb[0].mxu0
        %4236 = vmatprep.mubr.f32.mxu0 0.0
        %4237 = vmatmul.mubr.f32.gmra.mrb[0].mxu0 %v4099
        %v4238 = vpop.f32.mrb[0].mxu0
        %v4239 = vadd.f32 0.0, %v4238
        %v4240 = vpop.f32.mrb[0].mxu0
        %4241 = vmatprep.mubr.f32.mxu0 0.0
        %4242 = vmatmul.mubr.f32.gmra.mrb[0].mxu0 %v4102
        %v4243 = vpop.f32.mrb[0].mxu0
        %v4244 = vadd.f32 0.0, %v4243
        %v4245 = vpop.f32.mrb[0].mxu0
        %4246 = vmatprep.mubr.f32.mxu0 0.0
        %4247 = vmatmul.mubr.f32.gmra.mrb[0].mxu0 %v4105
        %v4248 = vpop.f32.mrb[0].mxu0
        %v4249 = vadd.f32 0.0, %v4248
        %v4250 = vpop.f32.mrb[0].mxu0
        %4251 = vdwg.mxu0
        %v4252 = vsub.f32 %v3528, %v4174
        %v4253 = vsub.f32 %v3529, %v4179
        %v4254 = vsub.f32 %v3530, %v4184
        %v4255 = vsub.f32 %v3531, %v4189
        %v4256 = vsub.f32 %v3532, %v4194
        %v4257 = vsub.f32 %v3533, %v4199
        %v4258 = vsub.f32 %v3534, %v4204
        %v4259 = vsub.f32 %v3535, %v4209
        %v4260 = vsub.f32 %v3536, %v4214
        %v4261 = vsub.f32 %v3537, %v4219
        %v4262 = vsub.f32 %v3538, %v4224
        %v4263 = vsub.f32 %v3539, %v4229
        %v4264 = vsub.f32 %v3540, %v4234
        %v4265 = vsub.f32 %v3541, %v4239
        %v4266 = vsub.f32 %v3542, %v4244
        %v4267 = vsub.f32 %v3543, %v4249
        %v4268 = vmul.f32 %v4252, %v4252
        %v4269 = vmul.f32 %v4253, %v4253
        %v4270 = vmul.f32 %v4254, %v4254
        %v4271 = vmul.f32 %v4255, %v4255
        %v4272 = vmul.f32 %v4256, %v4256
        %v4273 = vmul.f32 %v4257, %v4257
        %v4274 = vmul.f32 %v4258, %v4258
        %v4275 = vmul.f32 %v4259, %v4259
        %v4276 = vmul.f32 %v4260, %v4260
        %v4277 = vmul.f32 %v4261, %v4261
        %v4278 = vmul.f32 %v4262, %v4262
        %v4279 = vmul.f32 %v4263, %v4263
        %v4280 = vmul.f32 %v4264, %v4264
        %v4281 = vmul.f32 %v4265, %v4265
        %v4282 = vmul.f32 %v4266, %v4266
        %v4283 = vmul.f32 %v4267, %v4267
        %v4285 = vsel %vm3566, %v4268, 0
        %v4288 = vsel %vm3566, %v4269, 0
        %v4291 = vsel %vm3566, %v4270, 0
        %v4294 = vsel %vm3566, %v4271, 0
        %v4297 = vsel %vm3566, %v4272, 0
        %v4300 = vsel %vm3566, %v4273, 0
        %v4303 = vsel %vm3566, %v4274, 0
        %v4306 = vsel %vm3566, %v4275, 0
        %v4309 = vsel %vm3566, %v4276, 0
        %v4312 = vsel %vm3566, %v4277, 0
        %v4315 = vsel %vm3566, %v4278, 0
        %v4318 = vsel %vm3566, %v4279, 0
        %v4321 = vsel %vm3566, %v4280, 0
        %v4324 = vsel %vm3566, %v4281, 0
        %v4327 = vsel %vm3566, %v4282, 0
        %v4330 = vsel %vm3566, %v4283, 0
        %4332 = vmatprep.subr.mxu0 0.0
        %4333 = vmatpush1.msra.mxu0 %v3560
        %4334 = vmatprep.subr.mxu0 0.0
        %4335 = vmatpush1.msra.mxu0 %v3561
        %4336 = vmatprep.subr.mxu0 0.0
        %4337 = vmatpush1.msra.mxu0 %v3562
        %4338 = vmatprep.subr.mxu0 0.0
        %4339 = vmatpush1.msra.mxu0 %v3563
        %4340 = vmatprep.subr.mxu0 0.0
        %4341 = vmatpush1.msra.mxu0 0.0
        %4342 = vmatprep.subr.mxu0 0.0
        %4343 = vmatpush1.msra.mxu0 0.0
        %4344 = vmatprep.subr.mxu0 0.0
        %4345 = vmatpush1.msra.mxu0 0.0
        %4346 = vmatprep.subr.mxu0 0.0
        %4347 = vmatpush1.msra.mxu0 0.0
        %4348 = vmatprep.subr.mxu0 0.0
        %4349 = vmatpush1.msra.mxu0 0.0
        %4350 = vmatprep.subr.mxu0 0.0
        %4351 = vmatpush1.msra.mxu0 0.0
        %4352 = vmatprep.subr.mxu0 0.0
        %4353 = vmatpush1.msra.mxu0 0.0
        %4354 = vmatprep.subr.mxu0 0.0
        %4355 = vmatpush1.msra.mxu0 0.0
        %4356 = vmatprep.subr.mxu0 0.0
        %4357 = vmatpush1.msra.mxu0 0.0
        %4358 = vmatprep.subr.mxu0 0.0
        %4359 = vmatpush1.msra.mxu0 0.0
        %4360 = vmatprep.subr.mxu0 0.0
        %4361 = vmatpush1.msra.mxu0 0.0
        %4362 = vmatprep.subr.mxu0 0.0
        %4363 = vmatpush1.msra.mxu0 0.0
        %4364 = vmatprep.subr.mxu0 0.0
        %4365 = vmatpush1.msra.mxu0 0.0
        %4366 = vmatprep.subr.mxu0 0.0
        %4367 = vmatpush1.msra.mxu0 0.0
        %4368 = vmatprep.subr.mxu0 0.0
        %4369 = vmatpush1.msra.mxu0 0.0
        %4370 = vmatprep.subr.mxu0 0.0
        %4371 = vmatpush1.msra.mxu0 0.0
        %4372 = vmatprep.subr.mxu0 0.0
        %4373 = vmatpush1.msra.mxu0 0.0
        %4374 = vmatprep.subr.mxu0 0.0
        %4375 = vmatpush1.msra.mxu0 0.0
        %4376 = vmatprep.subr.mxu0 0.0
        %4377 = vmatpush1.msra.mxu0 0.0
        %4378 = vmatprep.subr.mxu0 0.0
        %4379 = vmatpush1.msra.mxu0 0.0
        %4380 = vmatprep.subr.mxu0 0.0
        %4381 = vmatpush1.msra.mxu0 0.0
        %4382 = vmatprep.subr.mxu0 0.0
        %4383 = vmatpush1.msra.mxu0 0.0
        %4384 = vmatprep.subr.mxu0 0.0
        %4385 = vmatpush1.msra.mxu0 0.0
        %4386 = vmatprep.subr.mxu0 0.0
        %4387 = vmatpush1.msra.mxu0 0.0
        %4388 = vmatprep.subr.mxu0 0.0
        %4389 = vmatpush1.msra.mxu0 0.0
        %4390 = vmatprep.subr.mxu0 0.0
        %4391 = vmatpush1.msra.mxu0 0.0
        %4392 = vmatprep.subr.mxu0 0.0
        %4393 = vmatpush1.msra.mxu0 0.0
        %4394 = vmatprep.subr.mxu0 0.0
        %4395 = vmatpush1.msra.mxu0 0.0
        %4396 = vmatprep.mubr.f32.mxu0 0.0
        %4397 = vmatmul.mubr.f32.gmra.mrb[0].mxu0 %v4285
        %v4398 = vpop.f32.mrb[0].mxu0
        %v4399 = vadd.f32 1e-09, %v4398
        %v4400 = vpop.f32.mrb[0].mxu0
        %4401 = vmatprep.mubr.f32.mxu0 0.0
        %4402 = vmatmul.mubr.f32.gmra.mrb[0].mxu0 %v4288
        %v4403 = vpop.f32.mrb[0].mxu0
        %v4404 = vadd.f32 1e-09, %v4403
        %v4405 = vpop.f32.mrb[0].mxu0
        %4406 = vmatprep.mubr.f32.mxu0 0.0
        %4407 = vmatmul.mubr.f32.gmra.mrb[0].mxu0 %v4291
        %v4408 = vpop.f32.mrb[0].mxu0
        %v4409 = vadd.f32 1e-09, %v4408
        %v4410 = vpop.f32.mrb[0].mxu0
        %4411 = vmatprep.mubr.f32.mxu0 0.0
        %4412 = vmatmul.mubr.f32.gmra.mrb[0].mxu0 %v4294
        %v4413 = vpop.f32.mrb[0].mxu0
        %v4414 = vadd.f32 1e-09, %v4413
        %v4415 = vpop.f32.mrb[0].mxu0
        %4416 = vmatprep.mubr.f32.mxu0 0.0
        %4417 = vmatmul.mubr.f32.gmra.mrb[0].mxu0 %v4297
        %v4418 = vpop.f32.mrb[0].mxu0
        %v4419 = vadd.f32 1e-09, %v4418
        %v4420 = vpop.f32.mrb[0].mxu0
        %4421 = vmatprep.mubr.f32.mxu0 0.0
        %4422 = vmatmul.mubr.f32.gmra.mrb[0].mxu0 %v4300
        %v4423 = vpop.f32.mrb[0].mxu0
        %v4424 = vadd.f32 1e-09, %v4423
        %v4425 = vpop.f32.mrb[0].mxu0
        %4426 = vmatprep.mubr.f32.mxu0 0.0
        %4427 = vmatmul.mubr.f32.gmra.mrb[0].mxu0 %v4303
        %v4428 = vpop.f32.mrb[0].mxu0
        %v4429 = vadd.f32 1e-09, %v4428
        %v4430 = vpop.f32.mrb[0].mxu0
        %4431 = vmatprep.mubr.f32.mxu0 0.0
        %4432 = vmatmul.mubr.f32.gmra.mrb[0].mxu0 %v4306
        %v4433 = vpop.f32.mrb[0].mxu0
        %v4434 = vadd.f32 1e-09, %v4433
        %v4435 = vpop.f32.mrb[0].mxu0
        %4436 = vmatprep.mubr.f32.mxu0 0.0
        %4437 = vmatmul.mubr.f32.gmra.mrb[0].mxu0 %v4309
        %v4438 = vpop.f32.mrb[0].mxu0
        %v4439 = vadd.f32 1e-09, %v4438
        %v4440 = vpop.f32.mrb[0].mxu0
        %4441 = vmatprep.mubr.f32.mxu0 0.0
        %4442 = vmatmul.mubr.f32.gmra.mrb[0].mxu0 %v4312
        %v4443 = vpop.f32.mrb[0].mxu0
        %v4444 = vadd.f32 1e-09, %v4443
        %v4445 = vpop.f32.mrb[0].mxu0
        %4446 = vmatprep.mubr.f32.mxu0 0.0
        %4447 = vmatmul.mubr.f32.gmra.mrb[0].mxu0 %v4315
        %v4448 = vpop.f32.mrb[0].mxu0
        %v4449 = vadd.f32 1e-09, %v4448
        %v4450 = vpop.f32.mrb[0].mxu0
        %4451 = vmatprep.mubr.f32.mxu0 0.0
        %4452 = vmatmul.mubr.f32.gmra.mrb[0].mxu0 %v4318
        %v4453 = vpop.f32.mrb[0].mxu0
        %v4454 = vadd.f32 1e-09, %v4453
        %v4455 = vpop.f32.mrb[0].mxu0
        %4456 = vmatprep.mubr.f32.mxu0 0.0
        %4457 = vmatmul.mubr.f32.gmra.mrb[0].mxu0 %v4321
        %v4458 = vpop.f32.mrb[0].mxu0
        %v4459 = vadd.f32 1e-09, %v4458
        %v4460 = vpop.f32.mrb[0].mxu0
        %4461 = vmatprep.mubr.f32.mxu0 0.0
        %4462 = vmatmul.mubr.f32.gmra.mrb[0].mxu0 %v4324
        %v4463 = vpop.f32.mrb[0].mxu0
        %v4464 = vadd.f32 1e-09, %v4463
        %v4465 = vpop.f32.mrb[0].mxu0
        %4466 = vmatprep.mubr.f32.mxu0 0.0
        %4467 = vmatmul.mubr.f32.gmra.mrb[0].mxu0 %v4327
        %v4468 = vpop.f32.mrb[0].mxu0
        %v4469 = vadd.f32 1e-09, %v4468
        %v4470 = vpop.f32.mrb[0].mxu0
        %4471 = vmatprep.mubr.f32.mxu0 0.0
        %4472 = vmatmul.mubr.f32.gmra.mrb[0].mxu0 %v4330
        %v4473 = vpop.f32.mrb[0].mxu0
        %v4474 = vadd.f32 1e-09, %v4473
        %v4475 = vpop.f32.mrb[0].mxu0
        %4476 = vdwg.mxu0
        %v4477 = vrsqrt.pop %v4399
        %v4478 = vrsqrt.pop %v4404
        %v4479 = vrsqrt.pop %v4409
        %v4480 = vrsqrt.pop %v4414
        %v4481 = vrsqrt.pop %v4419
        %v4482 = vrsqrt.pop %v4424
        %v4483 = vrsqrt.pop %v4429
        %v4484 = vrsqrt.pop %v4434
        %v4485 = vrsqrt.pop %v4439
        %v4486 = vrsqrt.pop %v4444
        %v4487 = vrsqrt.pop %v4449
        %v4488 = vrsqrt.pop %v4454
        %v4489 = vrsqrt.pop %v4459
        %v4490 = vrsqrt.pop %v4464
        %v4491 = vrsqrt.pop %v4469
        %v4492 = vrsqrt.pop %v4474
        %v4493 = vmul.f32 %v4252, %v4477
        %v4494 = vmul.f32 %v4253, %v4478
        %v4495 = vmul.f32 %v4254, %v4479
        %v4496 = vmul.f32 %v4255, %v4480
        %v4497 = vmul.f32 %v4256, %v4481
        %v4498 = vmul.f32 %v4257, %v4482
        %v4499 = vmul.f32 %v4258, %v4483
        %v4500 = vmul.f32 %v4259, %v4484
        %v4501 = vmul.f32 %v4260, %v4485
        %v4502 = vmul.f32 %v4261, %v4486
        %v4503 = vmul.f32 %v4262, %v4487
        %v4504 = vmul.f32 %v4263, %v4488
        %v4505 = vmul.f32 %v4264, %v4489
        %v4506 = vmul.f32 %v4265, %v4490
        %v4507 = vmul.f32 %v4266, %v4491
        %v4508 = vmul.f32 %v4267, %v4492
        %v4509 = vlaneseq
        %v4510 = vshrl.u32 %v4509, 7
        %v4511 = vsub.s32 0, %v4510
        %v4512 = vrot.slane %v4057, %v4511
        %v4513 = vmul.f32 %v4493, %v4512
        %v4514 = vmul.f32 %v4494, %v4512
        %v4515 = vmul.f32 %v4495, %v4512
        %v4516 = vmul.f32 %v4496, %v4512
        %v4517 = vmul.f32 %v4497, %v4512
        %v4518 = vmul.f32 %v4498, %v4512
        %v4519 = vmul.f32 %v4499, %v4512
        %v4520 = vmul.f32 %v4500, %v4512
        %v4521 = vmul.f32 %v4501, %v4512
        %v4522 = vmul.f32 %v4502, %v4512
        %v4523 = vmul.f32 %v4503, %v4512
        %v4524 = vmul.f32 %v4504, %v4512
        %v4525 = vmul.f32 %v4505, %v4512
        %v4526 = vmul.f32 %v4506, %v4512
        %v4527 = vmul.f32 %v4507, %v4512
        %v4528 = vmul.f32 %v4508, %v4512
        %v4529 = vlaneseq
        %v4530 = vshrl.u32 %v4529, 7
        %v4531 = vsub.s32 0, %v4530
        %v4532 = vrot.slane %v4058, %v4531
        %v4533 = vadd.f32 %v4513, %v4532
        %v4534 = vadd.f32 %v4514, %v4532
        %v4535 = vadd.f32 %v4515, %v4532
        %v4536 = vadd.f32 %v4516, %v4532
        %v4537 = vadd.f32 %v4517, %v4532
        %v4538 = vadd.f32 %v4518, %v4532
        %v4539 = vadd.f32 %v4519, %v4532
        %v4540 = vadd.f32 %v4520, %v4532
        %v4541 = vadd.f32 %v4521, %v4532
        %v4542 = vadd.f32 %v4522, %v4532
        %v4543 = vadd.f32 %v4523, %v4532
        %v4544 = vadd.f32 %v4524, %v4532
        %v4545 = vadd.f32 %v4525, %v4532
        %v4546 = vadd.f32 %v4526, %v4532
        %v4547 = vadd.f32 %v4527, %v4532
        %v4548 = vadd.f32 %v4528, %v4532
        %v4549 = vadd.f32 %v4041, %v4533
        %v4550 = vadd.f32 %v4042, %v4534
        %v4551 = vadd.f32 %v4043, %v4535
        %v4552 = vadd.f32 %v4044, %v4536
        %v4553 = vadd.f32 %v4045, %v4537
        %v4554 = vadd.f32 %v4046, %v4538
        %v4555 = vadd.f32 %v4047, %v4539
        %v4556 = vadd.f32 %v4048, %v4540
        %v4557 = vadd.f32 %v4049, %v4541
        %v4558 = vadd.f32 %v4050, %v4542
        %v4559 = vadd.f32 %v4051, %v4543
        %v4560 = vadd.f32 %v4052, %v4544
        %v4561 = vadd.f32 %v4053, %v4545
        %v4562 = vadd.f32 %v4054, %v4546
        %v4563 = vadd.f32 %v4055, %v4547
        %v4564 = vadd.f32 %v4056, %v4548
        %v4565 = vmul.f32 %v4549, 0.5
        %v4566 = vmul.f32 %v4550, 0.5
        %v4567 = vmul.f32 %v4551, 0.5
        %v4568 = vmul.f32 %v4552, 0.5
        %v4569 = vmul.f32 %v4553, 0.5
        %v4570 = vmul.f32 %v4554, 0.5
        %v4571 = vmul.f32 %v4555, 0.5
        %v4572 = vmul.f32 %v4556, 0.5
        %v4573 = vmul.f32 %v4557, 0.5
        %v4574 = vmul.f32 %v4558, 0.5
        %v4575 = vmul.f32 %v4559, 0.5
        %v4576 = vmul.f32 %v4560, 0.5
        %v4577 = vmul.f32 %v4561, 0.5
        %v4578 = vmul.f32 %v4562, 0.5
        %v4579 = vmul.f32 %v4563, 0.5
        %v4580 = vmul.f32 %v4564, 0.5
        %4581 = vst.msk [vmem:[%s480] sm:$0xff] %vm3566, %v4565
        %4582 = vst.msk [vmem:[%s480 + $0x8] sm:$0xff] %vm3566, %v4566
        %4583 = vst.msk [vmem:[%s480 + $0x10] sm:$0xff] %vm3566, %v4567
        %4584 = vst.msk [vmem:[%s480 + $0x18] sm:$0xff] %vm3566, %v4568
        %4585 = vst.msk [vmem:[%s480 + $0x20] sm:$0xff] %vm3566, %v4569
        %4586 = vst.msk [vmem:[%s480 + $0x28] sm:$0xff] %vm3566, %v4570
        %4587 = vst.msk [vmem:[%s480 + $0x30] sm:$0xff] %vm3566, %v4571
        %4588 = vst.msk [vmem:[%s480 + $0x38] sm:$0xff] %vm3566, %v4572
        %4589 = vst.msk [vmem:[%s480 + $0x40] sm:$0xff] %vm3566, %v4573
        %4590 = vst.msk [vmem:[%s480 + $0x48] sm:$0xff] %vm3566, %v4574
        %4591 = vst.msk [vmem:[%s480 + $0x50] sm:$0xff] %vm3566, %v4575
        %4592 = vst.msk [vmem:[%s480 + $0x58] sm:$0xff] %vm3566, %v4576
        %4593 = vst.msk [vmem:[%s480 + $0x60] sm:$0xff] %vm3566, %v4577
        %4594 = vst.msk [vmem:[%s480 + $0x68] sm:$0xff] %vm3566, %v4578
        %4595 = vst.msk [vmem:[%s480 + $0x70] sm:$0xff] %vm3566, %v4579
        %4596 = vst.msk [vmem:[%s480 + $0x78] sm:$0xff] %vm3566, %v4580
      $region64: #{gat_forward.3} parent=51 // pred_fallthru
        _
      %s4597 = smul.u32 16, %s35
      %p4598 = scmp.lt.s32.totalorder %s4597, 63
      %s4599 = scalar_select %p4598, %s4597, 63
      %s4600 = smul.addr %s4599, 8
      %s4601 = scalar_lea.vmem %s10, %s4600
      // Predicated region
      $region65: #{gat_forward.3} parent=51 // pred_check
        %p4602 = pneg %p268
      $region66: #{gat_forward.3} parent=51 // pred_check_branch
        %4604 = sbr.rel (%p4602) target = $region68
      $region67: #{gat_forward.3} parent=51 // pred_region
        %s4605 = smul.u32 16, %s35
      $region68: #{gat_forward.3} parent=51 // pred_fallthru
        _
    $region52: #{gat_forward.3} parent=5 // pred_fallthru
      _
    %p4606 = scmp.le.s32.totalorder 2, %s26
    // Predicated region
    $region69: #{gat_forward.3} parent=5 // pred_check
      %p4607 = pneg %p4606
    $region70: #{gat_forward.3} parent=5 // pred_check_branch
      %4609 = sbr.rel (%p4607) target = $region72
    $region71: #{gat_forward.3} parent=5 // pred_region
      %s4610 = ssub.s32 %s26, 2
      // Predicated region
      $region73: #{gat_forward.3} parent=71 // pred_check
        %p4611 = pneg %p274
      $region74: #{gat_forward.3} parent=71 // pred_check_branch
        %4613 = sbr.rel (%p4611) target = $region76
      $region75: #{gat_forward.3} parent=71 // pred_region
        %s4614 = smul.u32 16, %s37
        %p4615 = scmp.lt.s32.totalorder %s4614, 63
        %s4616 = scalar_select %p4615, %s4614, 63
        %s4617 = smul.addr %s4616, 8
        %s4618 = scalar_lea.vmem %s10, %s4617
      $region76: #{gat_forward.3} parent=71 // pred_fallthru
        _
    $region72: #{gat_forward.3} parent=5 // pred_fallthru
      _
  $region6: #{gat_forward.3} parent=0 // loop_footer
    %s30 = sadd.s32 1, %s26
  $region7: #{gat_forward.3} parent=0 // loop_footer_branch
    %25 = sbr.rel target = $region3
  $region8: #{gat_forward.3} parent=0 // loop_exit
    _

</llo_original>
